<compile_context>
chip_gen: v5e
topology: v5e:2x2
jax: 0.10.0
libtpu: 0.0.40
codegen_flags: <defaults>
</compile_context>

<pallas_src>
import functools

import jax
import jax.numpy as jnp
from jax.experimental import pallas as pl
from jax.experimental.pallas import tpu as pltpu


# ----------------------------- helpers ---------------------------------------

def _make_divisible(v, divisor=8):
    new_v = max(divisor, int(v + divisor / 2) // divisor * divisor)
    if new_v < 0.9 * v:
        new_v += divisor
    return new_v


def _hardswish(x):
    return x * jnp.clip(x + 3.0, 0.0, 6.0) * (1.0 / 6.0)


def _relu(x):
    return jnp.maximum(x, 0.0)


def _hardsigmoid(x):
    return jnp.clip(x + 3.0, 0.0, 6.0) * (1.0 / 6.0)


def _bn_fold(gamma, beta, mean, var, eps):
    s = gamma * jax.lax.rsqrt(var + eps)
    return s, beta - mean * s


def _dot(a, b):
    # bf16 MXU operands, f32 accumulation.
    return jnp.dot(a.astype(jnp.bfloat16), b, preferred_element_type=jnp.float32)


# ----------------------------- fused Pallas kernel ----------------------------

def _fused_ir_kernel(*refs, W, K, P, act, has_expand, use_se, add_residual):
    it = iter(refs)
    x_ref = next(it)
    if has_expand:
        w1_ref, b1_ref = next(it), next(it)
    kw_ref, b2_ref = next(it), next(it)
    if use_se:
        wse1_ref, bse1_ref = next(it), next(it)
        wse2_ref, bse2_ref = next(it), next(it)
    w3_ref, b3_ref = next(it), next(it)
    o_ref = next(it)
    pad_ref = next(it)                        # VMEM scratch (Nb, H*W + 2*S, Cexp), f32

    Nb, HW, Cin = x_ref.shape
    Cexp = pad_ref.shape[-1]
    Cout = o_ref.shape[-1]
    S = P * (W + 1)                           # per-image halo rows
    M = Nb * HW

    x3 = x_ref[...]                           # (Nb, HW, Cin) f32

    # --- 1x1 expand conv + folded BN1 + activation: true (M, Cin) @ (Cin, Cexp) ---
    if has_expand:
        h = _dot(x3.reshape(M, Cin), w1_ref[...]) + b1_ref[...]
        h3 = act(h).reshape(Nb, HW, Cexp)
    else:
        h3 = x3

    # --- depthwise KxK conv via shifted sublane slices of a per-image haloed scratch
    # Only the small halo is zeroed (interior fully overwritten every step).  Re-zeroed
    # each step: under megacore "parallel" sharding every core has its own scratch, so
    # a program_id==0 guard would leave the other core's halo uninitialized.
    pad_ref[:, :S, :] = jnp.zeros((Nb, S, Cexp), jnp.float32)
    pad_ref[:, S + HW:, :] = jnp.zeros((Nb, S, Cexp), jnp.float32)
    pad_ref[:, S:S + HW, :] = h3

    # W-boundary masks (H/batch boundaries are handled by the zero halo).
    col = jax.lax.broadcasted_iota(jnp.int32, (1, HW, Cexp), 1) % W
    masks = {dx: (col + dx >= 0) & (col + dx < W)
             for dx in range(-P, P + 1) if dx != 0}

    kw = kw_ref[...]                          # (K*K, Cexp): tap weights, BN2 scale folded
    parts = []                                # K independent partial accumulators
    for dh in range(K):
        part = None
        for dw in range(K):
            shift = (dh - P) * W + (dw - P)
            v = pad_ref[:, S + shift:S + shift + HW, :] * kw[dh * K + dw]
            dx = dw - P
            if dx != 0:
                v = jnp.where(masks[dx], v, 0.0)
            part = v if part is None else part + v
        parts.append(part)
    acc = parts[0]
    for part in parts[1:]:
        acc = acc + part
    y3 = act(acc + b2_ref[...])               # (Nb, HW, Cexp), folded BN2 bias

    # --- SqueezeExcitation, fused (pooled vector never leaves the kernel) ---
    if use_se:
        pooled = jnp.sum(y3, axis=1) * (1.0 / HW)                  # (Nb, Cexp)
        z = _relu(_dot(pooled, wse1_ref[...]) + bse1_ref[...])     # (Nb, Ssq)
        ses = _hardsigmoid(_dot(z, wse2_ref[...]) + bse2_ref[...])  # (Nb, Cexp)
        y3 = y3 * ses[:, None, :]

    # --- 1x1 project conv + folded BN3 (+ residual), one store ---
    o = _dot(y3.reshape(M, Cexp), w3_ref[...]) + b3_ref[...]       # (M, Cout)
    if add_residual:
        o = o + x3.reshape(M, Cin)            # Cout == Cin -> identical layout
    o_ref[...] = o.reshape(Nb, HW, Cout).astype(o_ref.dtype)


# ----------------------------- wrapper -----------------------------------------

def inverted_residual_forward(x_nchw, params, cfg, *, bn_eps=1e-3, batch_block=None):
    """Pallas forward for InvertedResidual (eval-mode BN). Input/Output: NCHW."""
    N, Cin, H, W = x_nchw.shape
    Cexp, Cout, K = cfg["exp_channels"], cfg["out_channels"], cfg["kernel"]
    P = (K - 1) // 2
    assert cfg["stride"] == 1 and cfg["dilation"] == 1, \
        "TODO(synk): stride>1 / dilation>1 not implemented"
    has_expand = Cexp != cfg["in_channels"]
    use_se = cfg["use_se"]
    add_residual = cfg["shortcut"]
    act = _hardswish if cfg["activation"] == "HS" else _relu

    HW = H * W
    S = P * (W + 1)

    # Batch block: keep the parallel grid a multiple of 2 when N allows it (v7x has
    # two TensorCores); M = Nb*H*W >= 256 fills the MXU rows even for Nb == 1.
    if batch_block is None:
        batch_block = N // 2 if (N % 2 == 0 and N > 1) else N
    Nb = batch_block
    assert N % Nb == 0, "batch_block must divide N"
    grid = (N // Nb,)

    f32, bf16 = jnp.float32, jnp.bfloat16

    # NCHW -> (N, H*W, C): rows = (batch, spatial), lanes = channels (glue only).
    x_rows = jnp.transpose(x_nchw, (0, 2, 3, 1)).reshape(N, HW, Cin).astype(f32)

    def vec(v):                    # per-channel vector -> (1, C) f32 row (f32 epilogue add)
        return v.reshape(1, -1).astype(f32)

    def full_spec(a):              # whole (small) weight as a single resident block
        nd = a.ndim
        return pl.BlockSpec(a.shape, lambda n: (0,) * nd)

    args = [x_rows]
    if has_expand:
        s1, b1 = _bn_fold(*params["bn1"], bn_eps)
        args += [(params["w1"] * s1[:, None]).T.astype(bf16),      # (Cin, Cexp), BN folded
                 vec(b1)]
    s2, b2 = _bn_fold(*params["bn2"], bn_eps)
    kw = (params["w_dw"] * s2[:, None, None]).reshape(Cexp, K * K).T   # BN2 scale folded
    args += [kw.astype(f32), vec(b2)]
    if use_se:
        args += [params["w_fc1"].T.astype(bf16), vec(params["b_fc1"]),
                 params["w_fc2"].T.astype(bf16), vec(params["b_fc2"])]
    s3, b3 = _bn_fold(*params["bn3"], bn_eps)
    args += [(params["w3"] * s3[:, None]).T.astype(bf16),           # (Cexp, Cout), BN folded
             vec(b3)]

    in_specs = [pl.BlockSpec((Nb, HW, Cin), lambda n: (n, 0, 0))]
    in_specs += [full_spec(a) for a in args[1:]]

    kernel = functools.partial(
        _fused_ir_kernel, W=W, K=K, P=P, act=act,
        has_expand=has_expand, use_se=use_se, add_residual=add_residual)

    out = pl.pallas_call(
        kernel,
        out_shape=jax.ShapeDtypeStruct((N, HW, Cout), x_nchw.dtype),
        grid=grid,
        in_specs=in_specs,
        out_specs=pl.BlockSpec((Nb, HW, Cout), lambda n: (n, 0, 0)),
        scratch_shapes=[pltpu.VMEM((Nb, HW + 2 * S, Cexp), f32)],
        compiler_params=pltpu.CompilerParams(
            dimension_semantics=("parallel",),
            vmem_limit_bytes=32 * 1024 * 1024),
    )(*args)

    # (N, H*W, Cout) slab -> NCHW (glue only)
    return jnp.transpose(out.reshape(N, H, W, Cout), (0, 3, 1, 2))


# ----------------------------- pure-JAX reference (NCHW) ----------------------

def _reference_forward(x, p, cfg, bn_eps=1e-3):
    K = cfg["kernel"]
    P = (K - 1) // 2
    N, _, H, W = x.shape
    act = _hardswish if cfg["activation"] == "HS" else _relu
    hp_prec = jax.lax.Precision.HIGHEST

    h = x
    if cfg["exp_channels"] != cfg["in_channels"]:
        s1, b1 = _bn_fold(*p["bn1"], bn_eps)
        h = jnp.einsum("oi,nihw->nohw", p["w1"], x, precision=hp_prec)
        h = act(h * s1[None, :, None, None] + b1[None, :, None, None])

    hp = jnp.pad(h, ((0, 0), (0, 0), (P, P), (P, P)))
    acc = jnp.zeros_like(h)
    for dh in range(K):
        for dw in range(K):
            acc = acc + hp[:, :, dh:dh + H, dw:dw + W] * \
                p["w_dw"][:, dh, dw][None, :, None, None]
    s2, b2 = _bn_fold(*p["bn2"], bn_eps)
    h = act(acc * s2[None, :, None, None] + b2[None, :, None, None])

    if cfg["use_se"]:
        pooled = jnp.mean(h, axis=(2, 3))
        z = jnp.maximum(jnp.einsum("nc,sc->ns", pooled, p["w_fc1"],
                                   precision=hp_prec) + p["b_fc1"], 0.0)
        sc = _hardsigmoid(jnp.einsum("ns,cs->nc", z, p["w_fc2"],
                                     precision=hp_prec) + p["b_fc2"])
        h = h * sc[:, :, None, None]

    o = jnp.einsum("oi,nihw->nohw", p["w3"], h, precision=hp_prec)
    s3, b3 = _bn_fold(*p["bn3"], bn_eps)
    o = o * s3[None, :, None, None] + b3[None, :, None, None]
    if cfg["shortcut"]:
        o = o + x
    return o


# ----------------------------- main -------------------------------------------

if __name__ == "__main__":
    # InvertedResidual(in=16, kernel=3, exp=32, out=16, use_se=True, 'HS', stride=1, dilation=1)
    in_ch, kernel, exp_ch, out_ch = 16, 3, 32, 16
    stride, dilation = 1, 1
    cfg = dict(
        in_channels=_make_divisible(in_ch),
        exp_channels=_make_divisible(exp_ch),
        out_channels=_make_divisible(out_ch),
        kernel=kernel, use_se=True, activation="HS",
        stride=stride, dilation=dilation,
        shortcut=(stride == 1 and in_ch == out_ch),
    )
    Cin, Cexp, Cout, K = cfg["in_channels"], cfg["exp_channels"], cfg["out_channels"], kernel
    Ssq = _make_divisible(Cexp // 4, 8)

    key = jax.random.PRNGKey(0)
    ks = jax.random.split(key, 20)

    def nrm(k, shape, scale=0.1):
        return jax.random.normal(k, shape, jnp.float32) * scale

    def uni(k, shape):
        return jax.random.uniform(k, shape, jnp.float32, 0.5, 1.5)

    # parameters in PyTorch layouts (1x1 conv weights with 1x1 squeezed, depthwise
    # weight (Cexp, 1, K, K) squeezed to (Cexp, K, K)); BN = (gamma, beta, mean, var)
    params = dict(
        w1=nrm(ks[0], (Cexp, Cin)),
        bn1=(uni(ks[1], (Cexp,)), nrm(ks[2], (Cexp,)), nrm(ks[3], (Cexp,)), uni(ks[4], (Cexp,))),
        w_dw=nrm(ks[5], (Cexp, K, K)),
        bn2=(uni(ks[6], (Cexp,)), nrm(ks[7], (Cexp,)), nrm(ks[8], (Cexp,)), uni(ks[9], (Cexp,))),
        w_fc1=nrm(ks[10], (Ssq, Cexp)), b_fc1=nrm(ks[11], (Ssq,)),
        w_fc2=nrm(ks[12], (Cexp, Ssq)), b_fc2=nrm(ks[13], (Cexp,)),
        w3=nrm(ks[14], (Cout, Cexp)),
        bn3=(uni(ks[15], (Cout,)), nrm(ks[16], (Cout,)), nrm(ks[17], (Cout,)), uni(ks[18], (Cout,))),
    )

    # N=8 -> grid=(2,): even grid for the two v7x TensorCores; Nb=4 -> matmul M=1024.
    x = jax.random.normal(ks[19], (8, Cin, 16, 16), jnp.float32)   # NCHW like PyTorch

    out = jax.block_until_ready(inverted_residual_forward(x, params, cfg))
    ref = jax.block_until_ready(_reference_forward(x, params, cfg))

    assert out.shape == (8, Cout, 16, 16)
    err = float(jnp.max(jnp.abs(out - ref)))
    # bf16 MXU operands (f32 accumulation) vs. HIGHEST-precision f32 reference.
    assert jnp.allclose(out, ref, atol=3e-2, rtol=3e-2), f"max abs err {err}"

    print("KERNEL_OK")
</pallas_src>

<mosaic_0001>
module attributes {stable_mosaic.version = 11 : i64} {
  func.func @_fused_ir_kernel(%arg0: i32, %arg1: memref<4x256x16xf32, #tpu.memory_space<vmem>>, %arg2: memref<16x32xbf16, #tpu.memory_space<vmem>>, %arg3: memref<1x32xf32, #tpu.memory_space<vmem>>, %arg4: memref<9x32xf32, #tpu.memory_space<vmem>>, %arg5: memref<1x32xf32, #tpu.memory_space<vmem>>, %arg6: memref<32x8xbf16, #tpu.memory_space<vmem>>, %arg7: memref<1x8xf32, #tpu.memory_space<vmem>>, %arg8: memref<8x32xbf16, #tpu.memory_space<vmem>>, %arg9: memref<1x32xf32, #tpu.memory_space<vmem>>, %arg10: memref<32x16xbf16, #tpu.memory_space<vmem>>, %arg11: memref<1x16xf32, #tpu.memory_space<vmem>>, %arg12: memref<4x256x16xf32, #tpu.memory_space<vmem>>, %arg13: memref<4x290x32xf32, #tpu.memory_space<vmem>>) attributes {dimension_semantics = [#tpu.dimension_semantics<parallel>], iteration_bounds = array<i64: 2>, scalar_prefetch = 0 : i64, scratch_operands = 1 : i64, tpu.core_type = #tpu.core_type<tc>, window_params = [{transform_indices = @transform_0, window_bounds = array<i64: 4, 256, 16>}, {pipeline_mode = #tpu.pipeline_mode<synchronous>, transform_indices = @transform_1, window_bounds = array<i64: 16, 32>}, {pipeline_mode = #tpu.pipeline_mode<synchronous>, transform_indices = @transform_2, window_bounds = array<i64: 1, 32>}, {pipeline_mode = #tpu.pipeline_mode<synchronous>, transform_indices = @transform_3, window_bounds = array<i64: 9, 32>}, {pipeline_mode = #tpu.pipeline_mode<synchronous>, transform_indices = @transform_4, window_bounds = array<i64: 1, 32>}, {pipeline_mode = #tpu.pipeline_mode<synchronous>, transform_indices = @transform_5, window_bounds = array<i64: 32, 8>}, {pipeline_mode = #tpu.pipeline_mode<synchronous>, transform_indices = @transform_6, window_bounds = array<i64: 1, 8>}, {pipeline_mode = #tpu.pipeline_mode<synchronous>, transform_indices = @transform_7, window_bounds = array<i64: 8, 32>}, {pipeline_mode = #tpu.pipeline_mode<synchronous>, transform_indices = @transform_8, window_bounds = array<i64: 1, 32>}, {pipeline_mode = #tpu.pipeline_mode<synchronous>, transform_indices = @transform_9, window_bounds = array<i64: 32, 16>}, {pipeline_mode = #tpu.pipeline_mode<synchronous>, transform_indices = @transform_10, window_bounds = array<i64: 1, 16>}, {transform_indices = @transform_11, window_bounds = array<i64: 4, 256, 16>}]} {
    %c0 = arith.constant 0 : index
    %c0_0 = arith.constant 0 : index
    %c0_1 = arith.constant 0 : index
    %0 = vector.load %arg1[%c0, %c0_0, %c0_1] : memref<4x256x16xf32, #tpu.memory_space<vmem>>, vector<4x256x16xf32>
    %1 = vector.shape_cast %0 : vector<4x256x16xf32> to vector<1024x16xf32>
    %c0_2 = arith.constant 0 : index
    %c0_3 = arith.constant 0 : index
    %2 = vector.load %arg2[%c0_2, %c0_3] : memref<16x32xbf16, #tpu.memory_space<vmem>>, vector<16x32xbf16>
    %3 = arith.truncf %1 : vector<1024x16xf32> to vector<1024x16xbf16>
    %cst = arith.constant dense<0.000000e+00> : vector<1024x32xf32>
    %4 = tpu.matmul %3, %2, %cst {dimension_numbers = #tpu.dot_dimension_numbers<[1], [0], [0], [1], [0, 0, 1, 1], [], []>} : vector<1024x16xbf16>, vector<16x32xbf16>, vector<1024x32xf32> -> vector<1024x32xf32>
    %c0_4 = arith.constant 0 : index
    %c0_5 = arith.constant 0 : index
    %5 = vector.load %arg3[%c0_4, %c0_5] : memref<1x32xf32, #tpu.memory_space<vmem>>, vector<1x32xf32>
    %6 = vector.broadcast %5 : vector<1x32xf32> to vector<1024x32xf32>
    %7 = arith.addf %4, %6 : vector<1024x32xf32>
    %cst_6 = arith.constant 3.000000e+00 : f32
    %8 = vector.broadcast %cst_6 : f32 to vector<1024x32xf32>
    %9 = arith.addf %7, %8 : vector<1024x32xf32>
    %cst_7 = arith.constant 0.000000e+00 : f32
    %cst_8 = arith.constant 6.000000e+00 : f32
    %10 = vector.broadcast %cst_7 : f32 to vector<1024x32xf32>
    %11 = arith.maximumf %10, %9 : vector<1024x32xf32>
    %12 = vector.broadcast %cst_8 : f32 to vector<1024x32xf32>
    %13 = arith.minimumf %12, %11 : vector<1024x32xf32>
    %14 = arith.mulf %7, %13 : vector<1024x32xf32>
    %cst_9 = arith.constant 0.166666672 : f32
    %15 = vector.broadcast %cst_9 : f32 to vector<1024x32xf32>
    %16 = arith.mulf %14, %15 : vector<1024x32xf32>
    %17 = vector.shape_cast %16 : vector<1024x32xf32> to vector<4x256x32xf32>
    %cst_10 = arith.constant 0.000000e+00 : f32
    %18 = vector.broadcast %cst_10 : f32 to vector<4x17x32xf32>
    %c0_11 = arith.constant 0 : index
    %c0_12 = arith.constant 0 : index
    %c0_13 = arith.constant 0 : index
    %19 = vector.load %arg13[%c0_11, %c0_12, %c0_13] : memref<4x290x32xf32, #tpu.memory_space<vmem>>, vector<4x17x32xf32>
    tpu.vector_store %arg13[%c0_11, %c0_12, %c0_13], %18 {strides = array<i32>} : memref<4x290x32xf32, #tpu.memory_space<vmem>>, vector<4x17x32xf32>,
    %cst_14 = arith.constant 0.000000e+00 : f32
    %20 = vector.broadcast %cst_14 : f32 to vector<4x17x32xf32>
    %c0_15 = arith.constant 0 : index
    %c273 = arith.constant 273 : index
    %c0_16 = arith.constant 0 : index
    %21 = vector.load %arg13[%c0_15, %c273, %c0_16] : memref<4x290x32xf32, #tpu.memory_space<vmem>>, vector<4x17x32xf32>
    tpu.vector_store %arg13[%c0_15, %c273, %c0_16], %20 {strides = array<i32>} : memref<4x290x32xf32, #tpu.memory_space<vmem>>, vector<4x17x32xf32>,
    %c0_17 = arith.constant 0 : index
    %c17 = arith.constant 17 : index
    %c0_18 = arith.constant 0 : index
    %22 = vector.load %arg13[%c0_17, %c17, %c0_18] : memref<4x290x32xf32, #tpu.memory_space<vmem>>, vector<4x256x32xf32>
    tpu.vector_store %arg13[%c0_17, %c17, %c0_18], %17 {strides = array<i32>} : memref<4x290x32xf32, #tpu.memory_space<vmem>>, vector<4x256x32xf32>,
    %23 = tpu.iota {dimensions = array<i32: 1>} : vector<1x256x32xi32>
    %c16_i32 = arith.constant 16 : i32
    %c0_i32 = arith.constant 0 : i32
    %24 = arith.cmpi eq, %c16_i32, %c0_i32 : i32
    %c1_i32 = arith.constant 1 : i32
    %25 = arith.select %24, %c1_i32, %c16_i32 : i32
    %26 = vector.broadcast %25 : i32 to vector<1x256x32xi32>
    %27 = arith.remsi %23, %26 : vector<1x256x32xi32>
    %c0_i32_19 = arith.constant 0 : i32
    %28 = vector.broadcast %c0_i32_19 : i32 to vector<1x256x32xi32>
    %29 = arith.cmpi ne, %27, %28 : vector<1x256x32xi32>
    %c0_i32_20 = arith.constant 0 : i32
    %30 = vector.broadcast %c0_i32_20 : i32 to vector<1x256x32xi32>
    %31 = arith.cmpi slt, %27, %30 : vector<1x256x32xi32>
    %c0_i32_21 = arith.constant 0 : i32
    %32 = arith.cmpi slt, %25, %c0_i32_21 : i32
    %33 = vector.broadcast %32 : i1 to vector<1x256x32xi1>
    %34 = vector.broadcast %33 : vector<1x256x32xi1> to vector<1x256x32xi1>
    %35 = arith.xori %31, %34 : vector<1x256x32xi1>
    %36 = arith.andi %35, %29 : vector<1x256x32xi1>
    %37 = vector.broadcast %25 : i32 to vector<1x256x32xi32>
    %38 = arith.addi %27, %37 : vector<1x256x32xi32>
    %39 = arith.select %36, %38, %27 : vector<1x256x32xi1>, vector<1x256x32xi32>
    %c-1_i32 = arith.constant -1 : i32
    %40 = vector.broadcast %c-1_i32 : i32 to vector<1x256x32xi32>
    %41 = arith.addi %39, %40 : vector<1x256x32xi32>
    %c0_i32_22 = arith.constant 0 : i32
    %42 = vector.broadcast %c0_i32_22 : i32 to vector<1x256x32xi32>
    %43 = arith.cmpi sge, %41, %42 : vector<1x256x32xi32>
    %c-1_i32_23 = arith.constant -1 : i32
    %44 = vector.broadcast %c-1_i32_23 : i32 to vector<1x256x32xi32>
    %45 = arith.addi %39, %44 : vector<1x256x32xi32>
    %c16_i32_24 = arith.constant 16 : i32
    %46 = vector.broadcast %c16_i32_24 : i32 to vector<1x256x32xi32>
    %47 = arith.cmpi slt, %45, %46 : vector<1x256x32xi32>
    %48 = arith.andi %43, %47 : vector<1x256x32xi1>
    %c1_i32_25 = arith.constant 1 : i32
    %49 = vector.broadcast %c1_i32_25 : i32 to vector<1x256x32xi32>
    %50 = arith.addi %39, %49 : vector<1x256x32xi32>
    %c0_i32_26 = arith.constant 0 : i32
    %51 = vector.broadcast %c0_i32_26 : i32 to vector<1x256x32xi32>
    %52 = arith.cmpi sge, %50, %51 : vector<1x256x32xi32>
    %c1_i32_27 = arith.constant 1 : i32
    %53 = vector.broadcast %c1_i32_27 : i32 to vector<1x256x32xi32>
    %54 = arith.addi %39, %53 : vector<1x256x32xi32>
    %c16_i32_28 = arith.constant 16 : i32
    %55 = vector.broadcast %c16_i32_28 : i32 to vector<1x256x32xi32>
    %56 = arith.cmpi slt, %54, %55 : vector<1x256x32xi32>
    %57 = arith.andi %52, %56 : vector<1x256x32xi1>
    %c0_29 = arith.constant 0 : index
    %c0_30 = arith.constant 0 : index
    %58 = vector.load %arg4[%c0_29, %c0_30] : memref<9x32xf32, #tpu.memory_space<vmem>>, vector<9x32xf32>
    %c0_31 = arith.constant 0 : index
    %c0_32 = arith.constant 0 : index
    %c0_33 = arith.constant 0 : index
    %59 = vector.load %arg13[%c0_31, %c0_32, %c0_33] : memref<4x290x32xf32, #tpu.memory_space<vmem>>, vector<4x256x32xf32>
    %60 = vector.extract_strided_slice %58 {offsets = [0, 0], sizes = [1, 32], strides = [1, 1]} : vector<9x32xf32> to vector<1x32xf32>
    %61 = vector.shape_cast %60 : vector<1x32xf32> to vector<32xf32>
    %62 = vector.shape_cast %61 : vector<32xf32> to vector<1x1x32xf32>
    %63 = vector.broadcast %62 : vector<1x1x32xf32> to vector<4x256x32xf32>
    %64 = arith.mulf %59, %63 : vector<4x256x32xf32>
    %cst_34 = arith.constant 0.000000e+00 : f32
    %65 = vector.shape_cast %48 : vector<1x256x32xi1> to vector<1x256x32xi1>
    %66 = vector.broadcast %65 : vector<1x256x32xi1> to vector<4x256x32xi1>
    %67 = vector.broadcast %cst_34 : f32 to vector<4x256x32xf32>
    %68 = arith.select %66, %64, %67 : vector<4x256x32xi1>, vector<4x256x32xf32>
    %c0_35 = arith.constant 0 : index
    %c1 = arith.constant 1 : index
    %c0_36 = arith.constant 0 : index
    %69 = vector.load %arg13[%c0_35, %c1, %c0_36] : memref<4x290x32xf32, #tpu.memory_space<vmem>>, vector<4x256x32xf32>
    %70 = vector.extract_strided_slice %58 {offsets = [1, 0], sizes = [1, 32], strides = [1, 1]} : vector<9x32xf32> to vector<1x32xf32>
    %71 = vector.shape_cast %70 : vector<1x32xf32> to vector<32xf32>
    %72 = vector.shape_cast %71 : vector<32xf32> to vector<1x1x32xf32>
    %73 = vector.broadcast %72 : vector<1x1x32xf32> to vector<4x256x32xf32>
    %74 = arith.mulf %69, %73 : vector<4x256x32xf32>
    %75 = arith.addf %68, %74 : vector<4x256x32xf32>
    %c0_37 = arith.constant 0 : index
    %c2 = arith.constant 2 : index
    %c0_38 = arith.constant 0 : index
    %76 = vector.load %arg13[%c0_37, %c2, %c0_38] : memref<4x290x32xf32, #tpu.memory_space<vmem>>, vector<4x256x32xf32>
    %77 = vector.extract_strided_slice %58 {offsets = [2, 0], sizes = [1, 32], strides = [1, 1]} : vector<9x32xf32> to vector<1x32xf32>
    %78 = vector.shape_cast %77 : vector<1x32xf32> to vector<32xf32>
    %79 = vector.shape_cast %78 : vector<32xf32> to vector<1x1x32xf32>
    %80 = vector.broadcast %79 : vector<1x1x32xf32> to vector<4x256x32xf32>
    %81 = arith.mulf %76, %80 : vector<4x256x32xf32>
    %cst_39 = arith.constant 0.000000e+00 : f32
    %82 = vector.shape_cast %57 : vector<1x256x32xi1> to vector<1x256x32xi1>
    %83 = vector.broadcast %82 : vector<1x256x32xi1> to vector<4x256x32xi1>
    %84 = vector.broadcast %cst_39 : f32 to vector<4x256x32xf32>
    %85 = arith.select %83, %81, %84 : vector<4x256x32xi1>, vector<4x256x32xf32>
    %86 = arith.addf %75, %85 : vector<4x256x32xf32>
    %c0_40 = arith.constant 0 : index
    %c16 = arith.constant 16 : index
    %c0_41 = arith.constant 0 : index
    %87 = vector.load %arg13[%c0_40, %c16, %c0_41] : memref<4x290x32xf32, #tpu.memory_space<vmem>>, vector<4x256x32xf32>
    %88 = vector.extract_strided_slice %58 {offsets = [3, 0], sizes = [1, 32], strides = [1, 1]} : vector<9x32xf32> to vector<1x32xf32>
    %89 = vector.shape_cast %88 : vector<1x32xf32> to vector<32xf32>
    %90 = vector.shape_cast %89 : vector<32xf32> to vector<1x1x32xf32>
    %91 = vector.broadcast %90 : vector<1x1x32xf32> to vector<4x256x32xf32>
    %92 = arith.mulf %87, %91 : vector<4x256x32xf32>
    %cst_42 = arith.constant 0.000000e+00 : f32
    %93 = vector.shape_cast %48 : vector<1x256x32xi1> to vector<1x256x32xi1>
    %94 = vector.broadcast %93 : vector<1x256x32xi1> to vector<4x256x32xi1>
    %95 = vector.broadcast %cst_42 : f32 to vector<4x256x32xf32>
    %96 = arith.select %94, %92, %95 : vector<4x256x32xi1>, vector<4x256x32xf32>
    %c0_43 = arith.constant 0 : index
    %c17_44 = arith.constant 17 : index
    %c0_45 = arith.constant 0 : index
    %97 = vector.load %arg13[%c0_43, %c17_44, %c0_45] : memref<4x290x32xf32, #tpu.memory_space<vmem>>, vector<4x256x32xf32>
    %98 = vector.extract_strided_slice %58 {offsets = [4, 0], sizes = [1, 32], strides = [1, 1]} : vector<9x32xf32> to vector<1x32xf32>
    %99 = vector.shape_cast %98 : vector<1x32xf32> to vector<32xf32>
    %100 = vector.shape_cast %99 : vector<32xf32> to vector<1x1x32xf32>
    %101 = vector.broadcast %100 : vector<1x1x32xf32> to vector<4x256x32xf32>
    %102 = arith.mulf %97, %101 : vector<4x256x32xf32>
    %103 = arith.addf %96, %102 : vector<4x256x32xf32>
    %c0_46 = arith.constant 0 : index
    %c18 = arith.constant 18 : index
    %c0_47 = arith.constant 0 : index
    %104 = vector.load %arg13[%c0_46, %c18, %c0_47] : memref<4x290x32xf32, #tpu.memory_space<vmem>>, vector<4x256x32xf32>
    %105 = vector.extract_strided_slice %58 {offsets = [5, 0], sizes = [1, 32], strides = [1, 1]} : vector<9x32xf32> to vector<1x32xf32>
    %106 = vector.shape_cast %105 : vector<1x32xf32> to vector<32xf32>
    %107 = vector.shape_cast %106 : vector<32xf32> to vector<1x1x32xf32>
    %108 = vector.broadcast %107 : vector<1x1x32xf32> to vector<4x256x32xf32>
    %109 = arith.mulf %104, %108 : vector<4x256x32xf32>
    %cst_48 = arith.constant 0.000000e+00 : f32
    %110 = vector.shape_cast %57 : vector<1x256x32xi1> to vector<1x256x32xi1>
    %111 = vector.broadcast %110 : vector<1x256x32xi1> to vector<4x256x32xi1>
    %112 = vector.broadcast %cst_48 : f32 to vector<4x256x32xf32>
    %113 = arith.select %111, %109, %112 : vector<4x256x32xi1>, vector<4x256x32xf32>
    %114 = arith.addf %103, %113 : vector<4x256x32xf32>
    %c0_49 = arith.constant 0 : index
    %c32 = arith.constant 32 : index
    %c0_50 = arith.constant 0 : index
    %115 = vector.load %arg13[%c0_49, %c32, %c0_50] : memref<4x290x32xf32, #tpu.memory_space<vmem>>, vector<4x256x32xf32>
    %116 = vector.extract_strided_slice %58 {offsets = [6, 0], sizes = [1, 32], strides = [1, 1]} : vector<9x32xf32> to vector<1x32xf32>
    %117 = vector.shape_cast %116 : vector<1x32xf32> to vector<32xf32>
    %118 = vector.shape_cast %117 : vector<32xf32> to vector<1x1x32xf32>
    %119 = vector.broadcast %118 : vector<1x1x32xf32> to vector<4x256x32xf32>
    %120 = arith.mulf %115, %119 : vector<4x256x32xf32>
    %cst_51 = arith.constant 0.000000e+00 : f32
    %121 = vector.shape_cast %48 : vector<1x256x32xi1> to vector<1x256x32xi1>
    %122 = vector.broadcast %121 : vector<1x256x32xi1> to vector<4x256x32xi1>
    %123 = vector.broadcast %cst_51 : f32 to vector<4x256x32xf32>
    %124 = arith.select %122, %120, %123 : vector<4x256x32xi1>, vector<4x256x32xf32>
    %c0_52 = arith.constant 0 : index
    %c33 = arith.constant 33 : index
    %c0_53 = arith.constant 0 : index
    %125 = vector.load %arg13[%c0_52, %c33, %c0_53] : memref<4x290x32xf32, #tpu.memory_space<vmem>>, vector<4x256x32xf32>
    %126 = vector.extract_strided_slice %58 {offsets = [7, 0], sizes = [1, 32], strides = [1, 1]} : vector<9x32xf32> to vector<1x32xf32>
    %127 = vector.shape_cast %126 : vector<1x32xf32> to vector<32xf32>
    %128 = vector.shape_cast %127 : vector<32xf32> to vector<1x1x32xf32>
    %129 = vector.broadcast %128 : vector<1x1x32xf32> to vector<4x256x32xf32>
    %130 = arith.mulf %125, %129 : vector<4x256x32xf32>
    %131 = arith.addf %124, %130 : vector<4x256x32xf32>
    %c0_54 = arith.constant 0 : index
    %c34 = arith.constant 34 : index
    %c0_55 = arith.constant 0 : index
    %132 = vector.load %arg13[%c0_54, %c34, %c0_55] : memref<4x290x32xf32, #tpu.memory_space<vmem>>, vector<4x256x32xf32>
    %133 = vector.extract_strided_slice %58 {offsets = [8, 0], sizes = [1, 32], strides = [1, 1]} : vector<9x32xf32> to vector<1x32xf32>
    %134 = vector.shape_cast %133 : vector<1x32xf32> to vector<32xf32>
    %135 = vector.shape_cast %134 : vector<32xf32> to vector<1x1x32xf32>
    %136 = vector.broadcast %135 : vector<1x1x32xf32> to vector<4x256x32xf32>
    %137 = arith.mulf %132, %136 : vector<4x256x32xf32>
    %cst_56 = arith.constant 0.000000e+00 : f32
    %138 = vector.shape_cast %57 : vector<1x256x32xi1> to vector<1x256x32xi1>
    %139 = vector.broadcast %138 : vector<1x256x32xi1> to vector<4x256x32xi1>
    %140 = vector.broadcast %cst_56 : f32 to vector<4x256x32xf32>
    %141 = arith.select %139, %137, %140 : vector<4x256x32xi1>, vector<4x256x32xf32>
    %142 = arith.addf %131, %141 : vector<4x256x32xf32>
    %143 = arith.addf %86, %114 : vector<4x256x32xf32>
    %144 = arith.addf %143, %142 : vector<4x256x32xf32>
    %c0_57 = arith.constant 0 : index
    %c0_58 = arith.constant 0 : index
    %145 = vector.load %arg5[%c0_57, %c0_58] : memref<1x32xf32, #tpu.memory_space<vmem>>, vector<1x32xf32>
    %146 = vector.shape_cast %145 : vector<1x32xf32> to vector<1x1x32xf32>
    %147 = vector.broadcast %146 : vector<1x1x32xf32> to vector<4x256x32xf32>
    %148 = arith.addf %144, %147 : vector<4x256x32xf32>
    %cst_59 = arith.constant 3.000000e+00 : f32
    %149 = vector.broadcast %cst_59 : f32 to vector<4x256x32xf32>
    %150 = arith.addf %148, %149 : vector<4x256x32xf32>
    %cst_60 = arith.constant 0.000000e+00 : f32
    %cst_61 = arith.constant 6.000000e+00 : f32
    %151 = vector.broadcast %cst_60 : f32 to vector<4x256x32xf32>
    %152 = arith.maximumf %151, %150 : vector<4x256x32xf32>
    %153 = vector.broadcast %cst_61 : f32 to vector<4x256x32xf32>
    %154 = arith.minimumf %153, %152 : vector<4x256x32xf32>
    %155 = arith.mulf %148, %154 : vector<4x256x32xf32>
    %cst_62 = arith.constant 0.166666672 : f32
    %156 = vector.broadcast %cst_62 : f32 to vector<4x256x32xf32>
    %157 = arith.mulf %155, %156 : vector<4x256x32xf32>
    %cst_63 = arith.constant dense<0.000000e+00> : vector<4x32xf32>
    %158 = vector.multi_reduction <add>, %157, %cst_63 [1] : vector<4x256x32xf32> to vector<4x32xf32>
    %cst_64 = arith.constant 3.906250e-03 : f32
    %159 = vector.broadcast %cst_64 : f32 to vector<4x32xf32>
    %160 = arith.mulf %158, %159 : vector<4x32xf32>
    %c0_65 = arith.constant 0 : index
    %c0_66 = arith.constant 0 : index
    %161 = vector.load %arg6[%c0_65, %c0_66] : memref<32x8xbf16, #tpu.memory_space<vmem>>, vector<32x8xbf16>
    %162 = arith.truncf %160 : vector<4x32xf32> to vector<4x32xbf16>
    %cst_67 = arith.constant dense<0.000000e+00> : vector<4x8xf32>
    %163 = tpu.matmul %162, %161, %cst_67 {dimension_numbers = #tpu.dot_dimension_numbers<[1], [0], [0], [1], [0, 0, 1, 1], [], []>} : vector<4x32xbf16>, vector<32x8xbf16>, vector<4x8xf32> -> vector<4x8xf32>
    %c0_68 = arith.constant 0 : index
    %c0_69 = arith.constant 0 : index
    %164 = vector.load %arg7[%c0_68, %c0_69] : memref<1x8xf32, #tpu.memory_space<vmem>>, vector<1x8xf32>
    %165 = vector.broadcast %164 : vector<1x8xf32> to vector<4x8xf32>
    %166 = arith.addf %163, %165 : vector<4x8xf32>
    %cst_70 = arith.constant 0.000000e+00 : f32
    %167 = vector.broadcast %cst_70 : f32 to vector<4x8xf32>
    %168 = arith.maximumf %166, %167 : vector<4x8xf32>
    %c0_71 = arith.constant 0 : index
    %c0_72 = arith.constant 0 : index
    %169 = vector.load %arg8[%c0_71, %c0_72] : memref<8x32xbf16, #tpu.memory_space<vmem>>, vector<8x32xbf16>
    %170 = arith.truncf %168 : vector<4x8xf32> to vector<4x8xbf16>
    %cst_73 = arith.constant dense<0.000000e+00> : vector<4x32xf32>
    %171 = tpu.matmul %170, %169, %cst_73 {dimension_numbers = #tpu.dot_dimension_numbers<[1], [0], [0], [1], [0, 0, 1, 1], [], []>} : vector<4x8xbf16>, vector<8x32xbf16>, vector<4x32xf32> -> vector<4x32xf32>
    %c0_74 = arith.constant 0 : index
    %c0_75 = arith.constant 0 : index
    %172 = vector.load %arg9[%c0_74, %c0_75] : memref<1x32xf32, #tpu.memory_space<vmem>>, vector<1x32xf32>
    %173 = vector.broadcast %172 : vector<1x32xf32> to vector<4x32xf32>
    %174 = arith.addf %171, %173 : vector<4x32xf32>
    %cst_76 = arith.constant 3.000000e+00 : f32
    %175 = vector.broadcast %cst_76 : f32 to vector<4x32xf32>
    %176 = arith.addf %174, %175 : vector<4x32xf32>
    %cst_77 = arith.constant 0.000000e+00 : f32
    %cst_78 = arith.constant 6.000000e+00 : f32
    %177 = vector.broadcast %cst_77 : f32 to vector<4x32xf32>
    %178 = arith.maximumf %177, %176 : vector<4x32xf32>
    %179 = vector.broadcast %cst_78 : f32 to vector<4x32xf32>
    %180 = arith.minimumf %179, %178 : vector<4x32xf32>
    %cst_79 = arith.constant 0.166666672 : f32
    %181 = vector.broadcast %cst_79 : f32 to vector<4x32xf32>
    %182 = arith.mulf %180, %181 : vector<4x32xf32>
    %183 = vector.shape_cast %182 : vector<4x32xf32> to vector<4x1x32xf32>
    %184 = vector.broadcast %183 : vector<4x1x32xf32> to vector<4x256x32xf32>
    %185 = arith.mulf %157, %184 : vector<4x256x32xf32>
    %186 = vector.shape_cast %185 : vector<4x256x32xf32> to vector<1024x32xf32>
    %c0_80 = arith.constant 0 : index
    %c0_81 = arith.constant 0 : index
    %187 = vector.load %arg10[%c0_80, %c0_81] : memref<32x16xbf16, #tpu.memory_space<vmem>>, vector<32x16xbf16>
    %188 = arith.truncf %186 : vector<1024x32xf32> to vector<1024x32xbf16>
    %cst_82 = arith.constant dense<0.000000e+00> : vector<1024x16xf32>
    %189 = tpu.matmul %188, %187, %cst_82 {dimension_numbers = #tpu.dot_dimension_numbers<[1], [0], [0], [1], [0, 0, 1, 1], [], []>} : vector<1024x32xbf16>, vector<32x16xbf16>, vector<1024x16xf32> -> vector<1024x16xf32>
    %c0_83 = arith.constant 0 : index
    %c0_84 = arith.constant 0 : index
    %190 = vector.load %arg11[%c0_83, %c0_84] : memref<1x16xf32, #tpu.memory_space<vmem>>, vector<1x16xf32>
    %191 = vector.broadcast %190 : vector<1x16xf32> to vector<1024x16xf32>
    %192 = arith.addf %189, %191 : vector<1024x16xf32>
    %193 = vector.shape_cast %0 : vector<4x256x16xf32> to vector<1024x16xf32>
    %194 = arith.addf %192, %193 : vector<1024x16xf32>
    %195 = vector.shape_cast %194 : vector<1024x16xf32> to vector<4x256x16xf32>
    %c0_85 = arith.constant 0 : index
    %c0_86 = arith.constant 0 : index
    %c0_87 = arith.constant 0 : index
    %196 = vector.load %arg12[%c0_85, %c0_86, %c0_87] : memref<4x256x16xf32, #tpu.memory_space<vmem>>, vector<4x256x16xf32>
    tpu.vector_store %arg12[%c0_85, %c0_86, %c0_87], %195 {strides = array<i32>} : memref<4x256x16xf32, #tpu.memory_space<vmem>>, vector<4x256x16xf32>,
    return
  }
  func.func @transform_0(%arg0: i32) -> (i32, i32, i32) {
    %c0_i32 = arith.constant 0 : i32
    %c0_i32_0 = arith.constant 0 : i32
    %c0_i32_1 = arith.constant 0 : i32
    return %arg0, %c0_i32, %c0_i32_0 : i32, i32, i32
  }
  func.func @transform_1(%arg0: i32) -> (i32, i32) {
    %c0_i32 = arith.constant 0 : i32
    %c0_i32_0 = arith.constant 0 : i32
    %c0_i32_1 = arith.constant 0 : i32
    return %c0_i32, %c0_i32_0 : i32, i32
  }
  func.func @transform_2(%arg0: i32) -> (i32, i32) {
    %c0_i32 = arith.constant 0 : i32
    %c0_i32_0 = arith.constant 0 : i32
    %c0_i32_1 = arith.constant 0 : i32
    return %c0_i32, %c0_i32_0 : i32, i32
  }
  func.func @transform_3(%arg0: i32) -> (i32, i32) {
    %c0_i32 = arith.constant 0 : i32
    %c0_i32_0 = arith.constant 0 : i32
    %c0_i32_1 = arith.constant 0 : i32
    return %c0_i32, %c0_i32_0 : i32, i32
  }
  func.func @transform_4(%arg0: i32) -> (i32, i32) {
    %c0_i32 = arith.constant 0 : i32
    %c0_i32_0 = arith.constant 0 : i32
    %c0_i32_1 = arith.constant 0 : i32
    return %c0_i32, %c0_i32_0 : i32, i32
  }
  func.func @transform_5(%arg0: i32) -> (i32, i32) {
    %c0_i32 = arith.constant 0 : i32
    %c0_i32_0 = arith.constant 0 : i32
    %c0_i32_1 = arith.constant 0 : i32
    return %c0_i32, %c0_i32_0 : i32, i32
  }
  func.func @transform_6(%arg0: i32) -> (i32, i32) {
    %c0_i32 = arith.constant 0 : i32
    %c0_i32_0 = arith.constant 0 : i32
    %c0_i32_1 = arith.constant 0 : i32
    return %c0_i32, %c0_i32_0 : i32, i32
  }
  func.func @transform_7(%arg0: i32) -> (i32, i32) {
    %c0_i32 = arith.constant 0 : i32
    %c0_i32_0 = arith.constant 0 : i32
    %c0_i32_1 = arith.constant 0 : i32
    return %c0_i32, %c0_i32_0 : i32, i32
  }
  func.func @transform_8(%arg0: i32) -> (i32, i32) {
    %c0_i32 = arith.constant 0 : i32
    %c0_i32_0 = arith.constant 0 : i32
    %c0_i32_1 = arith.constant 0 : i32
    return %c0_i32, %c0_i32_0 : i32, i32
  }
  func.func @transform_9(%arg0: i32) -> (i32, i32) {
    %c0_i32 = arith.constant 0 : i32
    %c0_i32_0 = arith.constant 0 : i32
    %c0_i32_1 = arith.constant 0 : i32
    return %c0_i32, %c0_i32_0 : i32, i32
  }
  func.func @transform_10(%arg0: i32) -> (i32, i32) {
    %c0_i32 = arith.constant 0 : i32
    %c0_i32_0 = arith.constant 0 : i32
    %c0_i32_1 = arith.constant 0 : i32
    return %c0_i32, %c0_i32_0 : i32, i32
  }
  func.func @transform_11(%arg0: i32) -> (i32, i32, i32) {
    %c0_i32 = arith.constant 0 : i32
    %c0_i32_0 = arith.constant 0 : i32
    %c0_i32_1 = arith.constant 0 : i32
    return %arg0, %c0_i32, %c0_i32_0 : i32, i32, i32
  }
}

</mosaic_0001>

<llo_original>
// kernel: tpu_custom_call.1
$region0: #{tpu_custom_call.1}
  #allocation0 [shape = 'u32[]', space=smem, size = 0x4, offset = 0x4, fixed_abs, tag = 'smem constant byte address 0x4 - core index']
  #allocation1 [shape = 'u32[72,128]{1,0:T(1,128)}', space=vmem, size = 0x9000, scoped, tag = 'internal scratch']
  #allocation2 [shape = 'f32[4,290,32]{2,1,0:T(8,128)}', space=vmem, size = 0x94000, scoped, tag = 'scratch operand']
  %s0 = inlined_call_operand.vmem [shape: f32[8,256,16], index: 0, kind: input, shape index: {}]
  %s1 = inlined_call_operand.vmem [shape: bf16[16,32], index: 1, kind: input, shape index: {}]
  %s2 = inlined_call_operand.vmem [shape: f32[1,32], index: 2, kind: input, shape index: {}]
  %s3 = inlined_call_operand.vmem [shape: f32[9,32], index: 3, kind: input, shape index: {}]
  %s4 = inlined_call_operand.vmem [shape: f32[1,32], index: 4, kind: input, shape index: {}]
  %s5 = inlined_call_operand.vmem [shape: bf16[32,8], index: 5, kind: input, shape index: {}]
  %s6 = inlined_call_operand.vmem [shape: f32[1,8], index: 6, kind: input, shape index: {}]
  %s7 = inlined_call_operand.vmem [shape: bf16[8,32], index: 7, kind: input, shape index: {}]
  %s8 = inlined_call_operand.vmem [shape: f32[1,32], index: 8, kind: input, shape index: {}]
  %s9 = inlined_call_operand.vmem [shape: bf16[32,16], index: 9, kind: input, shape index: {}]
  %s10 = inlined_call_operand.vmem [shape: f32[1,16], index: 10, kind: input, shape index: {}]
  %s11 = inlined_call_operand.vmem [shape: f32[8,256,16], index: 11, kind: output, shape index: {}]
  %s12 = sld [smem:[#allocation0]]
  $region77: #{tpu_custom_call.1} parent=0
    _
  %s14 = ssub.s32 1, %s12
  %s15 = scalar_select 0, %s14, %s12
  loop: start=0, step=1, limit=4
  $region2: #{tpu_custom_call.1} parent=0 // loop_pre_header
    _
  $region3: #{tpu_custom_call.1} parent=0 // loop_header
    %s17 = sphi 0, %s21
    %p18 = scmp.ge.s32.totalorder %s17, 4
    %s27 = sphi 0, %s29
    %s30 = sphi 0, %s27
    %s31 = sphi 0, %s30
    %s47 = sphi 0, %s31
    %s51 = sphi 0, %s51
    %s53 = sphi 0, %s51
    %s54 = sphi 0, %s53
    %s68 = sphi 0, %s54
    %s72 = sphi 0, %s72
    %s74 = sphi 0, %s72
    %s75 = sphi 0, %s74
    %s89 = sphi 0, %s75
    %s93 = sphi 0, %s93
    %s95 = sphi 0, %s93
    %s96 = sphi 0, %s95
    %s110 = sphi 0, %s96
    %s114 = sphi 0, %s114
    %s116 = sphi 0, %s114
    %s117 = sphi 0, %s116
    %s131 = sphi 0, %s117
    %s135 = sphi 0, %s135
    %s137 = sphi 0, %s135
    %s138 = sphi 0, %s137
    %s152 = sphi 0, %s138
    %s156 = sphi 0, %s156
    %s158 = sphi 0, %s156
    %s159 = sphi 0, %s158
    %s173 = sphi 0, %s159
    %s177 = sphi 0, %s177
    %s179 = sphi 0, %s177
    %s180 = sphi 0, %s179
    %s194 = sphi 0, %s180
    %s198 = sphi 0, %s198
    %s200 = sphi 0, %s198
    %s201 = sphi 0, %s200
    %s215 = sphi 0, %s201
    %s219 = sphi 0, %s219
    %s221 = sphi 0, %s219
    %s222 = sphi 0, %s221
    %s236 = sphi 0, %s222
    %s240 = sphi 0, %s240
    %s242 = sphi 0, %s240
    %s243 = sphi 0, %s242
    %s257 = sphi 0, %s243
    %s263 = sphi 0, %s265
    %s266 = sphi 0, %s263
    %s267 = sphi 0, %s266
    %s283 = sphi 0, %s267
  $region4: #{tpu_custom_call.1} parent=0 // loop_header_branch
    %20 = sbr.rel (%p18) target = $region8
  $region5: #{tpu_custom_call.1} parent=0 // loop_body
    %s22 = ssub.s32 %s17, 1
    %s23 = ssub.s32 %s17, 2
    %s24 = sadd.s32 %s17, 1
    %s25 = ssub.s32 %s17, %s24
    %p26 = scmp.eq.s32.totalorder %s25, 0
    %s28 = sadd.s32 %s27, 1
    %s29 = scalar_select %p26, %s27, %s28
    %p32 = pneg %p26
    %p33 = scmp.eq.s32.totalorder %s17, 1
    %p34 = por %p32, %p33
    %p35 = scmp.ne.s32.totalorder %s27, %s30
    %p36 = scmp.eq.s32.totalorder %s17, 0
    %p37 = por %p35, %p36
    %p38 = scmp.ne.s32.totalorder %s27, %s30
    %p39 = scmp.eq.s32.totalorder %s22, 1
    %p40 = por %p38, %p39
    %p41 = scmp.ne.s32.totalorder %s30, %s31
    %p42 = scmp.eq.s32.totalorder %s22, 0
    %p43 = por %p41, %p42
    %p44 = scmp.ne.s32.totalorder %s30, %s31
    %p45 = scmp.eq.s32.totalorder %s23, 1
    %p46 = por %p44, %p45
    %p48 = scmp.ne.s32.totalorder %s31, %s47
    %p49 = scmp.eq.s32.totalorder %s23, 0
    %p50 = por %p48, %p49
    %s52 = sadd.s32 %s51, 1
    %p55 = scmp.eq.s32.totalorder %s17, 1
    %p56 = scmp.ne.s32.totalorder %s51, %s53
    %p57 = scmp.eq.s32.totalorder %s17, 0
    %p58 = por %p56, %p57
    %p59 = scmp.ne.s32.totalorder %s51, %s53
    %p60 = scmp.eq.s32.totalorder %s22, 1
    %p61 = por %p59, %p60
    %p62 = scmp.ne.s32.totalorder %s53, %s54
    %p63 = scmp.eq.s32.totalorder %s22, 0
    %p64 = por %p62, %p63
    %p65 = scmp.ne.s32.totalorder %s53, %s54
    %p66 = scmp.eq.s32.totalorder %s23, 1
    %p67 = por %p65, %p66
    %p69 = scmp.ne.s32.totalorder %s54, %s68
    %p70 = scmp.eq.s32.totalorder %s23, 0
    %p71 = por %p69, %p70
    %s73 = sadd.s32 %s72, 1
    %p76 = scmp.eq.s32.totalorder %s17, 1
    %p77 = scmp.ne.s32.totalorder %s72, %s74
    %p78 = scmp.eq.s32.totalorder %s17, 0
    %p79 = por %p77, %p78
    %p80 = scmp.ne.s32.totalorder %s72, %s74
    %p81 = scmp.eq.s32.totalorder %s22, 1
    %p82 = por %p80, %p81
    %p83 = scmp.ne.s32.totalorder %s74, %s75
    %p84 = scmp.eq.s32.totalorder %s22, 0
    %p85 = por %p83, %p84
    %p86 = scmp.ne.s32.totalorder %s74, %s75
    %p87 = scmp.eq.s32.totalorder %s23, 1
    %p88 = por %p86, %p87
    %p90 = scmp.ne.s32.totalorder %s75, %s89
    %p91 = scmp.eq.s32.totalorder %s23, 0
    %p92 = por %p90, %p91
    %s94 = sadd.s32 %s93, 1
    %p97 = scmp.eq.s32.totalorder %s17, 1
    %p98 = scmp.ne.s32.totalorder %s93, %s95
    %p99 = scmp.eq.s32.totalorder %s17, 0
    %p100 = por %p98, %p99
    %p101 = scmp.ne.s32.totalorder %s93, %s95
    %p102 = scmp.eq.s32.totalorder %s22, 1
    %p103 = por %p101, %p102
    %p104 = scmp.ne.s32.totalorder %s95, %s96
    %p105 = scmp.eq.s32.totalorder %s22, 0
    %p106 = por %p104, %p105
    %p107 = scmp.ne.s32.totalorder %s95, %s96
    %p108 = scmp.eq.s32.totalorder %s23, 1
    %p109 = por %p107, %p108
    %p111 = scmp.ne.s32.totalorder %s96, %s110
    %p112 = scmp.eq.s32.totalorder %s23, 0
    %p113 = por %p111, %p112
    %s115 = sadd.s32 %s114, 1
    %p118 = scmp.eq.s32.totalorder %s17, 1
    %p119 = scmp.ne.s32.totalorder %s114, %s116
    %p120 = scmp.eq.s32.totalorder %s17, 0
    %p121 = por %p119, %p120
    %p122 = scmp.ne.s32.totalorder %s114, %s116
    %p123 = scmp.eq.s32.totalorder %s22, 1
    %p124 = por %p122, %p123
    %p125 = scmp.ne.s32.totalorder %s116, %s117
    %p126 = scmp.eq.s32.totalorder %s22, 0
    %p127 = por %p125, %p126
    %p128 = scmp.ne.s32.totalorder %s116, %s117
    %p129 = scmp.eq.s32.totalorder %s23, 1
    %p130 = por %p128, %p129
    %p132 = scmp.ne.s32.totalorder %s117, %s131
    %p133 = scmp.eq.s32.totalorder %s23, 0
    %p134 = por %p132, %p133
    %s136 = sadd.s32 %s135, 1
    %p139 = scmp.eq.s32.totalorder %s17, 1
    %p140 = scmp.ne.s32.totalorder %s135, %s137
    %p141 = scmp.eq.s32.totalorder %s17, 0
    %p142 = por %p140, %p141
    %p143 = scmp.ne.s32.totalorder %s135, %s137
    %p144 = scmp.eq.s32.totalorder %s22, 1
    %p145 = por %p143, %p144
    %p146 = scmp.ne.s32.totalorder %s137, %s138
    %p147 = scmp.eq.s32.totalorder %s22, 0
    %p148 = por %p146, %p147
    %p149 = scmp.ne.s32.totalorder %s137, %s138
    %p150 = scmp.eq.s32.totalorder %s23, 1
    %p151 = por %p149, %p150
    %p153 = scmp.ne.s32.totalorder %s138, %s152
    %p154 = scmp.eq.s32.totalorder %s23, 0
    %p155 = por %p153, %p154
    %s157 = sadd.s32 %s156, 1
    %p160 = scmp.eq.s32.totalorder %s17, 1
    %p161 = scmp.ne.s32.totalorder %s156, %s158
    %p162 = scmp.eq.s32.totalorder %s17, 0
    %p163 = por %p161, %p162
    %p164 = scmp.ne.s32.totalorder %s156, %s158
    %p165 = scmp.eq.s32.totalorder %s22, 1
    %p166 = por %p164, %p165
    %p167 = scmp.ne.s32.totalorder %s158, %s159
    %p168 = scmp.eq.s32.totalorder %s22, 0
    %p169 = por %p167, %p168
    %p170 = scmp.ne.s32.totalorder %s158, %s159
    %p171 = scmp.eq.s32.totalorder %s23, 1
    %p172 = por %p170, %p171
    %p174 = scmp.ne.s32.totalorder %s159, %s173
    %p175 = scmp.eq.s32.totalorder %s23, 0
    %p176 = por %p174, %p175
    %s178 = sadd.s32 %s177, 1
    %p181 = scmp.eq.s32.totalorder %s17, 1
    %p182 = scmp.ne.s32.totalorder %s177, %s179
    %p183 = scmp.eq.s32.totalorder %s17, 0
    %p184 = por %p182, %p183
    %p185 = scmp.ne.s32.totalorder %s177, %s179
    %p186 = scmp.eq.s32.totalorder %s22, 1
    %p187 = por %p185, %p186
    %p188 = scmp.ne.s32.totalorder %s179, %s180
    %p189 = scmp.eq.s32.totalorder %s22, 0
    %p190 = por %p188, %p189
    %p191 = scmp.ne.s32.totalorder %s179, %s180
    %p192 = scmp.eq.s32.totalorder %s23, 1
    %p193 = por %p191, %p192
    %p195 = scmp.ne.s32.totalorder %s180, %s194
    %p196 = scmp.eq.s32.totalorder %s23, 0
    %p197 = por %p195, %p196
    %s199 = sadd.s32 %s198, 1
    %p202 = scmp.eq.s32.totalorder %s17, 1
    %p203 = scmp.ne.s32.totalorder %s198, %s200
    %p204 = scmp.eq.s32.totalorder %s17, 0
    %p205 = por %p203, %p204
    %p206 = scmp.ne.s32.totalorder %s198, %s200
    %p207 = scmp.eq.s32.totalorder %s22, 1
    %p208 = por %p206, %p207
    %p209 = scmp.ne.s32.totalorder %s200, %s201
    %p210 = scmp.eq.s32.totalorder %s22, 0
    %p211 = por %p209, %p210
    %p212 = scmp.ne.s32.totalorder %s200, %s201
    %p213 = scmp.eq.s32.totalorder %s23, 1
    %p214 = por %p212, %p213
    %p216 = scmp.ne.s32.totalorder %s201, %s215
    %p217 = scmp.eq.s32.totalorder %s23, 0
    %p218 = por %p216, %p217
    %s220 = sadd.s32 %s219, 1
    %p223 = scmp.eq.s32.totalorder %s17, 1
    %p224 = scmp.ne.s32.totalorder %s219, %s221
    %p225 = scmp.eq.s32.totalorder %s17, 0
    %p226 = por %p224, %p225
    %p227 = scmp.ne.s32.totalorder %s219, %s221
    %p228 = scmp.eq.s32.totalorder %s22, 1
    %p229 = por %p227, %p228
    %p230 = scmp.ne.s32.totalorder %s221, %s222
    %p231 = scmp.eq.s32.totalorder %s22, 0
    %p232 = por %p230, %p231
    %p233 = scmp.ne.s32.totalorder %s221, %s222
    %p234 = scmp.eq.s32.totalorder %s23, 1
    %p235 = por %p233, %p234
    %p237 = scmp.ne.s32.totalorder %s222, %s236
    %p238 = scmp.eq.s32.totalorder %s23, 0
    %p239 = por %p237, %p238
    %s241 = sadd.s32 %s240, 1
    %p244 = scmp.eq.s32.totalorder %s17, 1
    %p245 = scmp.ne.s32.totalorder %s240, %s242
    %p246 = scmp.eq.s32.totalorder %s17, 0
    %p247 = por %p245, %p246
    %p248 = scmp.ne.s32.totalorder %s240, %s242
    %p249 = scmp.eq.s32.totalorder %s22, 1
    %p250 = por %p248, %p249
    %p251 = scmp.ne.s32.totalorder %s242, %s243
    %p252 = scmp.eq.s32.totalorder %s22, 0
    %p253 = por %p251, %p252
    %p254 = scmp.ne.s32.totalorder %s242, %s243
    %p255 = scmp.eq.s32.totalorder %s23, 1
    %p256 = por %p254, %p255
    %p258 = scmp.ne.s32.totalorder %s243, %s257
    %p259 = scmp.eq.s32.totalorder %s23, 0
    %p260 = por %p258, %p259
    %s261 = ssub.s32 %s17, %s24
    %p262 = scmp.eq.s32.totalorder %s261, 0
    %s264 = sadd.s32 %s263, 1
    %s265 = scalar_select %p262, %s263, %s264
    %p268 = pneg %p262
    %p269 = scmp.eq.s32.totalorder %s17, 1
    %p270 = por %p268, %p269
    %p271 = scmp.ne.s32.totalorder %s263, %s266
    %p272 = scmp.eq.s32.totalorder %s17, 0
    %p273 = por %p271, %p272
    %p274 = scmp.ne.s32.totalorder %s263, %s266
    %p275 = scmp.eq.s32.totalorder %s22, 1
    %p276 = por %p274, %p275
    %p277 = scmp.ne.s32.totalorder %s266, %s267
    %p278 = scmp.eq.s32.totalorder %s22, 0
    %p279 = por %p277, %p278
    %p280 = scmp.ne.s32.totalorder %s266, %s267
    %p281 = scmp.eq.s32.totalorder %s23, 1
    %p282 = por %p280, %p281
    %p284 = scmp.ne.s32.totalorder %s267, %s283
    %p285 = scmp.eq.s32.totalorder %s23, 0
    %p286 = por %p284, %p285
    %p287 = scmp.le.s32.totalorder 1, %s17
    %p288 = scmp.lt.s32.totalorder %s17, 3
    %p289 = pnand %p287, %p288
    %p290 = pneg %p289
    // Predicated region
    $region9: #{tpu_custom_call.1} parent=5 // pred_check
      _
    $region10: #{tpu_custom_call.1} parent=5 // pred_check_branch
      %292 = sbr.rel (%p289) target = $region12
    $region11: #{tpu_custom_call.1} parent=5 // pred_region
      %s293 = ssub.s32 %s17, 1
      // Predicated region
      $region13: #{tpu_custom_call.1} parent=11 // pred_check
        %p294 = pneg %p64
      $region14: #{tpu_custom_call.1} parent=11 // pred_check_branch
        %296 = sbr.rel (%p294) target = $region16
      $region15: #{tpu_custom_call.1} parent=11 // pred_region
        _
      $region16: #{tpu_custom_call.1} parent=11 // pred_fallthru
        _
      // Predicated region
      $region17: #{tpu_custom_call.1} parent=11 // pred_check
        %p297 = pneg %p85
      $region18: #{tpu_custom_call.1} parent=11 // pred_check_branch
        %299 = sbr.rel (%p297) target = $region20
      $region19: #{tpu_custom_call.1} parent=11 // pred_region
        _
      $region20: #{tpu_custom_call.1} parent=11 // pred_fallthru
        _
      // Predicated region
      $region21: #{tpu_custom_call.1} parent=11 // pred_check
        %p300 = pneg %p106
      $region22: #{tpu_custom_call.1} parent=11 // pred_check_branch
        %302 = sbr.rel (%p300) target = $region24
      $region23: #{tpu_custom_call.1} parent=11 // pred_region
        _
      $region24: #{tpu_custom_call.1} parent=11 // pred_fallthru
        _
      // Predicated region
      $region25: #{tpu_custom_call.1} parent=11 // pred_check
        %p303 = pneg %p127
      $region26: #{tpu_custom_call.1} parent=11 // pred_check_branch
        %305 = sbr.rel (%p303) target = $region28
      $region27: #{tpu_custom_call.1} parent=11 // pred_region
        _
      $region28: #{tpu_custom_call.1} parent=11 // pred_fallthru
        _
      // Predicated region
      $region29: #{tpu_custom_call.1} parent=11 // pred_check
        %p306 = pneg %p148
      $region30: #{tpu_custom_call.1} parent=11 // pred_check_branch
        %308 = sbr.rel (%p306) target = $region32
      $region31: #{tpu_custom_call.1} parent=11 // pred_region
        _
      $region32: #{tpu_custom_call.1} parent=11 // pred_fallthru
        _
      // Predicated region
      $region33: #{tpu_custom_call.1} parent=11 // pred_check
        %p309 = pneg %p169
      $region34: #{tpu_custom_call.1} parent=11 // pred_check_branch
        %311 = sbr.rel (%p309) target = $region36
      $region35: #{tpu_custom_call.1} parent=11 // pred_region
        _
      $region36: #{tpu_custom_call.1} parent=11 // pred_fallthru
        _
      // Predicated region
      $region37: #{tpu_custom_call.1} parent=11 // pred_check
        %p312 = pneg %p190
      $region38: #{tpu_custom_call.1} parent=11 // pred_check_branch
        %314 = sbr.rel (%p312) target = $region40
      $region39: #{tpu_custom_call.1} parent=11 // pred_region
        _
      $region40: #{tpu_custom_call.1} parent=11 // pred_fallthru
        _
      // Predicated region
      $region41: #{tpu_custom_call.1} parent=11 // pred_check
        %p315 = pneg %p211
      $region42: #{tpu_custom_call.1} parent=11 // pred_check_branch
        %317 = sbr.rel (%p315) target = $region44
      $region43: #{tpu_custom_call.1} parent=11 // pred_region
        _
      $region44: #{tpu_custom_call.1} parent=11 // pred_fallthru
        _
      // Predicated region
      $region45: #{tpu_custom_call.1} parent=11 // pred_check
        %p318 = pneg %p232
      $region46: #{tpu_custom_call.1} parent=11 // pred_check_branch
        %320 = sbr.rel (%p318) target = $region48
      $region47: #{tpu_custom_call.1} parent=11 // pred_region
        _
      $region48: #{tpu_custom_call.1} parent=11 // pred_fallthru
        _
      // Predicated region
      $region49: #{tpu_custom_call.1} parent=11 // pred_check
        %p321 = pneg %p253
      $region50: #{tpu_custom_call.1} parent=11 // pred_check_branch
        %323 = sbr.rel (%p321) target = $region52
      $region51: #{tpu_custom_call.1} parent=11 // pred_region
        _
      $region52: #{tpu_custom_call.1} parent=11 // pred_fallthru
        _
    $region12: #{tpu_custom_call.1} parent=5 // pred_fallthru
      _
    %p324 = scmp.lt.s32.totalorder %s17, 2
    // Predicated region
    $region53: #{tpu_custom_call.1} parent=5 // pred_check
      %p325 = pneg %p324
    $region54: #{tpu_custom_call.1} parent=5 // pred_check_branch
      %327 = sbr.rel (%p325) target = $region56
    $region55: #{tpu_custom_call.1} parent=5 // pred_region
      // Predicated region
      $region57: #{tpu_custom_call.1} parent=55 // pred_check
        %p328 = pneg %p37
      $region58: #{tpu_custom_call.1} parent=55 // pred_check_branch
        %330 = sbr.rel (%p328) target = $region60
      $region59: #{tpu_custom_call.1} parent=55 // pred_region
        %s331 = smul.u32 4, %s17
        %p332 = scmp.lt.s32.totalorder %s331, 7
        %s333 = scalar_select %p332, %s331, 7
        %s334 = smul.addr %s333, 32
        %s335 = smul.addr %s334, 8
        %s336 = scalar_lea.vmem %s0, %s335
        %s337 = smul.u32 4, %s17
      $region60: #{tpu_custom_call.1} parent=55 // pred_fallthru
        _
    $region56: #{tpu_custom_call.1} parent=5 // pred_fallthru
      _
    %p338 = scmp.le.s32.totalorder 1, %s17
    %p339 = scmp.lt.s32.totalorder %s17, 3
    %p340 = pnand %p338, %p339
    %p341 = pneg %p340
    // Predicated region
    $region61: #{tpu_custom_call.1} parent=5 // pred_check
      _
    $region62: #{tpu_custom_call.1} parent=5 // pred_check_branch
      %343 = sbr.rel (%p340) target = $region64
    $region63: #{tpu_custom_call.1} parent=5 // pred_region
      %s344 = ssub.s32 %s17, 1
      %s345 = smul.u32 4, %s22
      %p346 = scmp.lt.s32.totalorder %s345, 7
      %s347 = scalar_select %p346, %s345, 7
      %s348 = smul.addr %s347, 32
      %s349 = smul.addr %s348, 8
      %s350 = scalar_lea.vmem %s0, %s349
      %p351 = pneg %p43
      %p352 = pneg %p40
      %p353 = pneg %p64
      %p354 = pneg %p61
      %p355 = pneg %p85
      %p356 = pneg %p82
      %p357 = pneg %p106
      %p358 = pneg %p103
      %p359 = pneg %p127
      %p360 = pneg %p124
      %p361 = pneg %p148
      %p362 = pneg %p145
      %p363 = pneg %p169
      %p364 = pneg %p166
      %p365 = pneg %p190
      %p366 = pneg %p187
      %p367 = pneg %p211
      %p368 = pneg %p208
      %p369 = pneg %p232
      %p370 = pneg %p229
      %p371 = pneg %p253
      %p372 = pneg %p250
      %p373 = pneg %p279
      %p374 = pneg %p276
      %s375 = smul.u32 4, %s22
      %p376 = scmp.lt.s32.totalorder %s375, 7
      %s377 = scalar_select %p376, %s375, 7
      %s378 = smul.addr %s377, 32
      %s379 = smul.addr %s378, 8
      %s380 = scalar_lea.vmem %s11, %s379
      %s381 = smul.u32 4, %s22
      %p382 = scmp.lt.s32.totalorder %s381, 7
      %s383 = scalar_select %p382, %s381, 7
      %s384 = smul.addr %s383, 32
      %s385 = smul.addr %s384, 8
      %s386 = scalar_lea.vmem %s0, %s385
      %s387 = smul.u32 4, %s22
      %s388 = smul.u32 4, %s22
      %p389 = scmp.lt.s32.totalorder %s388, 7
      %s390 = scalar_select %p389, %s388, 7
      %s391 = smul.addr %s390, 32
      %s392 = smul.addr %s391, 8
      %s393 = scalar_lea.vmem %s11, %s392
      %s394 = smul.u32 4, %s22
      %v396 = vld [vmem:[%s386] sm:$0xff]
      %v397 = vld [vmem:[%s386 + $0x8] sm:$0xff]
      %v398 = vld [vmem:[%s386 + $0x10] sm:$0xff]
      %v399 = vld [vmem:[%s386 + $0x18] sm:$0xff]
      %v400 = vld [vmem:[%s386 + $0x20] sm:$0xff]
      %v401 = vld [vmem:[%s386 + $0x28] sm:$0xff]
      %v402 = vld [vmem:[%s386 + $0x30] sm:$0xff]
      %v403 = vld [vmem:[%s386 + $0x38] sm:$0xff]
      %v404 = vld [vmem:[%s386 + $0x40] sm:$0xff]
      %v405 = vld [vmem:[%s386 + $0x48] sm:$0xff]
      %v406 = vld [vmem:[%s386 + $0x50] sm:$0xff]
      %v407 = vld [vmem:[%s386 + $0x58] sm:$0xff]
      %v408 = vld [vmem:[%s386 + $0x60] sm:$0xff]
      %v409 = vld [vmem:[%s386 + $0x68] sm:$0xff]
      %v410 = vld [vmem:[%s386 + $0x70] sm:$0xff]
      %v411 = vld [vmem:[%s386 + $0x78] sm:$0xff]
      %v412 = vld [vmem:[%s386 + $0x80] sm:$0xff]
      %v413 = vld [vmem:[%s386 + $0x88] sm:$0xff]
      %v414 = vld [vmem:[%s386 + $0x90] sm:$0xff]
      %v415 = vld [vmem:[%s386 + $0x98] sm:$0xff]
      %v416 = vld [vmem:[%s386 + $0xa0] sm:$0xff]
      %v417 = vld [vmem:[%s386 + $0xa8] sm:$0xff]
      %v418 = vld [vmem:[%s386 + $0xb0] sm:$0xff]
      %v419 = vld [vmem:[%s386 + $0xb8] sm:$0xff]
      %v420 = vld [vmem:[%s386 + $0xc0] sm:$0xff]
      %v421 = vld [vmem:[%s386 + $0xc8] sm:$0xff]
      %v422 = vld [vmem:[%s386 + $0xd0] sm:$0xff]
      %v423 = vld [vmem:[%s386 + $0xd8] sm:$0xff]
      %v424 = vld [vmem:[%s386 + $0xe0] sm:$0xff]
      %v425 = vld [vmem:[%s386 + $0xe8] sm:$0xff]
      %v426 = vld [vmem:[%s386 + $0xf0] sm:$0xff]
      %v427 = vld [vmem:[%s386 + $0xf8] sm:$0xff]
      %v428 = vld [vmem:[%s386 + $0x100] sm:$0xff]
      %v429 = vld [vmem:[%s386 + $0x108] sm:$0xff]
      %v430 = vld [vmem:[%s386 + $0x110] sm:$0xff]
      %v431 = vld [vmem:[%s386 + $0x118] sm:$0xff]
      %v432 = vld [vmem:[%s386 + $0x120] sm:$0xff]
      %v433 = vld [vmem:[%s386 + $0x128] sm:$0xff]
      %v434 = vld [vmem:[%s386 + $0x130] sm:$0xff]
      %v435 = vld [vmem:[%s386 + $0x138] sm:$0xff]
      %v436 = vld [vmem:[%s386 + $0x140] sm:$0xff]
      %v437 = vld [vmem:[%s386 + $0x148] sm:$0xff]
      %v438 = vld [vmem:[%s386 + $0x150] sm:$0xff]
      %v439 = vld [vmem:[%s386 + $0x158] sm:$0xff]
      %v440 = vld [vmem:[%s386 + $0x160] sm:$0xff]
      %v441 = vld [vmem:[%s386 + $0x168] sm:$0xff]
      %v442 = vld [vmem:[%s386 + $0x170] sm:$0xff]
      %v443 = vld [vmem:[%s386 + $0x178] sm:$0xff]
      %v444 = vld [vmem:[%s386 + $0x180] sm:$0xff]
      %v445 = vld [vmem:[%s386 + $0x188] sm:$0xff]
      %v446 = vld [vmem:[%s386 + $0x190] sm:$0xff]
      %v447 = vld [vmem:[%s386 + $0x198] sm:$0xff]
      %v448 = vld [vmem:[%s386 + $0x1a0] sm:$0xff]
      %v449 = vld [vmem:[%s386 + $0x1a8] sm:$0xff]
      %v450 = vld [vmem:[%s386 + $0x1b0] sm:$0xff]
      %v451 = vld [vmem:[%s386 + $0x1b8] sm:$0xff]
      %v452 = vld [vmem:[%s386 + $0x1c0] sm:$0xff]
      %v453 = vld [vmem:[%s386 + $0x1c8] sm:$0xff]
      %v454 = vld [vmem:[%s386 + $0x1d0] sm:$0xff]
      %v455 = vld [vmem:[%s386 + $0x1d8] sm:$0xff]
      %v456 = vld [vmem:[%s386 + $0x1e0] sm:$0xff]
      %v457 = vld [vmem:[%s386 + $0x1e8] sm:$0xff]
      %v458 = vld [vmem:[%s386 + $0x1f0] sm:$0xff]
      %v459 = vld [vmem:[%s386 + $0x1f8] sm:$0xff]
      %v460 = vld [vmem:[%s386 + $0x200] sm:$0xff]
      %v461 = vld [vmem:[%s386 + $0x208] sm:$0xff]
      %v462 = vld [vmem:[%s386 + $0x210] sm:$0xff]
      %v463 = vld [vmem:[%s386 + $0x218] sm:$0xff]
      %v464 = vld [vmem:[%s386 + $0x220] sm:$0xff]
      %v465 = vld [vmem:[%s386 + $0x228] sm:$0xff]
      %v466 = vld [vmem:[%s386 + $0x230] sm:$0xff]
      %v467 = vld [vmem:[%s386 + $0x238] sm:$0xff]
      %v468 = vld [vmem:[%s386 + $0x240] sm:$0xff]
      %v469 = vld [vmem:[%s386 + $0x248] sm:$0xff]
      %v470 = vld [vmem:[%s386 + $0x250] sm:$0xff]
      %v471 = vld [vmem:[%s386 + $0x258] sm:$0xff]
      %v472 = vld [vmem:[%s386 + $0x260] sm:$0xff]
      %v473 = vld [vmem:[%s386 + $0x268] sm:$0xff]
      %v474 = vld [vmem:[%s386 + $0x270] sm:$0xff]
      %v475 = vld [vmem:[%s386 + $0x278] sm:$0xff]
      %v476 = vld [vmem:[%s386 + $0x280] sm:$0xff]
      %v477 = vld [vmem:[%s386 + $0x288] sm:$0xff]
      %v478 = vld [vmem:[%s386 + $0x290] sm:$0xff]
      %v479 = vld [vmem:[%s386 + $0x298] sm:$0xff]
      %v480 = vld [vmem:[%s386 + $0x2a0] sm:$0xff]
      %v481 = vld [vmem:[%s386 + $0x2a8] sm:$0xff]
      %v482 = vld [vmem:[%s386 + $0x2b0] sm:$0xff]
      %v483 = vld [vmem:[%s386 + $0x2b8] sm:$0xff]
      %v484 = vld [vmem:[%s386 + $0x2c0] sm:$0xff]
      %v485 = vld [vmem:[%s386 + $0x2c8] sm:$0xff]
      %v486 = vld [vmem:[%s386 + $0x2d0] sm:$0xff]
      %v487 = vld [vmem:[%s386 + $0x2d8] sm:$0xff]
      %v488 = vld [vmem:[%s386 + $0x2e0] sm:$0xff]
      %v489 = vld [vmem:[%s386 + $0x2e8] sm:$0xff]
      %v490 = vld [vmem:[%s386 + $0x2f0] sm:$0xff]
      %v491 = vld [vmem:[%s386 + $0x2f8] sm:$0xff]
      %v492 = vld [vmem:[%s386 + $0x300] sm:$0xff]
      %v493 = vld [vmem:[%s386 + $0x308] sm:$0xff]
      %v494 = vld [vmem:[%s386 + $0x310] sm:$0xff]
      %v495 = vld [vmem:[%s386 + $0x318] sm:$0xff]
      %v496 = vld [vmem:[%s386 + $0x320] sm:$0xff]
      %v497 = vld [vmem:[%s386 + $0x328] sm:$0xff]
      %v498 = vld [vmem:[%s386 + $0x330] sm:$0xff]
      %v499 = vld [vmem:[%s386 + $0x338] sm:$0xff]
      %v500 = vld [vmem:[%s386 + $0x340] sm:$0xff]
      %v501 = vld [vmem:[%s386 + $0x348] sm:$0xff]
      %v502 = vld [vmem:[%s386 + $0x350] sm:$0xff]
      %v503 = vld [vmem:[%s386 + $0x358] sm:$0xff]
      %v504 = vld [vmem:[%s386 + $0x360] sm:$0xff]
      %v505 = vld [vmem:[%s386 + $0x368] sm:$0xff]
      %v506 = vld [vmem:[%s386 + $0x370] sm:$0xff]
      %v507 = vld [vmem:[%s386 + $0x378] sm:$0xff]
      %v508 = vld [vmem:[%s386 + $0x380] sm:$0xff]
      %v509 = vld [vmem:[%s386 + $0x388] sm:$0xff]
      %v510 = vld [vmem:[%s386 + $0x390] sm:$0xff]
      %v511 = vld [vmem:[%s386 + $0x398] sm:$0xff]
      %v512 = vld [vmem:[%s386 + $0x3a0] sm:$0xff]
      %v513 = vld [vmem:[%s386 + $0x3a8] sm:$0xff]
      %v514 = vld [vmem:[%s386 + $0x3b0] sm:$0xff]
      %v515 = vld [vmem:[%s386 + $0x3b8] sm:$0xff]
      %v516 = vld [vmem:[%s386 + $0x3c0] sm:$0xff]
      %v517 = vld [vmem:[%s386 + $0x3c8] sm:$0xff]
      %v518 = vld [vmem:[%s386 + $0x3d0] sm:$0xff]
      %v519 = vld [vmem:[%s386 + $0x3d8] sm:$0xff]
      %v520 = vld [vmem:[%s386 + $0x3e0] sm:$0xff]
      %v521 = vld [vmem:[%s386 + $0x3e8] sm:$0xff]
      %v522 = vld [vmem:[%s386 + $0x3f0] sm:$0xff]
      %v523 = vld [vmem:[%s386 + $0x3f8] sm:$0xff]
      %v524 = vld [vmem:[%s1] sm:$0xf]
      %v525 = vld [vmem:[%s1 + $0x4] sm:$0xf]
      %v526 = vpack.c.bf16 %v397, %v396
      %v527 = vpack.c.bf16 %v399, %v398
      %v528 = vpack.c.bf16 %v401, %v400
      %v529 = vpack.c.bf16 %v403, %v402
      %v530 = vpack.c.bf16 %v405, %v404
      %v531 = vpack.c.bf16 %v407, %v406
      %v532 = vpack.c.bf16 %v409, %v408
      %v533 = vpack.c.bf16 %v411, %v410
      %v534 = vpack.c.bf16 %v413, %v412
      %v535 = vpack.c.bf16 %v415, %v414
      %v536 = vpack.c.bf16 %v417, %v416
      %v537 = vpack.c.bf16 %v419, %v418
      %v538 = vpack.c.bf16 %v421, %v420
      %v539 = vpack.c.bf16 %v423, %v422
      %v540 = vpack.c.bf16 %v425, %v424
      %v541 = vpack.c.bf16 %v427, %v426
      %v542 = vpack.c.bf16 %v429, %v428
      %v543 = vpack.c.bf16 %v431, %v430
      %v544 = vpack.c.bf16 %v433, %v432
      %v545 = vpack.c.bf16 %v435, %v434
      %v546 = vpack.c.bf16 %v437, %v436
      %v547 = vpack.c.bf16 %v439, %v438
      %v548 = vpack.c.bf16 %v441, %v440
      %v549 = vpack.c.bf16 %v443, %v442
      %v550 = vpack.c.bf16 %v445, %v444
      %v551 = vpack.c.bf16 %v447, %v446
      %v552 = vpack.c.bf16 %v449, %v448
      %v553 = vpack.c.bf16 %v451, %v450
      %v554 = vpack.c.bf16 %v453, %v452
      %v555 = vpack.c.bf16 %v455, %v454
      %v556 = vpack.c.bf16 %v457, %v456
      %v557 = vpack.c.bf16 %v459, %v458
      %v558 = vpack.c.bf16 %v461, %v460
      %v559 = vpack.c.bf16 %v463, %v462
      %v560 = vpack.c.bf16 %v465, %v464
      %v561 = vpack.c.bf16 %v467, %v466
      %v562 = vpack.c.bf16 %v469, %v468
      %v563 = vpack.c.bf16 %v471, %v470
      %v564 = vpack.c.bf16 %v473, %v472
      %v565 = vpack.c.bf16 %v475, %v474
      %v566 = vpack.c.bf16 %v477, %v476
      %v567 = vpack.c.bf16 %v479, %v478
      %v568 = vpack.c.bf16 %v481, %v480
      %v569 = vpack.c.bf16 %v483, %v482
      %v570 = vpack.c.bf16 %v485, %v484
      %v571 = vpack.c.bf16 %v487, %v486
      %v572 = vpack.c.bf16 %v489, %v488
      %v573 = vpack.c.bf16 %v491, %v490
      %v574 = vpack.c.bf16 %v493, %v492
      %v575 = vpack.c.bf16 %v495, %v494
      %v576 = vpack.c.bf16 %v497, %v496
      %v577 = vpack.c.bf16 %v499, %v498
      %v578 = vpack.c.bf16 %v501, %v500
      %v579 = vpack.c.bf16 %v503, %v502
      %v580 = vpack.c.bf16 %v505, %v504
      %v581 = vpack.c.bf16 %v507, %v506
      %v582 = vpack.c.bf16 %v509, %v508
      %v583 = vpack.c.bf16 %v511, %v510
      %v584 = vpack.c.bf16 %v513, %v512
      %v585 = vpack.c.bf16 %v515, %v514
      %v586 = vpack.c.bf16 %v517, %v516
      %v587 = vpack.c.bf16 %v519, %v518
      %v588 = vpack.c.bf16 %v521, %v520
      %v589 = vpack.c.bf16 %v523, %v522
      %v590 = vld [vmem:[%s2] sm:$0x1]
      %v592 = vperm.slane %v590, 0
      %v596 = vunpack.c.l.b16 %v524
      %v597 = vunpack.c.l.b16 %v525
      %v598 = vpack.c.b16 %v597, %v596
      %vm600 = vcmask 130048
      %v602 = vsel %vm600, %v526, 0
      %v605 = vsel %vm600, %v527, 0
      %v608 = vsel %vm600, %v528, 0
      %v611 = vsel %vm600, %v529, 0
      %v614 = vsel %vm600, %v530, 0
      %v617 = vsel %vm600, %v531, 0
      %v620 = vsel %vm600, %v532, 0
      %v623 = vsel %vm600, %v533, 0
      %v626 = vsel %vm600, %v534, 0
      %v629 = vsel %vm600, %v535, 0
      %v632 = vsel %vm600, %v536, 0
      %v635 = vsel %vm600, %v537, 0
      %v638 = vsel %vm600, %v538, 0
      %v641 = vsel %vm600, %v539, 0
      %v644 = vsel %vm600, %v540, 0
      %v647 = vsel %vm600, %v541, 0
      %v650 = vsel %vm600, %v542, 0
      %v653 = vsel %vm600, %v543, 0
      %v656 = vsel %vm600, %v544, 0
      %v659 = vsel %vm600, %v545, 0
      %v662 = vsel %vm600, %v546, 0
      %v665 = vsel %vm600, %v547, 0
      %v668 = vsel %vm600, %v548, 0
      %v671 = vsel %vm600, %v549, 0
      %v674 = vsel %vm600, %v550, 0
      %v677 = vsel %vm600, %v551, 0
      %v680 = vsel %vm600, %v552, 0
      %v683 = vsel %vm600, %v553, 0
      %v686 = vsel %vm600, %v554, 0
      %v689 = vsel %vm600, %v555, 0
      %v692 = vsel %vm600, %v556, 0
      %v695 = vsel %vm600, %v557, 0
      %v698 = vsel %vm600, %v558, 0
      %v701 = vsel %vm600, %v559, 0
      %v704 = vsel %vm600, %v560, 0
      %v707 = vsel %vm600, %v561, 0
      %v710 = vsel %vm600, %v562, 0
      %v713 = vsel %vm600, %v563, 0
      %v716 = vsel %vm600, %v564, 0
      %v719 = vsel %vm600, %v565, 0
      %v722 = vsel %vm600, %v566, 0
      %v725 = vsel %vm600, %v567, 0
      %v728 = vsel %vm600, %v568, 0
      %v731 = vsel %vm600, %v569, 0
      %v734 = vsel %vm600, %v570, 0
      %v737 = vsel %vm600, %v571, 0
      %v740 = vsel %vm600, %v572, 0
      %v743 = vsel %vm600, %v573, 0
      %v746 = vsel %vm600, %v574, 0
      %v749 = vsel %vm600, %v575, 0
      %v752 = vsel %vm600, %v576, 0
      %v755 = vsel %vm600, %v577, 0
      %v758 = vsel %vm600, %v578, 0
      %v761 = vsel %vm600, %v579, 0
      %v764 = vsel %vm600, %v580, 0
      %v767 = vsel %vm600, %v581, 0
      %v770 = vsel %vm600, %v582, 0
      %v773 = vsel %vm600, %v583, 0
      %v776 = vsel %vm600, %v584, 0
      %v779 = vsel %vm600, %v585, 0
      %v782 = vsel %vm600, %v586, 0
      %v785 = vsel %vm600, %v587, 0
      %v788 = vsel %vm600, %v588, 0
      %v791 = vsel %vm600, %v589, 0
      %793 = vmatpush.bf16.msra.mxu0 0
      %794 = vmatpush.bf16.msra.mxu0 0
      %795 = vmatpush.bf16.msra.mxu0 0
      %796 = vmatpush.bf16.msra.mxu0 0
      %797 = vmatpush.bf16.msra.mxu0 0
      %798 = vmatpush.bf16.msra.mxu0 0
      %799 = vmatpush.bf16.msra.mxu0 0
      %800 = vmatpush.bf16.msra.mxu0 %v598
      %801 = vmatmul.bf16.gmra.mxu0 %v602
      %v802 = vpop.f32.mrf.mxu0
      %v803 = vadd.f32 %v592, %v802
      %v804 = vpop.f32.mrf.mxu0
      %v805 = vadd.f32 %v592, %v804
      %806 = vmatmul.bf16.gmra.mxu0 %v605
      %v807 = vpop.f32.mrf.mxu0
      %v808 = vadd.f32 %v592, %v807
      %v809 = vpop.f32.mrf.mxu0
      %v810 = vadd.f32 %v592, %v809
      %811 = vmatmul.bf16.gmra.mxu0 %v608
      %v812 = vpop.f32.mrf.mxu0
      %v813 = vadd.f32 %v592, %v812
      %v814 = vpop.f32.mrf.mxu0
      %v815 = vadd.f32 %v592, %v814
      %816 = vmatmul.bf16.gmra.mxu0 %v611
      %v817 = vpop.f32.mrf.mxu0
      %v818 = vadd.f32 %v592, %v817
      %v819 = vpop.f32.mrf.mxu0
      %v820 = vadd.f32 %v592, %v819
      %821 = vmatmul.bf16.gmra.mxu0 %v614
      %v822 = vpop.f32.mrf.mxu0
      %v823 = vadd.f32 %v592, %v822
      %v824 = vpop.f32.mrf.mxu0
      %v825 = vadd.f32 %v592, %v824
      %826 = vmatmul.bf16.gmra.mxu0 %v617
      %v827 = vpop.f32.mrf.mxu0
      %v828 = vadd.f32 %v592, %v827
      %v829 = vpop.f32.mrf.mxu0
      %v830 = vadd.f32 %v592, %v829
      %831 = vmatmul.bf16.gmra.mxu0 %v620
      %v832 = vpop.f32.mrf.mxu0
      %v833 = vadd.f32 %v592, %v832
      %v834 = vpop.f32.mrf.mxu0
      %v835 = vadd.f32 %v592, %v834
      %836 = vmatmul.bf16.gmra.mxu0 %v623
      %v837 = vpop.f32.mrf.mxu0
      %v838 = vadd.f32 %v592, %v837
      %v839 = vpop.f32.mrf.mxu0
      %v840 = vadd.f32 %v592, %v839
      %841 = vmatmul.bf16.gmra.mxu0 %v626
      %v842 = vpop.f32.mrf.mxu0
      %v843 = vadd.f32 %v592, %v842
      %v844 = vpop.f32.mrf.mxu0
      %v845 = vadd.f32 %v592, %v844
      %846 = vmatmul.bf16.gmra.mxu0 %v629
      %v847 = vpop.f32.mrf.mxu0
      %v848 = vadd.f32 %v592, %v847
      %v849 = vpop.f32.mrf.mxu0
      %v850 = vadd.f32 %v592, %v849
      %851 = vmatmul.bf16.gmra.mxu0 %v632
      %v852 = vpop.f32.mrf.mxu0
      %v853 = vadd.f32 %v592, %v852
      %v854 = vpop.f32.mrf.mxu0
      %v855 = vadd.f32 %v592, %v854
      %856 = vmatmul.bf16.gmra.mxu0 %v635
      %v857 = vpop.f32.mrf.mxu0
      %v858 = vadd.f32 %v592, %v857
      %v859 = vpop.f32.mrf.mxu0
      %v860 = vadd.f32 %v592, %v859
      %861 = vmatmul.bf16.gmra.mxu0 %v638
      %v862 = vpop.f32.mrf.mxu0
      %v863 = vadd.f32 %v592, %v862
      %v864 = vpop.f32.mrf.mxu0
      %v865 = vadd.f32 %v592, %v864
      %866 = vmatmul.bf16.gmra.mxu0 %v641
      %v867 = vpop.f32.mrf.mxu0
      %v868 = vadd.f32 %v592, %v867
      %v869 = vpop.f32.mrf.mxu0
      %v870 = vadd.f32 %v592, %v869
      %871 = vmatmul.bf16.gmra.mxu0 %v644
      %v872 = vpop.f32.mrf.mxu0
      %v873 = vadd.f32 %v592, %v872
      %v874 = vpop.f32.mrf.mxu0
      %v875 = vadd.f32 %v592, %v874
      %876 = vmatmul.bf16.gmra.mxu0 %v647
      %v877 = vpop.f32.mrf.mxu0
      %v878 = vadd.f32 %v592, %v877
      %v879 = vpop.f32.mrf.mxu0
      %v880 = vadd.f32 %v592, %v879
      %881 = vmatmul.bf16.gmra.mxu0 %v650
      %v882 = vpop.f32.mrf.mxu0
      %v883 = vadd.f32 %v592, %v882
      %v884 = vpop.f32.mrf.mxu0
      %v885 = vadd.f32 %v592, %v884
      %886 = vmatmul.bf16.gmra.mxu0 %v653
      %v887 = vpop.f32.mrf.mxu0
      %v888 = vadd.f32 %v592, %v887
      %v889 = vpop.f32.mrf.mxu0
      %v890 = vadd.f32 %v592, %v889
      %891 = vmatmul.bf16.gmra.mxu0 %v656
      %v892 = vpop.f32.mrf.mxu0
      %v893 = vadd.f32 %v592, %v892
      %v894 = vpop.f32.mrf.mxu0
      %v895 = vadd.f32 %v592, %v894
      %896 = vmatmul.bf16.gmra.mxu0 %v659
      %v897 = vpop.f32.mrf.mxu0
      %v898 = vadd.f32 %v592, %v897
      %v899 = vpop.f32.mrf.mxu0
      %v900 = vadd.f32 %v592, %v899
      %901 = vmatmul.bf16.gmra.mxu0 %v662
      %v902 = vpop.f32.mrf.mxu0
      %v903 = vadd.f32 %v592, %v902
      %v904 = vpop.f32.mrf.mxu0
      %v905 = vadd.f32 %v592, %v904
      %906 = vmatmul.bf16.gmra.mxu0 %v665
      %v907 = vpop.f32.mrf.mxu0
      %v908 = vadd.f32 %v592, %v907
      %v909 = vpop.f32.mrf.mxu0
      %v910 = vadd.f32 %v592, %v909
      %911 = vmatmul.bf16.gmra.mxu0 %v668
      %v912 = vpop.f32.mrf.mxu0
      %v913 = vadd.f32 %v592, %v912
      %v914 = vpop.f32.mrf.mxu0
      %v915 = vadd.f32 %v592, %v914
      %916 = vmatmul.bf16.gmra.mxu0 %v671
      %v917 = vpop.f32.mrf.mxu0
      %v918 = vadd.f32 %v592, %v917
      %v919 = vpop.f32.mrf.mxu0
      %v920 = vadd.f32 %v592, %v919
      %921 = vmatmul.bf16.gmra.mxu0 %v674
      %v922 = vpop.f32.mrf.mxu0
      %v923 = vadd.f32 %v592, %v922
      %v924 = vpop.f32.mrf.mxu0
      %v925 = vadd.f32 %v592, %v924
      %926 = vmatmul.bf16.gmra.mxu0 %v677
      %v927 = vpop.f32.mrf.mxu0
      %v928 = vadd.f32 %v592, %v927
      %v929 = vpop.f32.mrf.mxu0
      %v930 = vadd.f32 %v592, %v929
      %931 = vmatmul.bf16.gmra.mxu0 %v680
      %v932 = vpop.f32.mrf.mxu0
      %v933 = vadd.f32 %v592, %v932
      %v934 = vpop.f32.mrf.mxu0
      %v935 = vadd.f32 %v592, %v934
      %936 = vmatmul.bf16.gmra.mxu0 %v683
      %v937 = vpop.f32.mrf.mxu0
      %v938 = vadd.f32 %v592, %v937
      %v939 = vpop.f32.mrf.mxu0
      %v940 = vadd.f32 %v592, %v939
      %941 = vmatmul.bf16.gmra.mxu0 %v686
      %v942 = vpop.f32.mrf.mxu0
      %v943 = vadd.f32 %v592, %v942
      %v944 = vpop.f32.mrf.mxu0
      %v945 = vadd.f32 %v592, %v944
      %946 = vmatmul.bf16.gmra.mxu0 %v689
      %v947 = vpop.f32.mrf.mxu0
      %v948 = vadd.f32 %v592, %v947
      %v949 = vpop.f32.mrf.mxu0
      %v950 = vadd.f32 %v592, %v949
      %951 = vmatmul.bf16.gmra.mxu0 %v692
      %v952 = vpop.f32.mrf.mxu0
      %v953 = vadd.f32 %v592, %v952
      %v954 = vpop.f32.mrf.mxu0
      %v955 = vadd.f32 %v592, %v954
      %956 = vmatmul.bf16.gmra.mxu0 %v695
      %v957 = vpop.f32.mrf.mxu0
      %v958 = vadd.f32 %v592, %v957
      %v959 = vpop.f32.mrf.mxu0
      %v960 = vadd.f32 %v592, %v959
      %961 = vmatmul.bf16.gmra.mxu0 %v698
      %v962 = vpop.f32.mrf.mxu0
      %v963 = vadd.f32 %v592, %v962
      %v964 = vpop.f32.mrf.mxu0
      %v965 = vadd.f32 %v592, %v964
      %966 = vmatmul.bf16.gmra.mxu0 %v701
      %v967 = vpop.f32.mrf.mxu0
      %v968 = vadd.f32 %v592, %v967
      %v969 = vpop.f32.mrf.mxu0
      %v970 = vadd.f32 %v592, %v969
      %971 = vmatmul.bf16.gmra.mxu0 %v704
      %v972 = vpop.f32.mrf.mxu0
      %v973 = vadd.f32 %v592, %v972
      %v974 = vpop.f32.mrf.mxu0
      %v975 = vadd.f32 %v592, %v974
      %976 = vmatmul.bf16.gmra.mxu0 %v707
      %v977 = vpop.f32.mrf.mxu0
      %v978 = vadd.f32 %v592, %v977
      %v979 = vpop.f32.mrf.mxu0
      %v980 = vadd.f32 %v592, %v979
      %981 = vmatmul.bf16.gmra.mxu0 %v710
      %v982 = vpop.f32.mrf.mxu0
      %v983 = vadd.f32 %v592, %v982
      %v984 = vpop.f32.mrf.mxu0
      %v985 = vadd.f32 %v592, %v984
      %986 = vmatmul.bf16.gmra.mxu0 %v713
      %v987 = vpop.f32.mrf.mxu0
      %v988 = vadd.f32 %v592, %v987
      %v989 = vpop.f32.mrf.mxu0
      %v990 = vadd.f32 %v592, %v989
      %991 = vmatmul.bf16.gmra.mxu0 %v716
      %v992 = vpop.f32.mrf.mxu0
      %v993 = vadd.f32 %v592, %v992
      %v994 = vpop.f32.mrf.mxu0
      %v995 = vadd.f32 %v592, %v994
      %996 = vmatmul.bf16.gmra.mxu0 %v719
      %v997 = vpop.f32.mrf.mxu0
      %v998 = vadd.f32 %v592, %v997
      %v999 = vpop.f32.mrf.mxu0
      %v1000 = vadd.f32 %v592, %v999
      %1001 = vmatmul.bf16.gmra.mxu0 %v722
      %v1002 = vpop.f32.mrf.mxu0
      %v1003 = vadd.f32 %v592, %v1002
      %v1004 = vpop.f32.mrf.mxu0
      %v1005 = vadd.f32 %v592, %v1004
      %1006 = vmatmul.bf16.gmra.mxu0 %v725
      %v1007 = vpop.f32.mrf.mxu0
      %v1008 = vadd.f32 %v592, %v1007
      %v1009 = vpop.f32.mrf.mxu0
      %v1010 = vadd.f32 %v592, %v1009
      %1011 = vmatmul.bf16.gmra.mxu0 %v728
      %v1012 = vpop.f32.mrf.mxu0
      %v1013 = vadd.f32 %v592, %v1012
      %v1014 = vpop.f32.mrf.mxu0
      %v1015 = vadd.f32 %v592, %v1014
      %1016 = vmatmul.bf16.gmra.mxu0 %v731
      %v1017 = vpop.f32.mrf.mxu0
      %v1018 = vadd.f32 %v592, %v1017
      %v1019 = vpop.f32.mrf.mxu0
      %v1020 = vadd.f32 %v592, %v1019
      %1021 = vmatmul.bf16.gmra.mxu0 %v734
      %v1022 = vpop.f32.mrf.mxu0
      %v1023 = vadd.f32 %v592, %v1022
      %v1024 = vpop.f32.mrf.mxu0
      %v1025 = vadd.f32 %v592, %v1024
      %1026 = vmatmul.bf16.gmra.mxu0 %v737
      %v1027 = vpop.f32.mrf.mxu0
      %v1028 = vadd.f32 %v592, %v1027
      %v1029 = vpop.f32.mrf.mxu0
      %v1030 = vadd.f32 %v592, %v1029
      %1031 = vmatmul.bf16.gmra.mxu0 %v740
      %v1032 = vpop.f32.mrf.mxu0
      %v1033 = vadd.f32 %v592, %v1032
      %v1034 = vpop.f32.mrf.mxu0
      %v1035 = vadd.f32 %v592, %v1034
      %1036 = vmatmul.bf16.gmra.mxu0 %v743
      %v1037 = vpop.f32.mrf.mxu0
      %v1038 = vadd.f32 %v592, %v1037
      %v1039 = vpop.f32.mrf.mxu0
      %v1040 = vadd.f32 %v592, %v1039
      %1041 = vmatmul.bf16.gmra.mxu0 %v746
      %v1042 = vpop.f32.mrf.mxu0
      %v1043 = vadd.f32 %v592, %v1042
      %v1044 = vpop.f32.mrf.mxu0
      %v1045 = vadd.f32 %v592, %v1044
      %1046 = vmatmul.bf16.gmra.mxu0 %v749
      %v1047 = vpop.f32.mrf.mxu0
      %v1048 = vadd.f32 %v592, %v1047
      %v1049 = vpop.f32.mrf.mxu0
      %v1050 = vadd.f32 %v592, %v1049
      %1051 = vmatmul.bf16.gmra.mxu0 %v752
      %v1052 = vpop.f32.mrf.mxu0
      %v1053 = vadd.f32 %v592, %v1052
      %v1054 = vpop.f32.mrf.mxu0
      %v1055 = vadd.f32 %v592, %v1054
      %1056 = vmatmul.bf16.gmra.mxu0 %v755
      %v1057 = vpop.f32.mrf.mxu0
      %v1058 = vadd.f32 %v592, %v1057
      %v1059 = vpop.f32.mrf.mxu0
      %v1060 = vadd.f32 %v592, %v1059
      %1061 = vmatmul.bf16.gmra.mxu0 %v758
      %v1062 = vpop.f32.mrf.mxu0
      %v1063 = vadd.f32 %v592, %v1062
      %v1064 = vpop.f32.mrf.mxu0
      %v1065 = vadd.f32 %v592, %v1064
      %1066 = vmatmul.bf16.gmra.mxu0 %v761
      %v1067 = vpop.f32.mrf.mxu0
      %v1068 = vadd.f32 %v592, %v1067
      %v1069 = vpop.f32.mrf.mxu0
      %v1070 = vadd.f32 %v592, %v1069
      %1071 = vmatmul.bf16.gmra.mxu0 %v764
      %v1072 = vpop.f32.mrf.mxu0
      %v1073 = vadd.f32 %v592, %v1072
      %v1074 = vpop.f32.mrf.mxu0
      %v1075 = vadd.f32 %v592, %v1074
      %1076 = vmatmul.bf16.gmra.mxu0 %v767
      %v1077 = vpop.f32.mrf.mxu0
      %v1078 = vadd.f32 %v592, %v1077
      %v1079 = vpop.f32.mrf.mxu0
      %v1080 = vadd.f32 %v592, %v1079
      %1081 = vmatmul.bf16.gmra.mxu0 %v770
      %v1082 = vpop.f32.mrf.mxu0
      %v1083 = vadd.f32 %v592, %v1082
      %v1084 = vpop.f32.mrf.mxu0
      %v1085 = vadd.f32 %v592, %v1084
      %1086 = vmatmul.bf16.gmra.mxu0 %v773
      %v1087 = vpop.f32.mrf.mxu0
      %v1088 = vadd.f32 %v592, %v1087
      %v1089 = vpop.f32.mrf.mxu0
      %v1090 = vadd.f32 %v592, %v1089
      %1091 = vmatmul.bf16.gmra.mxu0 %v776
      %v1092 = vpop.f32.mrf.mxu0
      %v1093 = vadd.f32 %v592, %v1092
      %v1094 = vpop.f32.mrf.mxu0
      %v1095 = vadd.f32 %v592, %v1094
      %1096 = vmatmul.bf16.gmra.mxu0 %v779
      %v1097 = vpop.f32.mrf.mxu0
      %v1098 = vadd.f32 %v592, %v1097
      %v1099 = vpop.f32.mrf.mxu0
      %v1100 = vadd.f32 %v592, %v1099
      %1101 = vmatmul.bf16.gmra.mxu0 %v782
      %v1102 = vpop.f32.mrf.mxu0
      %v1103 = vadd.f32 %v592, %v1102
      %v1104 = vpop.f32.mrf.mxu0
      %v1105 = vadd.f32 %v592, %v1104
      %1106 = vmatmul.bf16.gmra.mxu0 %v785
      %v1107 = vpop.f32.mrf.mxu0
      %v1108 = vadd.f32 %v592, %v1107
      %v1109 = vpop.f32.mrf.mxu0
      %v1110 = vadd.f32 %v592, %v1109
      %1111 = vmatmul.bf16.gmra.mxu0 %v788
      %v1112 = vpop.f32.mrf.mxu0
      %v1113 = vadd.f32 %v592, %v1112
      %v1114 = vpop.f32.mrf.mxu0
      %v1115 = vadd.f32 %v592, %v1114
      %1116 = vmatmul.bf16.gmra.mxu0 %v791
      %v1117 = vpop.f32.mrf.mxu0
      %v1118 = vadd.f32 %v592, %v1117
      %v1119 = vpop.f32.mrf.mxu0
      %v1120 = vadd.f32 %v592, %v1119
      %1121 = vdwg.mxu0
      %v1122 = vadd.f32 %v803, 3.0
      %v1123 = vadd.f32 %v805, 3.0
      %v1124 = vadd.f32 %v808, 3.0
      %v1125 = vadd.f32 %v810, 3.0
      %v1126 = vadd.f32 %v813, 3.0
      %v1127 = vadd.f32 %v815, 3.0
      %v1128 = vadd.f32 %v818, 3.0
      %v1129 = vadd.f32 %v820, 3.0
      %v1130 = vadd.f32 %v823, 3.0
      %v1131 = vadd.f32 %v825, 3.0
      %v1132 = vadd.f32 %v828, 3.0
      %v1133 = vadd.f32 %v830, 3.0
      %v1134 = vadd.f32 %v833, 3.0
      %v1135 = vadd.f32 %v835, 3.0
      %v1136 = vadd.f32 %v838, 3.0
      %v1137 = vadd.f32 %v840, 3.0
      %v1138 = vadd.f32 %v843, 3.0
      %v1139 = vadd.f32 %v845, 3.0
      %v1140 = vadd.f32 %v848, 3.0
      %v1141 = vadd.f32 %v850, 3.0
      %v1142 = vadd.f32 %v853, 3.0
      %v1143 = vadd.f32 %v855, 3.0
      %v1144 = vadd.f32 %v858, 3.0
      %v1145 = vadd.f32 %v860, 3.0
      %v1146 = vadd.f32 %v863, 3.0
      %v1147 = vadd.f32 %v865, 3.0
      %v1148 = vadd.f32 %v868, 3.0
      %v1149 = vadd.f32 %v870, 3.0
      %v1150 = vadd.f32 %v873, 3.0
      %v1151 = vadd.f32 %v875, 3.0
      %v1152 = vadd.f32 %v878, 3.0
      %v1153 = vadd.f32 %v880, 3.0
      %v1154 = vadd.f32 %v883, 3.0
      %v1155 = vadd.f32 %v885, 3.0
      %v1156 = vadd.f32 %v888, 3.0
      %v1157 = vadd.f32 %v890, 3.0
      %v1158 = vadd.f32 %v893, 3.0
      %v1159 = vadd.f32 %v895, 3.0
      %v1160 = vadd.f32 %v898, 3.0
      %v1161 = vadd.f32 %v900, 3.0
      %v1162 = vadd.f32 %v903, 3.0
      %v1163 = vadd.f32 %v905, 3.0
      %v1164 = vadd.f32 %v908, 3.0
      %v1165 = vadd.f32 %v910, 3.0
      %v1166 = vadd.f32 %v913, 3.0
      %v1167 = vadd.f32 %v915, 3.0
      %v1168 = vadd.f32 %v918, 3.0
      %v1169 = vadd.f32 %v920, 3.0
      %v1170 = vadd.f32 %v923, 3.0
      %v1171 = vadd.f32 %v925, 3.0
      %v1172 = vadd.f32 %v928, 3.0
      %v1173 = vadd.f32 %v930, 3.0
      %v1174 = vadd.f32 %v933, 3.0
      %v1175 = vadd.f32 %v935, 3.0
      %v1176 = vadd.f32 %v938, 3.0
      %v1177 = vadd.f32 %v940, 3.0
      %v1178 = vadd.f32 %v943, 3.0
      %v1179 = vadd.f32 %v945, 3.0
      %v1180 = vadd.f32 %v948, 3.0
      %v1181 = vadd.f32 %v950, 3.0
      %v1182 = vadd.f32 %v953, 3.0
      %v1183 = vadd.f32 %v955, 3.0
      %v1184 = vadd.f32 %v958, 3.0
      %v1185 = vadd.f32 %v960, 3.0
      %v1186 = vadd.f32 %v963, 3.0
      %v1187 = vadd.f32 %v965, 3.0
      %v1188 = vadd.f32 %v968, 3.0
      %v1189 = vadd.f32 %v970, 3.0
      %v1190 = vadd.f32 %v973, 3.0
      %v1191 = vadd.f32 %v975, 3.0
      %v1192 = vadd.f32 %v978, 3.0
      %v1193 = vadd.f32 %v980, 3.0
      %v1194 = vadd.f32 %v983, 3.0
      %v1195 = vadd.f32 %v985, 3.0
      %v1196 = vadd.f32 %v988, 3.0
      %v1197 = vadd.f32 %v990, 3.0
      %v1198 = vadd.f32 %v993, 3.0
      %v1199 = vadd.f32 %v995, 3.0
      %v1200 = vadd.f32 %v998, 3.0
      %v1201 = vadd.f32 %v1000, 3.0
      %v1202 = vadd.f32 %v1003, 3.0
      %v1203 = vadd.f32 %v1005, 3.0
      %v1204 = vadd.f32 %v1008, 3.0
      %v1205 = vadd.f32 %v1010, 3.0
      %v1206 = vadd.f32 %v1013, 3.0
      %v1207 = vadd.f32 %v1015, 3.0
      %v1208 = vadd.f32 %v1018, 3.0
      %v1209 = vadd.f32 %v1020, 3.0
      %v1210 = vadd.f32 %v1023, 3.0
      %v1211 = vadd.f32 %v1025, 3.0
      %v1212 = vadd.f32 %v1028, 3.0
      %v1213 = vadd.f32 %v1030, 3.0
      %v1214 = vadd.f32 %v1033, 3.0
      %v1215 = vadd.f32 %v1035, 3.0
      %v1216 = vadd.f32 %v1038, 3.0
      %v1217 = vadd.f32 %v1040, 3.0
      %v1218 = vadd.f32 %v1043, 3.0
      %v1219 = vadd.f32 %v1045, 3.0
      %v1220 = vadd.f32 %v1048, 3.0
      %v1221 = vadd.f32 %v1050, 3.0
      %v1222 = vadd.f32 %v1053, 3.0
      %v1223 = vadd.f32 %v1055, 3.0
      %v1224 = vadd.f32 %v1058, 3.0
      %v1225 = vadd.f32 %v1060, 3.0
      %v1226 = vadd.f32 %v1063, 3.0
      %v1227 = vadd.f32 %v1065, 3.0
      %v1228 = vadd.f32 %v1068, 3.0
      %v1229 = vadd.f32 %v1070, 3.0
      %v1230 = vadd.f32 %v1073, 3.0
      %v1231 = vadd.f32 %v1075, 3.0
      %v1232 = vadd.f32 %v1078, 3.0
      %v1233 = vadd.f32 %v1080, 3.0
      %v1234 = vadd.f32 %v1083, 3.0
      %v1235 = vadd.f32 %v1085, 3.0
      %v1236 = vadd.f32 %v1088, 3.0
      %v1237 = vadd.f32 %v1090, 3.0
      %v1238 = vadd.f32 %v1093, 3.0
      %v1239 = vadd.f32 %v1095, 3.0
      %v1240 = vadd.f32 %v1098, 3.0
      %v1241 = vadd.f32 %v1100, 3.0
      %v1242 = vadd.f32 %v1103, 3.0
      %v1243 = vadd.f32 %v1105, 3.0
      %v1244 = vadd.f32 %v1108, 3.0
      %v1245 = vadd.f32 %v1110, 3.0
      %v1246 = vadd.f32 %v1113, 3.0
      %v1247 = vadd.f32 %v1115, 3.0
      %v1248 = vadd.f32 %v1118, 3.0
      %v1249 = vadd.f32 %v1120, 3.0
      %v1250 = vmax.f32 %v1122, 0.0
      %v1251 = vmax.f32 %v1123, 0.0
      %v1252 = vmax.f32 %v1124, 0.0
      %v1253 = vmax.f32 %v1125, 0.0
      %v1254 = vmax.f32 %v1126, 0.0
      %v1255 = vmax.f32 %v1127, 0.0
      %v1256 = vmax.f32 %v1128, 0.0
      %v1257 = vmax.f32 %v1129, 0.0
      %v1258 = vmax.f32 %v1130, 0.0
      %v1259 = vmax.f32 %v1131, 0.0
      %v1260 = vmax.f32 %v1132, 0.0
      %v1261 = vmax.f32 %v1133, 0.0
      %v1262 = vmax.f32 %v1134, 0.0
      %v1263 = vmax.f32 %v1135, 0.0
      %v1264 = vmax.f32 %v1136, 0.0
      %v1265 = vmax.f32 %v1137, 0.0
      %v1266 = vmax.f32 %v1138, 0.0
      %v1267 = vmax.f32 %v1139, 0.0
      %v1268 = vmax.f32 %v1140, 0.0
      %v1269 = vmax.f32 %v1141, 0.0
      %v1270 = vmax.f32 %v1142, 0.0
      %v1271 = vmax.f32 %v1143, 0.0
      %v1272 = vmax.f32 %v1144, 0.0
      %v1273 = vmax.f32 %v1145, 0.0
      %v1274 = vmax.f32 %v1146, 0.0
      %v1275 = vmax.f32 %v1147, 0.0
      %v1276 = vmax.f32 %v1148, 0.0
      %v1277 = vmax.f32 %v1149, 0.0
      %v1278 = vmax.f32 %v1150, 0.0
      %v1279 = vmax.f32 %v1151, 0.0
      %v1280 = vmax.f32 %v1152, 0.0
      %v1281 = vmax.f32 %v1153, 0.0
      %v1282 = vmax.f32 %v1154, 0.0
      %v1283 = vmax.f32 %v1155, 0.0
      %v1284 = vmax.f32 %v1156, 0.0
      %v1285 = vmax.f32 %v1157, 0.0
      %v1286 = vmax.f32 %v1158, 0.0
      %v1287 = vmax.f32 %v1159, 0.0
      %v1288 = vmax.f32 %v1160, 0.0
      %v1289 = vmax.f32 %v1161, 0.0
      %v1290 = vmax.f32 %v1162, 0.0
      %v1291 = vmax.f32 %v1163, 0.0
      %v1292 = vmax.f32 %v1164, 0.0
      %v1293 = vmax.f32 %v1165, 0.0
      %v1294 = vmax.f32 %v1166, 0.0
      %v1295 = vmax.f32 %v1167, 0.0
      %v1296 = vmax.f32 %v1168, 0.0
      %v1297 = vmax.f32 %v1169, 0.0
      %v1298 = vmax.f32 %v1170, 0.0
      %v1299 = vmax.f32 %v1171, 0.0
      %v1300 = vmax.f32 %v1172, 0.0
      %v1301 = vmax.f32 %v1173, 0.0
      %v1302 = vmax.f32 %v1174, 0.0
      %v1303 = vmax.f32 %v1175, 0.0
      %v1304 = vmax.f32 %v1176, 0.0
      %v1305 = vmax.f32 %v1177, 0.0
      %v1306 = vmax.f32 %v1178, 0.0
      %v1307 = vmax.f32 %v1179, 0.0
      %v1308 = vmax.f32 %v1180, 0.0
      %v1309 = vmax.f32 %v1181, 0.0
      %v1310 = vmax.f32 %v1182, 0.0
      %v1311 = vmax.f32 %v1183, 0.0
      %v1312 = vmax.f32 %v1184, 0.0
      %v1313 = vmax.f32 %v1185, 0.0
      %v1314 = vmax.f32 %v1186, 0.0
      %v1315 = vmax.f32 %v1187, 0.0
      %v1316 = vmax.f32 %v1188, 0.0
      %v1317 = vmax.f32 %v1189, 0.0
      %v1318 = vmax.f32 %v1190, 0.0
      %v1319 = vmax.f32 %v1191, 0.0
      %v1320 = vmax.f32 %v1192, 0.0
      %v1321 = vmax.f32 %v1193, 0.0
      %v1322 = vmax.f32 %v1194, 0.0
      %v1323 = vmax.f32 %v1195, 0.0
      %v1324 = vmax.f32 %v1196, 0.0
      %v1325 = vmax.f32 %v1197, 0.0
      %v1326 = vmax.f32 %v1198, 0.0
      %v1327 = vmax.f32 %v1199, 0.0
      %v1328 = vmax.f32 %v1200, 0.0
      %v1329 = vmax.f32 %v1201, 0.0
      %v1330 = vmax.f32 %v1202, 0.0
      %v1331 = vmax.f32 %v1203, 0.0
      %v1332 = vmax.f32 %v1204, 0.0
      %v1333 = vmax.f32 %v1205, 0.0
      %v1334 = vmax.f32 %v1206, 0.0
      %v1335 = vmax.f32 %v1207, 0.0
      %v1336 = vmax.f32 %v1208, 0.0
      %v1337 = vmax.f32 %v1209, 0.0
      %v1338 = vmax.f32 %v1210, 0.0
      %v1339 = vmax.f32 %v1211, 0.0
      %v1340 = vmax.f32 %v1212, 0.0
      %v1341 = vmax.f32 %v1213, 0.0
      %v1342 = vmax.f32 %v1214, 0.0
      %v1343 = vmax.f32 %v1215, 0.0
      %v1344 = vmax.f32 %v1216, 0.0
      %v1345 = vmax.f32 %v1217, 0.0
      %v1346 = vmax.f32 %v1218, 0.0
      %v1347 = vmax.f32 %v1219, 0.0
      %v1348 = vmax.f32 %v1220, 0.0
      %v1349 = vmax.f32 %v1221, 0.0
      %v1350 = vmax.f32 %v1222, 0.0
      %v1351 = vmax.f32 %v1223, 0.0
      %v1352 = vmax.f32 %v1224, 0.0
      %v1353 = vmax.f32 %v1225, 0.0
      %v1354 = vmax.f32 %v1226, 0.0
      %v1355 = vmax.f32 %v1227, 0.0
      %v1356 = vmax.f32 %v1228, 0.0
      %v1357 = vmax.f32 %v1229, 0.0
      %v1358 = vmax.f32 %v1230, 0.0
      %v1359 = vmax.f32 %v1231, 0.0
      %v1360 = vmax.f32 %v1232, 0.0
      %v1361 = vmax.f32 %v1233, 0.0
      %v1362 = vmax.f32 %v1234, 0.0
      %v1363 = vmax.f32 %v1235, 0.0
      %v1364 = vmax.f32 %v1236, 0.0
      %v1365 = vmax.f32 %v1237, 0.0
      %v1366 = vmax.f32 %v1238, 0.0
      %v1367 = vmax.f32 %v1239, 0.0
      %v1368 = vmax.f32 %v1240, 0.0
      %v1369 = vmax.f32 %v1241, 0.0
      %v1370 = vmax.f32 %v1242, 0.0
      %v1371 = vmax.f32 %v1243, 0.0
      %v1372 = vmax.f32 %v1244, 0.0
      %v1373 = vmax.f32 %v1245, 0.0
      %v1374 = vmax.f32 %v1246, 0.0
      %v1375 = vmax.f32 %v1247, 0.0
      %v1376 = vmax.f32 %v1248, 0.0
      %v1377 = vmax.f32 %v1249, 0.0
      %v1378 = vmin.f32 %v1250, 6.0
      %v1379 = vmin.f32 %v1251, 6.0
      %v1380 = vmin.f32 %v1252, 6.0
      %v1381 = vmin.f32 %v1253, 6.0
      %v1382 = vmin.f32 %v1254, 6.0
      %v1383 = vmin.f32 %v1255, 6.0
      %v1384 = vmin.f32 %v1256, 6.0
      %v1385 = vmin.f32 %v1257, 6.0
      %v1386 = vmin.f32 %v1258, 6.0
      %v1387 = vmin.f32 %v1259, 6.0
      %v1388 = vmin.f32 %v1260, 6.0
      %v1389 = vmin.f32 %v1261, 6.0
      %v1390 = vmin.f32 %v1262, 6.0
      %v1391 = vmin.f32 %v1263, 6.0
      %v1392 = vmin.f32 %v1264, 6.0
      %v1393 = vmin.f32 %v1265, 6.0
      %v1394 = vmin.f32 %v1266, 6.0
      %v1395 = vmin.f32 %v1267, 6.0
      %v1396 = vmin.f32 %v1268, 6.0
      %v1397 = vmin.f32 %v1269, 6.0
      %v1398 = vmin.f32 %v1270, 6.0
      %v1399 = vmin.f32 %v1271, 6.0
      %v1400 = vmin.f32 %v1272, 6.0
      %v1401 = vmin.f32 %v1273, 6.0
      %v1402 = vmin.f32 %v1274, 6.0
      %v1403 = vmin.f32 %v1275, 6.0
      %v1404 = vmin.f32 %v1276, 6.0
      %v1405 = vmin.f32 %v1277, 6.0
      %v1406 = vmin.f32 %v1278, 6.0
      %v1407 = vmin.f32 %v1279, 6.0
      %v1408 = vmin.f32 %v1280, 6.0
      %v1409 = vmin.f32 %v1281, 6.0
      %v1410 = vmin.f32 %v1282, 6.0
      %v1411 = vmin.f32 %v1283, 6.0
      %v1412 = vmin.f32 %v1284, 6.0
      %v1413 = vmin.f32 %v1285, 6.0
      %v1414 = vmin.f32 %v1286, 6.0
      %v1415 = vmin.f32 %v1287, 6.0
      %v1416 = vmin.f32 %v1288, 6.0
      %v1417 = vmin.f32 %v1289, 6.0
      %v1418 = vmin.f32 %v1290, 6.0
      %v1419 = vmin.f32 %v1291, 6.0
      %v1420 = vmin.f32 %v1292, 6.0
      %v1421 = vmin.f32 %v1293, 6.0
      %v1422 = vmin.f32 %v1294, 6.0
      %v1423 = vmin.f32 %v1295, 6.0
      %v1424 = vmin.f32 %v1296, 6.0
      %v1425 = vmin.f32 %v1297, 6.0
      %v1426 = vmin.f32 %v1298, 6.0
      %v1427 = vmin.f32 %v1299, 6.0
      %v1428 = vmin.f32 %v1300, 6.0
      %v1429 = vmin.f32 %v1301, 6.0
      %v1430 = vmin.f32 %v1302, 6.0
      %v1431 = vmin.f32 %v1303, 6.0
      %v1432 = vmin.f32 %v1304, 6.0
      %v1433 = vmin.f32 %v1305, 6.0
      %v1434 = vmin.f32 %v1306, 6.0
      %v1435 = vmin.f32 %v1307, 6.0
      %v1436 = vmin.f32 %v1308, 6.0
      %v1437 = vmin.f32 %v1309, 6.0
      %v1438 = vmin.f32 %v1310, 6.0
      %v1439 = vmin.f32 %v1311, 6.0
      %v1440 = vmin.f32 %v1312, 6.0
      %v1441 = vmin.f32 %v1313, 6.0
      %v1442 = vmin.f32 %v1314, 6.0
      %v1443 = vmin.f32 %v1315, 6.0
      %v1444 = vmin.f32 %v1316, 6.0
      %v1445 = vmin.f32 %v1317, 6.0
      %v1446 = vmin.f32 %v1318, 6.0
      %v1447 = vmin.f32 %v1319, 6.0
      %v1448 = vmin.f32 %v1320, 6.0
      %v1449 = vmin.f32 %v1321, 6.0
      %v1450 = vmin.f32 %v1322, 6.0
      %v1451 = vmin.f32 %v1323, 6.0
      %v1452 = vmin.f32 %v1324, 6.0
      %v1453 = vmin.f32 %v1325, 6.0
      %v1454 = vmin.f32 %v1326, 6.0
      %v1455 = vmin.f32 %v1327, 6.0
      %v1456 = vmin.f32 %v1328, 6.0
      %v1457 = vmin.f32 %v1329, 6.0
      %v1458 = vmin.f32 %v1330, 6.0
      %v1459 = vmin.f32 %v1331, 6.0
      %v1460 = vmin.f32 %v1332, 6.0
      %v1461 = vmin.f32 %v1333, 6.0
      %v1462 = vmin.f32 %v1334, 6.0
      %v1463 = vmin.f32 %v1335, 6.0
      %v1464 = vmin.f32 %v1336, 6.0
      %v1465 = vmin.f32 %v1337, 6.0
      %v1466 = vmin.f32 %v1338, 6.0
      %v1467 = vmin.f32 %v1339, 6.0
      %v1468 = vmin.f32 %v1340, 6.0
      %v1469 = vmin.f32 %v1341, 6.0
      %v1470 = vmin.f32 %v1342, 6.0
      %v1471 = vmin.f32 %v1343, 6.0
      %v1472 = vmin.f32 %v1344, 6.0
      %v1473 = vmin.f32 %v1345, 6.0
      %v1474 = vmin.f32 %v1346, 6.0
      %v1475 = vmin.f32 %v1347, 6.0
      %v1476 = vmin.f32 %v1348, 6.0
      %v1477 = vmin.f32 %v1349, 6.0
      %v1478 = vmin.f32 %v1350, 6.0
      %v1479 = vmin.f32 %v1351, 6.0
      %v1480 = vmin.f32 %v1352, 6.0
      %v1481 = vmin.f32 %v1353, 6.0
      %v1482 = vmin.f32 %v1354, 6.0
      %v1483 = vmin.f32 %v1355, 6.0
      %v1484 = vmin.f32 %v1356, 6.0
      %v1485 = vmin.f32 %v1357, 6.0
      %v1486 = vmin.f32 %v1358, 6.0
      %v1487 = vmin.f32 %v1359, 6.0
      %v1488 = vmin.f32 %v1360, 6.0
      %v1489 = vmin.f32 %v1361, 6.0
      %v1490 = vmin.f32 %v1362, 6.0
      %v1491 = vmin.f32 %v1363, 6.0
      %v1492 = vmin.f32 %v1364, 6.0
      %v1493 = vmin.f32 %v1365, 6.0
      %v1494 = vmin.f32 %v1366, 6.0
      %v1495 = vmin.f32 %v1367, 6.0
      %v1496 = vmin.f32 %v1368, 6.0
      %v1497 = vmin.f32 %v1369, 6.0
      %v1498 = vmin.f32 %v1370, 6.0
      %v1499 = vmin.f32 %v1371, 6.0
      %v1500 = vmin.f32 %v1372, 6.0
      %v1501 = vmin.f32 %v1373, 6.0
      %v1502 = vmin.f32 %v1374, 6.0
      %v1503 = vmin.f32 %v1375, 6.0
      %v1504 = vmin.f32 %v1376, 6.0
      %v1505 = vmin.f32 %v1377, 6.0
      %v1506 = vmul.f32 %v803, %v1378
      %v1507 = vmul.f32 %v805, %v1379
      %v1508 = vmul.f32 %v808, %v1380
      %v1509 = vmul.f32 %v810, %v1381
      %v1510 = vmul.f32 %v813, %v1382
      %v1511 = vmul.f32 %v815, %v1383
      %v1512 = vmul.f32 %v818, %v1384
      %v1513 = vmul.f32 %v820, %v1385
      %v1514 = vmul.f32 %v823, %v1386
      %v1515 = vmul.f32 %v825, %v1387
      %v1516 = vmul.f32 %v828, %v1388
      %v1517 = vmul.f32 %v830, %v1389
      %v1518 = vmul.f32 %v833, %v1390
      %v1519 = vmul.f32 %v835, %v1391
      %v1520 = vmul.f32 %v838, %v1392
      %v1521 = vmul.f32 %v840, %v1393
      %v1522 = vmul.f32 %v843, %v1394
      %v1523 = vmul.f32 %v845, %v1395
      %v1524 = vmul.f32 %v848, %v1396
      %v1525 = vmul.f32 %v850, %v1397
      %v1526 = vmul.f32 %v853, %v1398
      %v1527 = vmul.f32 %v855, %v1399
      %v1528 = vmul.f32 %v858, %v1400
      %v1529 = vmul.f32 %v860, %v1401
      %v1530 = vmul.f32 %v863, %v1402
      %v1531 = vmul.f32 %v865, %v1403
      %v1532 = vmul.f32 %v868, %v1404
      %v1533 = vmul.f32 %v870, %v1405
      %v1534 = vmul.f32 %v873, %v1406
      %v1535 = vmul.f32 %v875, %v1407
      %v1536 = vmul.f32 %v878, %v1408
      %v1537 = vmul.f32 %v880, %v1409
      %v1538 = vmul.f32 %v883, %v1410
      %v1539 = vmul.f32 %v885, %v1411
      %v1540 = vmul.f32 %v888, %v1412
      %v1541 = vmul.f32 %v890, %v1413
      %v1542 = vmul.f32 %v893, %v1414
      %v1543 = vmul.f32 %v895, %v1415
      %v1544 = vmul.f32 %v898, %v1416
      %v1545 = vmul.f32 %v900, %v1417
      %v1546 = vmul.f32 %v903, %v1418
      %v1547 = vmul.f32 %v905, %v1419
      %v1548 = vmul.f32 %v908, %v1420
      %v1549 = vmul.f32 %v910, %v1421
      %v1550 = vmul.f32 %v913, %v1422
      %v1551 = vmul.f32 %v915, %v1423
      %v1552 = vmul.f32 %v918, %v1424
      %v1553 = vmul.f32 %v920, %v1425
      %v1554 = vmul.f32 %v923, %v1426
      %v1555 = vmul.f32 %v925, %v1427
      %v1556 = vmul.f32 %v928, %v1428
      %v1557 = vmul.f32 %v930, %v1429
      %v1558 = vmul.f32 %v933, %v1430
      %v1559 = vmul.f32 %v935, %v1431
      %v1560 = vmul.f32 %v938, %v1432
      %v1561 = vmul.f32 %v940, %v1433
      %v1562 = vmul.f32 %v943, %v1434
      %v1563 = vmul.f32 %v945, %v1435
      %v1564 = vmul.f32 %v948, %v1436
      %v1565 = vmul.f32 %v950, %v1437
      %v1566 = vmul.f32 %v953, %v1438
      %v1567 = vmul.f32 %v955, %v1439
      %v1568 = vmul.f32 %v958, %v1440
      %v1569 = vmul.f32 %v960, %v1441
      %v1570 = vmul.f32 %v963, %v1442
      %v1571 = vmul.f32 %v965, %v1443
      %v1572 = vmul.f32 %v968, %v1444
      %v1573 = vmul.f32 %v970, %v1445
      %v1574 = vmul.f32 %v973, %v1446
      %v1575 = vmul.f32 %v975, %v1447
      %v1576 = vmul.f32 %v978, %v1448
      %v1577 = vmul.f32 %v980, %v1449
      %v1578 = vmul.f32 %v983, %v1450
      %v1579 = vmul.f32 %v985, %v1451
      %v1580 = vmul.f32 %v988, %v1452
      %v1581 = vmul.f32 %v990, %v1453
      %v1582 = vmul.f32 %v993, %v1454
      %v1583 = vmul.f32 %v995, %v1455
      %v1584 = vmul.f32 %v998, %v1456
      %v1585 = vmul.f32 %v1000, %v1457
      %v1586 = vmul.f32 %v1003, %v1458
      %v1587 = vmul.f32 %v1005, %v1459
      %v1588 = vmul.f32 %v1008, %v1460
      %v1589 = vmul.f32 %v1010, %v1461
      %v1590 = vmul.f32 %v1013, %v1462
      %v1591 = vmul.f32 %v1015, %v1463
      %v1592 = vmul.f32 %v1018, %v1464
      %v1593 = vmul.f32 %v1020, %v1465
      %v1594 = vmul.f32 %v1023, %v1466
      %v1595 = vmul.f32 %v1025, %v1467
      %v1596 = vmul.f32 %v1028, %v1468
      %v1597 = vmul.f32 %v1030, %v1469
      %v1598 = vmul.f32 %v1033, %v1470
      %v1599 = vmul.f32 %v1035, %v1471
      %v1600 = vmul.f32 %v1038, %v1472
      %v1601 = vmul.f32 %v1040, %v1473
      %v1602 = vmul.f32 %v1043, %v1474
      %v1603 = vmul.f32 %v1045, %v1475
      %v1604 = vmul.f32 %v1048, %v1476
      %v1605 = vmul.f32 %v1050, %v1477
      %v1606 = vmul.f32 %v1053, %v1478
      %v1607 = vmul.f32 %v1055, %v1479
      %v1608 = vmul.f32 %v1058, %v1480
      %v1609 = vmul.f32 %v1060, %v1481
      %v1610 = vmul.f32 %v1063, %v1482
      %v1611 = vmul.f32 %v1065, %v1483
      %v1612 = vmul.f32 %v1068, %v1484
      %v1613 = vmul.f32 %v1070, %v1485
      %v1614 = vmul.f32 %v1073, %v1486
      %v1615 = vmul.f32 %v1075, %v1487
      %v1616 = vmul.f32 %v1078, %v1488
      %v1617 = vmul.f32 %v1080, %v1489
      %v1618 = vmul.f32 %v1083, %v1490
      %v1619 = vmul.f32 %v1085, %v1491
      %v1620 = vmul.f32 %v1088, %v1492
      %v1621 = vmul.f32 %v1090, %v1493
      %v1622 = vmul.f32 %v1093, %v1494
      %v1623 = vmul.f32 %v1095, %v1495
      %v1624 = vmul.f32 %v1098, %v1496
      %v1625 = vmul.f32 %v1100, %v1497
      %v1626 = vmul.f32 %v1103, %v1498
      %v1627 = vmul.f32 %v1105, %v1499
      %v1628 = vmul.f32 %v1108, %v1500
      %v1629 = vmul.f32 %v1110, %v1501
      %v1630 = vmul.f32 %v1113, %v1502
      %v1631 = vmul.f32 %v1115, %v1503
      %v1632 = vmul.f32 %v1118, %v1504
      %v1633 = vmul.f32 %v1120, %v1505
      %v1634 = vmul.f32 %v1506, 0.16666667
      %v1635 = vmul.f32 %v1507, 0.16666667
      %v1636 = vmul.f32 %v1508, 0.16666667
      %v1637 = vmul.f32 %v1509, 0.16666667
      %v1638 = vmul.f32 %v1510, 0.16666667
      %v1639 = vmul.f32 %v1511, 0.16666667
      %v1640 = vmul.f32 %v1512, 0.16666667
      %v1641 = vmul.f32 %v1513, 0.16666667
      %v1642 = vmul.f32 %v1514, 0.16666667
      %v1643 = vmul.f32 %v1515, 0.16666667
      %v1644 = vmul.f32 %v1516, 0.16666667
      %v1645 = vmul.f32 %v1517, 0.16666667
      %v1646 = vmul.f32 %v1518, 0.16666667
      %v1647 = vmul.f32 %v1519, 0.16666667
      %v1648 = vmul.f32 %v1520, 0.16666667
      %v1649 = vmul.f32 %v1521, 0.16666667
      %v1650 = vmul.f32 %v1522, 0.16666667
      %v1651 = vmul.f32 %v1523, 0.16666667
      %v1652 = vmul.f32 %v1524, 0.16666667
      %v1653 = vmul.f32 %v1525, 0.16666667
      %v1654 = vmul.f32 %v1526, 0.16666667
      %v1655 = vmul.f32 %v1527, 0.16666667
      %v1656 = vmul.f32 %v1528, 0.16666667
      %v1657 = vmul.f32 %v1529, 0.16666667
      %v1658 = vmul.f32 %v1530, 0.16666667
      %v1659 = vmul.f32 %v1531, 0.16666667
      %v1660 = vmul.f32 %v1532, 0.16666667
      %v1661 = vmul.f32 %v1533, 0.16666667
      %v1662 = vmul.f32 %v1534, 0.16666667
      %v1663 = vmul.f32 %v1535, 0.16666667
      %v1664 = vmul.f32 %v1536, 0.16666667
      %v1665 = vmul.f32 %v1537, 0.16666667
      %v1666 = vmul.f32 %v1538, 0.16666667
      %v1667 = vmul.f32 %v1539, 0.16666667
      %v1668 = vmul.f32 %v1540, 0.16666667
      %v1669 = vmul.f32 %v1541, 0.16666667
      %v1670 = vmul.f32 %v1542, 0.16666667
      %v1671 = vmul.f32 %v1543, 0.16666667
      %v1672 = vmul.f32 %v1544, 0.16666667
      %v1673 = vmul.f32 %v1545, 0.16666667
      %v1674 = vmul.f32 %v1546, 0.16666667
      %v1675 = vmul.f32 %v1547, 0.16666667
      %v1676 = vmul.f32 %v1548, 0.16666667
      %v1677 = vmul.f32 %v1549, 0.16666667
      %v1678 = vmul.f32 %v1550, 0.16666667
      %v1679 = vmul.f32 %v1551, 0.16666667
      %v1680 = vmul.f32 %v1552, 0.16666667
      %v1681 = vmul.f32 %v1553, 0.16666667
      %v1682 = vmul.f32 %v1554, 0.16666667
      %v1683 = vmul.f32 %v1555, 0.16666667
      %v1684 = vmul.f32 %v1556, 0.16666667
      %v1685 = vmul.f32 %v1557, 0.16666667
      %v1686 = vmul.f32 %v1558, 0.16666667
      %v1687 = vmul.f32 %v1559, 0.16666667
      %v1688 = vmul.f32 %v1560, 0.16666667
      %v1689 = vmul.f32 %v1561, 0.16666667
      %v1690 = vmul.f32 %v1562, 0.16666667
      %v1691 = vmul.f32 %v1563, 0.16666667
      %v1692 = vmul.f32 %v1564, 0.16666667
      %v1693 = vmul.f32 %v1565, 0.16666667
      %v1694 = vmul.f32 %v1566, 0.16666667
      %v1695 = vmul.f32 %v1567, 0.16666667
      %v1696 = vmul.f32 %v1568, 0.16666667
      %v1697 = vmul.f32 %v1569, 0.16666667
      %v1698 = vmul.f32 %v1570, 0.16666667
      %v1699 = vmul.f32 %v1571, 0.16666667
      %v1700 = vmul.f32 %v1572, 0.16666667
      %v1701 = vmul.f32 %v1573, 0.16666667
      %v1702 = vmul.f32 %v1574, 0.16666667
      %v1703 = vmul.f32 %v1575, 0.16666667
      %v1704 = vmul.f32 %v1576, 0.16666667
      %v1705 = vmul.f32 %v1577, 0.16666667
      %v1706 = vmul.f32 %v1578, 0.16666667
      %v1707 = vmul.f32 %v1579, 0.16666667
      %v1708 = vmul.f32 %v1580, 0.16666667
      %v1709 = vmul.f32 %v1581, 0.16666667
      %v1710 = vmul.f32 %v1582, 0.16666667
      %v1711 = vmul.f32 %v1583, 0.16666667
      %v1712 = vmul.f32 %v1584, 0.16666667
      %v1713 = vmul.f32 %v1585, 0.16666667
      %v1714 = vmul.f32 %v1586, 0.16666667
      %v1715 = vmul.f32 %v1587, 0.16666667
      %v1716 = vmul.f32 %v1588, 0.16666667
      %v1717 = vmul.f32 %v1589, 0.16666667
      %v1718 = vmul.f32 %v1590, 0.16666667
      %v1719 = vmul.f32 %v1591, 0.16666667
      %v1720 = vmul.f32 %v1592, 0.16666667
      %v1721 = vmul.f32 %v1593, 0.16666667
      %v1722 = vmul.f32 %v1594, 0.16666667
      %v1723 = vmul.f32 %v1595, 0.16666667
      %v1724 = vmul.f32 %v1596, 0.16666667
      %v1725 = vmul.f32 %v1597, 0.16666667
      %v1726 = vmul.f32 %v1598, 0.16666667
      %v1727 = vmul.f32 %v1599, 0.16666667
      %v1728 = vmul.f32 %v1600, 0.16666667
      %v1729 = vmul.f32 %v1601, 0.16666667
      %v1730 = vmul.f32 %v1602, 0.16666667
      %v1731 = vmul.f32 %v1603, 0.16666667
      %v1732 = vmul.f32 %v1604, 0.16666667
      %v1733 = vmul.f32 %v1605, 0.16666667
      %v1734 = vmul.f32 %v1606, 0.16666667
      %v1735 = vmul.f32 %v1607, 0.16666667
      %v1736 = vmul.f32 %v1608, 0.16666667
      %v1737 = vmul.f32 %v1609, 0.16666667
      %v1738 = vmul.f32 %v1610, 0.16666667
      %v1739 = vmul.f32 %v1611, 0.16666667
      %v1740 = vmul.f32 %v1612, 0.16666667
      %v1741 = vmul.f32 %v1613, 0.16666667
      %v1742 = vmul.f32 %v1614, 0.16666667
      %v1743 = vmul.f32 %v1615, 0.16666667
      %v1744 = vmul.f32 %v1616, 0.16666667
      %v1745 = vmul.f32 %v1617, 0.16666667
      %v1746 = vmul.f32 %v1618, 0.16666667
      %v1747 = vmul.f32 %v1619, 0.16666667
      %v1748 = vmul.f32 %v1620, 0.16666667
      %v1749 = vmul.f32 %v1621, 0.16666667
      %v1750 = vmul.f32 %v1622, 0.16666667
      %v1751 = vmul.f32 %v1623, 0.16666667
      %v1752 = vmul.f32 %v1624, 0.16666667
      %v1753 = vmul.f32 %v1625, 0.16666667
      %v1754 = vmul.f32 %v1626, 0.16666667
      %v1755 = vmul.f32 %v1627, 0.16666667
      %v1756 = vmul.f32 %v1628, 0.16666667
      %v1757 = vmul.f32 %v1629, 0.16666667
      %v1758 = vmul.f32 %v1630, 0.16666667
      %v1759 = vmul.f32 %v1631, 0.16666667
      %v1760 = vmul.f32 %v1632, 0.16666667
      %v1761 = vmul.f32 %v1633, 0.16666667
      %vm1762 = vcmask 261120
      %1763 = vst.msk [vmem:[#allocation2] sm:$0xff] %vm1762, 0.0
      %1764 = vst.msk [vmem:[#allocation2 + $0x8] sm:$0xff] %vm1762, 0.0
      %vm1765 = vcmask 253952
      %1766 = vst.msk [vmem:[#allocation2 + $0x10] sm:$0x1] %vm1765, 0.0
      %1767 = vst.msk [vmem:[#allocation2 + $0x128] sm:$0xff] %vm1762, 0.0
      %1768 = vst.msk [vmem:[#allocation2 + $0x130] sm:$0xff] %vm1762, 0.0
      %1769 = vst.msk [vmem:[#allocation2 + $0x138] sm:$0x1] %vm1765, 0.0
      %1770 = vst.msk [vmem:[#allocation2 + $0x250] sm:$0xff] %vm1762, 0.0
      %1771 = vst.msk [vmem:[#allocation2 + $0x258] sm:$0xff] %vm1762, 0.0
      %1772 = vst.msk [vmem:[#allocation2 + $0x260] sm:$0x1] %vm1765, 0.0
      %1773 = vst.msk [vmem:[#allocation2 + $0x378] sm:$0xff] %vm1762, 0.0
      %1774 = vst.msk [vmem:[#allocation2 + $0x380] sm:$0xff] %vm1762, 0.0
      %1775 = vst.msk [vmem:[#allocation2 + $0x388] sm:$0x1] %vm1765, 0.0
      %1776 = vst.msk [vmem:[#allocation2 + $0x111] sm:$0xff] %vm1762, 0.0
      %1777 = vst.msk [vmem:[#allocation2 + $0x119] sm:$0xff] %vm1762, 0.0
      %1778 = vst.msk [vmem:[#allocation2 + $0x121] sm:$0x1] %vm1765, 0.0
      %1779 = vst.msk [vmem:[#allocation2 + $0x239] sm:$0xff] %vm1762, 0.0
      %1780 = vst.msk [vmem:[#allocation2 + $0x241] sm:$0xff] %vm1762, 0.0
      %1781 = vst.msk [vmem:[#allocation2 + $0x249] sm:$0x1] %vm1765, 0.0
      %1782 = vst.msk [vmem:[#allocation2 + $0x361] sm:$0xff] %vm1762, 0.0
      %1783 = vst.msk [vmem:[#allocation2 + $0x369] sm:$0xff] %vm1762, 0.0
      %1784 = vst.msk [vmem:[#allocation2 + $0x371] sm:$0x1] %vm1765, 0.0
      %1785 = vst.msk [vmem:[#allocation2 + $0x489] sm:$0xff] %vm1762, 0.0
      %1786 = vst.msk [vmem:[#allocation2 + $0x491] sm:$0xff] %vm1762, 0.0
      %1787 = vst.msk [vmem:[#allocation2 + $0x499] sm:$0x1] %vm1765, 0.0
      %1788 = vst.msk [vmem:[#allocation2 + $0x11] sm:$0xff] %vm1762, %v1634
      %1789 = vst.msk [vmem:[#allocation2 + $0x19] sm:$0xff] %vm1762, %v1635
      %1790 = vst.msk [vmem:[#allocation2 + $0x21] sm:$0xff] %vm1762, %v1636
      %1791 = vst.msk [vmem:[#allocation2 + $0x29] sm:$0xff] %vm1762, %v1637
      %1792 = vst.msk [vmem:[#allocation2 + $0x31] sm:$0xff] %vm1762, %v1638
      %1793 = vst.msk [vmem:[#allocation2 + $0x39] sm:$0xff] %vm1762, %v1639
      %1794 = vst.msk [vmem:[#allocation2 + $0x41] sm:$0xff] %vm1762, %v1640
      %1795 = vst.msk [vmem:[#allocation2 + $0x49] sm:$0xff] %vm1762, %v1641
      %1796 = vst.msk [vmem:[#allocation2 + $0x51] sm:$0xff] %vm1762, %v1642
      %1797 = vst.msk [vmem:[#allocation2 + $0x59] sm:$0xff] %vm1762, %v1643
      %1798 = vst.msk [vmem:[#allocation2 + $0x61] sm:$0xff] %vm1762, %v1644
      %1799 = vst.msk [vmem:[#allocation2 + $0x69] sm:$0xff] %vm1762, %v1645
      %1800 = vst.msk [vmem:[#allocation2 + $0x71] sm:$0xff] %vm1762, %v1646
      %1801 = vst.msk [vmem:[#allocation2 + $0x79] sm:$0xff] %vm1762, %v1647
      %1802 = vst.msk [vmem:[#allocation2 + $0x81] sm:$0xff] %vm1762, %v1648
      %1803 = vst.msk [vmem:[#allocation2 + $0x89] sm:$0xff] %vm1762, %v1649
      %1804 = vst.msk [vmem:[#allocation2 + $0x91] sm:$0xff] %vm1762, %v1650
      %1805 = vst.msk [vmem:[#allocation2 + $0x99] sm:$0xff] %vm1762, %v1651
      %1806 = vst.msk [vmem:[#allocation2 + $0xa1] sm:$0xff] %vm1762, %v1652
      %1807 = vst.msk [vmem:[#allocation2 + $0xa9] sm:$0xff] %vm1762, %v1653
      %1808 = vst.msk [vmem:[#allocation2 + $0xb1] sm:$0xff] %vm1762, %v1654
      %1809 = vst.msk [vmem:[#allocation2 + $0xb9] sm:$0xff] %vm1762, %v1655
      %1810 = vst.msk [vmem:[#allocation2 + $0xc1] sm:$0xff] %vm1762, %v1656
      %1811 = vst.msk [vmem:[#allocation2 + $0xc9] sm:$0xff] %vm1762, %v1657
      %1812 = vst.msk [vmem:[#allocation2 + $0xd1] sm:$0xff] %vm1762, %v1658
      %1813 = vst.msk [vmem:[#allocation2 + $0xd9] sm:$0xff] %vm1762, %v1659
      %1814 = vst.msk [vmem:[#allocation2 + $0xe1] sm:$0xff] %vm1762, %v1660
      %1815 = vst.msk [vmem:[#allocation2 + $0xe9] sm:$0xff] %vm1762, %v1661
      %1816 = vst.msk [vmem:[#allocation2 + $0xf1] sm:$0xff] %vm1762, %v1662
      %1817 = vst.msk [vmem:[#allocation2 + $0xf9] sm:$0xff] %vm1762, %v1663
      %1818 = vst.msk [vmem:[#allocation2 + $0x101] sm:$0xff] %vm1762, %v1664
      %1819 = vst.msk [vmem:[#allocation2 + $0x109] sm:$0xff] %vm1762, %v1665
      %1820 = vst.msk [vmem:[#allocation2 + $0x139] sm:$0xff] %vm1762, %v1666
      %1821 = vst.msk [vmem:[#allocation2 + $0x141] sm:$0xff] %vm1762, %v1667
      %1822 = vst.msk [vmem:[#allocation2 + $0x149] sm:$0xff] %vm1762, %v1668
      %1823 = vst.msk [vmem:[#allocation2 + $0x151] sm:$0xff] %vm1762, %v1669
      %1824 = vst.msk [vmem:[#allocation2 + $0x159] sm:$0xff] %vm1762, %v1670
      %1825 = vst.msk [vmem:[#allocation2 + $0x161] sm:$0xff] %vm1762, %v1671
      %1826 = vst.msk [vmem:[#allocation2 + $0x169] sm:$0xff] %vm1762, %v1672
      %1827 = vst.msk [vmem:[#allocation2 + $0x171] sm:$0xff] %vm1762, %v1673
      %1828 = vst.msk [vmem:[#allocation2 + $0x179] sm:$0xff] %vm1762, %v1674
      %1829 = vst.msk [vmem:[#allocation2 + $0x181] sm:$0xff] %vm1762, %v1675
      %1830 = vst.msk [vmem:[#allocation2 + $0x189] sm:$0xff] %vm1762, %v1676
      %1831 = vst.msk [vmem:[#allocation2 + $0x191] sm:$0xff] %vm1762, %v1677
      %1832 = vst.msk [vmem:[#allocation2 + $0x199] sm:$0xff] %vm1762, %v1678
      %1833 = vst.msk [vmem:[#allocation2 + $0x1a1] sm:$0xff] %vm1762, %v1679
      %1834 = vst.msk [vmem:[#allocation2 + $0x1a9] sm:$0xff] %vm1762, %v1680
      %1835 = vst.msk [vmem:[#allocation2 + $0x1b1] sm:$0xff] %vm1762, %v1681
      %1836 = vst.msk [vmem:[#allocation2 + $0x1b9] sm:$0xff] %vm1762, %v1682
      %1837 = vst.msk [vmem:[#allocation2 + $0x1c1] sm:$0xff] %vm1762, %v1683
      %1838 = vst.msk [vmem:[#allocation2 + $0x1c9] sm:$0xff] %vm1762, %v1684
      %1839 = vst.msk [vmem:[#allocation2 + $0x1d1] sm:$0xff] %vm1762, %v1685
      %1840 = vst.msk [vmem:[#allocation2 + $0x1d9] sm:$0xff] %vm1762, %v1686
      %1841 = vst.msk [vmem:[#allocation2 + $0x1e1] sm:$0xff] %vm1762, %v1687
      %1842 = vst.msk [vmem:[#allocation2 + $0x1e9] sm:$0xff] %vm1762, %v1688
      %1843 = vst.msk [vmem:[#allocation2 + $0x1f1] sm:$0xff] %vm1762, %v1689
      %1844 = vst.msk [vmem:[#allocation2 + $0x1f9] sm:$0xff] %vm1762, %v1690
      %1845 = vst.msk [vmem:[#allocation2 + $0x201] sm:$0xff] %vm1762, %v1691
      %1846 = vst.msk [vmem:[#allocation2 + $0x209] sm:$0xff] %vm1762, %v1692
      %1847 = vst.msk [vmem:[#allocation2 + $0x211] sm:$0xff] %vm1762, %v1693
      %1848 = vst.msk [vmem:[#allocation2 + $0x219] sm:$0xff] %vm1762, %v1694
      %1849 = vst.msk [vmem:[#allocation2 + $0x221] sm:$0xff] %vm1762, %v1695
      %1850 = vst.msk [vmem:[#allocation2 + $0x229] sm:$0xff] %vm1762, %v1696
      %1851 = vst.msk [vmem:[#allocation2 + $0x231] sm:$0xff] %vm1762, %v1697
      %1852 = vst.msk [vmem:[#allocation2 + $0x261] sm:$0xff] %vm1762, %v1698
      %1853 = vst.msk [vmem:[#allocation2 + $0x269] sm:$0xff] %vm1762, %v1699
      %1854 = vst.msk [vmem:[#allocation2 + $0x271] sm:$0xff] %vm1762, %v1700
      %1855 = vst.msk [vmem:[#allocation2 + $0x279] sm:$0xff] %vm1762, %v1701
      %1856 = vst.msk [vmem:[#allocation2 + $0x281] sm:$0xff] %vm1762, %v1702
      %1857 = vst.msk [vmem:[#allocation2 + $0x289] sm:$0xff] %vm1762, %v1703
      %1858 = vst.msk [vmem:[#allocation2 + $0x291] sm:$0xff] %vm1762, %v1704
      %1859 = vst.msk [vmem:[#allocation2 + $0x299] sm:$0xff] %vm1762, %v1705
      %1860 = vst.msk [vmem:[#allocation2 + $0x2a1] sm:$0xff] %vm1762, %v1706
      %1861 = vst.msk [vmem:[#allocation2 + $0x2a9] sm:$0xff] %vm1762, %v1707
      %1862 = vst.msk [vmem:[#allocation2 + $0x2b1] sm:$0xff] %vm1762, %v1708
      %1863 = vst.msk [vmem:[#allocation2 + $0x2b9] sm:$0xff] %vm1762, %v1709
      %1864 = vst.msk [vmem:[#allocation2 + $0x2c1] sm:$0xff] %vm1762, %v1710
      %1865 = vst.msk [vmem:[#allocation2 + $0x2c9] sm:$0xff] %vm1762, %v1711
      %1866 = vst.msk [vmem:[#allocation2 + $0x2d1] sm:$0xff] %vm1762, %v1712
      %1867 = vst.msk [vmem:[#allocation2 + $0x2d9] sm:$0xff] %vm1762, %v1713
      %1868 = vst.msk [vmem:[#allocation2 + $0x2e1] sm:$0xff] %vm1762, %v1714
      %1869 = vst.msk [vmem:[#allocation2 + $0x2e9] sm:$0xff] %vm1762, %v1715
      %1870 = vst.msk [vmem:[#allocation2 + $0x2f1] sm:$0xff] %vm1762, %v1716
      %1871 = vst.msk [vmem:[#allocation2 + $0x2f9] sm:$0xff] %vm1762, %v1717
      %1872 = vst.msk [vmem:[#allocation2 + $0x301] sm:$0xff] %vm1762, %v1718
      %1873 = vst.msk [vmem:[#allocation2 + $0x309] sm:$0xff] %vm1762, %v1719
      %1874 = vst.msk [vmem:[#allocation2 + $0x311] sm:$0xff] %vm1762, %v1720
      %1875 = vst.msk [vmem:[#allocation2 + $0x319] sm:$0xff] %vm1762, %v1721
      %1876 = vst.msk [vmem:[#allocation2 + $0x321] sm:$0xff] %vm1762, %v1722
      %1877 = vst.msk [vmem:[#allocation2 + $0x329] sm:$0xff] %vm1762, %v1723
      %1878 = vst.msk [vmem:[#allocation2 + $0x331] sm:$0xff] %vm1762, %v1724
      %1879 = vst.msk [vmem:[#allocation2 + $0x339] sm:$0xff] %vm1762, %v1725
      %1880 = vst.msk [vmem:[#allocation2 + $0x341] sm:$0xff] %vm1762, %v1726
      %1881 = vst.msk [vmem:[#allocation2 + $0x349] sm:$0xff] %vm1762, %v1727
      %1882 = vst.msk [vmem:[#allocation2 + $0x351] sm:$0xff] %vm1762, %v1728
      %1883 = vst.msk [vmem:[#allocation2 + $0x359] sm:$0xff] %vm1762, %v1729
      %1884 = vst.msk [vmem:[#allocation2 + $0x389] sm:$0xff] %vm1762, %v1730
      %1885 = vst.msk [vmem:[#allocation2 + $0x391] sm:$0xff] %vm1762, %v1731
      %1886 = vst.msk [vmem:[#allocation2 + $0x399] sm:$0xff] %vm1762, %v1732
      %1887 = vst.msk [vmem:[#allocation2 + $0x3a1] sm:$0xff] %vm1762, %v1733
      %1888 = vst.msk [vmem:[#allocation2 + $0x3a9] sm:$0xff] %vm1762, %v1734
      %1889 = vst.msk [vmem:[#allocation2 + $0x3b1] sm:$0xff] %vm1762, %v1735
      %1890 = vst.msk [vmem:[#allocation2 + $0x3b9] sm:$0xff] %vm1762, %v1736
      %1891 = vst.msk [vmem:[#allocation2 + $0x3c1] sm:$0xff] %vm1762, %v1737
      %1892 = vst.msk [vmem:[#allocation2 + $0x3c9] sm:$0xff] %vm1762, %v1738
      %1893 = vst.msk [vmem:[#allocation2 + $0x3d1] sm:$0xff] %vm1762, %v1739
      %1894 = vst.msk [vmem:[#allocation2 + $0x3d9] sm:$0xff] %vm1762, %v1740
      %1895 = vst.msk [vmem:[#allocation2 + $0x3e1] sm:$0xff] %vm1762, %v1741
      %1896 = vst.msk [vmem:[#allocation2 + $0x3e9] sm:$0xff] %vm1762, %v1742
      %1897 = vst.msk [vmem:[#allocation2 + $0x3f1] sm:$0xff] %vm1762, %v1743
      %1898 = vst.msk [vmem:[#allocation2 + $0x3f9] sm:$0xff] %vm1762, %v1744
      %1899 = vst.msk [vmem:[#allocation2 + $0x401] sm:$0xff] %vm1762, %v1745
      %1900 = vst.msk [vmem:[#allocation2 + $0x409] sm:$0xff] %vm1762, %v1746
      %1901 = vst.msk [vmem:[#allocation2 + $0x411] sm:$0xff] %vm1762, %v1747
      %1902 = vst.msk [vmem:[#allocation2 + $0x419] sm:$0xff] %vm1762, %v1748
      %1903 = vst.msk [vmem:[#allocation2 + $0x421] sm:$0xff] %vm1762, %v1749
      %1904 = vst.msk [vmem:[#allocation2 + $0x429] sm:$0xff] %vm1762, %v1750
      %1905 = vst.msk [vmem:[#allocation2 + $0x431] sm:$0xff] %vm1762, %v1751
      %1906 = vst.msk [vmem:[#allocation2 + $0x439] sm:$0xff] %vm1762, %v1752
      %1907 = vst.msk [vmem:[#allocation2 + $0x441] sm:$0xff] %vm1762, %v1753
      %1908 = vst.msk [vmem:[#allocation2 + $0x449] sm:$0xff] %vm1762, %v1754
      %1909 = vst.msk [vmem:[#allocation2 + $0x451] sm:$0xff] %vm1762, %v1755
      %1910 = vst.msk [vmem:[#allocation2 + $0x459] sm:$0xff] %vm1762, %v1756
      %1911 = vst.msk [vmem:[#allocation2 + $0x461] sm:$0xff] %vm1762, %v1757
      %1912 = vst.msk [vmem:[#allocation2 + $0x469] sm:$0xff] %vm1762, %v1758
      %1913 = vst.msk [vmem:[#allocation2 + $0x471] sm:$0xff] %vm1762, %v1759
      %1914 = vst.msk [vmem:[#allocation2 + $0x479] sm:$0xff] %vm1762, %v1760
      %1915 = vst.msk [vmem:[#allocation2 + $0x481] sm:$0xff] %vm1762, %v1761
      %v1916 = vlaneseq
      %v1917 = vshrl.u32 %v1916, 7
      %v1918 = vadd.s32 %v1917, 8
      %v1919 = vadd.s32 %v1917, 16
      %v1920 = vadd.s32 %v1917, 24
      %v1921 = vadd.s32 %v1917, 32
      %v1922 = vadd.s32 %v1917, 40
      %v1923 = vadd.s32 %v1917, 48
      %v1924 = vadd.s32 %v1917, 56
      %v1925 = vadd.s32 %v1917, 64
      %v1926 = vadd.s32 %v1917, 72
      %v1927 = vadd.s32 %v1917, 80
      %v1928 = vadd.s32 %v1917, 88
      %v1929 = vadd.s32 %v1917, 96
      %v1930 = vadd.s32 %v1917, 104
      %v1931 = vadd.s32 %v1917, 112
      %v1932 = vadd.s32 %v1917, 120
      %v1933 = vadd.s32 %v1917, 128
      %v1934 = vadd.s32 %v1917, 136
      %v1935 = vadd.s32 %v1917, 144
      %v1936 = vadd.s32 %v1917, 152
      %v1937 = vadd.s32 %v1917, 160
      %v1938 = vadd.s32 %v1917, 168
      %v1939 = vadd.s32 %v1917, 176
      %v1940 = vadd.s32 %v1917, 184
      %v1941 = vadd.s32 %v1917, 192
      %v1942 = vadd.s32 %v1917, 200
      %v1943 = vadd.s32 %v1917, 208
      %v1944 = vadd.s32 %v1917, 216
      %v1945 = vadd.s32 %v1917, 224
      %v1946 = vadd.s32 %v1917, 232
      %v1947 = vadd.s32 %v1917, 240
      %v1948 = vadd.s32 %v1917, 248
      %vm1949 = vcmp.lt.s32.totalorder %v1917, 0
      %v1950 = vsub.s32 0, %v1917
      %v1951 = vsel %vm1949, %v1950, %v1917
      %v1952 = vshrl.u32 %v1951, 4
      %v1953 = vand.u32 %v1951, 15
      %v1954 = vsub.s32 0, %v1953
      %v1955 = vsel %vm1949, %v1954, %v1953
      %vm1956 = vcmp.lt.s32.totalorder %v1918, 0
      %v1957 = vsub.s32 0, %v1918
      %v1958 = vsel %vm1956, %v1957, %v1918
      %v1959 = vshrl.u32 %v1958, 4
      %v1960 = vand.u32 %v1958, 15
      %v1961 = vsub.s32 0, %v1960
      %v1962 = vsel %vm1956, %v1961, %v1960
      %vm1963 = vcmp.lt.s32.totalorder %v1919, 0
      %v1964 = vsub.s32 0, %v1919
      %v1965 = vsel %vm1963, %v1964, %v1919
      %v1966 = vshrl.u32 %v1965, 4
      %v1967 = vand.u32 %v1965, 15
      %v1968 = vsub.s32 0, %v1967
      %v1969 = vsel %vm1963, %v1968, %v1967
      %vm1970 = vcmp.lt.s32.totalorder %v1920, 0
      %v1971 = vsub.s32 0, %v1920
      %v1972 = vsel %vm1970, %v1971, %v1920
      %v1973 = vshrl.u32 %v1972, 4
      %v1974 = vand.u32 %v1972, 15
      %v1975 = vsub.s32 0, %v1974
      %v1976 = vsel %vm1970, %v1975, %v1974
      %vm1977 = vcmp.lt.s32.totalorder %v1921, 0
      %v1978 = vsub.s32 0, %v1921
      %v1979 = vsel %vm1977, %v1978, %v1921
      %v1980 = vshrl.u32 %v1979, 4
      %v1981 = vand.u32 %v1979, 15
      %v1982 = vsub.s32 0, %v1981
      %v1983 = vsel %vm1977, %v1982, %v1981
      %vm1984 = vcmp.lt.s32.totalorder %v1922, 0
      %v1985 = vsub.s32 0, %v1922
      %v1986 = vsel %vm1984, %v1985, %v1922
      %v1987 = vshrl.u32 %v1986, 4
      %v1988 = vand.u32 %v1986, 15
      %v1989 = vsub.s32 0, %v1988
      %v1990 = vsel %vm1984, %v1989, %v1988
      %vm1991 = vcmp.lt.s32.totalorder %v1923, 0
      %v1992 = vsub.s32 0, %v1923
      %v1993 = vsel %vm1991, %v1992, %v1923
      %v1994 = vshrl.u32 %v1993, 4
      %v1995 = vand.u32 %v1993, 15
      %v1996 = vsub.s32 0, %v1995
      %v1997 = vsel %vm1991, %v1996, %v1995
      %vm1998 = vcmp.lt.s32.totalorder %v1924, 0
      %v1999 = vsub.s32 0, %v1924
      %v2000 = vsel %vm1998, %v1999, %v1924
      %v2001 = vshrl.u32 %v2000, 4
      %v2002 = vand.u32 %v2000, 15
      %v2003 = vsub.s32 0, %v2002
      %v2004 = vsel %vm1998, %v2003, %v2002
      %vm2005 = vcmp.lt.s32.totalorder %v1925, 0
      %v2006 = vsub.s32 0, %v1925
      %v2007 = vsel %vm2005, %v2006, %v1925
      %v2008 = vshrl.u32 %v2007, 4
      %v2009 = vand.u32 %v2007, 15
      %v2010 = vsub.s32 0, %v2009
      %v2011 = vsel %vm2005, %v2010, %v2009
      %vm2012 = vcmp.lt.s32.totalorder %v1926, 0
      %v2013 = vsub.s32 0, %v1926
      %v2014 = vsel %vm2012, %v2013, %v1926
      %v2015 = vshrl.u32 %v2014, 4
      %v2016 = vand.u32 %v2014, 15
      %v2017 = vsub.s32 0, %v2016
      %v2018 = vsel %vm2012, %v2017, %v2016
      %vm2019 = vcmp.lt.s32.totalorder %v1927, 0
      %v2020 = vsub.s32 0, %v1927
      %v2021 = vsel %vm2019, %v2020, %v1927
      %v2022 = vshrl.u32 %v2021, 4
      %v2023 = vand.u32 %v2021, 15
      %v2024 = vsub.s32 0, %v2023
      %v2025 = vsel %vm2019, %v2024, %v2023
      %vm2026 = vcmp.lt.s32.totalorder %v1928, 0
      %v2027 = vsub.s32 0, %v1928
      %v2028 = vsel %vm2026, %v2027, %v1928
      %v2029 = vshrl.u32 %v2028, 4
      %v2030 = vand.u32 %v2028, 15
      %v2031 = vsub.s32 0, %v2030
      %v2032 = vsel %vm2026, %v2031, %v2030
      %vm2033 = vcmp.lt.s32.totalorder %v1929, 0
      %v2034 = vsub.s32 0, %v1929
      %v2035 = vsel %vm2033, %v2034, %v1929
      %v2036 = vshrl.u32 %v2035, 4
      %v2037 = vand.u32 %v2035, 15
      %v2038 = vsub.s32 0, %v2037
      %v2039 = vsel %vm2033, %v2038, %v2037
      %vm2040 = vcmp.lt.s32.totalorder %v1930, 0
      %v2041 = vsub.s32 0, %v1930
      %v2042 = vsel %vm2040, %v2041, %v1930
      %v2043 = vshrl.u32 %v2042, 4
      %v2044 = vand.u32 %v2042, 15
      %v2045 = vsub.s32 0, %v2044
      %v2046 = vsel %vm2040, %v2045, %v2044
      %vm2047 = vcmp.lt.s32.totalorder %v1931, 0
      %v2048 = vsub.s32 0, %v1931
      %v2049 = vsel %vm2047, %v2048, %v1931
      %v2050 = vshrl.u32 %v2049, 4
      %v2051 = vand.u32 %v2049, 15
      %v2052 = vsub.s32 0, %v2051
      %v2053 = vsel %vm2047, %v2052, %v2051
      %vm2054 = vcmp.lt.s32.totalorder %v1932, 0
      %v2055 = vsub.s32 0, %v1932
      %v2056 = vsel %vm2054, %v2055, %v1932
      %v2057 = vshrl.u32 %v2056, 4
      %v2058 = vand.u32 %v2056, 15
      %v2059 = vsub.s32 0, %v2058
      %v2060 = vsel %vm2054, %v2059, %v2058
      %vm2061 = vcmp.lt.s32.totalorder %v1933, 0
      %v2062 = vsub.s32 0, %v1933
      %v2063 = vsel %vm2061, %v2062, %v1933
      %v2064 = vshrl.u32 %v2063, 4
      %v2065 = vand.u32 %v2063, 15
      %v2066 = vsub.s32 0, %v2065
      %v2067 = vsel %vm2061, %v2066, %v2065
      %vm2068 = vcmp.lt.s32.totalorder %v1934, 0
      %v2069 = vsub.s32 0, %v1934
      %v2070 = vsel %vm2068, %v2069, %v1934
      %v2071 = vshrl.u32 %v2070, 4
      %v2072 = vand.u32 %v2070, 15
      %v2073 = vsub.s32 0, %v2072
      %v2074 = vsel %vm2068, %v2073, %v2072
      %vm2075 = vcmp.lt.s32.totalorder %v1935, 0
      %v2076 = vsub.s32 0, %v1935
      %v2077 = vsel %vm2075, %v2076, %v1935
      %v2078 = vshrl.u32 %v2077, 4
      %v2079 = vand.u32 %v2077, 15
      %v2080 = vsub.s32 0, %v2079
      %v2081 = vsel %vm2075, %v2080, %v2079
      %vm2082 = vcmp.lt.s32.totalorder %v1936, 0
      %v2083 = vsub.s32 0, %v1936
      %v2084 = vsel %vm2082, %v2083, %v1936
      %v2085 = vshrl.u32 %v2084, 4
      %v2086 = vand.u32 %v2084, 15
      %v2087 = vsub.s32 0, %v2086
      %v2088 = vsel %vm2082, %v2087, %v2086
      %vm2089 = vcmp.lt.s32.totalorder %v1937, 0
      %v2090 = vsub.s32 0, %v1937
      %v2091 = vsel %vm2089, %v2090, %v1937
      %v2092 = vshrl.u32 %v2091, 4
      %v2093 = vand.u32 %v2091, 15
      %v2094 = vsub.s32 0, %v2093
      %v2095 = vsel %vm2089, %v2094, %v2093
      %vm2096 = vcmp.lt.s32.totalorder %v1938, 0
      %v2097 = vsub.s32 0, %v1938
      %v2098 = vsel %vm2096, %v2097, %v1938
      %v2099 = vshrl.u32 %v2098, 4
      %v2100 = vand.u32 %v2098, 15
      %v2101 = vsub.s32 0, %v2100
      %v2102 = vsel %vm2096, %v2101, %v2100
      %vm2103 = vcmp.lt.s32.totalorder %v1939, 0
      %v2104 = vsub.s32 0, %v1939
      %v2105 = vsel %vm2103, %v2104, %v1939
      %v2106 = vshrl.u32 %v2105, 4
      %v2107 = vand.u32 %v2105, 15
      %v2108 = vsub.s32 0, %v2107
      %v2109 = vsel %vm2103, %v2108, %v2107
      %vm2110 = vcmp.lt.s32.totalorder %v1940, 0
      %v2111 = vsub.s32 0, %v1940
      %v2112 = vsel %vm2110, %v2111, %v1940
      %v2113 = vshrl.u32 %v2112, 4
      %v2114 = vand.u32 %v2112, 15
      %v2115 = vsub.s32 0, %v2114
      %v2116 = vsel %vm2110, %v2115, %v2114
      %vm2117 = vcmp.lt.s32.totalorder %v1941, 0
      %v2118 = vsub.s32 0, %v1941
      %v2119 = vsel %vm2117, %v2118, %v1941
      %v2120 = vshrl.u32 %v2119, 4
      %v2121 = vand.u32 %v2119, 15
      %v2122 = vsub.s32 0, %v2121
      %v2123 = vsel %vm2117, %v2122, %v2121
      %vm2124 = vcmp.lt.s32.totalorder %v1942, 0
      %v2125 = vsub.s32 0, %v1942
      %v2126 = vsel %vm2124, %v2125, %v1942
      %v2127 = vshrl.u32 %v2126, 4
      %v2128 = vand.u32 %v2126, 15
      %v2129 = vsub.s32 0, %v2128
      %v2130 = vsel %vm2124, %v2129, %v2128
      %vm2131 = vcmp.lt.s32.totalorder %v1943, 0
      %v2132 = vsub.s32 0, %v1943
      %v2133 = vsel %vm2131, %v2132, %v1943
      %v2134 = vshrl.u32 %v2133, 4
      %v2135 = vand.u32 %v2133, 15
      %v2136 = vsub.s32 0, %v2135
      %v2137 = vsel %vm2131, %v2136, %v2135
      %vm2138 = vcmp.lt.s32.totalorder %v1944, 0
      %v2139 = vsub.s32 0, %v1944
      %v2140 = vsel %vm2138, %v2139, %v1944
      %v2141 = vshrl.u32 %v2140, 4
      %v2142 = vand.u32 %v2140, 15
      %v2143 = vsub.s32 0, %v2142
      %v2144 = vsel %vm2138, %v2143, %v2142
      %vm2145 = vcmp.lt.s32.totalorder %v1945, 0
      %v2146 = vsub.s32 0, %v1945
      %v2147 = vsel %vm2145, %v2146, %v1945
      %v2148 = vshrl.u32 %v2147, 4
      %v2149 = vand.u32 %v2147, 15
      %v2150 = vsub.s32 0, %v2149
      %v2151 = vsel %vm2145, %v2150, %v2149
      %vm2152 = vcmp.lt.s32.totalorder %v1946, 0
      %v2153 = vsub.s32 0, %v1946
      %v2154 = vsel %vm2152, %v2153, %v1946
      %v2155 = vshrl.u32 %v2154, 4
      %v2156 = vand.u32 %v2154, 15
      %v2157 = vsub.s32 0, %v2156
      %v2158 = vsel %vm2152, %v2157, %v2156
      %vm2159 = vcmp.lt.s32.totalorder %v1947, 0
      %v2160 = vsub.s32 0, %v1947
      %v2161 = vsel %vm2159, %v2160, %v1947
      %v2162 = vshrl.u32 %v2161, 4
      %v2163 = vand.u32 %v2161, 15
      %v2164 = vsub.s32 0, %v2163
      %v2165 = vsel %vm2159, %v2164, %v2163
      %vm2166 = vcmp.lt.s32.totalorder %v1948, 0
      %v2167 = vsub.s32 0, %v1948
      %v2168 = vsel %vm2166, %v2167, %v1948
      %v2169 = vshrl.u32 %v2168, 4
      %v2170 = vand.u32 %v2168, 15
      %v2171 = vsub.s32 0, %v2170
      %v2172 = vsel %vm2166, %v2171, %v2170
      %vm2173 = vcmp.ne.s32.totalorder %v1955, 0
      %vm2174 = vcmp.ne.s32.totalorder %v1962, 0
      %vm2175 = vcmp.ne.s32.totalorder %v1969, 0
      %vm2176 = vcmp.ne.s32.totalorder %v1976, 0
      %vm2177 = vcmp.ne.s32.totalorder %v1983, 0
      %vm2178 = vcmp.ne.s32.totalorder %v1990, 0
      %vm2179 = vcmp.ne.s32.totalorder %v1997, 0
      %vm2180 = vcmp.ne.s32.totalorder %v2004, 0
      %vm2181 = vcmp.ne.s32.totalorder %v2011, 0
      %vm2182 = vcmp.ne.s32.totalorder %v2018, 0
      %vm2183 = vcmp.ne.s32.totalorder %v2025, 0
      %vm2184 = vcmp.ne.s32.totalorder %v2032, 0
      %vm2185 = vcmp.ne.s32.totalorder %v2039, 0
      %vm2186 = vcmp.ne.s32.totalorder %v2046, 0
      %vm2187 = vcmp.ne.s32.totalorder %v2053, 0
      %vm2188 = vcmp.ne.s32.totalorder %v2060, 0
      %vm2189 = vcmp.ne.s32.totalorder %v2067, 0
      %vm2190 = vcmp.ne.s32.totalorder %v2074, 0
      %vm2191 = vcmp.ne.s32.totalorder %v2081, 0
      %vm2192 = vcmp.ne.s32.totalorder %v2088, 0
      %vm2193 = vcmp.ne.s32.totalorder %v2095, 0
      %vm2194 = vcmp.ne.s32.totalorder %v2102, 0
      %vm2195 = vcmp.ne.s32.totalorder %v2109, 0
      %vm2196 = vcmp.ne.s32.totalorder %v2116, 0
      %vm2197 = vcmp.ne.s32.totalorder %v2123, 0
      %vm2198 = vcmp.ne.s32.totalorder %v2130, 0
      %vm2199 = vcmp.ne.s32.totalorder %v2137, 0
      %vm2200 = vcmp.ne.s32.totalorder %v2144, 0
      %vm2201 = vcmp.ne.s32.totalorder %v2151, 0
      %vm2202 = vcmp.ne.s32.totalorder %v2158, 0
      %vm2203 = vcmp.ne.s32.totalorder %v2165, 0
      %vm2204 = vcmp.ne.s32.totalorder %v2172, 0
      %vm2205 = vcmp.lt.s32.totalorder %v1955, 0
      %vm2206 = vcmp.lt.s32.totalorder %v1962, 0
      %vm2207 = vcmp.lt.s32.totalorder %v1969, 0
      %vm2208 = vcmp.lt.s32.totalorder %v1976, 0
      %vm2209 = vcmp.lt.s32.totalorder %v1983, 0
      %vm2210 = vcmp.lt.s32.totalorder %v1990, 0
      %vm2211 = vcmp.lt.s32.totalorder %v1997, 0
      %vm2212 = vcmp.lt.s32.totalorder %v2004, 0
      %vm2213 = vcmp.lt.s32.totalorder %v2011, 0
      %vm2214 = vcmp.lt.s32.totalorder %v2018, 0
      %vm2215 = vcmp.lt.s32.totalorder %v2025, 0
      %vm2216 = vcmp.lt.s32.totalorder %v2032, 0
      %vm2217 = vcmp.lt.s32.totalorder %v2039, 0
      %vm2218 = vcmp.lt.s32.totalorder %v2046, 0
      %vm2219 = vcmp.lt.s32.totalorder %v2053, 0
      %vm2220 = vcmp.lt.s32.totalorder %v2060, 0
      %vm2221 = vcmp.lt.s32.totalorder %v2067, 0
      %vm2222 = vcmp.lt.s32.totalorder %v2074, 0
      %vm2223 = vcmp.lt.s32.totalorder %v2081, 0
      %vm2224 = vcmp.lt.s32.totalorder %v2088, 0
      %vm2225 = vcmp.lt.s32.totalorder %v2095, 0
      %vm2226 = vcmp.lt.s32.totalorder %v2102, 0
      %vm2227 = vcmp.lt.s32.totalorder %v2109, 0
      %vm2228 = vcmp.lt.s32.totalorder %v2116, 0
      %vm2229 = vcmp.lt.s32.totalorder %v2123, 0
      %vm2230 = vcmp.lt.s32.totalorder %v2130, 0
      %vm2231 = vcmp.lt.s32.totalorder %v2137, 0
      %vm2232 = vcmp.lt.s32.totalorder %v2144, 0
      %vm2233 = vcmp.lt.s32.totalorder %v2151, 0
      %vm2234 = vcmp.lt.s32.totalorder %v2158, 0
      %vm2235 = vcmp.lt.s32.totalorder %v2165, 0
      %vm2236 = vcmp.lt.s32.totalorder %v2172, 0
      %vm2237 = vmand %vm2205, %vm2173
      %vm2238 = vmand %vm2206, %vm2174
      %vm2239 = vmand %vm2207, %vm2175
      %vm2240 = vmand %vm2208, %vm2176
      %vm2241 = vmand %vm2209, %vm2177
      %vm2242 = vmand %vm2210, %vm2178
      %vm2243 = vmand %vm2211, %vm2179
      %vm2244 = vmand %vm2212, %vm2180
      %vm2245 = vmand %vm2213, %vm2181
      %vm2246 = vmand %vm2214, %vm2182
      %vm2247 = vmand %vm2215, %vm2183
      %vm2248 = vmand %vm2216, %vm2184
      %vm2249 = vmand %vm2217, %vm2185
      %vm2250 = vmand %vm2218, %vm2186
      %vm2251 = vmand %vm2219, %vm2187
      %vm2252 = vmand %vm2220, %vm2188
      %vm2253 = vmand %vm2221, %vm2189
      %vm2254 = vmand %vm2222, %vm2190
      %vm2255 = vmand %vm2223, %vm2191
      %vm2256 = vmand %vm2224, %vm2192
      %vm2257 = vmand %vm2225, %vm2193
      %vm2258 = vmand %vm2226, %vm2194
      %vm2259 = vmand %vm2227, %vm2195
      %vm2260 = vmand %vm2228, %vm2196
      %vm2261 = vmand %vm2229, %vm2197
      %vm2262 = vmand %vm2230, %vm2198
      %vm2263 = vmand %vm2231, %vm2199
      %vm2264 = vmand %vm2232, %vm2200
      %vm2265 = vmand %vm2233, %vm2201
      %vm2266 = vmand %vm2234, %vm2202
      %vm2267 = vmand %vm2235, %vm2203
      %vm2268 = vmand %vm2236, %vm2204
      %v2269 = vadd.s32 %v1955, 16
      %v2270 = vadd.s32 %v1962, 16
      %v2271 = vadd.s32 %v1969, 16
      %v2272 = vadd.s32 %v1976, 16
      %v2273 = vadd.s32 %v1983, 16
      %v2274 = vadd.s32 %v1990, 16
      %v2275 = vadd.s32 %v1997, 16
      %v2276 = vadd.s32 %v2004, 16
      %v2277 = vadd.s32 %v2011, 16
      %v2278 = vadd.s32 %v2018, 16
      %v2279 = vadd.s32 %v2025, 16
      %v2280 = vadd.s32 %v2032, 16
      %v2281 = vadd.s32 %v2039, 16
      %v2282 = vadd.s32 %v2046, 16
      %v2283 = vadd.s32 %v2053, 16
      %v2284 = vadd.s32 %v2060, 16
      %v2285 = vadd.s32 %v2067, 16
      %v2286 = vadd.s32 %v2074, 16
      %v2287 = vadd.s32 %v2081, 16
      %v2288 = vadd.s32 %v2088, 16
      %v2289 = vadd.s32 %v2095, 16
      %v2290 = vadd.s32 %v2102, 16
      %v2291 = vadd.s32 %v2109, 16
      %v2292 = vadd.s32 %v2116, 16
      %v2293 = vadd.s32 %v2123, 16
      %v2294 = vadd.s32 %v2130, 16
      %v2295 = vadd.s32 %v2137, 16
      %v2296 = vadd.s32 %v2144, 16
      %v2297 = vadd.s32 %v2151, 16
      %v2298 = vadd.s32 %v2158, 16
      %v2299 = vadd.s32 %v2165, 16
      %v2300 = vadd.s32 %v2172, 16
      %v2301 = vsel %vm2237, %v2269, %v1955
      %v2302 = vsel %vm2238, %v2270, %v1962
      %v2303 = vsel %vm2239, %v2271, %v1969
      %v2304 = vsel %vm2240, %v2272, %v1976
      %v2305 = vsel %vm2241, %v2273, %v1983
      %v2306 = vsel %vm2242, %v2274, %v1990
      %v2307 = vsel %vm2243, %v2275, %v1997
      %v2308 = vsel %vm2244, %v2276, %v2004
      %v2309 = vsel %vm2245, %v2277, %v2011
      %v2310 = vsel %vm2246, %v2278, %v2018
      %v2311 = vsel %vm2247, %v2279, %v2025
      %v2312 = vsel %vm2248, %v2280, %v2032
      %v2313 = vsel %vm2249, %v2281, %v2039
      %v2314 = vsel %vm2250, %v2282, %v2046
      %v2315 = vsel %vm2251, %v2283, %v2053
      %v2316 = vsel %vm2252, %v2284, %v2060
      %v2317 = vsel %vm2253, %v2285, %v2067
      %v2318 = vsel %vm2254, %v2286, %v2074
      %v2319 = vsel %vm2255, %v2287, %v2081
      %v2320 = vsel %vm2256, %v2288, %v2088
      %v2321 = vsel %vm2257, %v2289, %v2095
      %v2322 = vsel %vm2258, %v2290, %v2102
      %v2323 = vsel %vm2259, %v2291, %v2109
      %v2324 = vsel %vm2260, %v2292, %v2116
      %v2325 = vsel %vm2261, %v2293, %v2123
      %v2326 = vsel %vm2262, %v2294, %v2130
      %v2327 = vsel %vm2263, %v2295, %v2137
      %v2328 = vsel %vm2264, %v2296, %v2144
      %v2329 = vsel %vm2265, %v2297, %v2151
      %v2330 = vsel %vm2266, %v2298, %v2158
      %v2331 = vsel %vm2267, %v2299, %v2165
      %v2332 = vsel %vm2268, %v2300, %v2172
      %v2333 = vadd.s32 %v2301, 4294967295
      %v2334 = vadd.s32 %v2302, 4294967295
      %v2335 = vadd.s32 %v2303, 4294967295
      %v2336 = vadd.s32 %v2304, 4294967295
      %v2337 = vadd.s32 %v2305, 4294967295
      %v2338 = vadd.s32 %v2306, 4294967295
      %v2339 = vadd.s32 %v2307, 4294967295
      %v2340 = vadd.s32 %v2308, 4294967295
      %v2341 = vadd.s32 %v2309, 4294967295
      %v2342 = vadd.s32 %v2310, 4294967295
      %v2343 = vadd.s32 %v2311, 4294967295
      %v2344 = vadd.s32 %v2312, 4294967295
      %v2345 = vadd.s32 %v2313, 4294967295
      %v2346 = vadd.s32 %v2314, 4294967295
      %v2347 = vadd.s32 %v2315, 4294967295
      %v2348 = vadd.s32 %v2316, 4294967295
      %v2349 = vadd.s32 %v2317, 4294967295
      %v2350 = vadd.s32 %v2318, 4294967295
      %v2351 = vadd.s32 %v2319, 4294967295
      %v2352 = vadd.s32 %v2320, 4294967295
      %v2353 = vadd.s32 %v2321, 4294967295
      %v2354 = vadd.s32 %v2322, 4294967295
      %v2355 = vadd.s32 %v2323, 4294967295
      %v2356 = vadd.s32 %v2324, 4294967295
      %v2357 = vadd.s32 %v2325, 4294967295
      %v2358 = vadd.s32 %v2326, 4294967295
      %v2359 = vadd.s32 %v2327, 4294967295
      %v2360 = vadd.s32 %v2328, 4294967295
      %v2361 = vadd.s32 %v2329, 4294967295
      %v2362 = vadd.s32 %v2330, 4294967295
      %v2363 = vadd.s32 %v2331, 4294967295
      %v2364 = vadd.s32 %v2332, 4294967295
      %vm2365 = vcmp.ge.s32.totalorder %v2333, 0
      %vm2366 = vcmp.ge.s32.totalorder %v2334, 0
      %vm2367 = vcmp.ge.s32.totalorder %v2335, 0
      %vm2368 = vcmp.ge.s32.totalorder %v2336, 0
      %vm2369 = vcmp.ge.s32.totalorder %v2337, 0
      %vm2370 = vcmp.ge.s32.totalorder %v2338, 0
      %vm2371 = vcmp.ge.s32.totalorder %v2339, 0
      %vm2372 = vcmp.ge.s32.totalorder %v2340, 0
      %vm2373 = vcmp.ge.s32.totalorder %v2341, 0
      %vm2374 = vcmp.ge.s32.totalorder %v2342, 0
      %vm2375 = vcmp.ge.s32.totalorder %v2343, 0
      %vm2376 = vcmp.ge.s32.totalorder %v2344, 0
      %vm2377 = vcmp.ge.s32.totalorder %v2345, 0
      %vm2378 = vcmp.ge.s32.totalorder %v2346, 0
      %vm2379 = vcmp.ge.s32.totalorder %v2347, 0
      %vm2380 = vcmp.ge.s32.totalorder %v2348, 0
      %vm2381 = vcmp.ge.s32.totalorder %v2349, 0
      %vm2382 = vcmp.ge.s32.totalorder %v2350, 0
      %vm2383 = vcmp.ge.s32.totalorder %v2351, 0
      %vm2384 = vcmp.ge.s32.totalorder %v2352, 0
      %vm2385 = vcmp.ge.s32.totalorder %v2353, 0
      %vm2386 = vcmp.ge.s32.totalorder %v2354, 0
      %vm2387 = vcmp.ge.s32.totalorder %v2355, 0
      %vm2388 = vcmp.ge.s32.totalorder %v2356, 0
      %vm2389 = vcmp.ge.s32.totalorder %v2357, 0
      %vm2390 = vcmp.ge.s32.totalorder %v2358, 0
      %vm2391 = vcmp.ge.s32.totalorder %v2359, 0
      %vm2392 = vcmp.ge.s32.totalorder %v2360, 0
      %vm2393 = vcmp.ge.s32.totalorder %v2361, 0
      %vm2394 = vcmp.ge.s32.totalorder %v2362, 0
      %vm2395 = vcmp.ge.s32.totalorder %v2363, 0
      %vm2396 = vcmp.ge.s32.totalorder %v2364, 0
      %vm2397 = vcmp.lt.s32.totalorder %v2333, 16
      %vm2398 = vcmp.lt.s32.totalorder %v2334, 16
      %vm2399 = vcmp.lt.s32.totalorder %v2335, 16
      %vm2400 = vcmp.lt.s32.totalorder %v2336, 16
      %vm2401 = vcmp.lt.s32.totalorder %v2337, 16
      %vm2402 = vcmp.lt.s32.totalorder %v2338, 16
      %vm2403 = vcmp.lt.s32.totalorder %v2339, 16
      %vm2404 = vcmp.lt.s32.totalorder %v2340, 16
      %vm2405 = vcmp.lt.s32.totalorder %v2341, 16
      %vm2406 = vcmp.lt.s32.totalorder %v2342, 16
      %vm2407 = vcmp.lt.s32.totalorder %v2343, 16
      %vm2408 = vcmp.lt.s32.totalorder %v2344, 16
      %vm2409 = vcmp.lt.s32.totalorder %v2345, 16
      %vm2410 = vcmp.lt.s32.totalorder %v2346, 16
      %vm2411 = vcmp.lt.s32.totalorder %v2347, 16
      %vm2412 = vcmp.lt.s32.totalorder %v2348, 16
      %vm2413 = vcmp.lt.s32.totalorder %v2349, 16
      %vm2414 = vcmp.lt.s32.totalorder %v2350, 16
      %vm2415 = vcmp.lt.s32.totalorder %v2351, 16
      %vm2416 = vcmp.lt.s32.totalorder %v2352, 16
      %vm2417 = vcmp.lt.s32.totalorder %v2353, 16
      %vm2418 = vcmp.lt.s32.totalorder %v2354, 16
      %vm2419 = vcmp.lt.s32.totalorder %v2355, 16
      %vm2420 = vcmp.lt.s32.totalorder %v2356, 16
      %vm2421 = vcmp.lt.s32.totalorder %v2357, 16
      %vm2422 = vcmp.lt.s32.totalorder %v2358, 16
      %vm2423 = vcmp.lt.s32.totalorder %v2359, 16
      %vm2424 = vcmp.lt.s32.totalorder %v2360, 16
      %vm2425 = vcmp.lt.s32.totalorder %v2361, 16
      %vm2426 = vcmp.lt.s32.totalorder %v2362, 16
      %vm2427 = vcmp.lt.s32.totalorder %v2363, 16
      %vm2428 = vcmp.lt.s32.totalorder %v2364, 16
      %vm2429 = vmand %vm2365, %vm2397
      %vm2430 = vmand %vm2366, %vm2398
      %vm2431 = vmand %vm2367, %vm2399
      %vm2432 = vmand %vm2368, %vm2400
      %vm2433 = vmand %vm2369, %vm2401
      %vm2434 = vmand %vm2370, %vm2402
      %vm2435 = vmand %vm2371, %vm2403
      %vm2436 = vmand %vm2372, %vm2404
      %vm2437 = vmand %vm2373, %vm2405
      %vm2438 = vmand %vm2374, %vm2406
      %vm2439 = vmand %vm2375, %vm2407
      %vm2440 = vmand %vm2376, %vm2408
      %vm2441 = vmand %vm2377, %vm2409
      %vm2442 = vmand %vm2378, %vm2410
      %vm2443 = vmand %vm2379, %vm2411
      %vm2444 = vmand %vm2380, %vm2412
      %vm2445 = vmand %vm2381, %vm2413
      %vm2446 = vmand %vm2382, %vm2414
      %vm2447 = vmand %vm2383, %vm2415
      %vm2448 = vmand %vm2384, %vm2416
      %vm2449 = vmand %vm2385, %vm2417
      %vm2450 = vmand %vm2386, %vm2418
      %vm2451 = vmand %vm2387, %vm2419
      %vm2452 = vmand %vm2388, %vm2420
      %vm2453 = vmand %vm2389, %vm2421
      %vm2454 = vmand %vm2390, %vm2422
      %vm2455 = vmand %vm2391, %vm2423
      %vm2456 = vmand %vm2392, %vm2424
      %vm2457 = vmand %vm2393, %vm2425
      %vm2458 = vmand %vm2394, %vm2426
      %vm2459 = vmand %vm2395, %vm2427
      %vm2460 = vmand %vm2396, %vm2428
      %v2461 = vadd.s32 %v2301, 1
      %v2462 = vadd.s32 %v2302, 1
      %v2463 = vadd.s32 %v2303, 1
      %v2464 = vadd.s32 %v2304, 1
      %v2465 = vadd.s32 %v2305, 1
      %v2466 = vadd.s32 %v2306, 1
      %v2467 = vadd.s32 %v2307, 1
      %v2468 = vadd.s32 %v2308, 1
      %v2469 = vadd.s32 %v2309, 1
      %v2470 = vadd.s32 %v2310, 1
      %v2471 = vadd.s32 %v2311, 1
      %v2472 = vadd.s32 %v2312, 1
      %v2473 = vadd.s32 %v2313, 1
      %v2474 = vadd.s32 %v2314, 1
      %v2475 = vadd.s32 %v2315, 1
      %v2476 = vadd.s32 %v2316, 1
      %v2477 = vadd.s32 %v2317, 1
      %v2478 = vadd.s32 %v2318, 1
      %v2479 = vadd.s32 %v2319, 1
      %v2480 = vadd.s32 %v2320, 1
      %v2481 = vadd.s32 %v2321, 1
      %v2482 = vadd.s32 %v2322, 1
      %v2483 = vadd.s32 %v2323, 1
      %v2484 = vadd.s32 %v2324, 1
      %v2485 = vadd.s32 %v2325, 1
      %v2486 = vadd.s32 %v2326, 1
      %v2487 = vadd.s32 %v2327, 1
      %v2488 = vadd.s32 %v2328, 1
      %v2489 = vadd.s32 %v2329, 1
      %v2490 = vadd.s32 %v2330, 1
      %v2491 = vadd.s32 %v2331, 1
      %v2492 = vadd.s32 %v2332, 1
      %vm2493 = vcmp.ge.s32.totalorder %v2461, 0
      %vm2494 = vcmp.ge.s32.totalorder %v2462, 0
      %vm2495 = vcmp.ge.s32.totalorder %v2463, 0
      %vm2496 = vcmp.ge.s32.totalorder %v2464, 0
      %vm2497 = vcmp.ge.s32.totalorder %v2465, 0
      %vm2498 = vcmp.ge.s32.totalorder %v2466, 0
      %vm2499 = vcmp.ge.s32.totalorder %v2467, 0
      %vm2500 = vcmp.ge.s32.totalorder %v2468, 0
      %vm2501 = vcmp.ge.s32.totalorder %v2469, 0
      %vm2502 = vcmp.ge.s32.totalorder %v2470, 0
      %vm2503 = vcmp.ge.s32.totalorder %v2471, 0
      %vm2504 = vcmp.ge.s32.totalorder %v2472, 0
      %vm2505 = vcmp.ge.s32.totalorder %v2473, 0
      %vm2506 = vcmp.ge.s32.totalorder %v2474, 0
      %vm2507 = vcmp.ge.s32.totalorder %v2475, 0
      %vm2508 = vcmp.ge.s32.totalorder %v2476, 0
      %vm2509 = vcmp.ge.s32.totalorder %v2477, 0
      %vm2510 = vcmp.ge.s32.totalorder %v2478, 0
      %vm2511 = vcmp.ge.s32.totalorder %v2479, 0
      %vm2512 = vcmp.ge.s32.totalorder %v2480, 0
      %vm2513 = vcmp.ge.s32.totalorder %v2481, 0
      %vm2514 = vcmp.ge.s32.totalorder %v2482, 0
      %vm2515 = vcmp.ge.s32.totalorder %v2483, 0
      %vm2516 = vcmp.ge.s32.totalorder %v2484, 0
      %vm2517 = vcmp.ge.s32.totalorder %v2485, 0
      %vm2518 = vcmp.ge.s32.totalorder %v2486, 0
      %vm2519 = vcmp.ge.s32.totalorder %v2487, 0
      %vm2520 = vcmp.ge.s32.totalorder %v2488, 0
      %vm2521 = vcmp.ge.s32.totalorder %v2489, 0
      %vm2522 = vcmp.ge.s32.totalorder %v2490, 0
      %vm2523 = vcmp.ge.s32.totalorder %v2491, 0
      %vm2524 = vcmp.ge.s32.totalorder %v2492, 0
      %vm2525 = vcmp.lt.s32.totalorder %v2461, 16
      %vm2526 = vcmp.lt.s32.totalorder %v2462, 16
      %vm2527 = vcmp.lt.s32.totalorder %v2463, 16
      %vm2528 = vcmp.lt.s32.totalorder %v2464, 16
      %vm2529 = vcmp.lt.s32.totalorder %v2465, 16
      %vm2530 = vcmp.lt.s32.totalorder %v2466, 16
      %vm2531 = vcmp.lt.s32.totalorder %v2467, 16
      %vm2532 = vcmp.lt.s32.totalorder %v2468, 16
      %vm2533 = vcmp.lt.s32.totalorder %v2469, 16
      %vm2534 = vcmp.lt.s32.totalorder %v2470, 16
      %vm2535 = vcmp.lt.s32.totalorder %v2471, 16
      %vm2536 = vcmp.lt.s32.totalorder %v2472, 16
      %vm2537 = vcmp.lt.s32.totalorder %v2473, 16
      %vm2538 = vcmp.lt.s32.totalorder %v2474, 16
      %vm2539 = vcmp.lt.s32.totalorder %v2475, 16
      %vm2540 = vcmp.lt.s32.totalorder %v2476, 16
      %vm2541 = vcmp.lt.s32.totalorder %v2477, 16
      %vm2542 = vcmp.lt.s32.totalorder %v2478, 16
      %vm2543 = vcmp.lt.s32.totalorder %v2479, 16
      %vm2544 = vcmp.lt.s32.totalorder %v2480, 16
      %vm2545 = vcmp.lt.s32.totalorder %v2481, 16
      %vm2546 = vcmp.lt.s32.totalorder %v2482, 16
      %vm2547 = vcmp.lt.s32.totalorder %v2483, 16
      %vm2548 = vcmp.lt.s32.totalorder %v2484, 16
      %vm2549 = vcmp.lt.s32.totalorder %v2485, 16
      %vm2550 = vcmp.lt.s32.totalorder %v2486, 16
      %vm2551 = vcmp.lt.s32.totalorder %v2487, 16
      %vm2552 = vcmp.lt.s32.totalorder %v2488, 16
      %vm2553 = vcmp.lt.s32.totalorder %v2489, 16
      %vm2554 = vcmp.lt.s32.totalorder %v2490, 16
      %vm2555 = vcmp.lt.s32.totalorder %v2491, 16
      %vm2556 = vcmp.lt.s32.totalorder %v2492, 16
      %vm2557 = vmand %vm2493, %vm2525
      %vm2558 = vmand %vm2494, %vm2526
      %vm2559 = vmand %vm2495, %vm2527
      %vm2560 = vmand %vm2496, %vm2528
      %vm2561 = vmand %vm2497, %vm2529
      %vm2562 = vmand %vm2498, %vm2530
      %vm2563 = vmand %vm2499, %vm2531
      %vm2564 = vmand %vm2500, %vm2532
      %vm2565 = vmand %vm2501, %vm2533
      %vm2566 = vmand %vm2502, %vm2534
      %vm2567 = vmand %vm2503, %vm2535
      %vm2568 = vmand %vm2504, %vm2536
      %vm2569 = vmand %vm2505, %vm2537
      %vm2570 = vmand %vm2506, %vm2538
      %vm2571 = vmand %vm2507, %vm2539
      %vm2572 = vmand %vm2508, %vm2540
      %vm2573 = vmand %vm2509, %vm2541
      %vm2574 = vmand %vm2510, %vm2542
      %vm2575 = vmand %vm2511, %vm2543
      %vm2576 = vmand %vm2512, %vm2544
      %vm2577 = vmand %vm2513, %vm2545
      %vm2578 = vmand %vm2514, %vm2546
      %vm2579 = vmand %vm2515, %vm2547
      %vm2580 = vmand %vm2516, %vm2548
      %vm2581 = vmand %vm2517, %vm2549
      %vm2582 = vmand %vm2518, %vm2550
      %vm2583 = vmand %vm2519, %vm2551
      %vm2584 = vmand %vm2520, %vm2552
      %vm2585 = vmand %vm2521, %vm2553
      %vm2586 = vmand %vm2522, %vm2554
      %vm2587 = vmand %vm2523, %vm2555
      %vm2588 = vmand %vm2524, %vm2556
      %v2589 = vld [vmem:[%s3] sm:$0xff]
      %v2590 = vld [vmem:[%s3 + $0x8] sm:$0x1]
      %v2591 = vld [vmem:[#allocation2] sm:$0xff]
      %v2592 = vld [vmem:[#allocation2 + $0x8] sm:$0xff]
      %v2593 = vld [vmem:[#allocation2 + $0x10] sm:$0xff]
      %v2594 = vld [vmem:[#allocation2 + $0x18] sm:$0xff]
      %v2595 = vld [vmem:[#allocation2 + $0x20] sm:$0xff]
      %v2596 = vld [vmem:[#allocation2 + $0x28] sm:$0xff]
      %v2597 = vld [vmem:[#allocation2 + $0x30] sm:$0xff]
      %v2598 = vld [vmem:[#allocation2 + $0x38] sm:$0xff]
      %v2599 = vld [vmem:[#allocation2 + $0x40] sm:$0xff]
      %v2600 = vld [vmem:[#allocation2 + $0x48] sm:$0xff]
      %v2601 = vld [vmem:[#allocation2 + $0x50] sm:$0xff]
      %v2602 = vld [vmem:[#allocation2 + $0x58] sm:$0xff]
      %v2603 = vld [vmem:[#allocation2 + $0x60] sm:$0xff]
      %v2604 = vld [vmem:[#allocation2 + $0x68] sm:$0xff]
      %v2605 = vld [vmem:[#allocation2 + $0x70] sm:$0xff]
      %v2606 = vld [vmem:[#allocation2 + $0x78] sm:$0xff]
      %v2607 = vld [vmem:[#allocation2 + $0x80] sm:$0xff]
      %v2608 = vld [vmem:[#allocation2 + $0x88] sm:$0xff]
      %v2609 = vld [vmem:[#allocation2 + $0x90] sm:$0xff]
      %v2610 = vld [vmem:[#allocation2 + $0x98] sm:$0xff]
      %v2611 = vld [vmem:[#allocation2 + $0xa0] sm:$0xff]
      %v2612 = vld [vmem:[#allocation2 + $0xa8] sm:$0xff]
      %v2613 = vld [vmem:[#allocation2 + $0xb0] sm:$0xff]
      %v2614 = vld [vmem:[#allocation2 + $0xb8] sm:$0xff]
      %v2615 = vld [vmem:[#allocation2 + $0xc0] sm:$0xff]
      %v2616 = vld [vmem:[#allocation2 + $0xc8] sm:$0xff]
      %v2617 = vld [vmem:[#allocation2 + $0xd0] sm:$0xff]
      %v2618 = vld [vmem:[#allocation2 + $0xd8] sm:$0xff]
      %v2619 = vld [vmem:[#allocation2 + $0xe0] sm:$0xff]
      %v2620 = vld [vmem:[#allocation2 + $0xe8] sm:$0xff]
      %v2621 = vld [vmem:[#allocation2 + $0xf0] sm:$0xff]
      %v2622 = vld [vmem:[#allocation2 + $0xf8] sm:$0xff]
      %v2623 = vld [vmem:[#allocation2 + $0x128] sm:$0xff]
      %v2624 = vld [vmem:[#allocation2 + $0x130] sm:$0xff]
      %v2625 = vld [vmem:[#allocation2 + $0x138] sm:$0xff]
      %v2626 = vld [vmem:[#allocation2 + $0x140] sm:$0xff]
      %v2627 = vld [vmem:[#allocation2 + $0x148] sm:$0xff]
      %v2628 = vld [vmem:[#allocation2 + $0x150] sm:$0xff]
      %v2629 = vld [vmem:[#allocation2 + $0x158] sm:$0xff]
      %v2630 = vld [vmem:[#allocation2 + $0x160] sm:$0xff]
      %v2631 = vld [vmem:[#allocation2 + $0x168] sm:$0xff]
      %v2632 = vld [vmem:[#allocation2 + $0x170] sm:$0xff]
      %v2633 = vld [vmem:[#allocation2 + $0x178] sm:$0xff]
      %v2634 = vld [vmem:[#allocation2 + $0x180] sm:$0xff]
      %v2635 = vld [vmem:[#allocation2 + $0x188] sm:$0xff]
      %v2636 = vld [vmem:[#allocation2 + $0x190] sm:$0xff]
      %v2637 = vld [vmem:[#allocation2 + $0x198] sm:$0xff]
      %v2638 = vld [vmem:[#allocation2 + $0x1a0] sm:$0xff]
      %v2639 = vld [vmem:[#allocation2 + $0x1a8] sm:$0xff]
      %v2640 = vld [vmem:[#allocation2 + $0x1b0] sm:$0xff]
      %v2641 = vld [vmem:[#allocation2 + $0x1b8] sm:$0xff]
      %v2642 = vld [vmem:[#allocation2 + $0x1c0] sm:$0xff]
      %v2643 = vld [vmem:[#allocation2 + $0x1c8] sm:$0xff]
      %v2644 = vld [vmem:[#allocation2 + $0x1d0] sm:$0xff]
      %v2645 = vld [vmem:[#allocation2 + $0x1d8] sm:$0xff]
      %v2646 = vld [vmem:[#allocation2 + $0x1e0] sm:$0xff]
      %v2647 = vld [vmem:[#allocation2 + $0x1e8] sm:$0xff]
      %v2648 = vld [vmem:[#allocation2 + $0x1f0] sm:$0xff]
      %v2649 = vld [vmem:[#allocation2 + $0x1f8] sm:$0xff]
      %v2650 = vld [vmem:[#allocation2 + $0x200] sm:$0xff]
      %v2651 = vld [vmem:[#allocation2 + $0x208] sm:$0xff]
      %v2652 = vld [vmem:[#allocation2 + $0x210] sm:$0xff]
      %v2653 = vld [vmem:[#allocation2 + $0x218] sm:$0xff]
      %v2654 = vld [vmem:[#allocation2 + $0x220] sm:$0xff]
      %v2655 = vld [vmem:[#allocation2 + $0x250] sm:$0xff]
      %v2656 = vld [vmem:[#allocation2 + $0x258] sm:$0xff]
      %v2657 = vld [vmem:[#allocation2 + $0x260] sm:$0xff]
      %v2658 = vld [vmem:[#allocation2 + $0x268] sm:$0xff]
      %v2659 = vld [vmem:[#allocation2 + $0x270] sm:$0xff]
      %v2660 = vld [vmem:[#allocation2 + $0x278] sm:$0xff]
      %v2661 = vld [vmem:[#allocation2 + $0x280] sm:$0xff]
      %v2662 = vld [vmem:[#allocation2 + $0x288] sm:$0xff]
      %v2663 = vld [vmem:[#allocation2 + $0x290] sm:$0xff]
      %v2664 = vld [vmem:[#allocation2 + $0x298] sm:$0xff]
      %v2665 = vld [vmem:[#allocation2 + $0x2a0] sm:$0xff]
      %v2666 = vld [vmem:[#allocation2 + $0x2a8] sm:$0xff]
      %v2667 = vld [vmem:[#allocation2 + $0x2b0] sm:$0xff]
      %v2668 = vld [vmem:[#allocation2 + $0x2b8] sm:$0xff]
      %v2669 = vld [vmem:[#allocation2 + $0x2c0] sm:$0xff]
      %v2670 = vld [vmem:[#allocation2 + $0x2c8] sm:$0xff]
      %v2671 = vld [vmem:[#allocation2 + $0x2d0] sm:$0xff]
      %v2672 = vld [vmem:[#allocation2 + $0x2d8] sm:$0xff]
      %v2673 = vld [vmem:[#allocation2 + $0x2e0] sm:$0xff]
      %v2674 = vld [vmem:[#allocation2 + $0x2e8] sm:$0xff]
      %v2675 = vld [vmem:[#allocation2 + $0x2f0] sm:$0xff]
      %v2676 = vld [vmem:[#allocation2 + $0x2f8] sm:$0xff]
      %v2677 = vld [vmem:[#allocation2 + $0x300] sm:$0xff]
      %v2678 = vld [vmem:[#allocation2 + $0x308] sm:$0xff]
      %v2679 = vld [vmem:[#allocation2 + $0x310] sm:$0xff]
      %v2680 = vld [vmem:[#allocation2 + $0x318] sm:$0xff]
      %v2681 = vld [vmem:[#allocation2 + $0x320] sm:$0xff]
      %v2682 = vld [vmem:[#allocation2 + $0x328] sm:$0xff]
      %v2683 = vld [vmem:[#allocation2 + $0x330] sm:$0xff]
      %v2684 = vld [vmem:[#allocation2 + $0x338] sm:$0xff]
      %v2685 = vld [vmem:[#allocation2 + $0x340] sm:$0xff]
      %v2686 = vld [vmem:[#allocation2 + $0x348] sm:$0xff]
      %v2687 = vld [vmem:[#allocation2 + $0x378] sm:$0xff]
      %v2688 = vld [vmem:[#allocation2 + $0x380] sm:$0xff]
      %v2689 = vld [vmem:[#allocation2 + $0x388] sm:$0xff]
      %v2690 = vld [vmem:[#allocation2 + $0x390] sm:$0xff]
      %v2691 = vld [vmem:[#allocation2 + $0x398] sm:$0xff]
      %v2692 = vld [vmem:[#allocation2 + $0x3a0] sm:$0xff]
      %v2693 = vld [vmem:[#allocation2 + $0x3a8] sm:$0xff]
      %v2694 = vld [vmem:[#allocation2 + $0x3b0] sm:$0xff]
      %v2695 = vld [vmem:[#allocation2 + $0x3b8] sm:$0xff]
      %v2696 = vld [vmem:[#allocation2 + $0x3c0] sm:$0xff]
      %v2697 = vld [vmem:[#allocation2 + $0x3c8] sm:$0xff]
      %v2698 = vld [vmem:[#allocation2 + $0x3d0] sm:$0xff]
      %v2699 = vld [vmem:[#allocation2 + $0x3d8] sm:$0xff]
      %v2700 = vld [vmem:[#allocation2 + $0x3e0] sm:$0xff]
      %v2701 = vld [vmem:[#allocation2 + $0x3e8] sm:$0xff]
      %v2702 = vld [vmem:[#allocation2 + $0x3f0] sm:$0xff]
      %v2703 = vld [vmem:[#allocation2 + $0x3f8] sm:$0xff]
      %v2704 = vld [vmem:[#allocation2 + $0x400] sm:$0xff]
      %v2705 = vld [vmem:[#allocation2 + $0x408] sm:$0xff]
      %v2706 = vld [vmem:[#allocation2 + $0x410] sm:$0xff]
      %v2707 = vld [vmem:[#allocation2 + $0x418] sm:$0xff]
      %v2708 = vld [vmem:[#allocation2 + $0x420] sm:$0xff]
      %v2709 = vld [vmem:[#allocation2 + $0x428] sm:$0xff]
      %v2710 = vld [vmem:[#allocation2 + $0x430] sm:$0xff]
      %v2711 = vld [vmem:[#allocation2 + $0x438] sm:$0xff]
      %v2712 = vld [vmem:[#allocation2 + $0x440] sm:$0xff]
      %v2713 = vld [vmem:[#allocation2 + $0x448] sm:$0xff]
      %v2714 = vld [vmem:[#allocation2 + $0x450] sm:$0xff]
      %v2715 = vld [vmem:[#allocation2 + $0x458] sm:$0xff]
      %v2716 = vld [vmem:[#allocation2 + $0x460] sm:$0xff]
      %v2717 = vld [vmem:[#allocation2 + $0x468] sm:$0xff]
      %v2718 = vld [vmem:[#allocation2 + $0x470] sm:$0xff]
      %v2719 = vperm.slane %v2589, 0
      %v2720 = vmul.f32 %v2591, %v2719
      %v2721 = vmul.f32 %v2592, %v2719
      %v2722 = vmul.f32 %v2593, %v2719
      %v2723 = vmul.f32 %v2594, %v2719
      %v2724 = vmul.f32 %v2595, %v2719
      %v2725 = vmul.f32 %v2596, %v2719
      %v2726 = vmul.f32 %v2597, %v2719
      %v2727 = vmul.f32 %v2598, %v2719
      %v2728 = vmul.f32 %v2599, %v2719
      %v2729 = vmul.f32 %v2600, %v2719
      %v2730 = vmul.f32 %v2601, %v2719
      %v2731 = vmul.f32 %v2602, %v2719
      %v2732 = vmul.f32 %v2603, %v2719
      %v2733 = vmul.f32 %v2604, %v2719
      %v2734 = vmul.f32 %v2605, %v2719
      %v2735 = vmul.f32 %v2606, %v2719
      %v2736 = vmul.f32 %v2607, %v2719
      %v2737 = vmul.f32 %v2608, %v2719
      %v2738 = vmul.f32 %v2609, %v2719
      %v2739 = vmul.f32 %v2610, %v2719
      %v2740 = vmul.f32 %v2611, %v2719
      %v2741 = vmul.f32 %v2612, %v2719
      %v2742 = vmul.f32 %v2613, %v2719
      %v2743 = vmul.f32 %v2614, %v2719
      %v2744 = vmul.f32 %v2615, %v2719
      %v2745 = vmul.f32 %v2616, %v2719
      %v2746 = vmul.f32 %v2617, %v2719
      %v2747 = vmul.f32 %v2618, %v2719
      %v2748 = vmul.f32 %v2619, %v2719
      %v2749 = vmul.f32 %v2620, %v2719
      %v2750 = vmul.f32 %v2621, %v2719
      %v2751 = vmul.f32 %v2622, %v2719
      %v2752 = vmul.f32 %v2623, %v2719
      %v2753 = vmul.f32 %v2624, %v2719
      %v2754 = vmul.f32 %v2625, %v2719
      %v2755 = vmul.f32 %v2626, %v2719
      %v2756 = vmul.f32 %v2627, %v2719
      %v2757 = vmul.f32 %v2628, %v2719
      %v2758 = vmul.f32 %v2629, %v2719
      %v2759 = vmul.f32 %v2630, %v2719
      %v2760 = vmul.f32 %v2631, %v2719
      %v2761 = vmul.f32 %v2632, %v2719
      %v2762 = vmul.f32 %v2633, %v2719
      %v2763 = vmul.f32 %v2634, %v2719
      %v2764 = vmul.f32 %v2635, %v2719
      %v2765 = vmul.f32 %v2636, %v2719
      %v2766 = vmul.f32 %v2637, %v2719
      %v2767 = vmul.f32 %v2638, %v2719
      %v2768 = vmul.f32 %v2639, %v2719
      %v2769 = vmul.f32 %v2640, %v2719
      %v2770 = vmul.f32 %v2641, %v2719
      %v2771 = vmul.f32 %v2642, %v2719
      %v2772 = vmul.f32 %v2643, %v2719
      %v2773 = vmul.f32 %v2644, %v2719
      %v2774 = vmul.f32 %v2645, %v2719
      %v2775 = vmul.f32 %v2646, %v2719
      %v2776 = vmul.f32 %v2647, %v2719
      %v2777 = vmul.f32 %v2648, %v2719
      %v2778 = vmul.f32 %v2649, %v2719
      %v2779 = vmul.f32 %v2650, %v2719
      %v2780 = vmul.f32 %v2651, %v2719
      %v2781 = vmul.f32 %v2652, %v2719
      %v2782 = vmul.f32 %v2653, %v2719
      %v2783 = vmul.f32 %v2654, %v2719
      %v2784 = vmul.f32 %v2655, %v2719
      %v2785 = vmul.f32 %v2656, %v2719
      %v2786 = vmul.f32 %v2657, %v2719
      %v2787 = vmul.f32 %v2658, %v2719
      %v2788 = vmul.f32 %v2659, %v2719
      %v2789 = vmul.f32 %v2660, %v2719
      %v2790 = vmul.f32 %v2661, %v2719
      %v2791 = vmul.f32 %v2662, %v2719
      %v2792 = vmul.f32 %v2663, %v2719
      %v2793 = vmul.f32 %v2664, %v2719
      %v2794 = vmul.f32 %v2665, %v2719
      %v2795 = vmul.f32 %v2666, %v2719
      %v2796 = vmul.f32 %v2667, %v2719
      %v2797 = vmul.f32 %v2668, %v2719
      %v2798 = vmul.f32 %v2669, %v2719
      %v2799 = vmul.f32 %v2670, %v2719
      %v2800 = vmul.f32 %v2671, %v2719
      %v2801 = vmul.f32 %v2672, %v2719
      %v2802 = vmul.f32 %v2673, %v2719
      %v2803 = vmul.f32 %v2674, %v2719
      %v2804 = vmul.f32 %v2675, %v2719
      %v2805 = vmul.f32 %v2676, %v2719
      %v2806 = vmul.f32 %v2677, %v2719
      %v2807 = vmul.f32 %v2678, %v2719
      %v2808 = vmul.f32 %v2679, %v2719
      %v2809 = vmul.f32 %v2680, %v2719
      %v2810 = vmul.f32 %v2681, %v2719
      %v2811 = vmul.f32 %v2682, %v2719
      %v2812 = vmul.f32 %v2683, %v2719
      %v2813 = vmul.f32 %v2684, %v2719
      %v2814 = vmul.f32 %v2685, %v2719
      %v2815 = vmul.f32 %v2686, %v2719
      %v2816 = vmul.f32 %v2687, %v2719
      %v2817 = vmul.f32 %v2688, %v2719
      %v2818 = vmul.f32 %v2689, %v2719
      %v2819 = vmul.f32 %v2690, %v2719
      %v2820 = vmul.f32 %v2691, %v2719
      %v2821 = vmul.f32 %v2692, %v2719
      %v2822 = vmul.f32 %v2693, %v2719
      %v2823 = vmul.f32 %v2694, %v2719
      %v2824 = vmul.f32 %v2695, %v2719
      %v2825 = vmul.f32 %v2696, %v2719
      %v2826 = vmul.f32 %v2697, %v2719
      %v2827 = vmul.f32 %v2698, %v2719
      %v2828 = vmul.f32 %v2699, %v2719
      %v2829 = vmul.f32 %v2700, %v2719
      %v2830 = vmul.f32 %v2701, %v2719
      %v2831 = vmul.f32 %v2702, %v2719
      %v2832 = vmul.f32 %v2703, %v2719
      %v2833 = vmul.f32 %v2704, %v2719
      %v2834 = vmul.f32 %v2705, %v2719
      %v2835 = vmul.f32 %v2706, %v2719
      %v2836 = vmul.f32 %v2707, %v2719
      %v2837 = vmul.f32 %v2708, %v2719
      %v2838 = vmul.f32 %v2709, %v2719
      %v2839 = vmul.f32 %v2710, %v2719
      %v2840 = vmul.f32 %v2711, %v2719
      %v2841 = vmul.f32 %v2712, %v2719
      %v2842 = vmul.f32 %v2713, %v2719
      %v2843 = vmul.f32 %v2714, %v2719
      %v2844 = vmul.f32 %v2715, %v2719
      %v2845 = vmul.f32 %v2716, %v2719
      %v2846 = vmul.f32 %v2717, %v2719
      %v2847 = vmul.f32 %v2718, %v2719
      %v2848 = vsel %vm2429, 1, 0
      %v2849 = vsel %vm2430, 1, 0
      %v2850 = vsel %vm2431, 1, 0
      %v2851 = vsel %vm2432, 1, 0
      %v2852 = vsel %vm2433, 1, 0
      %v2853 = vsel %vm2434, 1, 0
      %v2854 = vsel %vm2435, 1, 0
      %v2855 = vsel %vm2436, 1, 0
      %v2856 = vsel %vm2437, 1, 0
      %v2857 = vsel %vm2438, 1, 0
      %v2858 = vsel %vm2439, 1, 0
      %v2859 = vsel %vm2440, 1, 0
      %v2860 = vsel %vm2441, 1, 0
      %v2861 = vsel %vm2442, 1, 0
      %v2862 = vsel %vm2443, 1, 0
      %v2863 = vsel %vm2444, 1, 0
      %v2864 = vsel %vm2445, 1, 0
      %v2865 = vsel %vm2446, 1, 0
      %v2866 = vsel %vm2447, 1, 0
      %v2867 = vsel %vm2448, 1, 0
      %v2868 = vsel %vm2449, 1, 0
      %v2869 = vsel %vm2450, 1, 0
      %v2870 = vsel %vm2451, 1, 0
      %v2871 = vsel %vm2452, 1, 0
      %v2872 = vsel %vm2453, 1, 0
      %v2873 = vsel %vm2454, 1, 0
      %v2874 = vsel %vm2455, 1, 0
      %v2875 = vsel %vm2456, 1, 0
      %v2876 = vsel %vm2457, 1, 0
      %v2877 = vsel %vm2458, 1, 0
      %v2878 = vsel %vm2459, 1, 0
      %v2879 = vsel %vm2460, 1, 0
      %vm2880 = vcmp.eq.s32.totalorder %v2848, 1
      %vm2881 = vcmp.eq.s32.totalorder %v2849, 1
      %vm2882 = vcmp.eq.s32.totalorder %v2850, 1
      %vm2883 = vcmp.eq.s32.totalorder %v2851, 1
      %vm2884 = vcmp.eq.s32.totalorder %v2852, 1
      %vm2885 = vcmp.eq.s32.totalorder %v2853, 1
      %vm2886 = vcmp.eq.s32.totalorder %v2854, 1
      %vm2887 = vcmp.eq.s32.totalorder %v2855, 1
      %vm2888 = vcmp.eq.s32.totalorder %v2856, 1
      %vm2889 = vcmp.eq.s32.totalorder %v2857, 1
      %vm2890 = vcmp.eq.s32.totalorder %v2858, 1
      %vm2891 = vcmp.eq.s32.totalorder %v2859, 1
      %vm2892 = vcmp.eq.s32.totalorder %v2860, 1
      %vm2893 = vcmp.eq.s32.totalorder %v2861, 1
      %vm2894 = vcmp.eq.s32.totalorder %v2862, 1
      %vm2895 = vcmp.eq.s32.totalorder %v2863, 1
      %vm2896 = vcmp.eq.s32.totalorder %v2864, 1
      %vm2897 = vcmp.eq.s32.totalorder %v2865, 1
      %vm2898 = vcmp.eq.s32.totalorder %v2866, 1
      %vm2899 = vcmp.eq.s32.totalorder %v2867, 1
      %vm2900 = vcmp.eq.s32.totalorder %v2868, 1
      %vm2901 = vcmp.eq.s32.totalorder %v2869, 1
      %vm2902 = vcmp.eq.s32.totalorder %v2870, 1
      %vm2903 = vcmp.eq.s32.totalorder %v2871, 1
      %vm2904 = vcmp.eq.s32.totalorder %v2872, 1
      %vm2905 = vcmp.eq.s32.totalorder %v2873, 1
      %vm2906 = vcmp.eq.s32.totalorder %v2874, 1
      %vm2907 = vcmp.eq.s32.totalorder %v2875, 1
      %vm2908 = vcmp.eq.s32.totalorder %v2876, 1
      %vm2909 = vcmp.eq.s32.totalorder %v2877, 1
      %vm2910 = vcmp.eq.s32.totalorder %v2878, 1
      %vm2911 = vcmp.eq.s32.totalorder %v2879, 1
      %v2912 = vsel %vm2880, %v2720, 0.0
      %v2913 = vsel %vm2881, %v2721, 0.0
      %v2914 = vsel %vm2882, %v2722, 0.0
      %v2915 = vsel %vm2883, %v2723, 0.0
      %v2916 = vsel %vm2884, %v2724, 0.0
      %v2917 = vsel %vm2885, %v2725, 0.0
      %v2918 = vsel %vm2886, %v2726, 0.0
      %v2919 = vsel %vm2887, %v2727, 0.0
      %v2920 = vsel %vm2888, %v2728, 0.0
      %v2921 = vsel %vm2889, %v2729, 0.0
      %v2922 = vsel %vm2890, %v2730, 0.0
      %v2923 = vsel %vm2891, %v2731, 0.0
      %v2924 = vsel %vm2892, %v2732, 0.0
      %v2925 = vsel %vm2893, %v2733, 0.0
      %v2926 = vsel %vm2894, %v2734, 0.0
      %v2927 = vsel %vm2895, %v2735, 0.0
      %v2928 = vsel %vm2896, %v2736, 0.0
      %v2929 = vsel %vm2897, %v2737, 0.0
      %v2930 = vsel %vm2898, %v2738, 0.0
      %v2931 = vsel %vm2899, %v2739, 0.0
      %v2932 = vsel %vm2900, %v2740, 0.0
      %v2933 = vsel %vm2901, %v2741, 0.0
      %v2934 = vsel %vm2902, %v2742, 0.0
      %v2935 = vsel %vm2903, %v2743, 0.0
      %v2936 = vsel %vm2904, %v2744, 0.0
      %v2937 = vsel %vm2905, %v2745, 0.0
      %v2938 = vsel %vm2906, %v2746, 0.0
      %v2939 = vsel %vm2907, %v2747, 0.0
      %v2940 = vsel %vm2908, %v2748, 0.0
      %v2941 = vsel %vm2909, %v2749, 0.0
      %v2942 = vsel %vm2910, %v2750, 0.0
      %v2943 = vsel %vm2911, %v2751, 0.0
      %v2944 = vsel %vm2880, %v2752, 0.0
      %v2945 = vsel %vm2881, %v2753, 0.0
      %v2946 = vsel %vm2882, %v2754, 0.0
      %v2947 = vsel %vm2883, %v2755, 0.0
      %v2948 = vsel %vm2884, %v2756, 0.0
      %v2949 = vsel %vm2885, %v2757, 0.0
      %v2950 = vsel %vm2886, %v2758, 0.0
      %v2951 = vsel %vm2887, %v2759, 0.0
      %v2952 = vsel %vm2888, %v2760, 0.0
      %v2953 = vsel %vm2889, %v2761, 0.0
      %v2954 = vsel %vm2890, %v2762, 0.0
      %v2955 = vsel %vm2891, %v2763, 0.0
      %v2956 = vsel %vm2892, %v2764, 0.0
      %v2957 = vsel %vm2893, %v2765, 0.0
      %v2958 = vsel %vm2894, %v2766, 0.0
      %v2959 = vsel %vm2895, %v2767, 0.0
      %v2960 = vsel %vm2896, %v2768, 0.0
      %v2961 = vsel %vm2897, %v2769, 0.0
      %v2962 = vsel %vm2898, %v2770, 0.0
      %v2963 = vsel %vm2899, %v2771, 0.0
      %v2964 = vsel %vm2900, %v2772, 0.0
      %v2965 = vsel %vm2901, %v2773, 0.0
      %v2966 = vsel %vm2902, %v2774, 0.0
      %v2967 = vsel %vm2903, %v2775, 0.0
      %v2968 = vsel %vm2904, %v2776, 0.0
      %v2969 = vsel %vm2905, %v2777, 0.0
      %v2970 = vsel %vm2906, %v2778, 0.0
      %v2971 = vsel %vm2907, %v2779, 0.0
      %v2972 = vsel %vm2908, %v2780, 0.0
      %v2973 = vsel %vm2909, %v2781, 0.0
      %v2974 = vsel %vm2910, %v2782, 0.0
      %v2975 = vsel %vm2911, %v2783, 0.0
      %v2976 = vsel %vm2880, %v2784, 0.0
      %v2977 = vsel %vm2881, %v2785, 0.0
      %v2978 = vsel %vm2882, %v2786, 0.0
      %v2979 = vsel %vm2883, %v2787, 0.0
      %v2980 = vsel %vm2884, %v2788, 0.0
      %v2981 = vsel %vm2885, %v2789, 0.0
      %v2982 = vsel %vm2886, %v2790, 0.0
      %v2983 = vsel %vm2887, %v2791, 0.0
      %v2984 = vsel %vm2888, %v2792, 0.0
      %v2985 = vsel %vm2889, %v2793, 0.0
      %v2986 = vsel %vm2890, %v2794, 0.0
      %v2987 = vsel %vm2891, %v2795, 0.0
      %v2988 = vsel %vm2892, %v2796, 0.0
      %v2989 = vsel %vm2893, %v2797, 0.0
      %v2990 = vsel %vm2894, %v2798, 0.0
      %v2991 = vsel %vm2895, %v2799, 0.0
      %v2992 = vsel %vm2896, %v2800, 0.0
      %v2993 = vsel %vm2897, %v2801, 0.0
      %v2994 = vsel %vm2898, %v2802, 0.0
      %v2995 = vsel %vm2899, %v2803, 0.0
      %v2996 = vsel %vm2900, %v2804, 0.0
      %v2997 = vsel %vm2901, %v2805, 0.0
      %v2998 = vsel %vm2902, %v2806, 0.0
      %v2999 = vsel %vm2903, %v2807, 0.0
      %v3000 = vsel %vm2904, %v2808, 0.0
      %v3001 = vsel %vm2905, %v2809, 0.0
      %v3002 = vsel %vm2906, %v2810, 0.0
      %v3003 = vsel %vm2907, %v2811, 0.0
      %v3004 = vsel %vm2908, %v2812, 0.0
      %v3005 = vsel %vm2909, %v2813, 0.0
      %v3006 = vsel %vm2910, %v2814, 0.0
      %v3007 = vsel %vm2911, %v2815, 0.0
      %v3008 = vsel %vm2880, %v2816, 0.0
      %v3009 = vsel %vm2881, %v2817, 0.0
      %v3010 = vsel %vm2882, %v2818, 0.0
      %v3011 = vsel %vm2883, %v2819, 0.0
      %v3012 = vsel %vm2884, %v2820, 0.0
      %v3013 = vsel %vm2885, %v2821, 0.0
      %v3014 = vsel %vm2886, %v2822, 0.0
      %v3015 = vsel %vm2887, %v2823, 0.0
      %v3016 = vsel %vm2888, %v2824, 0.0
      %v3017 = vsel %vm2889, %v2825, 0.0
      %v3018 = vsel %vm2890, %v2826, 0.0
      %v3019 = vsel %vm2891, %v2827, 0.0
      %v3020 = vsel %vm2892, %v2828, 0.0
      %v3021 = vsel %vm2893, %v2829, 0.0
      %v3022 = vsel %vm2894, %v2830, 0.0
      %v3023 = vsel %vm2895, %v2831, 0.0
      %v3024 = vsel %vm2896, %v2832, 0.0
      %v3025 = vsel %vm2897, %v2833, 0.0
      %v3026 = vsel %vm2898, %v2834, 0.0
      %v3027 = vsel %vm2899, %v2835, 0.0
      %v3028 = vsel %vm2900, %v2836, 0.0
      %v3029 = vsel %vm2901, %v2837, 0.0
      %v3030 = vsel %vm2902, %v2838, 0.0
      %v3031 = vsel %vm2903, %v2839, 0.0
      %v3032 = vsel %vm2904, %v2840, 0.0
      %v3033 = vsel %vm2905, %v2841, 0.0
      %v3034 = vsel %vm2906, %v2842, 0.0
      %v3035 = vsel %vm2907, %v2843, 0.0
      %v3036 = vsel %vm2908, %v2844, 0.0
      %v3037 = vsel %vm2909, %v2845, 0.0
      %v3038 = vsel %vm2910, %v2846, 0.0
      %v3039 = vsel %vm2911, %v2847, 0.0
      %v3040 = vld [vmem:[#allocation2 + $0x1] sm:$0xff]
      %v3041 = vld [vmem:[#allocation2 + $0x9] sm:$0xff]
      %v3042 = vld [vmem:[#allocation2 + $0x11] sm:$0xff]
      %v3043 = vld [vmem:[#allocation2 + $0x19] sm:$0xff]
      %v3044 = vld [vmem:[#allocation2 + $0x21] sm:$0xff]
      %v3045 = vld [vmem:[#allocation2 + $0x29] sm:$0xff]
      %v3046 = vld [vmem:[#allocation2 + $0x31] sm:$0xff]
      %v3047 = vld [vmem:[#allocation2 + $0x39] sm:$0xff]
      %v3048 = vld [vmem:[#allocation2 + $0x41] sm:$0xff]
      %v3049 = vld [vmem:[#allocation2 + $0x49] sm:$0xff]
      %v3050 = vld [vmem:[#allocation2 + $0x51] sm:$0xff]
      %v3051 = vld [vmem:[#allocation2 + $0x59] sm:$0xff]
      %v3052 = vld [vmem:[#allocation2 + $0x61] sm:$0xff]
      %v3053 = vld [vmem:[#allocation2 + $0x69] sm:$0xff]
      %v3054 = vld [vmem:[#allocation2 + $0x71] sm:$0xff]
      %v3055 = vld [vmem:[#allocation2 + $0x79] sm:$0xff]
      %v3056 = vld [vmem:[#allocation2 + $0x81] sm:$0xff]
      %v3057 = vld [vmem:[#allocation2 + $0x89] sm:$0xff]
      %v3058 = vld [vmem:[#allocation2 + $0x91] sm:$0xff]
      %v3059 = vld [vmem:[#allocation2 + $0x99] sm:$0xff]
      %v3060 = vld [vmem:[#allocation2 + $0xa1] sm:$0xff]
      %v3061 = vld [vmem:[#allocation2 + $0xa9] sm:$0xff]
      %v3062 = vld [vmem:[#allocation2 + $0xb1] sm:$0xff]
      %v3063 = vld [vmem:[#allocation2 + $0xb9] sm:$0xff]
      %v3064 = vld [vmem:[#allocation2 + $0xc1] sm:$0xff]
      %v3065 = vld [vmem:[#allocation2 + $0xc9] sm:$0xff]
      %v3066 = vld [vmem:[#allocation2 + $0xd1] sm:$0xff]
      %v3067 = vld [vmem:[#allocation2 + $0xd9] sm:$0xff]
      %v3068 = vld [vmem:[#allocation2 + $0xe1] sm:$0xff]
      %v3069 = vld [vmem:[#allocation2 + $0xe9] sm:$0xff]
      %v3070 = vld [vmem:[#allocation2 + $0xf1] sm:$0xff]
      %v3071 = vld [vmem:[#allocation2 + $0xf9] sm:$0xff]
      %v3072 = vld [vmem:[#allocation2 + $0x129] sm:$0xff]
      %v3073 = vld [vmem:[#allocation2 + $0x131] sm:$0xff]
      %v3074 = vld [vmem:[#allocation2 + $0x139] sm:$0xff]
      %v3075 = vld [vmem:[#allocation2 + $0x141] sm:$0xff]
      %v3076 = vld [vmem:[#allocation2 + $0x149] sm:$0xff]
      %v3077 = vld [vmem:[#allocation2 + $0x151] sm:$0xff]
      %v3078 = vld [vmem:[#allocation2 + $0x159] sm:$0xff]
      %v3079 = vld [vmem:[#allocation2 + $0x161] sm:$0xff]
      %v3080 = vld [vmem:[#allocation2 + $0x169] sm:$0xff]
      %v3081 = vld [vmem:[#allocation2 + $0x171] sm:$0xff]
      %v3082 = vld [vmem:[#allocation2 + $0x179] sm:$0xff]
      %v3083 = vld [vmem:[#allocation2 + $0x181] sm:$0xff]
      %v3084 = vld [vmem:[#allocation2 + $0x189] sm:$0xff]
      %v3085 = vld [vmem:[#allocation2 + $0x191] sm:$0xff]
      %v3086 = vld [vmem:[#allocation2 + $0x199] sm:$0xff]
      %v3087 = vld [vmem:[#allocation2 + $0x1a1] sm:$0xff]
      %v3088 = vld [vmem:[#allocation2 + $0x1a9] sm:$0xff]
      %v3089 = vld [vmem:[#allocation2 + $0x1b1] sm:$0xff]
      %v3090 = vld [vmem:[#allocation2 + $0x1b9] sm:$0xff]
      %v3091 = vld [vmem:[#allocation2 + $0x1c1] sm:$0xff]
      %v3092 = vld [vmem:[#allocation2 + $0x1c9] sm:$0xff]
      %v3093 = vld [vmem:[#allocation2 + $0x1d1] sm:$0xff]
      %v3094 = vld [vmem:[#allocation2 + $0x1d9] sm:$0xff]
      %v3095 = vld [vmem:[#allocation2 + $0x1e1] sm:$0xff]
      %v3096 = vld [vmem:[#allocation2 + $0x1e9] sm:$0xff]
      %v3097 = vld [vmem:[#allocation2 + $0x1f1] sm:$0xff]
      %v3098 = vld [vmem:[#allocation2 + $0x1f9] sm:$0xff]
      %v3099 = vld [vmem:[#allocation2 + $0x201] sm:$0xff]
      %v3100 = vld [vmem:[#allocation2 + $0x209] sm:$0xff]
      %v3101 = vld [vmem:[#allocation2 + $0x211] sm:$0xff]
      %v3102 = vld [vmem:[#allocation2 + $0x219] sm:$0xff]
      %v3103 = vld [vmem:[#allocation2 + $0x221] sm:$0xff]
      %v3104 = vld [vmem:[#allocation2 + $0x251] sm:$0xff]
      %v3105 = vld [vmem:[#allocation2 + $0x259] sm:$0xff]
      %v3106 = vld [vmem:[#allocation2 + $0x261] sm:$0xff]
      %v3107 = vld [vmem:[#allocation2 + $0x269] sm:$0xff]
      %v3108 = vld [vmem:[#allocation2 + $0x271] sm:$0xff]
      %v3109 = vld [vmem:[#allocation2 + $0x279] sm:$0xff]
      %v3110 = vld [vmem:[#allocation2 + $0x281] sm:$0xff]
      %v3111 = vld [vmem:[#allocation2 + $0x289] sm:$0xff]
      %v3112 = vld [vmem:[#allocation2 + $0x291] sm:$0xff]
      %v3113 = vld [vmem:[#allocation2 + $0x299] sm:$0xff]
      %v3114 = vld [vmem:[#allocation2 + $0x2a1] sm:$0xff]
      %v3115 = vld [vmem:[#allocation2 + $0x2a9] sm:$0xff]
      %v3116 = vld [vmem:[#allocation2 + $0x2b1] sm:$0xff]
      %v3117 = vld [vmem:[#allocation2 + $0x2b9] sm:$0xff]
      %v3118 = vld [vmem:[#allocation2 + $0x2c1] sm:$0xff]
      %v3119 = vld [vmem:[#allocation2 + $0x2c9] sm:$0xff]
      %v3120 = vld [vmem:[#allocation2 + $0x2d1] sm:$0xff]
      %v3121 = vld [vmem:[#allocation2 + $0x2d9] sm:$0xff]
      %v3122 = vld [vmem:[#allocation2 + $0x2e1] sm:$0xff]
      %v3123 = vld [vmem:[#allocation2 + $0x2e9] sm:$0xff]
      %v3124 = vld [vmem:[#allocation2 + $0x2f1] sm:$0xff]
      %v3125 = vld [vmem:[#allocation2 + $0x2f9] sm:$0xff]
      %v3126 = vld [vmem:[#allocation2 + $0x301] sm:$0xff]
      %v3127 = vld [vmem:[#allocation2 + $0x309] sm:$0xff]
      %v3128 = vld [vmem:[#allocation2 + $0x311] sm:$0xff]
      %v3129 = vld [vmem:[#allocation2 + $0x319] sm:$0xff]
      %v3130 = vld [vmem:[#allocation2 + $0x321] sm:$0xff]
      %v3131 = vld [vmem:[#allocation2 + $0x329] sm:$0xff]
      %v3132 = vld [vmem:[#allocation2 + $0x331] sm:$0xff]
      %v3133 = vld [vmem:[#allocation2 + $0x339] sm:$0xff]
      %v3134 = vld [vmem:[#allocation2 + $0x341] sm:$0xff]
      %v3135 = vld [vmem:[#allocation2 + $0x349] sm:$0xff]
      %v3136 = vld [vmem:[#allocation2 + $0x379] sm:$0xff]
      %v3137 = vld [vmem:[#allocation2 + $0x381] sm:$0xff]
      %v3138 = vld [vmem:[#allocation2 + $0x389] sm:$0xff]
      %v3139 = vld [vmem:[#allocation2 + $0x391] sm:$0xff]
      %v3140 = vld [vmem:[#allocation2 + $0x399] sm:$0xff]
      %v3141 = vld [vmem:[#allocation2 + $0x3a1] sm:$0xff]
      %v3142 = vld [vmem:[#allocation2 + $0x3a9] sm:$0xff]
      %v3143 = vld [vmem:[#allocation2 + $0x3b1] sm:$0xff]
      %v3144 = vld [vmem:[#allocation2 + $0x3b9] sm:$0xff]
      %v3145 = vld [vmem:[#allocation2 + $0x3c1] sm:$0xff]
      %v3146 = vld [vmem:[#allocation2 + $0x3c9] sm:$0xff]
      %v3147 = vld [vmem:[#allocation2 + $0x3d1] sm:$0xff]
      %v3148 = vld [vmem:[#allocation2 + $0x3d9] sm:$0xff]
      %v3149 = vld [vmem:[#allocation2 + $0x3e1] sm:$0xff]
      %v3150 = vld [vmem:[#allocation2 + $0x3e9] sm:$0xff]
      %v3151 = vld [vmem:[#allocation2 + $0x3f1] sm:$0xff]
      %v3152 = vld [vmem:[#allocation2 + $0x3f9] sm:$0xff]
      %v3153 = vld [vmem:[#allocation2 + $0x401] sm:$0xff]
      %v3154 = vld [vmem:[#allocation2 + $0x409] sm:$0xff]
      %v3155 = vld [vmem:[#allocation2 + $0x411] sm:$0xff]
      %v3156 = vld [vmem:[#allocation2 + $0x419] sm:$0xff]
      %v3157 = vld [vmem:[#allocation2 + $0x421] sm:$0xff]
      %v3158 = vld [vmem:[#allocation2 + $0x429] sm:$0xff]
      %v3159 = vld [vmem:[#allocation2 + $0x431] sm:$0xff]
      %v3160 = vld [vmem:[#allocation2 + $0x439] sm:$0xff]
      %v3161 = vld [vmem:[#allocation2 + $0x441] sm:$0xff]
      %v3162 = vld [vmem:[#allocation2 + $0x449] sm:$0xff]
      %v3163 = vld [vmem:[#allocation2 + $0x451] sm:$0xff]
      %v3164 = vld [vmem:[#allocation2 + $0x459] sm:$0xff]
      %v3165 = vld [vmem:[#allocation2 + $0x461] sm:$0xff]
      %v3166 = vld [vmem:[#allocation2 + $0x469] sm:$0xff]
      %v3167 = vld [vmem:[#allocation2 + $0x471] sm:$0xff]
      %v3168 = vperm.slane %v2589, 1
      %v3169 = vmul.f32 %v3040, %v3168
      %v3170 = vmul.f32 %v3041, %v3168
      %v3171 = vmul.f32 %v3042, %v3168
      %v3172 = vmul.f32 %v3043, %v3168
      %v3173 = vmul.f32 %v3044, %v3168
      %v3174 = vmul.f32 %v3045, %v3168
      %v3175 = vmul.f32 %v3046, %v3168
      %v3176 = vmul.f32 %v3047, %v3168
      %v3177 = vmul.f32 %v3048, %v3168
      %v3178 = vmul.f32 %v3049, %v3168
      %v3179 = vmul.f32 %v3050, %v3168
      %v3180 = vmul.f32 %v3051, %v3168
      %v3181 = vmul.f32 %v3052, %v3168
      %v3182 = vmul.f32 %v3053, %v3168
      %v3183 = vmul.f32 %v3054, %v3168
      %v3184 = vmul.f32 %v3055, %v3168
      %v3185 = vmul.f32 %v3056, %v3168
      %v3186 = vmul.f32 %v3057, %v3168
      %v3187 = vmul.f32 %v3058, %v3168
      %v3188 = vmul.f32 %v3059, %v3168
      %v3189 = vmul.f32 %v3060, %v3168
      %v3190 = vmul.f32 %v3061, %v3168
      %v3191 = vmul.f32 %v3062, %v3168
      %v3192 = vmul.f32 %v3063, %v3168
      %v3193 = vmul.f32 %v3064, %v3168
      %v3194 = vmul.f32 %v3065, %v3168
      %v3195 = vmul.f32 %v3066, %v3168
      %v3196 = vmul.f32 %v3067, %v3168
      %v3197 = vmul.f32 %v3068, %v3168
      %v3198 = vmul.f32 %v3069, %v3168
      %v3199 = vmul.f32 %v3070, %v3168
      %v3200 = vmul.f32 %v3071, %v3168
      %v3201 = vmul.f32 %v3072, %v3168
      %v3202 = vmul.f32 %v3073, %v3168
      %v3203 = vmul.f32 %v3074, %v3168
      %v3204 = vmul.f32 %v3075, %v3168
      %v3205 = vmul.f32 %v3076, %v3168
      %v3206 = vmul.f32 %v3077, %v3168
      %v3207 = vmul.f32 %v3078, %v3168
      %v3208 = vmul.f32 %v3079, %v3168
      %v3209 = vmul.f32 %v3080, %v3168
      %v3210 = vmul.f32 %v3081, %v3168
      %v3211 = vmul.f32 %v3082, %v3168
      %v3212 = vmul.f32 %v3083, %v3168
      %v3213 = vmul.f32 %v3084, %v3168
      %v3214 = vmul.f32 %v3085, %v3168
      %v3215 = vmul.f32 %v3086, %v3168
      %v3216 = vmul.f32 %v3087, %v3168
      %v3217 = vmul.f32 %v3088, %v3168
      %v3218 = vmul.f32 %v3089, %v3168
      %v3219 = vmul.f32 %v3090, %v3168
      %v3220 = vmul.f32 %v3091, %v3168
      %v3221 = vmul.f32 %v3092, %v3168
      %v3222 = vmul.f32 %v3093, %v3168
      %v3223 = vmul.f32 %v3094, %v3168
      %v3224 = vmul.f32 %v3095, %v3168
      %v3225 = vmul.f32 %v3096, %v3168
      %v3226 = vmul.f32 %v3097, %v3168
      %v3227 = vmul.f32 %v3098, %v3168
      %v3228 = vmul.f32 %v3099, %v3168
      %v3229 = vmul.f32 %v3100, %v3168
      %v3230 = vmul.f32 %v3101, %v3168
      %v3231 = vmul.f32 %v3102, %v3168
      %v3232 = vmul.f32 %v3103, %v3168
      %v3233 = vmul.f32 %v3104, %v3168
      %v3234 = vmul.f32 %v3105, %v3168
      %v3235 = vmul.f32 %v3106, %v3168
      %v3236 = vmul.f32 %v3107, %v3168
      %v3237 = vmul.f32 %v3108, %v3168
      %v3238 = vmul.f32 %v3109, %v3168
      %v3239 = vmul.f32 %v3110, %v3168
      %v3240 = vmul.f32 %v3111, %v3168
      %v3241 = vmul.f32 %v3112, %v3168
      %v3242 = vmul.f32 %v3113, %v3168
      %v3243 = vmul.f32 %v3114, %v3168
      %v3244 = vmul.f32 %v3115, %v3168
      %v3245 = vmul.f32 %v3116, %v3168
      %v3246 = vmul.f32 %v3117, %v3168
      %v3247 = vmul.f32 %v3118, %v3168
      %v3248 = vmul.f32 %v3119, %v3168
      %v3249 = vmul.f32 %v3120, %v3168
      %v3250 = vmul.f32 %v3121, %v3168
      %v3251 = vmul.f32 %v3122, %v3168
      %v3252 = vmul.f32 %v3123, %v3168
      %v3253 = vmul.f32 %v3124, %v3168
      %v3254 = vmul.f32 %v3125, %v3168
      %v3255 = vmul.f32 %v3126, %v3168
      %v3256 = vmul.f32 %v3127, %v3168
      %v3257 = vmul.f32 %v3128, %v3168
      %v3258 = vmul.f32 %v3129, %v3168
      %v3259 = vmul.f32 %v3130, %v3168
      %v3260 = vmul.f32 %v3131, %v3168
      %v3261 = vmul.f32 %v3132, %v3168
      %v3262 = vmul.f32 %v3133, %v3168
      %v3263 = vmul.f32 %v3134, %v3168
      %v3264 = vmul.f32 %v3135, %v3168
      %v3265 = vmul.f32 %v3136, %v3168
      %v3266 = vmul.f32 %v3137, %v3168
      %v3267 = vmul.f32 %v3138, %v3168
      %v3268 = vmul.f32 %v3139, %v3168
      %v3269 = vmul.f32 %v3140, %v3168
      %v3270 = vmul.f32 %v3141, %v3168
      %v3271 = vmul.f32 %v3142, %v3168
      %v3272 = vmul.f32 %v3143, %v3168
      %v3273 = vmul.f32 %v3144, %v3168
      %v3274 = vmul.f32 %v3145, %v3168
      %v3275 = vmul.f32 %v3146, %v3168
      %v3276 = vmul.f32 %v3147, %v3168
      %v3277 = vmul.f32 %v3148, %v3168
      %v3278 = vmul.f32 %v3149, %v3168
      %v3279 = vmul.f32 %v3150, %v3168
      %v3280 = vmul.f32 %v3151, %v3168
      %v3281 = vmul.f32 %v3152, %v3168
      %v3282 = vmul.f32 %v3153, %v3168
      %v3283 = vmul.f32 %v3154, %v3168
      %v3284 = vmul.f32 %v3155, %v3168
      %v3285 = vmul.f32 %v3156, %v3168
      %v3286 = vmul.f32 %v3157, %v3168
      %v3287 = vmul.f32 %v3158, %v3168
      %v3288 = vmul.f32 %v3159, %v3168
      %v3289 = vmul.f32 %v3160, %v3168
      %v3290 = vmul.f32 %v3161, %v3168
      %v3291 = vmul.f32 %v3162, %v3168
      %v3292 = vmul.f32 %v3163, %v3168
      %v3293 = vmul.f32 %v3164, %v3168
      %v3294 = vmul.f32 %v3165, %v3168
      %v3295 = vmul.f32 %v3166, %v3168
      %v3296 = vmul.f32 %v3167, %v3168
      %v3297 = vadd.f32 %v2912, %v3169
      %v3298 = vadd.f32 %v2913, %v3170
      %v3299 = vadd.f32 %v2914, %v3171
      %v3300 = vadd.f32 %v2915, %v3172
      %v3301 = vadd.f32 %v2916, %v3173
      %v3302 = vadd.f32 %v2917, %v3174
      %v3303 = vadd.f32 %v2918, %v3175
      %v3304 = vadd.f32 %v2919, %v3176
      %v3305 = vadd.f32 %v2920, %v3177
      %v3306 = vadd.f32 %v2921, %v3178
      %v3307 = vadd.f32 %v2922, %v3179
      %v3308 = vadd.f32 %v2923, %v3180
      %v3309 = vadd.f32 %v2924, %v3181
      %v3310 = vadd.f32 %v2925, %v3182
      %v3311 = vadd.f32 %v2926, %v3183
      %v3312 = vadd.f32 %v2927, %v3184
      %v3313 = vadd.f32 %v2928, %v3185
      %v3314 = vadd.f32 %v2929, %v3186
      %v3315 = vadd.f32 %v2930, %v3187
      %v3316 = vadd.f32 %v2931, %v3188
      %v3317 = vadd.f32 %v2932, %v3189
      %v3318 = vadd.f32 %v2933, %v3190
      %v3319 = vadd.f32 %v2934, %v3191
      %v3320 = vadd.f32 %v2935, %v3192
      %v3321 = vadd.f32 %v2936, %v3193
      %v3322 = vadd.f32 %v2937, %v3194
      %v3323 = vadd.f32 %v2938, %v3195
      %v3324 = vadd.f32 %v2939, %v3196
      %v3325 = vadd.f32 %v2940, %v3197
      %v3326 = vadd.f32 %v2941, %v3198
      %v3327 = vadd.f32 %v2942, %v3199
      %v3328 = vadd.f32 %v2943, %v3200
      %v3329 = vadd.f32 %v2944, %v3201
      %v3330 = vadd.f32 %v2945, %v3202
      %v3331 = vadd.f32 %v2946, %v3203
      %v3332 = vadd.f32 %v2947, %v3204
      %v3333 = vadd.f32 %v2948, %v3205
      %v3334 = vadd.f32 %v2949, %v3206
      %v3335 = vadd.f32 %v2950, %v3207
      %v3336 = vadd.f32 %v2951, %v3208
      %v3337 = vadd.f32 %v2952, %v3209
      %v3338 = vadd.f32 %v2953, %v3210
      %v3339 = vadd.f32 %v2954, %v3211
      %v3340 = vadd.f32 %v2955, %v3212
      %v3341 = vadd.f32 %v2956, %v3213
      %v3342 = vadd.f32 %v2957, %v3214
      %v3343 = vadd.f32 %v2958, %v3215
      %v3344 = vadd.f32 %v2959, %v3216
      %v3345 = vadd.f32 %v2960, %v3217
      %v3346 = vadd.f32 %v2961, %v3218
      %v3347 = vadd.f32 %v2962, %v3219
      %v3348 = vadd.f32 %v2963, %v3220
      %v3349 = vadd.f32 %v2964, %v3221
      %v3350 = vadd.f32 %v2965, %v3222
      %v3351 = vadd.f32 %v2966, %v3223
      %v3352 = vadd.f32 %v2967, %v3224
      %v3353 = vadd.f32 %v2968, %v3225
      %v3354 = vadd.f32 %v2969, %v3226
      %v3355 = vadd.f32 %v2970, %v3227
      %v3356 = vadd.f32 %v2971, %v3228
      %v3357 = vadd.f32 %v2972, %v3229
      %v3358 = vadd.f32 %v2973, %v3230
      %v3359 = vadd.f32 %v2974, %v3231
      %v3360 = vadd.f32 %v2975, %v3232
      %v3361 = vadd.f32 %v2976, %v3233
      %v3362 = vadd.f32 %v2977, %v3234
      %v3363 = vadd.f32 %v2978, %v3235
      %v3364 = vadd.f32 %v2979, %v3236
      %v3365 = vadd.f32 %v2980, %v3237
      %v3366 = vadd.f32 %v2981, %v3238
      %v3367 = vadd.f32 %v2982, %v3239
      %v3368 = vadd.f32 %v2983, %v3240
      %v3369 = vadd.f32 %v2984, %v3241
      %v3370 = vadd.f32 %v2985, %v3242
      %v3371 = vadd.f32 %v2986, %v3243
      %v3372 = vadd.f32 %v2987, %v3244
      %v3373 = vadd.f32 %v2988, %v3245
      %v3374 = vadd.f32 %v2989, %v3246
      %v3375 = vadd.f32 %v2990, %v3247
      %v3376 = vadd.f32 %v2991, %v3248
      %v3377 = vadd.f32 %v2992, %v3249
      %v3378 = vadd.f32 %v2993, %v3250
      %v3379 = vadd.f32 %v2994, %v3251
      %v3380 = vadd.f32 %v2995, %v3252
      %v3381 = vadd.f32 %v2996, %v3253
      %v3382 = vadd.f32 %v2997, %v3254
      %v3383 = vadd.f32 %v2998, %v3255
      %v3384 = vadd.f32 %v2999, %v3256
      %v3385 = vadd.f32 %v3000, %v3257
      %v3386 = vadd.f32 %v3001, %v3258
      %v3387 = vadd.f32 %v3002, %v3259
      %v3388 = vadd.f32 %v3003, %v3260
      %v3389 = vadd.f32 %v3004, %v3261
      %v3390 = vadd.f32 %v3005, %v3262
      %v3391 = vadd.f32 %v3006, %v3263
      %v3392 = vadd.f32 %v3007, %v3264
      %v3393 = vadd.f32 %v3008, %v3265
      %v3394 = vadd.f32 %v3009, %v3266
      %v3395 = vadd.f32 %v3010, %v3267
      %v3396 = vadd.f32 %v3011, %v3268
      %v3397 = vadd.f32 %v3012, %v3269
      %v3398 = vadd.f32 %v3013, %v3270
      %v3399 = vadd.f32 %v3014, %v3271
      %v3400 = vadd.f32 %v3015, %v3272
      %v3401 = vadd.f32 %v3016, %v3273
      %v3402 = vadd.f32 %v3017, %v3274
      %v3403 = vadd.f32 %v3018, %v3275
      %v3404 = vadd.f32 %v3019, %v3276
      %v3405 = vadd.f32 %v3020, %v3277
      %v3406 = vadd.f32 %v3021, %v3278
      %v3407 = vadd.f32 %v3022, %v3279
      %v3408 = vadd.f32 %v3023, %v3280
      %v3409 = vadd.f32 %v3024, %v3281
      %v3410 = vadd.f32 %v3025, %v3282
      %v3411 = vadd.f32 %v3026, %v3283
      %v3412 = vadd.f32 %v3027, %v3284
      %v3413 = vadd.f32 %v3028, %v3285
      %v3414 = vadd.f32 %v3029, %v3286
      %v3415 = vadd.f32 %v3030, %v3287
      %v3416 = vadd.f32 %v3031, %v3288
      %v3417 = vadd.f32 %v3032, %v3289
      %v3418 = vadd.f32 %v3033, %v3290
      %v3419 = vadd.f32 %v3034, %v3291
      %v3420 = vadd.f32 %v3035, %v3292
      %v3421 = vadd.f32 %v3036, %v3293
      %v3422 = vadd.f32 %v3037, %v3294
      %v3423 = vadd.f32 %v3038, %v3295
      %v3424 = vadd.f32 %v3039, %v3296
      %v3425 = vld [vmem:[#allocation2 + $0x2] sm:$0xff]
      %v3426 = vld [vmem:[#allocation2 + $0xa] sm:$0xff]
      %v3427 = vld [vmem:[#allocation2 + $0x12] sm:$0xff]
      %v3428 = vld [vmem:[#allocation2 + $0x1a] sm:$0xff]
      %v3429 = vld [vmem:[#allocation2 + $0x22] sm:$0xff]
      %v3430 = vld [vmem:[#allocation2 + $0x2a] sm:$0xff]
      %v3431 = vld [vmem:[#allocation2 + $0x32] sm:$0xff]
      %v3432 = vld [vmem:[#allocation2 + $0x3a] sm:$0xff]
      %v3433 = vld [vmem:[#allocation2 + $0x42] sm:$0xff]
      %v3434 = vld [vmem:[#allocation2 + $0x4a] sm:$0xff]
      %v3435 = vld [vmem:[#allocation2 + $0x52] sm:$0xff]
      %v3436 = vld [vmem:[#allocation2 + $0x5a] sm:$0xff]
      %v3437 = vld [vmem:[#allocation2 + $0x62] sm:$0xff]
      %v3438 = vld [vmem:[#allocation2 + $0x6a] sm:$0xff]
      %v3439 = vld [vmem:[#allocation2 + $0x72] sm:$0xff]
      %v3440 = vld [vmem:[#allocation2 + $0x7a] sm:$0xff]
      %v3441 = vld [vmem:[#allocation2 + $0x82] sm:$0xff]
      %v3442 = vld [vmem:[#allocation2 + $0x8a] sm:$0xff]
      %v3443 = vld [vmem:[#allocation2 + $0x92] sm:$0xff]
      %v3444 = vld [vmem:[#allocation2 + $0x9a] sm:$0xff]
      %v3445 = vld [vmem:[#allocation2 + $0xa2] sm:$0xff]
      %v3446 = vld [vmem:[#allocation2 + $0xaa] sm:$0xff]
      %v3447 = vld [vmem:[#allocation2 + $0xb2] sm:$0xff]
      %v3448 = vld [vmem:[#allocation2 + $0xba] sm:$0xff]
      %v3449 = vld [vmem:[#allocation2 + $0xc2] sm:$0xff]
      %v3450 = vld [vmem:[#allocation2 + $0xca] sm:$0xff]
      %v3451 = vld [vmem:[#allocation2 + $0xd2] sm:$0xff]
      %v3452 = vld [vmem:[#allocation2 + $0xda] sm:$0xff]
      %v3453 = vld [vmem:[#allocation2 + $0xe2] sm:$0xff]
      %v3454 = vld [vmem:[#allocation2 + $0xea] sm:$0xff]
      %v3455 = vld [vmem:[#allocation2 + $0xf2] sm:$0xff]
      %v3456 = vld [vmem:[#allocation2 + $0xfa] sm:$0xff]
      %v3457 = vld [vmem:[#allocation2 + $0x12a] sm:$0xff]
      %v3458 = vld [vmem:[#allocation2 + $0x132] sm:$0xff]
      %v3459 = vld [vmem:[#allocation2 + $0x13a] sm:$0xff]
      %v3460 = vld [vmem:[#allocation2 + $0x142] sm:$0xff]
      %v3461 = vld [vmem:[#allocation2 + $0x14a] sm:$0xff]
      %v3462 = vld [vmem:[#allocation2 + $0x152] sm:$0xff]
      %v3463 = vld [vmem:[#allocation2 + $0x15a] sm:$0xff]
      %v3464 = vld [vmem:[#allocation2 + $0x162] sm:$0xff]
      %v3465 = vld [vmem:[#allocation2 + $0x16a] sm:$0xff]
      %v3466 = vld [vmem:[#allocation2 + $0x172] sm:$0xff]
      %v3467 = vld [vmem:[#allocation2 + $0x17a] sm:$0xff]
      %v3468 = vld [vmem:[#allocation2 + $0x182] sm:$0xff]
      %v3469 = vld [vmem:[#allocation2 + $0x18a] sm:$0xff]
      %v3470 = vld [vmem:[#allocation2 + $0x192] sm:$0xff]
      %v3471 = vld [vmem:[#allocation2 + $0x19a] sm:$0xff]
      %v3472 = vld [vmem:[#allocation2 + $0x1a2] sm:$0xff]
      %v3473 = vld [vmem:[#allocation2 + $0x1aa] sm:$0xff]
      %v3474 = vld [vmem:[#allocation2 + $0x1b2] sm:$0xff]
      %v3475 = vld [vmem:[#allocation2 + $0x1ba] sm:$0xff]
      %v3476 = vld [vmem:[#allocation2 + $0x1c2] sm:$0xff]
      %v3477 = vld [vmem:[#allocation2 + $0x1ca] sm:$0xff]
      %v3478 = vld [vmem:[#allocation2 + $0x1d2] sm:$0xff]
      %v3479 = vld [vmem:[#allocation2 + $0x1da] sm:$0xff]
      %v3480 = vld [vmem:[#allocation2 + $0x1e2] sm:$0xff]
      %v3481 = vld [vmem:[#allocation2 + $0x1ea] sm:$0xff]
      %v3482 = vld [vmem:[#allocation2 + $0x1f2] sm:$0xff]
      %v3483 = vld [vmem:[#allocation2 + $0x1fa] sm:$0xff]
      %v3484 = vld [vmem:[#allocation2 + $0x202] sm:$0xff]
      %v3485 = vld [vmem:[#allocation2 + $0x20a] sm:$0xff]
      %v3486 = vld [vmem:[#allocation2 + $0x212] sm:$0xff]
      %v3487 = vld [vmem:[#allocation2 + $0x21a] sm:$0xff]
      %v3488 = vld [vmem:[#allocation2 + $0x222] sm:$0xff]
      %v3489 = vld [vmem:[#allocation2 + $0x252] sm:$0xff]
      %v3490 = vld [vmem:[#allocation2 + $0x25a] sm:$0xff]
      %v3491 = vld [vmem:[#allocation2 + $0x262] sm:$0xff]
      %v3492 = vld [vmem:[#allocation2 + $0x26a] sm:$0xff]
      %v3493 = vld [vmem:[#allocation2 + $0x272] sm:$0xff]
      %v3494 = vld [vmem:[#allocation2 + $0x27a] sm:$0xff]
      %v3495 = vld [vmem:[#allocation2 + $0x282] sm:$0xff]
      %v3496 = vld [vmem:[#allocation2 + $0x28a] sm:$0xff]
      %v3497 = vld [vmem:[#allocation2 + $0x292] sm:$0xff]
      %v3498 = vld [vmem:[#allocation2 + $0x29a] sm:$0xff]
      %v3499 = vld [vmem:[#allocation2 + $0x2a2] sm:$0xff]
      %v3500 = vld [vmem:[#allocation2 + $0x2aa] sm:$0xff]
      %v3501 = vld [vmem:[#allocation2 + $0x2b2] sm:$0xff]
      %v3502 = vld [vmem:[#allocation2 + $0x2ba] sm:$0xff]
      %v3503 = vld [vmem:[#allocation2 + $0x2c2] sm:$0xff]
      %v3504 = vld [vmem:[#allocation2 + $0x2ca] sm:$0xff]
      %v3505 = vld [vmem:[#allocation2 + $0x2d2] sm:$0xff]
      %v3506 = vld [vmem:[#allocation2 + $0x2da] sm:$0xff]
      %v3507 = vld [vmem:[#allocation2 + $0x2e2] sm:$0xff]
      %v3508 = vld [vmem:[#allocation2 + $0x2ea] sm:$0xff]
      %v3509 = vld [vmem:[#allocation2 + $0x2f2] sm:$0xff]
      %v3510 = vld [vmem:[#allocation2 + $0x2fa] sm:$0xff]
      %v3511 = vld [vmem:[#allocation2 + $0x302] sm:$0xff]
      %v3512 = vld [vmem:[#allocation2 + $0x30a] sm:$0xff]
      %v3513 = vld [vmem:[#allocation2 + $0x312] sm:$0xff]
      %v3514 = vld [vmem:[#allocation2 + $0x31a] sm:$0xff]
      %v3515 = vld [vmem:[#allocation2 + $0x322] sm:$0xff]
      %v3516 = vld [vmem:[#allocation2 + $0x32a] sm:$0xff]
      %v3517 = vld [vmem:[#allocation2 + $0x332] sm:$0xff]
      %v3518 = vld [vmem:[#allocation2 + $0x33a] sm:$0xff]
      %v3519 = vld [vmem:[#allocation2 + $0x342] sm:$0xff]
      %v3520 = vld [vmem:[#allocation2 + $0x34a] sm:$0xff]
      %v3521 = vld [vmem:[#allocation2 + $0x37a] sm:$0xff]
      %v3522 = vld [vmem:[#allocation2 + $0x382] sm:$0xff]
      %v3523 = vld [vmem:[#allocation2 + $0x38a] sm:$0xff]
      %v3524 = vld [vmem:[#allocation2 + $0x392] sm:$0xff]
      %v3525 = vld [vmem:[#allocation2 + $0x39a] sm:$0xff]
      %v3526 = vld [vmem:[#allocation2 + $0x3a2] sm:$0xff]
      %v3527 = vld [vmem:[#allocation2 + $0x3aa] sm:$0xff]
      %v3528 = vld [vmem:[#allocation2 + $0x3b2] sm:$0xff]
      %v3529 = vld [vmem:[#allocation2 + $0x3ba] sm:$0xff]
      %v3530 = vld [vmem:[#allocation2 + $0x3c2] sm:$0xff]
      %v3531 = vld [vmem:[#allocation2 + $0x3ca] sm:$0xff]
      %v3532 = vld [vmem:[#allocation2 + $0x3d2] sm:$0xff]
      %v3533 = vld [vmem:[#allocation2 + $0x3da] sm:$0xff]
      %v3534 = vld [vmem:[#allocation2 + $0x3e2] sm:$0xff]
      %v3535 = vld [vmem:[#allocation2 + $0x3ea] sm:$0xff]
      %v3536 = vld [vmem:[#allocation2 + $0x3f2] sm:$0xff]
      %v3537 = vld [vmem:[#allocation2 + $0x3fa] sm:$0xff]
      %v3538 = vld [vmem:[#allocation2 + $0x402] sm:$0xff]
      %v3539 = vld [vmem:[#allocation2 + $0x40a] sm:$0xff]
      %v3540 = vld [vmem:[#allocation2 + $0x412] sm:$0xff]
      %v3541 = vld [vmem:[#allocation2 + $0x41a] sm:$0xff]
      %v3542 = vld [vmem:[#allocation2 + $0x422] sm:$0xff]
      %v3543 = vld [vmem:[#allocation2 + $0x42a] sm:$0xff]
      %v3544 = vld [vmem:[#allocation2 + $0x432] sm:$0xff]
      %v3545 = vld [vmem:[#allocation2 + $0x43a] sm:$0xff]
      %v3546 = vld [vmem:[#allocation2 + $0x442] sm:$0xff]
      %v3547 = vld [vmem:[#allocation2 + $0x44a] sm:$0xff]
      %v3548 = vld [vmem:[#allocation2 + $0x452] sm:$0xff]
      %v3549 = vld [vmem:[#allocation2 + $0x45a] sm:$0xff]
      %v3550 = vld [vmem:[#allocation2 + $0x462] sm:$0xff]
      %v3551 = vld [vmem:[#allocation2 + $0x46a] sm:$0xff]
      %v3552 = vld [vmem:[#allocation2 + $0x472] sm:$0xff]
      %v3553 = vperm.slane %v2589, 2
      %v3554 = vmul.f32 %v3425, %v3553
      %v3555 = vmul.f32 %v3426, %v3553
      %v3556 = vmul.f32 %v3427, %v3553
      %v3557 = vmul.f32 %v3428, %v3553
      %v3558 = vmul.f32 %v3429, %v3553
      %v3559 = vmul.f32 %v3430, %v3553
      %v3560 = vmul.f32 %v3431, %v3553
      %v3561 = vmul.f32 %v3432, %v3553
      %v3562 = vmul.f32 %v3433, %v3553
      %v3563 = vmul.f32 %v3434, %v3553
      %v3564 = vmul.f32 %v3435, %v3553
      %v3565 = vmul.f32 %v3436, %v3553
      %v3566 = vmul.f32 %v3437, %v3553
      %v3567 = vmul.f32 %v3438, %v3553
      %v3568 = vmul.f32 %v3439, %v3553
      %v3569 = vmul.f32 %v3440, %v3553
      %v3570 = vmul.f32 %v3441, %v3553
      %v3571 = vmul.f32 %v3442, %v3553
      %v3572 = vmul.f32 %v3443, %v3553
      %v3573 = vmul.f32 %v3444, %v3553
      %v3574 = vmul.f32 %v3445, %v3553
      %v3575 = vmul.f32 %v3446, %v3553
      %v3576 = vmul.f32 %v3447, %v3553
      %v3577 = vmul.f32 %v3448, %v3553
      %v3578 = vmul.f32 %v3449, %v3553
      %v3579 = vmul.f32 %v3450, %v3553
      %v3580 = vmul.f32 %v3451, %v3553
      %v3581 = vmul.f32 %v3452, %v3553
      %v3582 = vmul.f32 %v3453, %v3553
      %v3583 = vmul.f32 %v3454, %v3553
      %v3584 = vmul.f32 %v3455, %v3553
      %v3585 = vmul.f32 %v3456, %v3553
      %v3586 = vmul.f32 %v3457, %v3553
      %v3587 = vmul.f32 %v3458, %v3553
      %v3588 = vmul.f32 %v3459, %v3553
      %v3589 = vmul.f32 %v3460, %v3553
      %v3590 = vmul.f32 %v3461, %v3553
      %v3591 = vmul.f32 %v3462, %v3553
      %v3592 = vmul.f32 %v3463, %v3553
      %v3593 = vmul.f32 %v3464, %v3553
      %v3594 = vmul.f32 %v3465, %v3553
      %v3595 = vmul.f32 %v3466, %v3553
      %v3596 = vmul.f32 %v3467, %v3553
      %v3597 = vmul.f32 %v3468, %v3553
      %v3598 = vmul.f32 %v3469, %v3553
      %v3599 = vmul.f32 %v3470, %v3553
      %v3600 = vmul.f32 %v3471, %v3553
      %v3601 = vmul.f32 %v3472, %v3553
      %v3602 = vmul.f32 %v3473, %v3553
      %v3603 = vmul.f32 %v3474, %v3553
      %v3604 = vmul.f32 %v3475, %v3553
      %v3605 = vmul.f32 %v3476, %v3553
      %v3606 = vmul.f32 %v3477, %v3553
      %v3607 = vmul.f32 %v3478, %v3553
      %v3608 = vmul.f32 %v3479, %v3553
      %v3609 = vmul.f32 %v3480, %v3553
      %v3610 = vmul.f32 %v3481, %v3553
      %v3611 = vmul.f32 %v3482, %v3553
      %v3612 = vmul.f32 %v3483, %v3553
      %v3613 = vmul.f32 %v3484, %v3553
      %v3614 = vmul.f32 %v3485, %v3553
      %v3615 = vmul.f32 %v3486, %v3553
      %v3616 = vmul.f32 %v3487, %v3553
      %v3617 = vmul.f32 %v3488, %v3553
      %v3618 = vmul.f32 %v3489, %v3553
      %v3619 = vmul.f32 %v3490, %v3553
      %v3620 = vmul.f32 %v3491, %v3553
      %v3621 = vmul.f32 %v3492, %v3553
      %v3622 = vmul.f32 %v3493, %v3553
      %v3623 = vmul.f32 %v3494, %v3553
      %v3624 = vmul.f32 %v3495, %v3553
      %v3625 = vmul.f32 %v3496, %v3553
      %v3626 = vmul.f32 %v3497, %v3553
      %v3627 = vmul.f32 %v3498, %v3553
      %v3628 = vmul.f32 %v3499, %v3553
      %v3629 = vmul.f32 %v3500, %v3553
      %v3630 = vmul.f32 %v3501, %v3553
      %v3631 = vmul.f32 %v3502, %v3553
      %v3632 = vmul.f32 %v3503, %v3553
      %v3633 = vmul.f32 %v3504, %v3553
      %v3634 = vmul.f32 %v3505, %v3553
      %v3635 = vmul.f32 %v3506, %v3553
      %v3636 = vmul.f32 %v3507, %v3553
      %v3637 = vmul.f32 %v3508, %v3553
      %v3638 = vmul.f32 %v3509, %v3553
      %v3639 = vmul.f32 %v3510, %v3553
      %v3640 = vmul.f32 %v3511, %v3553
      %v3641 = vmul.f32 %v3512, %v3553
      %v3642 = vmul.f32 %v3513, %v3553
      %v3643 = vmul.f32 %v3514, %v3553
      %v3644 = vmul.f32 %v3515, %v3553
      %v3645 = vmul.f32 %v3516, %v3553
      %v3646 = vmul.f32 %v3517, %v3553
      %v3647 = vmul.f32 %v3518, %v3553
      %v3648 = vmul.f32 %v3519, %v3553
      %v3649 = vmul.f32 %v3520, %v3553
      %v3650 = vmul.f32 %v3521, %v3553
      %v3651 = vmul.f32 %v3522, %v3553
      %v3652 = vmul.f32 %v3523, %v3553
      %v3653 = vmul.f32 %v3524, %v3553
      %v3654 = vmul.f32 %v3525, %v3553
      %v3655 = vmul.f32 %v3526, %v3553
      %v3656 = vmul.f32 %v3527, %v3553
      %v3657 = vmul.f32 %v3528, %v3553
      %v3658 = vmul.f32 %v3529, %v3553
      %v3659 = vmul.f32 %v3530, %v3553
      %v3660 = vmul.f32 %v3531, %v3553
      %v3661 = vmul.f32 %v3532, %v3553
      %v3662 = vmul.f32 %v3533, %v3553
      %v3663 = vmul.f32 %v3534, %v3553
      %v3664 = vmul.f32 %v3535, %v3553
      %v3665 = vmul.f32 %v3536, %v3553
      %v3666 = vmul.f32 %v3537, %v3553
      %v3667 = vmul.f32 %v3538, %v3553
      %v3668 = vmul.f32 %v3539, %v3553
      %v3669 = vmul.f32 %v3540, %v3553
      %v3670 = vmul.f32 %v3541, %v3553
      %v3671 = vmul.f32 %v3542, %v3553
      %v3672 = vmul.f32 %v3543, %v3553
      %v3673 = vmul.f32 %v3544, %v3553
      %v3674 = vmul.f32 %v3545, %v3553
      %v3675 = vmul.f32 %v3546, %v3553
      %v3676 = vmul.f32 %v3547, %v3553
      %v3677 = vmul.f32 %v3548, %v3553
      %v3678 = vmul.f32 %v3549, %v3553
      %v3679 = vmul.f32 %v3550, %v3553
      %v3680 = vmul.f32 %v3551, %v3553
      %v3681 = vmul.f32 %v3552, %v3553
      %v3682 = vsel %vm2557, 1, 0
      %v3683 = vsel %vm2558, 1, 0
      %v3684 = vsel %vm2559, 1, 0
      %v3685 = vsel %vm2560, 1, 0
      %v3686 = vsel %vm2561, 1, 0
      %v3687 = vsel %vm2562, 1, 0
      %v3688 = vsel %vm2563, 1, 0
      %v3689 = vsel %vm2564, 1, 0
      %v3690 = vsel %vm2565, 1, 0
      %v3691 = vsel %vm2566, 1, 0
      %v3692 = vsel %vm2567, 1, 0
      %v3693 = vsel %vm2568, 1, 0
      %v3694 = vsel %vm2569, 1, 0
      %v3695 = vsel %vm2570, 1, 0
      %v3696 = vsel %vm2571, 1, 0
      %v3697 = vsel %vm2572, 1, 0
      %v3698 = vsel %vm2573, 1, 0
      %v3699 = vsel %vm2574, 1, 0
      %v3700 = vsel %vm2575, 1, 0
      %v3701 = vsel %vm2576, 1, 0
      %v3702 = vsel %vm2577, 1, 0
      %v3703 = vsel %vm2578, 1, 0
      %v3704 = vsel %vm2579, 1, 0
      %v3705 = vsel %vm2580, 1, 0
      %v3706 = vsel %vm2581, 1, 0
      %v3707 = vsel %vm2582, 1, 0
      %v3708 = vsel %vm2583, 1, 0
      %v3709 = vsel %vm2584, 1, 0
      %v3710 = vsel %vm2585, 1, 0
      %v3711 = vsel %vm2586, 1, 0
      %v3712 = vsel %vm2587, 1, 0
      %v3713 = vsel %vm2588, 1, 0
      %vm3714 = vcmp.eq.s32.totalorder %v3682, 1
      %vm3715 = vcmp.eq.s32.totalorder %v3683, 1
      %vm3716 = vcmp.eq.s32.totalorder %v3684, 1
      %vm3717 = vcmp.eq.s32.totalorder %v3685, 1
      %vm3718 = vcmp.eq.s32.totalorder %v3686, 1
      %vm3719 = vcmp.eq.s32.totalorder %v3687, 1
      %vm3720 = vcmp.eq.s32.totalorder %v3688, 1
      %vm3721 = vcmp.eq.s32.totalorder %v3689, 1
      %vm3722 = vcmp.eq.s32.totalorder %v3690, 1
      %vm3723 = vcmp.eq.s32.totalorder %v3691, 1
      %vm3724 = vcmp.eq.s32.totalorder %v3692, 1
      %vm3725 = vcmp.eq.s32.totalorder %v3693, 1
      %vm3726 = vcmp.eq.s32.totalorder %v3694, 1
      %vm3727 = vcmp.eq.s32.totalorder %v3695, 1
      %vm3728 = vcmp.eq.s32.totalorder %v3696, 1
      %vm3729 = vcmp.eq.s32.totalorder %v3697, 1
      %vm3730 = vcmp.eq.s32.totalorder %v3698, 1
      %vm3731 = vcmp.eq.s32.totalorder %v3699, 1
      %vm3732 = vcmp.eq.s32.totalorder %v3700, 1
      %vm3733 = vcmp.eq.s32.totalorder %v3701, 1
      %vm3734 = vcmp.eq.s32.totalorder %v3702, 1
      %vm3735 = vcmp.eq.s32.totalorder %v3703, 1
      %vm3736 = vcmp.eq.s32.totalorder %v3704, 1
      %vm3737 = vcmp.eq.s32.totalorder %v3705, 1
      %vm3738 = vcmp.eq.s32.totalorder %v3706, 1
      %vm3739 = vcmp.eq.s32.totalorder %v3707, 1
      %vm3740 = vcmp.eq.s32.totalorder %v3708, 1
      %vm3741 = vcmp.eq.s32.totalorder %v3709, 1
      %vm3742 = vcmp.eq.s32.totalorder %v3710, 1
      %vm3743 = vcmp.eq.s32.totalorder %v3711, 1
      %vm3744 = vcmp.eq.s32.totalorder %v3712, 1
      %vm3745 = vcmp.eq.s32.totalorder %v3713, 1
      %v3746 = vsel %vm3714, %v3554, 0.0
      %v3747 = vsel %vm3715, %v3555, 0.0
      %v3748 = vsel %vm3716, %v3556, 0.0
      %v3749 = vsel %vm3717, %v3557, 0.0
      %v3750 = vsel %vm3718, %v3558, 0.0
      %v3751 = vsel %vm3719, %v3559, 0.0
      %v3752 = vsel %vm3720, %v3560, 0.0
      %v3753 = vsel %vm3721, %v3561, 0.0
      %v3754 = vsel %vm3722, %v3562, 0.0
      %v3755 = vsel %vm3723, %v3563, 0.0
      %v3756 = vsel %vm3724, %v3564, 0.0
      %v3757 = vsel %vm3725, %v3565, 0.0
      %v3758 = vsel %vm3726, %v3566, 0.0
      %v3759 = vsel %vm3727, %v3567, 0.0
      %v3760 = vsel %vm3728, %v3568, 0.0
      %v3761 = vsel %vm3729, %v3569, 0.0
      %v3762 = vsel %vm3730, %v3570, 0.0
      %v3763 = vsel %vm3731, %v3571, 0.0
      %v3764 = vsel %vm3732, %v3572, 0.0
      %v3765 = vsel %vm3733, %v3573, 0.0
      %v3766 = vsel %vm3734, %v3574, 0.0
      %v3767 = vsel %vm3735, %v3575, 0.0
      %v3768 = vsel %vm3736, %v3576, 0.0
      %v3769 = vsel %vm3737, %v3577, 0.0
      %v3770 = vsel %vm3738, %v3578, 0.0
      %v3771 = vsel %vm3739, %v3579, 0.0
      %v3772 = vsel %vm3740, %v3580, 0.0
      %v3773 = vsel %vm3741, %v3581, 0.0
      %v3774 = vsel %vm3742, %v3582, 0.0
      %v3775 = vsel %vm3743, %v3583, 0.0
      %v3776 = vsel %vm3744, %v3584, 0.0
      %v3777 = vsel %vm3745, %v3585, 0.0
      %v3778 = vsel %vm3714, %v3586, 0.0
      %v3779 = vsel %vm3715, %v3587, 0.0
      %v3780 = vsel %vm3716, %v3588, 0.0
      %v3781 = vsel %vm3717, %v3589, 0.0
      %v3782 = vsel %vm3718, %v3590, 0.0
      %v3783 = vsel %vm3719, %v3591, 0.0
      %v3784 = vsel %vm3720, %v3592, 0.0
      %v3785 = vsel %vm3721, %v3593, 0.0
      %v3786 = vsel %vm3722, %v3594, 0.0
      %v3787 = vsel %vm3723, %v3595, 0.0
      %v3788 = vsel %vm3724, %v3596, 0.0
      %v3789 = vsel %vm3725, %v3597, 0.0
      %v3790 = vsel %vm3726, %v3598, 0.0
      %v3791 = vsel %vm3727, %v3599, 0.0
      %v3792 = vsel %vm3728, %v3600, 0.0
      %v3793 = vsel %vm3729, %v3601, 0.0
      %v3794 = vsel %vm3730, %v3602, 0.0
      %v3795 = vsel %vm3731, %v3603, 0.0
      %v3796 = vsel %vm3732, %v3604, 0.0
      %v3797 = vsel %vm3733, %v3605, 0.0
      %v3798 = vsel %vm3734, %v3606, 0.0
      %v3799 = vsel %vm3735, %v3607, 0.0
      %v3800 = vsel %vm3736, %v3608, 0.0
      %v3801 = vsel %vm3737, %v3609, 0.0
      %v3802 = vsel %vm3738, %v3610, 0.0
      %v3803 = vsel %vm3739, %v3611, 0.0
      %v3804 = vsel %vm3740, %v3612, 0.0
      %v3805 = vsel %vm3741, %v3613, 0.0
      %v3806 = vsel %vm3742, %v3614, 0.0
      %v3807 = vsel %vm3743, %v3615, 0.0
      %v3808 = vsel %vm3744, %v3616, 0.0
      %v3809 = vsel %vm3745, %v3617, 0.0
      %v3810 = vsel %vm3714, %v3618, 0.0
      %v3811 = vsel %vm3715, %v3619, 0.0
      %v3812 = vsel %vm3716, %v3620, 0.0
      %v3813 = vsel %vm3717, %v3621, 0.0
      %v3814 = vsel %vm3718, %v3622, 0.0
      %v3815 = vsel %vm3719, %v3623, 0.0
      %v3816 = vsel %vm3720, %v3624, 0.0
      %v3817 = vsel %vm3721, %v3625, 0.0
      %v3818 = vsel %vm3722, %v3626, 0.0
      %v3819 = vsel %vm3723, %v3627, 0.0
      %v3820 = vsel %vm3724, %v3628, 0.0
      %v3821 = vsel %vm3725, %v3629, 0.0
      %v3822 = vsel %vm3726, %v3630, 0.0
      %v3823 = vsel %vm3727, %v3631, 0.0
      %v3824 = vsel %vm3728, %v3632, 0.0
      %v3825 = vsel %vm3729, %v3633, 0.0
      %v3826 = vsel %vm3730, %v3634, 0.0
      %v3827 = vsel %vm3731, %v3635, 0.0
      %v3828 = vsel %vm3732, %v3636, 0.0
      %v3829 = vsel %vm3733, %v3637, 0.0
      %v3830 = vsel %vm3734, %v3638, 0.0
      %v3831 = vsel %vm3735, %v3639, 0.0
      %v3832 = vsel %vm3736, %v3640, 0.0
      %v3833 = vsel %vm3737, %v3641, 0.0
      %v3834 = vsel %vm3738, %v3642, 0.0
      %v3835 = vsel %vm3739, %v3643, 0.0
      %v3836 = vsel %vm3740, %v3644, 0.0
      %v3837 = vsel %vm3741, %v3645, 0.0
      %v3838 = vsel %vm3742, %v3646, 0.0
      %v3839 = vsel %vm3743, %v3647, 0.0
      %v3840 = vsel %vm3744, %v3648, 0.0
      %v3841 = vsel %vm3745, %v3649, 0.0
      %v3842 = vsel %vm3714, %v3650, 0.0
      %v3843 = vsel %vm3715, %v3651, 0.0
      %v3844 = vsel %vm3716, %v3652, 0.0
      %v3845 = vsel %vm3717, %v3653, 0.0
      %v3846 = vsel %vm3718, %v3654, 0.0
      %v3847 = vsel %vm3719, %v3655, 0.0
      %v3848 = vsel %vm3720, %v3656, 0.0
      %v3849 = vsel %vm3721, %v3657, 0.0
      %v3850 = vsel %vm3722, %v3658, 0.0
      %v3851 = vsel %vm3723, %v3659, 0.0
      %v3852 = vsel %vm3724, %v3660, 0.0
      %v3853 = vsel %vm3725, %v3661, 0.0
      %v3854 = vsel %vm3726, %v3662, 0.0
      %v3855 = vsel %vm3727, %v3663, 0.0
      %v3856 = vsel %vm3728, %v3664, 0.0
      %v3857 = vsel %vm3729, %v3665, 0.0
      %v3858 = vsel %vm3730, %v3666, 0.0
      %v3859 = vsel %vm3731, %v3667, 0.0
      %v3860 = vsel %vm3732, %v3668, 0.0
      %v3861 = vsel %vm3733, %v3669, 0.0
      %v3862 = vsel %vm3734, %v3670, 0.0
      %v3863 = vsel %vm3735, %v3671, 0.0
      %v3864 = vsel %vm3736, %v3672, 0.0
      %v3865 = vsel %vm3737, %v3673, 0.0
      %v3866 = vsel %vm3738, %v3674, 0.0
      %v3867 = vsel %vm3739, %v3675, 0.0
      %v3868 = vsel %vm3740, %v3676, 0.0
      %v3869 = vsel %vm3741, %v3677, 0.0
      %v3870 = vsel %vm3742, %v3678, 0.0
      %v3871 = vsel %vm3743, %v3679, 0.0
      %v3872 = vsel %vm3744, %v3680, 0.0
      %v3873 = vsel %vm3745, %v3681, 0.0
      %v3874 = vadd.f32 %v3297, %v3746
      %v3875 = vadd.f32 %v3298, %v3747
      %v3876 = vadd.f32 %v3299, %v3748
      %v3877 = vadd.f32 %v3300, %v3749
      %v3878 = vadd.f32 %v3301, %v3750
      %v3879 = vadd.f32 %v3302, %v3751
      %v3880 = vadd.f32 %v3303, %v3752
      %v3881 = vadd.f32 %v3304, %v3753
      %v3882 = vadd.f32 %v3305, %v3754
      %v3883 = vadd.f32 %v3306, %v3755
      %v3884 = vadd.f32 %v3307, %v3756
      %v3885 = vadd.f32 %v3308, %v3757
      %v3886 = vadd.f32 %v3309, %v3758
      %v3887 = vadd.f32 %v3310, %v3759
      %v3888 = vadd.f32 %v3311, %v3760
      %v3889 = vadd.f32 %v3312, %v3761
      %v3890 = vadd.f32 %v3313, %v3762
      %v3891 = vadd.f32 %v3314, %v3763
      %v3892 = vadd.f32 %v3315, %v3764
      %v3893 = vadd.f32 %v3316, %v3765
      %v3894 = vadd.f32 %v3317, %v3766
      %v3895 = vadd.f32 %v3318, %v3767
      %v3896 = vadd.f32 %v3319, %v3768
      %v3897 = vadd.f32 %v3320, %v3769
      %v3898 = vadd.f32 %v3321, %v3770
      %v3899 = vadd.f32 %v3322, %v3771
      %v3900 = vadd.f32 %v3323, %v3772
      %v3901 = vadd.f32 %v3324, %v3773
      %v3902 = vadd.f32 %v3325, %v3774
      %v3903 = vadd.f32 %v3326, %v3775
      %v3904 = vadd.f32 %v3327, %v3776
      %v3905 = vadd.f32 %v3328, %v3777
      %v3906 = vadd.f32 %v3329, %v3778
      %v3907 = vadd.f32 %v3330, %v3779
      %v3908 = vadd.f32 %v3331, %v3780
      %v3909 = vadd.f32 %v3332, %v3781
      %v3910 = vadd.f32 %v3333, %v3782
      %v3911 = vadd.f32 %v3334, %v3783
      %v3912 = vadd.f32 %v3335, %v3784
      %v3913 = vadd.f32 %v3336, %v3785
      %v3914 = vadd.f32 %v3337, %v3786
      %v3915 = vadd.f32 %v3338, %v3787
      %v3916 = vadd.f32 %v3339, %v3788
      %v3917 = vadd.f32 %v3340, %v3789
      %v3918 = vadd.f32 %v3341, %v3790
      %v3919 = vadd.f32 %v3342, %v3791
      %v3920 = vadd.f32 %v3343, %v3792
      %v3921 = vadd.f32 %v3344, %v3793
      %v3922 = vadd.f32 %v3345, %v3794
      %v3923 = vadd.f32 %v3346, %v3795
      %v3924 = vadd.f32 %v3347, %v3796
      %v3925 = vadd.f32 %v3348, %v3797
      %v3926 = vadd.f32 %v3349, %v3798
      %v3927 = vadd.f32 %v3350, %v3799
      %v3928 = vadd.f32 %v3351, %v3800
      %v3929 = vadd.f32 %v3352, %v3801
      %v3930 = vadd.f32 %v3353, %v3802
      %v3931 = vadd.f32 %v3354, %v3803
      %v3932 = vadd.f32 %v3355, %v3804
      %v3933 = vadd.f32 %v3356, %v3805
      %v3934 = vadd.f32 %v3357, %v3806
      %v3935 = vadd.f32 %v3358, %v3807
      %v3936 = vadd.f32 %v3359, %v3808
      %v3937 = vadd.f32 %v3360, %v3809
      %v3938 = vadd.f32 %v3361, %v3810
      %v3939 = vadd.f32 %v3362, %v3811
      %v3940 = vadd.f32 %v3363, %v3812
      %v3941 = vadd.f32 %v3364, %v3813
      %v3942 = vadd.f32 %v3365, %v3814
      %v3943 = vadd.f32 %v3366, %v3815
      %v3944 = vadd.f32 %v3367, %v3816
      %v3945 = vadd.f32 %v3368, %v3817
      %v3946 = vadd.f32 %v3369, %v3818
      %v3947 = vadd.f32 %v3370, %v3819
      %v3948 = vadd.f32 %v3371, %v3820
      %v3949 = vadd.f32 %v3372, %v3821
      %v3950 = vadd.f32 %v3373, %v3822
      %v3951 = vadd.f32 %v3374, %v3823
      %v3952 = vadd.f32 %v3375, %v3824
      %v3953 = vadd.f32 %v3376, %v3825
      %v3954 = vadd.f32 %v3377, %v3826
      %v3955 = vadd.f32 %v3378, %v3827
      %v3956 = vadd.f32 %v3379, %v3828
      %v3957 = vadd.f32 %v3380, %v3829
      %v3958 = vadd.f32 %v3381, %v3830
      %v3959 = vadd.f32 %v3382, %v3831
      %v3960 = vadd.f32 %v3383, %v3832
      %v3961 = vadd.f32 %v3384, %v3833
      %v3962 = vadd.f32 %v3385, %v3834
      %v3963 = vadd.f32 %v3386, %v3835
      %v3964 = vadd.f32 %v3387, %v3836
      %v3965 = vadd.f32 %v3388, %v3837
      %v3966 = vadd.f32 %v3389, %v3838
      %v3967 = vadd.f32 %v3390, %v3839
      %v3968 = vadd.f32 %v3391, %v3840
      %v3969 = vadd.f32 %v3392, %v3841
      %v3970 = vadd.f32 %v3393, %v3842
      %v3971 = vadd.f32 %v3394, %v3843
      %v3972 = vadd.f32 %v3395, %v3844
      %v3973 = vadd.f32 %v3396, %v3845
      %v3974 = vadd.f32 %v3397, %v3846
      %v3975 = vadd.f32 %v3398, %v3847
      %v3976 = vadd.f32 %v3399, %v3848
      %v3977 = vadd.f32 %v3400, %v3849
      %v3978 = vadd.f32 %v3401, %v3850
      %v3979 = vadd.f32 %v3402, %v3851
      %v3980 = vadd.f32 %v3403, %v3852
      %v3981 = vadd.f32 %v3404, %v3853
      %v3982 = vadd.f32 %v3405, %v3854
      %v3983 = vadd.f32 %v3406, %v3855
      %v3984 = vadd.f32 %v3407, %v3856
      %v3985 = vadd.f32 %v3408, %v3857
      %v3986 = vadd.f32 %v3409, %v3858
      %v3987 = vadd.f32 %v3410, %v3859
      %v3988 = vadd.f32 %v3411, %v3860
      %v3989 = vadd.f32 %v3412, %v3861
      %v3990 = vadd.f32 %v3413, %v3862
      %v3991 = vadd.f32 %v3414, %v3863
      %v3992 = vadd.f32 %v3415, %v3864
      %v3993 = vadd.f32 %v3416, %v3865
      %v3994 = vadd.f32 %v3417, %v3866
      %v3995 = vadd.f32 %v3418, %v3867
      %v3996 = vadd.f32 %v3419, %v3868
      %v3997 = vadd.f32 %v3420, %v3869
      %v3998 = vadd.f32 %v3421, %v3870
      %v3999 = vadd.f32 %v3422, %v3871
      %v4000 = vadd.f32 %v3423, %v3872
      %v4001 = vadd.f32 %v3424, %v3873
      %v4002 = vld [vmem:[#allocation2 + $0x100] sm:$0xff]
      %v4003 = vld [vmem:[#allocation2 + $0x108] sm:$0xff]
      %v4004 = vld [vmem:[#allocation2 + $0x228] sm:$0xff]
      %v4005 = vld [vmem:[#allocation2 + $0x230] sm:$0xff]
      %v4006 = vld [vmem:[#allocation2 + $0x350] sm:$0xff]
      %v4007 = vld [vmem:[#allocation2 + $0x358] sm:$0xff]
      %v4008 = vld [vmem:[#allocation2 + $0x478] sm:$0xff]
      %v4009 = vld [vmem:[#allocation2 + $0x480] sm:$0xff]
      %v4010 = vperm.slane %v2589, 3
      %v4011 = vmul.f32 %v2593, %v4010
      %v4012 = vmul.f32 %v2594, %v4010
      %v4013 = vmul.f32 %v2595, %v4010
      %v4014 = vmul.f32 %v2596, %v4010
      %v4015 = vmul.f32 %v2597, %v4010
      %v4016 = vmul.f32 %v2598, %v4010
      %v4017 = vmul.f32 %v2599, %v4010
      %v4018 = vmul.f32 %v2600, %v4010
      %v4019 = vmul.f32 %v2601, %v4010
      %v4020 = vmul.f32 %v2602, %v4010
      %v4021 = vmul.f32 %v2603, %v4010
      %v4022 = vmul.f32 %v2604, %v4010
      %v4023 = vmul.f32 %v2605, %v4010
      %v4024 = vmul.f32 %v2606, %v4010
      %v4025 = vmul.f32 %v2607, %v4010
      %v4026 = vmul.f32 %v2608, %v4010
      %v4027 = vmul.f32 %v2609, %v4010
      %v4028 = vmul.f32 %v2610, %v4010
      %v4029 = vmul.f32 %v2611, %v4010
      %v4030 = vmul.f32 %v2612, %v4010
      %v4031 = vmul.f32 %v2613, %v4010
      %v4032 = vmul.f32 %v2614, %v4010
      %v4033 = vmul.f32 %v2615, %v4010
      %v4034 = vmul.f32 %v2616, %v4010
      %v4035 = vmul.f32 %v2617, %v4010
      %v4036 = vmul.f32 %v2618, %v4010
      %v4037 = vmul.f32 %v2619, %v4010
      %v4038 = vmul.f32 %v2620, %v4010
      %v4039 = vmul.f32 %v2621, %v4010
      %v4040 = vmul.f32 %v2622, %v4010
      %v4041 = vmul.f32 %v4002, %v4010
      %v4042 = vmul.f32 %v4003, %v4010
      %v4043 = vmul.f32 %v2625, %v4010
      %v4044 = vmul.f32 %v2626, %v4010
      %v4045 = vmul.f32 %v2627, %v4010
      %v4046 = vmul.f32 %v2628, %v4010
      %v4047 = vmul.f32 %v2629, %v4010
      %v4048 = vmul.f32 %v2630, %v4010
      %v4049 = vmul.f32 %v2631, %v4010
      %v4050 = vmul.f32 %v2632, %v4010
      %v4051 = vmul.f32 %v2633, %v4010
      %v4052 = vmul.f32 %v2634, %v4010
      %v4053 = vmul.f32 %v2635, %v4010
      %v4054 = vmul.f32 %v2636, %v4010
      %v4055 = vmul.f32 %v2637, %v4010
      %v4056 = vmul.f32 %v2638, %v4010
      %v4057 = vmul.f32 %v2639, %v4010
      %v4058 = vmul.f32 %v2640, %v4010
      %v4059 = vmul.f32 %v2641, %v4010
      %v4060 = vmul.f32 %v2642, %v4010
      %v4061 = vmul.f32 %v2643, %v4010
      %v4062 = vmul.f32 %v2644, %v4010
      %v4063 = vmul.f32 %v2645, %v4010
      %v4064 = vmul.f32 %v2646, %v4010
      %v4065 = vmul.f32 %v2647, %v4010
      %v4066 = vmul.f32 %v2648, %v4010
      %v4067 = vmul.f32 %v2649, %v4010
      %v4068 = vmul.f32 %v2650, %v4010
      %v4069 = vmul.f32 %v2651, %v4010
      %v4070 = vmul.f32 %v2652, %v4010
      %v4071 = vmul.f32 %v2653, %v4010
      %v4072 = vmul.f32 %v2654, %v4010
      %v4073 = vmul.f32 %v4004, %v4010
      %v4074 = vmul.f32 %v4005, %v4010
      %v4075 = vmul.f32 %v2657, %v4010
      %v4076 = vmul.f32 %v2658, %v4010
      %v4077 = vmul.f32 %v2659, %v4010
      %v4078 = vmul.f32 %v2660, %v4010
      %v4079 = vmul.f32 %v2661, %v4010
      %v4080 = vmul.f32 %v2662, %v4010
      %v4081 = vmul.f32 %v2663, %v4010
      %v4082 = vmul.f32 %v2664, %v4010
      %v4083 = vmul.f32 %v2665, %v4010
      %v4084 = vmul.f32 %v2666, %v4010
      %v4085 = vmul.f32 %v2667, %v4010
      %v4086 = vmul.f32 %v2668, %v4010
      %v4087 = vmul.f32 %v2669, %v4010
      %v4088 = vmul.f32 %v2670, %v4010
      %v4089 = vmul.f32 %v2671, %v4010
      %v4090 = vmul.f32 %v2672, %v4010
      %v4091 = vmul.f32 %v2673, %v4010
      %v4092 = vmul.f32 %v2674, %v4010
      %v4093 = vmul.f32 %v2675, %v4010
      %v4094 = vmul.f32 %v2676, %v4010
      %v4095 = vmul.f32 %v2677, %v4010
      %v4096 = vmul.f32 %v2678, %v4010
      %v4097 = vmul.f32 %v2679, %v4010
      %v4098 = vmul.f32 %v2680, %v4010
      %v4099 = vmul.f32 %v2681, %v4010
      %v4100 = vmul.f32 %v2682, %v4010
      %v4101 = vmul.f32 %v2683, %v4010
      %v4102 = vmul.f32 %v2684, %v4010
      %v4103 = vmul.f32 %v2685, %v4010
      %v4104 = vmul.f32 %v2686, %v4010
      %v4105 = vmul.f32 %v4006, %v4010
      %v4106 = vmul.f32 %v4007, %v4010
      %v4107 = vmul.f32 %v2689, %v4010
      %v4108 = vmul.f32 %v2690, %v4010
      %v4109 = vmul.f32 %v2691, %v4010
      %v4110 = vmul.f32 %v2692, %v4010
      %v4111 = vmul.f32 %v2693, %v4010
      %v4112 = vmul.f32 %v2694, %v4010
      %v4113 = vmul.f32 %v2695, %v4010
      %v4114 = vmul.f32 %v2696, %v4010
      %v4115 = vmul.f32 %v2697, %v4010
      %v4116 = vmul.f32 %v2698, %v4010
      %v4117 = vmul.f32 %v2699, %v4010
      %v4118 = vmul.f32 %v2700, %v4010
      %v4119 = vmul.f32 %v2701, %v4010
      %v4120 = vmul.f32 %v2702, %v4010
      %v4121 = vmul.f32 %v2703, %v4010
      %v4122 = vmul.f32 %v2704, %v4010
      %v4123 = vmul.f32 %v2705, %v4010
      %v4124 = vmul.f32 %v2706, %v4010
      %v4125 = vmul.f32 %v2707, %v4010
      %v4126 = vmul.f32 %v2708, %v4010
      %v4127 = vmul.f32 %v2709, %v4010
      %v4128 = vmul.f32 %v2710, %v4010
      %v4129 = vmul.f32 %v2711, %v4010
      %v4130 = vmul.f32 %v2712, %v4010
      %v4131 = vmul.f32 %v2713, %v4010
      %v4132 = vmul.f32 %v2714, %v4010
      %v4133 = vmul.f32 %v2715, %v4010
      %v4134 = vmul.f32 %v2716, %v4010
      %v4135 = vmul.f32 %v2717, %v4010
      %v4136 = vmul.f32 %v2718, %v4010
      %v4137 = vmul.f32 %v4008, %v4010
      %v4138 = vmul.f32 %v4009, %v4010
      %v4139 = vsel %vm2880, %v4011, 0.0
      %v4140 = vsel %vm2881, %v4012, 0.0
      %v4141 = vsel %vm2882, %v4013, 0.0
      %v4142 = vsel %vm2883, %v4014, 0.0
      %v4143 = vsel %vm2884, %v4015, 0.0
      %v4144 = vsel %vm2885, %v4016, 0.0
      %v4145 = vsel %vm2886, %v4017, 0.0
      %v4146 = vsel %vm2887, %v4018, 0.0
      %v4147 = vsel %vm2888, %v4019, 0.0
      %v4148 = vsel %vm2889, %v4020, 0.0
      %v4149 = vsel %vm2890, %v4021, 0.0
      %v4150 = vsel %vm2891, %v4022, 0.0
      %v4151 = vsel %vm2892, %v4023, 0.0
      %v4152 = vsel %vm2893, %v4024, 0.0
      %v4153 = vsel %vm2894, %v4025, 0.0
      %v4154 = vsel %vm2895, %v4026, 0.0
      %v4155 = vsel %vm2896, %v4027, 0.0
      %v4156 = vsel %vm2897, %v4028, 0.0
      %v4157 = vsel %vm2898, %v4029, 0.0
      %v4158 = vsel %vm2899, %v4030, 0.0
      %v4159 = vsel %vm2900, %v4031, 0.0
      %v4160 = vsel %vm2901, %v4032, 0.0
      %v4161 = vsel %vm2902, %v4033, 0.0
      %v4162 = vsel %vm2903, %v4034, 0.0
      %v4163 = vsel %vm2904, %v4035, 0.0
      %v4164 = vsel %vm2905, %v4036, 0.0
      %v4165 = vsel %vm2906, %v4037, 0.0
      %v4166 = vsel %vm2907, %v4038, 0.0
      %v4167 = vsel %vm2908, %v4039, 0.0
      %v4168 = vsel %vm2909, %v4040, 0.0
      %v4169 = vsel %vm2910, %v4041, 0.0
      %v4170 = vsel %vm2911, %v4042, 0.0
      %v4171 = vsel %vm2880, %v4043, 0.0
      %v4172 = vsel %vm2881, %v4044, 0.0
      %v4173 = vsel %vm2882, %v4045, 0.0
      %v4174 = vsel %vm2883, %v4046, 0.0
      %v4175 = vsel %vm2884, %v4047, 0.0
      %v4176 = vsel %vm2885, %v4048, 0.0
      %v4177 = vsel %vm2886, %v4049, 0.0
      %v4178 = vsel %vm2887, %v4050, 0.0
      %v4179 = vsel %vm2888, %v4051, 0.0
      %v4180 = vsel %vm2889, %v4052, 0.0
      %v4181 = vsel %vm2890, %v4053, 0.0
      %v4182 = vsel %vm2891, %v4054, 0.0
      %v4183 = vsel %vm2892, %v4055, 0.0
      %v4184 = vsel %vm2893, %v4056, 0.0
      %v4185 = vsel %vm2894, %v4057, 0.0
      %v4186 = vsel %vm2895, %v4058, 0.0
      %v4187 = vsel %vm2896, %v4059, 0.0
      %v4188 = vsel %vm2897, %v4060, 0.0
      %v4189 = vsel %vm2898, %v4061, 0.0
      %v4190 = vsel %vm2899, %v4062, 0.0
      %v4191 = vsel %vm2900, %v4063, 0.0
      %v4192 = vsel %vm2901, %v4064, 0.0
      %v4193 = vsel %vm2902, %v4065, 0.0
      %v4194 = vsel %vm2903, %v4066, 0.0
      %v4195 = vsel %vm2904, %v4067, 0.0
      %v4196 = vsel %vm2905, %v4068, 0.0
      %v4197 = vsel %vm2906, %v4069, 0.0
      %v4198 = vsel %vm2907, %v4070, 0.0
      %v4199 = vsel %vm2908, %v4071, 0.0
      %v4200 = vsel %vm2909, %v4072, 0.0
      %v4201 = vsel %vm2910, %v4073, 0.0
      %v4202 = vsel %vm2911, %v4074, 0.0
      %v4203 = vsel %vm2880, %v4075, 0.0
      %v4204 = vsel %vm2881, %v4076, 0.0
      %v4205 = vsel %vm2882, %v4077, 0.0
      %v4206 = vsel %vm2883, %v4078, 0.0
      %v4207 = vsel %vm2884, %v4079, 0.0
      %v4208 = vsel %vm2885, %v4080, 0.0
      %v4209 = vsel %vm2886, %v4081, 0.0
      %v4210 = vsel %vm2887, %v4082, 0.0
      %v4211 = vsel %vm2888, %v4083, 0.0
      %v4212 = vsel %vm2889, %v4084, 0.0
      %v4213 = vsel %vm2890, %v4085, 0.0
      %v4214 = vsel %vm2891, %v4086, 0.0
      %v4215 = vsel %vm2892, %v4087, 0.0
      %v4216 = vsel %vm2893, %v4088, 0.0
      %v4217 = vsel %vm2894, %v4089, 0.0
      %v4218 = vsel %vm2895, %v4090, 0.0
      %v4219 = vsel %vm2896, %v4091, 0.0
      %v4220 = vsel %vm2897, %v4092, 0.0
      %v4221 = vsel %vm2898, %v4093, 0.0
      %v4222 = vsel %vm2899, %v4094, 0.0
      %v4223 = vsel %vm2900, %v4095, 0.0
      %v4224 = vsel %vm2901, %v4096, 0.0
      %v4225 = vsel %vm2902, %v4097, 0.0
      %v4226 = vsel %vm2903, %v4098, 0.0
      %v4227 = vsel %vm2904, %v4099, 0.0
      %v4228 = vsel %vm2905, %v4100, 0.0
      %v4229 = vsel %vm2906, %v4101, 0.0
      %v4230 = vsel %vm2907, %v4102, 0.0
      %v4231 = vsel %vm2908, %v4103, 0.0
      %v4232 = vsel %vm2909, %v4104, 0.0
      %v4233 = vsel %vm2910, %v4105, 0.0
      %v4234 = vsel %vm2911, %v4106, 0.0
      %v4235 = vsel %vm2880, %v4107, 0.0
      %v4236 = vsel %vm2881, %v4108, 0.0
      %v4237 = vsel %vm2882, %v4109, 0.0
      %v4238 = vsel %vm2883, %v4110, 0.0
      %v4239 = vsel %vm2884, %v4111, 0.0
      %v4240 = vsel %vm2885, %v4112, 0.0
      %v4241 = vsel %vm2886, %v4113, 0.0
      %v4242 = vsel %vm2887, %v4114, 0.0
      %v4243 = vsel %vm2888, %v4115, 0.0
      %v4244 = vsel %vm2889, %v4116, 0.0
      %v4245 = vsel %vm2890, %v4117, 0.0
      %v4246 = vsel %vm2891, %v4118, 0.0
      %v4247 = vsel %vm2892, %v4119, 0.0
      %v4248 = vsel %vm2893, %v4120, 0.0
      %v4249 = vsel %vm2894, %v4121, 0.0
      %v4250 = vsel %vm2895, %v4122, 0.0
      %v4251 = vsel %vm2896, %v4123, 0.0
      %v4252 = vsel %vm2897, %v4124, 0.0
      %v4253 = vsel %vm2898, %v4125, 0.0
      %v4254 = vsel %vm2899, %v4126, 0.0
      %v4255 = vsel %vm2900, %v4127, 0.0
      %v4256 = vsel %vm2901, %v4128, 0.0
      %v4257 = vsel %vm2902, %v4129, 0.0
      %v4258 = vsel %vm2903, %v4130, 0.0
      %v4259 = vsel %vm2904, %v4131, 0.0
      %v4260 = vsel %vm2905, %v4132, 0.0
      %v4261 = vsel %vm2906, %v4133, 0.0
      %v4262 = vsel %vm2907, %v4134, 0.0
      %v4263 = vsel %vm2908, %v4135, 0.0
      %v4264 = vsel %vm2909, %v4136, 0.0
      %v4265 = vsel %vm2910, %v4137, 0.0
      %v4266 = vsel %vm2911, %v4138, 0.0
      %v4267 = vld [vmem:[#allocation2 + $0x101] sm:$0xff]
      %v4268 = vld [vmem:[#allocation2 + $0x109] sm:$0xff]
      %v4269 = vld [vmem:[#allocation2 + $0x229] sm:$0xff]
      %v4270 = vld [vmem:[#allocation2 + $0x231] sm:$0xff]
      %v4271 = vld [vmem:[#allocation2 + $0x351] sm:$0xff]
      %v4272 = vld [vmem:[#allocation2 + $0x359] sm:$0xff]
      %v4273 = vld [vmem:[#allocation2 + $0x479] sm:$0xff]
      %v4274 = vld [vmem:[#allocation2 + $0x481] sm:$0xff]
      %v4275 = vperm.slane %v2589, 4
      %v4276 = vmul.f32 %v3042, %v4275
      %v4277 = vmul.f32 %v3043, %v4275
      %v4278 = vmul.f32 %v3044, %v4275
      %v4279 = vmul.f32 %v3045, %v4275
      %v4280 = vmul.f32 %v3046, %v4275
      %v4281 = vmul.f32 %v3047, %v4275
      %v4282 = vmul.f32 %v3048, %v4275
      %v4283 = vmul.f32 %v3049, %v4275
      %v4284 = vmul.f32 %v3050, %v4275
      %v4285 = vmul.f32 %v3051, %v4275
      %v4286 = vmul.f32 %v3052, %v4275
      %v4287 = vmul.f32 %v3053, %v4275
      %v4288 = vmul.f32 %v3054, %v4275
      %v4289 = vmul.f32 %v3055, %v4275
      %v4290 = vmul.f32 %v3056, %v4275
      %v4291 = vmul.f32 %v3057, %v4275
      %v4292 = vmul.f32 %v3058, %v4275
      %v4293 = vmul.f32 %v3059, %v4275
      %v4294 = vmul.f32 %v3060, %v4275
      %v4295 = vmul.f32 %v3061, %v4275
      %v4296 = vmul.f32 %v3062, %v4275
      %v4297 = vmul.f32 %v3063, %v4275
      %v4298 = vmul.f32 %v3064, %v4275
      %v4299 = vmul.f32 %v3065, %v4275
      %v4300 = vmul.f32 %v3066, %v4275
      %v4301 = vmul.f32 %v3067, %v4275
      %v4302 = vmul.f32 %v3068, %v4275
      %v4303 = vmul.f32 %v3069, %v4275
      %v4304 = vmul.f32 %v3070, %v4275
      %v4305 = vmul.f32 %v3071, %v4275
      %v4306 = vmul.f32 %v4267, %v4275
      %v4307 = vmul.f32 %v4268, %v4275
      %v4308 = vmul.f32 %v3074, %v4275
      %v4309 = vmul.f32 %v3075, %v4275
      %v4310 = vmul.f32 %v3076, %v4275
      %v4311 = vmul.f32 %v3077, %v4275
      %v4312 = vmul.f32 %v3078, %v4275
      %v4313 = vmul.f32 %v3079, %v4275
      %v4314 = vmul.f32 %v3080, %v4275
      %v4315 = vmul.f32 %v3081, %v4275
      %v4316 = vmul.f32 %v3082, %v4275
      %v4317 = vmul.f32 %v3083, %v4275
      %v4318 = vmul.f32 %v3084, %v4275
      %v4319 = vmul.f32 %v3085, %v4275
      %v4320 = vmul.f32 %v3086, %v4275
      %v4321 = vmul.f32 %v3087, %v4275
      %v4322 = vmul.f32 %v3088, %v4275
      %v4323 = vmul.f32 %v3089, %v4275
      %v4324 = vmul.f32 %v3090, %v4275
      %v4325 = vmul.f32 %v3091, %v4275
      %v4326 = vmul.f32 %v3092, %v4275
      %v4327 = vmul.f32 %v3093, %v4275
      %v4328 = vmul.f32 %v3094, %v4275
      %v4329 = vmul.f32 %v3095, %v4275
      %v4330 = vmul.f32 %v3096, %v4275
      %v4331 = vmul.f32 %v3097, %v4275
      %v4332 = vmul.f32 %v3098, %v4275
      %v4333 = vmul.f32 %v3099, %v4275
      %v4334 = vmul.f32 %v3100, %v4275
      %v4335 = vmul.f32 %v3101, %v4275
      %v4336 = vmul.f32 %v3102, %v4275
      %v4337 = vmul.f32 %v3103, %v4275
      %v4338 = vmul.f32 %v4269, %v4275
      %v4339 = vmul.f32 %v4270, %v4275
      %v4340 = vmul.f32 %v3106, %v4275
      %v4341 = vmul.f32 %v3107, %v4275
      %v4342 = vmul.f32 %v3108, %v4275
      %v4343 = vmul.f32 %v3109, %v4275
      %v4344 = vmul.f32 %v3110, %v4275
      %v4345 = vmul.f32 %v3111, %v4275
      %v4346 = vmul.f32 %v3112, %v4275
      %v4347 = vmul.f32 %v3113, %v4275
      %v4348 = vmul.f32 %v3114, %v4275
      %v4349 = vmul.f32 %v3115, %v4275
      %v4350 = vmul.f32 %v3116, %v4275
      %v4351 = vmul.f32 %v3117, %v4275
      %v4352 = vmul.f32 %v3118, %v4275
      %v4353 = vmul.f32 %v3119, %v4275
      %v4354 = vmul.f32 %v3120, %v4275
      %v4355 = vmul.f32 %v3121, %v4275
      %v4356 = vmul.f32 %v3122, %v4275
      %v4357 = vmul.f32 %v3123, %v4275
      %v4358 = vmul.f32 %v3124, %v4275
      %v4359 = vmul.f32 %v3125, %v4275
      %v4360 = vmul.f32 %v3126, %v4275
      %v4361 = vmul.f32 %v3127, %v4275
      %v4362 = vmul.f32 %v3128, %v4275
      %v4363 = vmul.f32 %v3129, %v4275
      %v4364 = vmul.f32 %v3130, %v4275
      %v4365 = vmul.f32 %v3131, %v4275
      %v4366 = vmul.f32 %v3132, %v4275
      %v4367 = vmul.f32 %v3133, %v4275
      %v4368 = vmul.f32 %v3134, %v4275
      %v4369 = vmul.f32 %v3135, %v4275
      %v4370 = vmul.f32 %v4271, %v4275
      %v4371 = vmul.f32 %v4272, %v4275
      %v4372 = vmul.f32 %v3138, %v4275
      %v4373 = vmul.f32 %v3139, %v4275
      %v4374 = vmul.f32 %v3140, %v4275
      %v4375 = vmul.f32 %v3141, %v4275
      %v4376 = vmul.f32 %v3142, %v4275
      %v4377 = vmul.f32 %v3143, %v4275
      %v4378 = vmul.f32 %v3144, %v4275
      %v4379 = vmul.f32 %v3145, %v4275
      %v4380 = vmul.f32 %v3146, %v4275
      %v4381 = vmul.f32 %v3147, %v4275
      %v4382 = vmul.f32 %v3148, %v4275
      %v4383 = vmul.f32 %v3149, %v4275
      %v4384 = vmul.f32 %v3150, %v4275
      %v4385 = vmul.f32 %v3151, %v4275
      %v4386 = vmul.f32 %v3152, %v4275
      %v4387 = vmul.f32 %v3153, %v4275
      %v4388 = vmul.f32 %v3154, %v4275
      %v4389 = vmul.f32 %v3155, %v4275
      %v4390 = vmul.f32 %v3156, %v4275
      %v4391 = vmul.f32 %v3157, %v4275
      %v4392 = vmul.f32 %v3158, %v4275
      %v4393 = vmul.f32 %v3159, %v4275
      %v4394 = vmul.f32 %v3160, %v4275
      %v4395 = vmul.f32 %v3161, %v4275
      %v4396 = vmul.f32 %v3162, %v4275
      %v4397 = vmul.f32 %v3163, %v4275
      %v4398 = vmul.f32 %v3164, %v4275
      %v4399 = vmul.f32 %v3165, %v4275
      %v4400 = vmul.f32 %v3166, %v4275
      %v4401 = vmul.f32 %v3167, %v4275
      %v4402 = vmul.f32 %v4273, %v4275
      %v4403 = vmul.f32 %v4274, %v4275
      %v4404 = vadd.f32 %v4139, %v4276
      %v4405 = vadd.f32 %v4140, %v4277
      %v4406 = vadd.f32 %v4141, %v4278
      %v4407 = vadd.f32 %v4142, %v4279
      %v4408 = vadd.f32 %v4143, %v4280
      %v4409 = vadd.f32 %v4144, %v4281
      %v4410 = vadd.f32 %v4145, %v4282
      %v4411 = vadd.f32 %v4146, %v4283
      %v4412 = vadd.f32 %v4147, %v4284
      %v4413 = vadd.f32 %v4148, %v4285
      %v4414 = vadd.f32 %v4149, %v4286
      %v4415 = vadd.f32 %v4150, %v4287
      %v4416 = vadd.f32 %v4151, %v4288
      %v4417 = vadd.f32 %v4152, %v4289
      %v4418 = vadd.f32 %v4153, %v4290
      %v4419 = vadd.f32 %v4154, %v4291
      %v4420 = vadd.f32 %v4155, %v4292
      %v4421 = vadd.f32 %v4156, %v4293
      %v4422 = vadd.f32 %v4157, %v4294
      %v4423 = vadd.f32 %v4158, %v4295
      %v4424 = vadd.f32 %v4159, %v4296
      %v4425 = vadd.f32 %v4160, %v4297
      %v4426 = vadd.f32 %v4161, %v4298
      %v4427 = vadd.f32 %v4162, %v4299
      %v4428 = vadd.f32 %v4163, %v4300
      %v4429 = vadd.f32 %v4164, %v4301
      %v4430 = vadd.f32 %v4165, %v4302
      %v4431 = vadd.f32 %v4166, %v4303
      %v4432 = vadd.f32 %v4167, %v4304
      %v4433 = vadd.f32 %v4168, %v4305
      %v4434 = vadd.f32 %v4169, %v4306
      %v4435 = vadd.f32 %v4170, %v4307
      %v4436 = vadd.f32 %v4171, %v4308
      %v4437 = vadd.f32 %v4172, %v4309
      %v4438 = vadd.f32 %v4173, %v4310
      %v4439 = vadd.f32 %v4174, %v4311
      %v4440 = vadd.f32 %v4175, %v4312
      %v4441 = vadd.f32 %v4176, %v4313
      %v4442 = vadd.f32 %v4177, %v4314
      %v4443 = vadd.f32 %v4178, %v4315
      %v4444 = vadd.f32 %v4179, %v4316
      %v4445 = vadd.f32 %v4180, %v4317
      %v4446 = vadd.f32 %v4181, %v4318
      %v4447 = vadd.f32 %v4182, %v4319
      %v4448 = vadd.f32 %v4183, %v4320
      %v4449 = vadd.f32 %v4184, %v4321
      %v4450 = vadd.f32 %v4185, %v4322
      %v4451 = vadd.f32 %v4186, %v4323
      %v4452 = vadd.f32 %v4187, %v4324
      %v4453 = vadd.f32 %v4188, %v4325
      %v4454 = vadd.f32 %v4189, %v4326
      %v4455 = vadd.f32 %v4190, %v4327
      %v4456 = vadd.f32 %v4191, %v4328
      %v4457 = vadd.f32 %v4192, %v4329
      %v4458 = vadd.f32 %v4193, %v4330
      %v4459 = vadd.f32 %v4194, %v4331
      %v4460 = vadd.f32 %v4195, %v4332
      %v4461 = vadd.f32 %v4196, %v4333
      %v4462 = vadd.f32 %v4197, %v4334
      %v4463 = vadd.f32 %v4198, %v4335
      %v4464 = vadd.f32 %v4199, %v4336
      %v4465 = vadd.f32 %v4200, %v4337
      %v4466 = vadd.f32 %v4201, %v4338
      %v4467 = vadd.f32 %v4202, %v4339
      %v4468 = vadd.f32 %v4203, %v4340
      %v4469 = vadd.f32 %v4204, %v4341
      %v4470 = vadd.f32 %v4205, %v4342
      %v4471 = vadd.f32 %v4206, %v4343
      %v4472 = vadd.f32 %v4207, %v4344
      %v4473 = vadd.f32 %v4208, %v4345
      %v4474 = vadd.f32 %v4209, %v4346
      %v4475 = vadd.f32 %v4210, %v4347
      %v4476 = vadd.f32 %v4211, %v4348
      %v4477 = vadd.f32 %v4212, %v4349
      %v4478 = vadd.f32 %v4213, %v4350
      %v4479 = vadd.f32 %v4214, %v4351
      %v4480 = vadd.f32 %v4215, %v4352
      %v4481 = vadd.f32 %v4216, %v4353
      %v4482 = vadd.f32 %v4217, %v4354
      %v4483 = vadd.f32 %v4218, %v4355
      %v4484 = vadd.f32 %v4219, %v4356
      %v4485 = vadd.f32 %v4220, %v4357
      %v4486 = vadd.f32 %v4221, %v4358
      %v4487 = vadd.f32 %v4222, %v4359
      %v4488 = vadd.f32 %v4223, %v4360
      %v4489 = vadd.f32 %v4224, %v4361
      %v4490 = vadd.f32 %v4225, %v4362
      %v4491 = vadd.f32 %v4226, %v4363
      %v4492 = vadd.f32 %v4227, %v4364
      %v4493 = vadd.f32 %v4228, %v4365
      %v4494 = vadd.f32 %v4229, %v4366
      %v4495 = vadd.f32 %v4230, %v4367
      %v4496 = vadd.f32 %v4231, %v4368
      %v4497 = vadd.f32 %v4232, %v4369
      %v4498 = vadd.f32 %v4233, %v4370
      %v4499 = vadd.f32 %v4234, %v4371
      %v4500 = vadd.f32 %v4235, %v4372
      %v4501 = vadd.f32 %v4236, %v4373
      %v4502 = vadd.f32 %v4237, %v4374
      %v4503 = vadd.f32 %v4238, %v4375
      %v4504 = vadd.f32 %v4239, %v4376
      %v4505 = vadd.f32 %v4240, %v4377
      %v4506 = vadd.f32 %v4241, %v4378
      %v4507 = vadd.f32 %v4242, %v4379
      %v4508 = vadd.f32 %v4243, %v4380
      %v4509 = vadd.f32 %v4244, %v4381
      %v4510 = vadd.f32 %v4245, %v4382
      %v4511 = vadd.f32 %v4246, %v4383
      %v4512 = vadd.f32 %v4247, %v4384
      %v4513 = vadd.f32 %v4248, %v4385
      %v4514 = vadd.f32 %v4249, %v4386
      %v4515 = vadd.f32 %v4250, %v4387
      %v4516 = vadd.f32 %v4251, %v4388
      %v4517 = vadd.f32 %v4252, %v4389
      %v4518 = vadd.f32 %v4253, %v4390
      %v4519 = vadd.f32 %v4254, %v4391
      %v4520 = vadd.f32 %v4255, %v4392
      %v4521 = vadd.f32 %v4256, %v4393
      %v4522 = vadd.f32 %v4257, %v4394
      %v4523 = vadd.f32 %v4258, %v4395
      %v4524 = vadd.f32 %v4259, %v4396
      %v4525 = vadd.f32 %v4260, %v4397
      %v4526 = vadd.f32 %v4261, %v4398
      %v4527 = vadd.f32 %v4262, %v4399
      %v4528 = vadd.f32 %v4263, %v4400
      %v4529 = vadd.f32 %v4264, %v4401
      %v4530 = vadd.f32 %v4265, %v4402
      %v4531 = vadd.f32 %v4266, %v4403
      %v4532 = vld [vmem:[#allocation2 + $0x102] sm:$0xff]
      %v4533 = vld [vmem:[#allocation2 + $0x10a] sm:$0xff]
      %v4534 = vld [vmem:[#allocation2 + $0x22a] sm:$0xff]
      %v4535 = vld [vmem:[#allocation2 + $0x232] sm:$0xff]
      %v4536 = vld [vmem:[#allocation2 + $0x352] sm:$0xff]
      %v4537 = vld [vmem:[#allocation2 + $0x35a] sm:$0xff]
      %v4538 = vld [vmem:[#allocation2 + $0x47a] sm:$0xff]
      %v4539 = vld [vmem:[#allocation2 + $0x482] sm:$0xff]
      %v4540 = vperm.slane %v2589, 5
      %v4541 = vmul.f32 %v3427, %v4540
      %v4542 = vmul.f32 %v3428, %v4540
      %v4543 = vmul.f32 %v3429, %v4540
      %v4544 = vmul.f32 %v3430, %v4540
      %v4545 = vmul.f32 %v3431, %v4540
      %v4546 = vmul.f32 %v3432, %v4540
      %v4547 = vmul.f32 %v3433, %v4540
      %v4548 = vmul.f32 %v3434, %v4540
      %v4549 = vmul.f32 %v3435, %v4540
      %v4550 = vmul.f32 %v3436, %v4540
      %v4551 = vmul.f32 %v3437, %v4540
      %v4552 = vmul.f32 %v3438, %v4540
      %v4553 = vmul.f32 %v3439, %v4540
      %v4554 = vmul.f32 %v3440, %v4540
      %v4555 = vmul.f32 %v3441, %v4540
      %v4556 = vmul.f32 %v3442, %v4540
      %v4557 = vmul.f32 %v3443, %v4540
      %v4558 = vmul.f32 %v3444, %v4540
      %v4559 = vmul.f32 %v3445, %v4540
      %v4560 = vmul.f32 %v3446, %v4540
      %v4561 = vmul.f32 %v3447, %v4540
      %v4562 = vmul.f32 %v3448, %v4540
      %v4563 = vmul.f32 %v3449, %v4540
      %v4564 = vmul.f32 %v3450, %v4540
      %v4565 = vmul.f32 %v3451, %v4540
      %v4566 = vmul.f32 %v3452, %v4540
      %v4567 = vmul.f32 %v3453, %v4540
      %v4568 = vmul.f32 %v3454, %v4540
      %v4569 = vmul.f32 %v3455, %v4540
      %v4570 = vmul.f32 %v3456, %v4540
      %v4571 = vmul.f32 %v4532, %v4540
      %v4572 = vmul.f32 %v4533, %v4540
      %v4573 = vmul.f32 %v3459, %v4540
      %v4574 = vmul.f32 %v3460, %v4540
      %v4575 = vmul.f32 %v3461, %v4540
      %v4576 = vmul.f32 %v3462, %v4540
      %v4577 = vmul.f32 %v3463, %v4540
      %v4578 = vmul.f32 %v3464, %v4540
      %v4579 = vmul.f32 %v3465, %v4540
      %v4580 = vmul.f32 %v3466, %v4540
      %v4581 = vmul.f32 %v3467, %v4540
      %v4582 = vmul.f32 %v3468, %v4540
      %v4583 = vmul.f32 %v3469, %v4540
      %v4584 = vmul.f32 %v3470, %v4540
      %v4585 = vmul.f32 %v3471, %v4540
      %v4586 = vmul.f32 %v3472, %v4540
      %v4587 = vmul.f32 %v3473, %v4540
      %v4588 = vmul.f32 %v3474, %v4540
      %v4589 = vmul.f32 %v3475, %v4540
      %v4590 = vmul.f32 %v3476, %v4540
      %v4591 = vmul.f32 %v3477, %v4540
      %v4592 = vmul.f32 %v3478, %v4540
      %v4593 = vmul.f32 %v3479, %v4540
      %v4594 = vmul.f32 %v3480, %v4540
      %v4595 = vmul.f32 %v3481, %v4540
      %v4596 = vmul.f32 %v3482, %v4540
      %v4597 = vmul.f32 %v3483, %v4540
      %v4598 = vmul.f32 %v3484, %v4540
      %v4599 = vmul.f32 %v3485, %v4540
      %v4600 = vmul.f32 %v3486, %v4540
      %v4601 = vmul.f32 %v3487, %v4540
      %v4602 = vmul.f32 %v3488, %v4540
      %v4603 = vmul.f32 %v4534, %v4540
      %v4604 = vmul.f32 %v4535, %v4540
      %v4605 = vmul.f32 %v3491, %v4540
      %v4606 = vmul.f32 %v3492, %v4540
      %v4607 = vmul.f32 %v3493, %v4540
      %v4608 = vmul.f32 %v3494, %v4540
      %v4609 = vmul.f32 %v3495, %v4540
      %v4610 = vmul.f32 %v3496, %v4540
      %v4611 = vmul.f32 %v3497, %v4540
      %v4612 = vmul.f32 %v3498, %v4540
      %v4613 = vmul.f32 %v3499, %v4540
      %v4614 = vmul.f32 %v3500, %v4540
      %v4615 = vmul.f32 %v3501, %v4540
      %v4616 = vmul.f32 %v3502, %v4540
      %v4617 = vmul.f32 %v3503, %v4540
      %v4618 = vmul.f32 %v3504, %v4540
      %v4619 = vmul.f32 %v3505, %v4540
      %v4620 = vmul.f32 %v3506, %v4540
      %v4621 = vmul.f32 %v3507, %v4540
      %v4622 = vmul.f32 %v3508, %v4540
      %v4623 = vmul.f32 %v3509, %v4540
      %v4624 = vmul.f32 %v3510, %v4540
      %v4625 = vmul.f32 %v3511, %v4540
      %v4626 = vmul.f32 %v3512, %v4540
      %v4627 = vmul.f32 %v3513, %v4540
      %v4628 = vmul.f32 %v3514, %v4540
      %v4629 = vmul.f32 %v3515, %v4540
      %v4630 = vmul.f32 %v3516, %v4540
      %v4631 = vmul.f32 %v3517, %v4540
      %v4632 = vmul.f32 %v3518, %v4540
      %v4633 = vmul.f32 %v3519, %v4540
      %v4634 = vmul.f32 %v3520, %v4540
      %v4635 = vmul.f32 %v4536, %v4540
      %v4636 = vmul.f32 %v4537, %v4540
      %v4637 = vmul.f32 %v3523, %v4540
      %v4638 = vmul.f32 %v3524, %v4540
      %v4639 = vmul.f32 %v3525, %v4540
      %v4640 = vmul.f32 %v3526, %v4540
      %v4641 = vmul.f32 %v3527, %v4540
      %v4642 = vmul.f32 %v3528, %v4540
      %v4643 = vmul.f32 %v3529, %v4540
      %v4644 = vmul.f32 %v3530, %v4540
      %v4645 = vmul.f32 %v3531, %v4540
      %v4646 = vmul.f32 %v3532, %v4540
      %v4647 = vmul.f32 %v3533, %v4540
      %v4648 = vmul.f32 %v3534, %v4540
      %v4649 = vmul.f32 %v3535, %v4540
      %v4650 = vmul.f32 %v3536, %v4540
      %v4651 = vmul.f32 %v3537, %v4540
      %v4652 = vmul.f32 %v3538, %v4540
      %v4653 = vmul.f32 %v3539, %v4540
      %v4654 = vmul.f32 %v3540, %v4540
      %v4655 = vmul.f32 %v3541, %v4540
      %v4656 = vmul.f32 %v3542, %v4540
      %v4657 = vmul.f32 %v3543, %v4540
      %v4658 = vmul.f32 %v3544, %v4540
      %v4659 = vmul.f32 %v3545, %v4540
      %v4660 = vmul.f32 %v3546, %v4540
      %v4661 = vmul.f32 %v3547, %v4540
      %v4662 = vmul.f32 %v3548, %v4540
      %v4663 = vmul.f32 %v3549, %v4540
      %v4664 = vmul.f32 %v3550, %v4540
      %v4665 = vmul.f32 %v3551, %v4540
      %v4666 = vmul.f32 %v3552, %v4540
      %v4667 = vmul.f32 %v4538, %v4540
      %v4668 = vmul.f32 %v4539, %v4540
      %v4669 = vsel %vm3714, %v4541, 0.0
      %v4670 = vsel %vm3715, %v4542, 0.0
      %v4671 = vsel %vm3716, %v4543, 0.0
      %v4672 = vsel %vm3717, %v4544, 0.0
      %v4673 = vsel %vm3718, %v4545, 0.0
      %v4674 = vsel %vm3719, %v4546, 0.0
      %v4675 = vsel %vm3720, %v4547, 0.0
      %v4676 = vsel %vm3721, %v4548, 0.0
      %v4677 = vsel %vm3722, %v4549, 0.0
      %v4678 = vsel %vm3723, %v4550, 0.0
      %v4679 = vsel %vm3724, %v4551, 0.0
      %v4680 = vsel %vm3725, %v4552, 0.0
      %v4681 = vsel %vm3726, %v4553, 0.0
      %v4682 = vsel %vm3727, %v4554, 0.0
      %v4683 = vsel %vm3728, %v4555, 0.0
      %v4684 = vsel %vm3729, %v4556, 0.0
      %v4685 = vsel %vm3730, %v4557, 0.0
      %v4686 = vsel %vm3731, %v4558, 0.0
      %v4687 = vsel %vm3732, %v4559, 0.0
      %v4688 = vsel %vm3733, %v4560, 0.0
      %v4689 = vsel %vm3734, %v4561, 0.0
      %v4690 = vsel %vm3735, %v4562, 0.0
      %v4691 = vsel %vm3736, %v4563, 0.0
      %v4692 = vsel %vm3737, %v4564, 0.0
      %v4693 = vsel %vm3738, %v4565, 0.0
      %v4694 = vsel %vm3739, %v4566, 0.0
      %v4695 = vsel %vm3740, %v4567, 0.0
      %v4696 = vsel %vm3741, %v4568, 0.0
      %v4697 = vsel %vm3742, %v4569, 0.0
      %v4698 = vsel %vm3743, %v4570, 0.0
      %v4699 = vsel %vm3744, %v4571, 0.0
      %v4700 = vsel %vm3745, %v4572, 0.0
      %v4701 = vsel %vm3714, %v4573, 0.0
      %v4702 = vsel %vm3715, %v4574, 0.0
      %v4703 = vsel %vm3716, %v4575, 0.0
      %v4704 = vsel %vm3717, %v4576, 0.0
      %v4705 = vsel %vm3718, %v4577, 0.0
      %v4706 = vsel %vm3719, %v4578, 0.0
      %v4707 = vsel %vm3720, %v4579, 0.0
      %v4708 = vsel %vm3721, %v4580, 0.0
      %v4709 = vsel %vm3722, %v4581, 0.0
      %v4710 = vsel %vm3723, %v4582, 0.0
      %v4711 = vsel %vm3724, %v4583, 0.0
      %v4712 = vsel %vm3725, %v4584, 0.0
      %v4713 = vsel %vm3726, %v4585, 0.0
      %v4714 = vsel %vm3727, %v4586, 0.0
      %v4715 = vsel %vm3728, %v4587, 0.0
      %v4716 = vsel %vm3729, %v4588, 0.0
      %v4717 = vsel %vm3730, %v4589, 0.0
      %v4718 = vsel %vm3731, %v4590, 0.0
      %v4719 = vsel %vm3732, %v4591, 0.0
      %v4720 = vsel %vm3733, %v4592, 0.0
      %v4721 = vsel %vm3734, %v4593, 0.0
      %v4722 = vsel %vm3735, %v4594, 0.0
      %v4723 = vsel %vm3736, %v4595, 0.0
      %v4724 = vsel %vm3737, %v4596, 0.0
      %v4725 = vsel %vm3738, %v4597, 0.0
      %v4726 = vsel %vm3739, %v4598, 0.0
      %v4727 = vsel %vm3740, %v4599, 0.0
      %v4728 = vsel %vm3741, %v4600, 0.0
      %v4729 = vsel %vm3742, %v4601, 0.0
      %v4730 = vsel %vm3743, %v4602, 0.0
      %v4731 = vsel %vm3744, %v4603, 0.0
      %v4732 = vsel %vm3745, %v4604, 0.0
      %v4733 = vsel %vm3714, %v4605, 0.0
      %v4734 = vsel %vm3715, %v4606, 0.0
      %v4735 = vsel %vm3716, %v4607, 0.0
      %v4736 = vsel %vm3717, %v4608, 0.0
      %v4737 = vsel %vm3718, %v4609, 0.0
      %v4738 = vsel %vm3719, %v4610, 0.0
      %v4739 = vsel %vm3720, %v4611, 0.0
      %v4740 = vsel %vm3721, %v4612, 0.0
      %v4741 = vsel %vm3722, %v4613, 0.0
      %v4742 = vsel %vm3723, %v4614, 0.0
      %v4743 = vsel %vm3724, %v4615, 0.0
      %v4744 = vsel %vm3725, %v4616, 0.0
      %v4745 = vsel %vm3726, %v4617, 0.0
      %v4746 = vsel %vm3727, %v4618, 0.0
      %v4747 = vsel %vm3728, %v4619, 0.0
      %v4748 = vsel %vm3729, %v4620, 0.0
      %v4749 = vsel %vm3730, %v4621, 0.0
      %v4750 = vsel %vm3731, %v4622, 0.0
      %v4751 = vsel %vm3732, %v4623, 0.0
      %v4752 = vsel %vm3733, %v4624, 0.0
      %v4753 = vsel %vm3734, %v4625, 0.0
      %v4754 = vsel %vm3735, %v4626, 0.0
      %v4755 = vsel %vm3736, %v4627, 0.0
      %v4756 = vsel %vm3737, %v4628, 0.0
      %v4757 = vsel %vm3738, %v4629, 0.0
      %v4758 = vsel %vm3739, %v4630, 0.0
      %v4759 = vsel %vm3740, %v4631, 0.0
      %v4760 = vsel %vm3741, %v4632, 0.0
      %v4761 = vsel %vm3742, %v4633, 0.0
      %v4762 = vsel %vm3743, %v4634, 0.0
      %v4763 = vsel %vm3744, %v4635, 0.0
      %v4764 = vsel %vm3745, %v4636, 0.0
      %v4765 = vsel %vm3714, %v4637, 0.0
      %v4766 = vsel %vm3715, %v4638, 0.0
      %v4767 = vsel %vm3716, %v4639, 0.0
      %v4768 = vsel %vm3717, %v4640, 0.0
      %v4769 = vsel %vm3718, %v4641, 0.0
      %v4770 = vsel %vm3719, %v4642, 0.0
      %v4771 = vsel %vm3720, %v4643, 0.0
      %v4772 = vsel %vm3721, %v4644, 0.0
      %v4773 = vsel %vm3722, %v4645, 0.0
      %v4774 = vsel %vm3723, %v4646, 0.0
      %v4775 = vsel %vm3724, %v4647, 0.0
      %v4776 = vsel %vm3725, %v4648, 0.0
      %v4777 = vsel %vm3726, %v4649, 0.0
      %v4778 = vsel %vm3727, %v4650, 0.0
      %v4779 = vsel %vm3728, %v4651, 0.0
      %v4780 = vsel %vm3729, %v4652, 0.0
      %v4781 = vsel %vm3730, %v4653, 0.0
      %v4782 = vsel %vm3731, %v4654, 0.0
      %v4783 = vsel %vm3732, %v4655, 0.0
      %v4784 = vsel %vm3733, %v4656, 0.0
      %v4785 = vsel %vm3734, %v4657, 0.0
      %v4786 = vsel %vm3735, %v4658, 0.0
      %v4787 = vsel %vm3736, %v4659, 0.0
      %v4788 = vsel %vm3737, %v4660, 0.0
      %v4789 = vsel %vm3738, %v4661, 0.0
      %v4790 = vsel %vm3739, %v4662, 0.0
      %v4791 = vsel %vm3740, %v4663, 0.0
      %v4792 = vsel %vm3741, %v4664, 0.0
      %v4793 = vsel %vm3742, %v4665, 0.0
      %v4794 = vsel %vm3743, %v4666, 0.0
      %v4795 = vsel %vm3744, %v4667, 0.0
      %v4796 = vsel %vm3745, %v4668, 0.0
      %v4797 = vadd.f32 %v4404, %v4669
      %v4798 = vadd.f32 %v4405, %v4670
      %v4799 = vadd.f32 %v4406, %v4671
      %v4800 = vadd.f32 %v4407, %v4672
      %v4801 = vadd.f32 %v4408, %v4673
      %v4802 = vadd.f32 %v4409, %v4674
      %v4803 = vadd.f32 %v4410, %v4675
      %v4804 = vadd.f32 %v4411, %v4676
      %v4805 = vadd.f32 %v4412, %v4677
      %v4806 = vadd.f32 %v4413, %v4678
      %v4807 = vadd.f32 %v4414, %v4679
      %v4808 = vadd.f32 %v4415, %v4680
      %v4809 = vadd.f32 %v4416, %v4681
      %v4810 = vadd.f32 %v4417, %v4682
      %v4811 = vadd.f32 %v4418, %v4683
      %v4812 = vadd.f32 %v4419, %v4684
      %v4813 = vadd.f32 %v4420, %v4685
      %v4814 = vadd.f32 %v4421, %v4686
      %v4815 = vadd.f32 %v4422, %v4687
      %v4816 = vadd.f32 %v4423, %v4688
      %v4817 = vadd.f32 %v4424, %v4689
      %v4818 = vadd.f32 %v4425, %v4690
      %v4819 = vadd.f32 %v4426, %v4691
      %v4820 = vadd.f32 %v4427, %v4692
      %v4821 = vadd.f32 %v4428, %v4693
      %v4822 = vadd.f32 %v4429, %v4694
      %v4823 = vadd.f32 %v4430, %v4695
      %v4824 = vadd.f32 %v4431, %v4696
      %v4825 = vadd.f32 %v4432, %v4697
      %v4826 = vadd.f32 %v4433, %v4698
      %v4827 = vadd.f32 %v4434, %v4699
      %v4828 = vadd.f32 %v4435, %v4700
      %v4829 = vadd.f32 %v4436, %v4701
      %v4830 = vadd.f32 %v4437, %v4702
      %v4831 = vadd.f32 %v4438, %v4703
      %v4832 = vadd.f32 %v4439, %v4704
      %v4833 = vadd.f32 %v4440, %v4705
      %v4834 = vadd.f32 %v4441, %v4706
      %v4835 = vadd.f32 %v4442, %v4707
      %v4836 = vadd.f32 %v4443, %v4708
      %v4837 = vadd.f32 %v4444, %v4709
      %v4838 = vadd.f32 %v4445, %v4710
      %v4839 = vadd.f32 %v4446, %v4711
      %v4840 = vadd.f32 %v4447, %v4712
      %v4841 = vadd.f32 %v4448, %v4713
      %v4842 = vadd.f32 %v4449, %v4714
      %v4843 = vadd.f32 %v4450, %v4715
      %v4844 = vadd.f32 %v4451, %v4716
      %v4845 = vadd.f32 %v4452, %v4717
      %v4846 = vadd.f32 %v4453, %v4718
      %v4847 = vadd.f32 %v4454, %v4719
      %v4848 = vadd.f32 %v4455, %v4720
      %v4849 = vadd.f32 %v4456, %v4721
      %v4850 = vadd.f32 %v4457, %v4722
      %v4851 = vadd.f32 %v4458, %v4723
      %v4852 = vadd.f32 %v4459, %v4724
      %v4853 = vadd.f32 %v4460, %v4725
      %v4854 = vadd.f32 %v4461, %v4726
      %v4855 = vadd.f32 %v4462, %v4727
      %v4856 = vadd.f32 %v4463, %v4728
      %v4857 = vadd.f32 %v4464, %v4729
      %v4858 = vadd.f32 %v4465, %v4730
      %v4859 = vadd.f32 %v4466, %v4731
      %v4860 = vadd.f32 %v4467, %v4732
      %v4861 = vadd.f32 %v4468, %v4733
      %v4862 = vadd.f32 %v4469, %v4734
      %v4863 = vadd.f32 %v4470, %v4735
      %v4864 = vadd.f32 %v4471, %v4736
      %v4865 = vadd.f32 %v4472, %v4737
      %v4866 = vadd.f32 %v4473, %v4738
      %v4867 = vadd.f32 %v4474, %v4739
      %v4868 = vadd.f32 %v4475, %v4740
      %v4869 = vadd.f32 %v4476, %v4741
      %v4870 = vadd.f32 %v4477, %v4742
      %v4871 = vadd.f32 %v4478, %v4743
      %v4872 = vadd.f32 %v4479, %v4744
      %v4873 = vadd.f32 %v4480, %v4745
      %v4874 = vadd.f32 %v4481, %v4746
      %v4875 = vadd.f32 %v4482, %v4747
      %v4876 = vadd.f32 %v4483, %v4748
      %v4877 = vadd.f32 %v4484, %v4749
      %v4878 = vadd.f32 %v4485, %v4750
      %v4879 = vadd.f32 %v4486, %v4751
      %v4880 = vadd.f32 %v4487, %v4752
      %v4881 = vadd.f32 %v4488, %v4753
      %v4882 = vadd.f32 %v4489, %v4754
      %v4883 = vadd.f32 %v4490, %v4755
      %v4884 = vadd.f32 %v4491, %v4756
      %v4885 = vadd.f32 %v4492, %v4757
      %v4886 = vadd.f32 %v4493, %v4758
      %v4887 = vadd.f32 %v4494, %v4759
      %v4888 = vadd.f32 %v4495, %v4760
      %v4889 = vadd.f32 %v4496, %v4761
      %v4890 = vadd.f32 %v4497, %v4762
      %v4891 = vadd.f32 %v4498, %v4763
      %v4892 = vadd.f32 %v4499, %v4764
      %v4893 = vadd.f32 %v4500, %v4765
      %v4894 = vadd.f32 %v4501, %v4766
      %v4895 = vadd.f32 %v4502, %v4767
      %v4896 = vadd.f32 %v4503, %v4768
      %v4897 = vadd.f32 %v4504, %v4769
      %v4898 = vadd.f32 %v4505, %v4770
      %v4899 = vadd.f32 %v4506, %v4771
      %v4900 = vadd.f32 %v4507, %v4772
      %v4901 = vadd.f32 %v4508, %v4773
      %v4902 = vadd.f32 %v4509, %v4774
      %v4903 = vadd.f32 %v4510, %v4775
      %v4904 = vadd.f32 %v4511, %v4776
      %v4905 = vadd.f32 %v4512, %v4777
      %v4906 = vadd.f32 %v4513, %v4778
      %v4907 = vadd.f32 %v4514, %v4779
      %v4908 = vadd.f32 %v4515, %v4780
      %v4909 = vadd.f32 %v4516, %v4781
      %v4910 = vadd.f32 %v4517, %v4782
      %v4911 = vadd.f32 %v4518, %v4783
      %v4912 = vadd.f32 %v4519, %v4784
      %v4913 = vadd.f32 %v4520, %v4785
      %v4914 = vadd.f32 %v4521, %v4786
      %v4915 = vadd.f32 %v4522, %v4787
      %v4916 = vadd.f32 %v4523, %v4788
      %v4917 = vadd.f32 %v4524, %v4789
      %v4918 = vadd.f32 %v4525, %v4790
      %v4919 = vadd.f32 %v4526, %v4791
      %v4920 = vadd.f32 %v4527, %v4792
      %v4921 = vadd.f32 %v4528, %v4793
      %v4922 = vadd.f32 %v4529, %v4794
      %v4923 = vadd.f32 %v4530, %v4795
      %v4924 = vadd.f32 %v4531, %v4796
      %v4925 = vld [vmem:[#allocation2 + $0x110] sm:$0xff]
      %v4926 = vld [vmem:[#allocation2 + $0x118] sm:$0xff]
      %v4927 = vld [vmem:[#allocation2 + $0x238] sm:$0xff]
      %v4928 = vld [vmem:[#allocation2 + $0x240] sm:$0xff]
      %v4929 = vld [vmem:[#allocation2 + $0x360] sm:$0xff]
      %v4930 = vld [vmem:[#allocation2 + $0x368] sm:$0xff]
      %v4931 = vld [vmem:[#allocation2 + $0x488] sm:$0xff]
      %v4932 = vld [vmem:[#allocation2 + $0x490] sm:$0xff]
      %v4933 = vperm.slane %v2589, 6
      %v4934 = vmul.f32 %v2595, %v4933
      %v4935 = vmul.f32 %v2596, %v4933
      %v4936 = vmul.f32 %v2597, %v4933
      %v4937 = vmul.f32 %v2598, %v4933
      %v4938 = vmul.f32 %v2599, %v4933
      %v4939 = vmul.f32 %v2600, %v4933
      %v4940 = vmul.f32 %v2601, %v4933
      %v4941 = vmul.f32 %v2602, %v4933
      %v4942 = vmul.f32 %v2603, %v4933
      %v4943 = vmul.f32 %v2604, %v4933
      %v4944 = vmul.f32 %v2605, %v4933
      %v4945 = vmul.f32 %v2606, %v4933
      %v4946 = vmul.f32 %v2607, %v4933
      %v4947 = vmul.f32 %v2608, %v4933
      %v4948 = vmul.f32 %v2609, %v4933
      %v4949 = vmul.f32 %v2610, %v4933
      %v4950 = vmul.f32 %v2611, %v4933
      %v4951 = vmul.f32 %v2612, %v4933
      %v4952 = vmul.f32 %v2613, %v4933
      %v4953 = vmul.f32 %v2614, %v4933
      %v4954 = vmul.f32 %v2615, %v4933
      %v4955 = vmul.f32 %v2616, %v4933
      %v4956 = vmul.f32 %v2617, %v4933
      %v4957 = vmul.f32 %v2618, %v4933
      %v4958 = vmul.f32 %v2619, %v4933
      %v4959 = vmul.f32 %v2620, %v4933
      %v4960 = vmul.f32 %v2621, %v4933
      %v4961 = vmul.f32 %v2622, %v4933
      %v4962 = vmul.f32 %v4002, %v4933
      %v4963 = vmul.f32 %v4003, %v4933
      %v4964 = vmul.f32 %v4925, %v4933
      %v4965 = vmul.f32 %v4926, %v4933
      %v4966 = vmul.f32 %v2627, %v4933
      %v4967 = vmul.f32 %v2628, %v4933
      %v4968 = vmul.f32 %v2629, %v4933
      %v4969 = vmul.f32 %v2630, %v4933
      %v4970 = vmul.f32 %v2631, %v4933
      %v4971 = vmul.f32 %v2632, %v4933
      %v4972 = vmul.f32 %v2633, %v4933
      %v4973 = vmul.f32 %v2634, %v4933
      %v4974 = vmul.f32 %v2635, %v4933
      %v4975 = vmul.f32 %v2636, %v4933
      %v4976 = vmul.f32 %v2637, %v4933
      %v4977 = vmul.f32 %v2638, %v4933
      %v4978 = vmul.f32 %v2639, %v4933
      %v4979 = vmul.f32 %v2640, %v4933
      %v4980 = vmul.f32 %v2641, %v4933
      %v4981 = vmul.f32 %v2642, %v4933
      %v4982 = vmul.f32 %v2643, %v4933
      %v4983 = vmul.f32 %v2644, %v4933
      %v4984 = vmul.f32 %v2645, %v4933
      %v4985 = vmul.f32 %v2646, %v4933
      %v4986 = vmul.f32 %v2647, %v4933
      %v4987 = vmul.f32 %v2648, %v4933
      %v4988 = vmul.f32 %v2649, %v4933
      %v4989 = vmul.f32 %v2650, %v4933
      %v4990 = vmul.f32 %v2651, %v4933
      %v4991 = vmul.f32 %v2652, %v4933
      %v4992 = vmul.f32 %v2653, %v4933
      %v4993 = vmul.f32 %v2654, %v4933
      %v4994 = vmul.f32 %v4004, %v4933
      %v4995 = vmul.f32 %v4005, %v4933
      %v4996 = vmul.f32 %v4927, %v4933
      %v4997 = vmul.f32 %v4928, %v4933
      %v4998 = vmul.f32 %v2659, %v4933
      %v4999 = vmul.f32 %v2660, %v4933
      %v5000 = vmul.f32 %v2661, %v4933
      %v5001 = vmul.f32 %v2662, %v4933
      %v5002 = vmul.f32 %v2663, %v4933
      %v5003 = vmul.f32 %v2664, %v4933
      %v5004 = vmul.f32 %v2665, %v4933
      %v5005 = vmul.f32 %v2666, %v4933
      %v5006 = vmul.f32 %v2667, %v4933
      %v5007 = vmul.f32 %v2668, %v4933
      %v5008 = vmul.f32 %v2669, %v4933
      %v5009 = vmul.f32 %v2670, %v4933
      %v5010 = vmul.f32 %v2671, %v4933
      %v5011 = vmul.f32 %v2672, %v4933
      %v5012 = vmul.f32 %v2673, %v4933
      %v5013 = vmul.f32 %v2674, %v4933
      %v5014 = vmul.f32 %v2675, %v4933
      %v5015 = vmul.f32 %v2676, %v4933
      %v5016 = vmul.f32 %v2677, %v4933
      %v5017 = vmul.f32 %v2678, %v4933
      %v5018 = vmul.f32 %v2679, %v4933
      %v5019 = vmul.f32 %v2680, %v4933
      %v5020 = vmul.f32 %v2681, %v4933
      %v5021 = vmul.f32 %v2682, %v4933
      %v5022 = vmul.f32 %v2683, %v4933
      %v5023 = vmul.f32 %v2684, %v4933
      %v5024 = vmul.f32 %v2685, %v4933
      %v5025 = vmul.f32 %v2686, %v4933
      %v5026 = vmul.f32 %v4006, %v4933
      %v5027 = vmul.f32 %v4007, %v4933
      %v5028 = vmul.f32 %v4929, %v4933
      %v5029 = vmul.f32 %v4930, %v4933
      %v5030 = vmul.f32 %v2691, %v4933
      %v5031 = vmul.f32 %v2692, %v4933
      %v5032 = vmul.f32 %v2693, %v4933
      %v5033 = vmul.f32 %v2694, %v4933
      %v5034 = vmul.f32 %v2695, %v4933
      %v5035 = vmul.f32 %v2696, %v4933
      %v5036 = vmul.f32 %v2697, %v4933
      %v5037 = vmul.f32 %v2698, %v4933
      %v5038 = vmul.f32 %v2699, %v4933
      %v5039 = vmul.f32 %v2700, %v4933
      %v5040 = vmul.f32 %v2701, %v4933
      %v5041 = vmul.f32 %v2702, %v4933
      %v5042 = vmul.f32 %v2703, %v4933
      %v5043 = vmul.f32 %v2704, %v4933
      %v5044 = vmul.f32 %v2705, %v4933
      %v5045 = vmul.f32 %v2706, %v4933
      %v5046 = vmul.f32 %v2707, %v4933
      %v5047 = vmul.f32 %v2708, %v4933
      %v5048 = vmul.f32 %v2709, %v4933
      %v5049 = vmul.f32 %v2710, %v4933
      %v5050 = vmul.f32 %v2711, %v4933
      %v5051 = vmul.f32 %v2712, %v4933
      %v5052 = vmul.f32 %v2713, %v4933
      %v5053 = vmul.f32 %v2714, %v4933
      %v5054 = vmul.f32 %v2715, %v4933
      %v5055 = vmul.f32 %v2716, %v4933
      %v5056 = vmul.f32 %v2717, %v4933
      %v5057 = vmul.f32 %v2718, %v4933
      %v5058 = vmul.f32 %v4008, %v4933
      %v5059 = vmul.f32 %v4009, %v4933
      %v5060 = vmul.f32 %v4931, %v4933
      %v5061 = vmul.f32 %v4932, %v4933
      %v5062 = vsel %vm2880, %v4934, 0.0
      %v5063 = vsel %vm2881, %v4935, 0.0
      %v5064 = vsel %vm2882, %v4936, 0.0
      %v5065 = vsel %vm2883, %v4937, 0.0
      %v5066 = vsel %vm2884, %v4938, 0.0
      %v5067 = vsel %vm2885, %v4939, 0.0
      %v5068 = vsel %vm2886, %v4940, 0.0
      %v5069 = vsel %vm2887, %v4941, 0.0
      %v5070 = vsel %vm2888, %v4942, 0.0
      %v5071 = vsel %vm2889, %v4943, 0.0
      %v5072 = vsel %vm2890, %v4944, 0.0
      %v5073 = vsel %vm2891, %v4945, 0.0
      %v5074 = vsel %vm2892, %v4946, 0.0
      %v5075 = vsel %vm2893, %v4947, 0.0
      %v5076 = vsel %vm2894, %v4948, 0.0
      %v5077 = vsel %vm2895, %v4949, 0.0
      %v5078 = vsel %vm2896, %v4950, 0.0
      %v5079 = vsel %vm2897, %v4951, 0.0
      %v5080 = vsel %vm2898, %v4952, 0.0
      %v5081 = vsel %vm2899, %v4953, 0.0
      %v5082 = vsel %vm2900, %v4954, 0.0
      %v5083 = vsel %vm2901, %v4955, 0.0
      %v5084 = vsel %vm2902, %v4956, 0.0
      %v5085 = vsel %vm2903, %v4957, 0.0
      %v5086 = vsel %vm2904, %v4958, 0.0
      %v5087 = vsel %vm2905, %v4959, 0.0
      %v5088 = vsel %vm2906, %v4960, 0.0
      %v5089 = vsel %vm2907, %v4961, 0.0
      %v5090 = vsel %vm2908, %v4962, 0.0
      %v5091 = vsel %vm2909, %v4963, 0.0
      %v5092 = vsel %vm2910, %v4964, 0.0
      %v5093 = vsel %vm2911, %v4965, 0.0
      %v5094 = vsel %vm2880, %v4966, 0.0
      %v5095 = vsel %vm2881, %v4967, 0.0
      %v5096 = vsel %vm2882, %v4968, 0.0
      %v5097 = vsel %vm2883, %v4969, 0.0
      %v5098 = vsel %vm2884, %v4970, 0.0
      %v5099 = vsel %vm2885, %v4971, 0.0
      %v5100 = vsel %vm2886, %v4972, 0.0
      %v5101 = vsel %vm2887, %v4973, 0.0
      %v5102 = vsel %vm2888, %v4974, 0.0
      %v5103 = vsel %vm2889, %v4975, 0.0
      %v5104 = vsel %vm2890, %v4976, 0.0
      %v5105 = vsel %vm2891, %v4977, 0.0
      %v5106 = vsel %vm2892, %v4978, 0.0
      %v5107 = vsel %vm2893, %v4979, 0.0
      %v5108 = vsel %vm2894, %v4980, 0.0
      %v5109 = vsel %vm2895, %v4981, 0.0
      %v5110 = vsel %vm2896, %v4982, 0.0
      %v5111 = vsel %vm2897, %v4983, 0.0
      %v5112 = vsel %vm2898, %v4984, 0.0
      %v5113 = vsel %vm2899, %v4985, 0.0
      %v5114 = vsel %vm2900, %v4986, 0.0
      %v5115 = vsel %vm2901, %v4987, 0.0
      %v5116 = vsel %vm2902, %v4988, 0.0
      %v5117 = vsel %vm2903, %v4989, 0.0
      %v5118 = vsel %vm2904, %v4990, 0.0
      %v5119 = vsel %vm2905, %v4991, 0.0
      %v5120 = vsel %vm2906, %v4992, 0.0
      %v5121 = vsel %vm2907, %v4993, 0.0
      %v5122 = vsel %vm2908, %v4994, 0.0
      %v5123 = vsel %vm2909, %v4995, 0.0
      %v5124 = vsel %vm2910, %v4996, 0.0
      %v5125 = vsel %vm2911, %v4997, 0.0
      %v5126 = vsel %vm2880, %v4998, 0.0
      %v5127 = vsel %vm2881, %v4999, 0.0
      %v5128 = vsel %vm2882, %v5000, 0.0
      %v5129 = vsel %vm2883, %v5001, 0.0
      %v5130 = vsel %vm2884, %v5002, 0.0
      %v5131 = vsel %vm2885, %v5003, 0.0
      %v5132 = vsel %vm2886, %v5004, 0.0
      %v5133 = vsel %vm2887, %v5005, 0.0
      %v5134 = vsel %vm2888, %v5006, 0.0
      %v5135 = vsel %vm2889, %v5007, 0.0
      %v5136 = vsel %vm2890, %v5008, 0.0
      %v5137 = vsel %vm2891, %v5009, 0.0
      %v5138 = vsel %vm2892, %v5010, 0.0
      %v5139 = vsel %vm2893, %v5011, 0.0
      %v5140 = vsel %vm2894, %v5012, 0.0
      %v5141 = vsel %vm2895, %v5013, 0.0
      %v5142 = vsel %vm2896, %v5014, 0.0
      %v5143 = vsel %vm2897, %v5015, 0.0
      %v5144 = vsel %vm2898, %v5016, 0.0
      %v5145 = vsel %vm2899, %v5017, 0.0
      %v5146 = vsel %vm2900, %v5018, 0.0
      %v5147 = vsel %vm2901, %v5019, 0.0
      %v5148 = vsel %vm2902, %v5020, 0.0
      %v5149 = vsel %vm2903, %v5021, 0.0
      %v5150 = vsel %vm2904, %v5022, 0.0
      %v5151 = vsel %vm2905, %v5023, 0.0
      %v5152 = vsel %vm2906, %v5024, 0.0
      %v5153 = vsel %vm2907, %v5025, 0.0
      %v5154 = vsel %vm2908, %v5026, 0.0
      %v5155 = vsel %vm2909, %v5027, 0.0
      %v5156 = vsel %vm2910, %v5028, 0.0
      %v5157 = vsel %vm2911, %v5029, 0.0
      %v5158 = vsel %vm2880, %v5030, 0.0
      %v5159 = vsel %vm2881, %v5031, 0.0
      %v5160 = vsel %vm2882, %v5032, 0.0
      %v5161 = vsel %vm2883, %v5033, 0.0
      %v5162 = vsel %vm2884, %v5034, 0.0
      %v5163 = vsel %vm2885, %v5035, 0.0
      %v5164 = vsel %vm2886, %v5036, 0.0
      %v5165 = vsel %vm2887, %v5037, 0.0
      %v5166 = vsel %vm2888, %v5038, 0.0
      %v5167 = vsel %vm2889, %v5039, 0.0
      %v5168 = vsel %vm2890, %v5040, 0.0
      %v5169 = vsel %vm2891, %v5041, 0.0
      %v5170 = vsel %vm2892, %v5042, 0.0
      %v5171 = vsel %vm2893, %v5043, 0.0
      %v5172 = vsel %vm2894, %v5044, 0.0
      %v5173 = vsel %vm2895, %v5045, 0.0
      %v5174 = vsel %vm2896, %v5046, 0.0
      %v5175 = vsel %vm2897, %v5047, 0.0
      %v5176 = vsel %vm2898, %v5048, 0.0
      %v5177 = vsel %vm2899, %v5049, 0.0
      %v5178 = vsel %vm2900, %v5050, 0.0
      %v5179 = vsel %vm2901, %v5051, 0.0
      %v5180 = vsel %vm2902, %v5052, 0.0
      %v5181 = vsel %vm2903, %v5053, 0.0
      %v5182 = vsel %vm2904, %v5054, 0.0
      %v5183 = vsel %vm2905, %v5055, 0.0
      %v5184 = vsel %vm2906, %v5056, 0.0
      %v5185 = vsel %vm2907, %v5057, 0.0
      %v5186 = vsel %vm2908, %v5058, 0.0
      %v5187 = vsel %vm2909, %v5059, 0.0
      %v5188 = vsel %vm2910, %v5060, 0.0
      %v5189 = vsel %vm2911, %v5061, 0.0
      %v5190 = vld [vmem:[#allocation2 + $0x111] sm:$0xff]
      %v5191 = vld [vmem:[#allocation2 + $0x119] sm:$0xff]
      %v5192 = vld [vmem:[#allocation2 + $0x239] sm:$0xff]
      %v5193 = vld [vmem:[#allocation2 + $0x241] sm:$0xff]
      %v5194 = vld [vmem:[#allocation2 + $0x361] sm:$0xff]
      %v5195 = vld [vmem:[#allocation2 + $0x369] sm:$0xff]
      %v5196 = vld [vmem:[#allocation2 + $0x489] sm:$0xff]
      %v5197 = vld [vmem:[#allocation2 + $0x491] sm:$0xff]
      %v5198 = vperm.slane %v2589, 7
      %v5199 = vmul.f32 %v3044, %v5198
      %v5200 = vmul.f32 %v3045, %v5198
      %v5201 = vmul.f32 %v3046, %v5198
      %v5202 = vmul.f32 %v3047, %v5198
      %v5203 = vmul.f32 %v3048, %v5198
      %v5204 = vmul.f32 %v3049, %v5198
      %v5205 = vmul.f32 %v3050, %v5198
      %v5206 = vmul.f32 %v3051, %v5198
      %v5207 = vmul.f32 %v3052, %v5198
      %v5208 = vmul.f32 %v3053, %v5198
      %v5209 = vmul.f32 %v3054, %v5198
      %v5210 = vmul.f32 %v3055, %v5198
      %v5211 = vmul.f32 %v3056, %v5198
      %v5212 = vmul.f32 %v3057, %v5198
      %v5213 = vmul.f32 %v3058, %v5198
      %v5214 = vmul.f32 %v3059, %v5198
      %v5215 = vmul.f32 %v3060, %v5198
      %v5216 = vmul.f32 %v3061, %v5198
      %v5217 = vmul.f32 %v3062, %v5198
      %v5218 = vmul.f32 %v3063, %v5198
      %v5219 = vmul.f32 %v3064, %v5198
      %v5220 = vmul.f32 %v3065, %v5198
      %v5221 = vmul.f32 %v3066, %v5198
      %v5222 = vmul.f32 %v3067, %v5198
      %v5223 = vmul.f32 %v3068, %v5198
      %v5224 = vmul.f32 %v3069, %v5198
      %v5225 = vmul.f32 %v3070, %v5198
      %v5226 = vmul.f32 %v3071, %v5198
      %v5227 = vmul.f32 %v4267, %v5198
      %v5228 = vmul.f32 %v4268, %v5198
      %v5229 = vmul.f32 %v5190, %v5198
      %v5230 = vmul.f32 %v5191, %v5198
      %v5231 = vmul.f32 %v3076, %v5198
      %v5232 = vmul.f32 %v3077, %v5198
      %v5233 = vmul.f32 %v3078, %v5198
      %v5234 = vmul.f32 %v3079, %v5198
      %v5235 = vmul.f32 %v3080, %v5198
      %v5236 = vmul.f32 %v3081, %v5198
      %v5237 = vmul.f32 %v3082, %v5198
      %v5238 = vmul.f32 %v3083, %v5198
      %v5239 = vmul.f32 %v3084, %v5198
      %v5240 = vmul.f32 %v3085, %v5198
      %v5241 = vmul.f32 %v3086, %v5198
      %v5242 = vmul.f32 %v3087, %v5198
      %v5243 = vmul.f32 %v3088, %v5198
      %v5244 = vmul.f32 %v3089, %v5198
      %v5245 = vmul.f32 %v3090, %v5198
      %v5246 = vmul.f32 %v3091, %v5198
      %v5247 = vmul.f32 %v3092, %v5198
      %v5248 = vmul.f32 %v3093, %v5198
      %v5249 = vmul.f32 %v3094, %v5198
      %v5250 = vmul.f32 %v3095, %v5198
      %v5251 = vmul.f32 %v3096, %v5198
      %v5252 = vmul.f32 %v3097, %v5198
      %v5253 = vmul.f32 %v3098, %v5198
      %v5254 = vmul.f32 %v3099, %v5198
      %v5255 = vmul.f32 %v3100, %v5198
      %v5256 = vmul.f32 %v3101, %v5198
      %v5257 = vmul.f32 %v3102, %v5198
      %v5258 = vmul.f32 %v3103, %v5198
      %v5259 = vmul.f32 %v4269, %v5198
      %v5260 = vmul.f32 %v4270, %v5198
      %v5261 = vmul.f32 %v5192, %v5198
      %v5262 = vmul.f32 %v5193, %v5198
      %v5263 = vmul.f32 %v3108, %v5198
      %v5264 = vmul.f32 %v3109, %v5198
      %v5265 = vmul.f32 %v3110, %v5198
      %v5266 = vmul.f32 %v3111, %v5198
      %v5267 = vmul.f32 %v3112, %v5198
      %v5268 = vmul.f32 %v3113, %v5198
      %v5269 = vmul.f32 %v3114, %v5198
      %v5270 = vmul.f32 %v3115, %v5198
      %v5271 = vmul.f32 %v3116, %v5198
      %v5272 = vmul.f32 %v3117, %v5198
      %v5273 = vmul.f32 %v3118, %v5198
      %v5274 = vmul.f32 %v3119, %v5198
      %v5275 = vmul.f32 %v3120, %v5198
      %v5276 = vmul.f32 %v3121, %v5198
      %v5277 = vmul.f32 %v3122, %v5198
      %v5278 = vmul.f32 %v3123, %v5198
      %v5279 = vmul.f32 %v3124, %v5198
      %v5280 = vmul.f32 %v3125, %v5198
      %v5281 = vmul.f32 %v3126, %v5198
      %v5282 = vmul.f32 %v3127, %v5198
      %v5283 = vmul.f32 %v3128, %v5198
      %v5284 = vmul.f32 %v3129, %v5198
      %v5285 = vmul.f32 %v3130, %v5198
      %v5286 = vmul.f32 %v3131, %v5198
      %v5287 = vmul.f32 %v3132, %v5198
      %v5288 = vmul.f32 %v3133, %v5198
      %v5289 = vmul.f32 %v3134, %v5198
      %v5290 = vmul.f32 %v3135, %v5198
      %v5291 = vmul.f32 %v4271, %v5198
      %v5292 = vmul.f32 %v4272, %v5198
      %v5293 = vmul.f32 %v5194, %v5198
      %v5294 = vmul.f32 %v5195, %v5198
      %v5295 = vmul.f32 %v3140, %v5198
      %v5296 = vmul.f32 %v3141, %v5198
      %v5297 = vmul.f32 %v3142, %v5198
      %v5298 = vmul.f32 %v3143, %v5198
      %v5299 = vmul.f32 %v3144, %v5198
      %v5300 = vmul.f32 %v3145, %v5198
      %v5301 = vmul.f32 %v3146, %v5198
      %v5302 = vmul.f32 %v3147, %v5198
      %v5303 = vmul.f32 %v3148, %v5198
      %v5304 = vmul.f32 %v3149, %v5198
      %v5305 = vmul.f32 %v3150, %v5198
      %v5306 = vmul.f32 %v3151, %v5198
      %v5307 = vmul.f32 %v3152, %v5198
      %v5308 = vmul.f32 %v3153, %v5198
      %v5309 = vmul.f32 %v3154, %v5198
      %v5310 = vmul.f32 %v3155, %v5198
      %v5311 = vmul.f32 %v3156, %v5198
      %v5312 = vmul.f32 %v3157, %v5198
      %v5313 = vmul.f32 %v3158, %v5198
      %v5314 = vmul.f32 %v3159, %v5198
      %v5315 = vmul.f32 %v3160, %v5198
      %v5316 = vmul.f32 %v3161, %v5198
      %v5317 = vmul.f32 %v3162, %v5198
      %v5318 = vmul.f32 %v3163, %v5198
      %v5319 = vmul.f32 %v3164, %v5198
      %v5320 = vmul.f32 %v3165, %v5198
      %v5321 = vmul.f32 %v3166, %v5198
      %v5322 = vmul.f32 %v3167, %v5198
      %v5323 = vmul.f32 %v4273, %v5198
      %v5324 = vmul.f32 %v4274, %v5198
      %v5325 = vmul.f32 %v5196, %v5198
      %v5326 = vmul.f32 %v5197, %v5198
      %v5327 = vadd.f32 %v5062, %v5199
      %v5328 = vadd.f32 %v5063, %v5200
      %v5329 = vadd.f32 %v5064, %v5201
      %v5330 = vadd.f32 %v5065, %v5202
      %v5331 = vadd.f32 %v5066, %v5203
      %v5332 = vadd.f32 %v5067, %v5204
      %v5333 = vadd.f32 %v5068, %v5205
      %v5334 = vadd.f32 %v5069, %v5206
      %v5335 = vadd.f32 %v5070, %v5207
      %v5336 = vadd.f32 %v5071, %v5208
      %v5337 = vadd.f32 %v5072, %v5209
      %v5338 = vadd.f32 %v5073, %v5210
      %v5339 = vadd.f32 %v5074, %v5211
      %v5340 = vadd.f32 %v5075, %v5212
      %v5341 = vadd.f32 %v5076, %v5213
      %v5342 = vadd.f32 %v5077, %v5214
      %v5343 = vadd.f32 %v5078, %v5215
      %v5344 = vadd.f32 %v5079, %v5216
      %v5345 = vadd.f32 %v5080, %v5217
      %v5346 = vadd.f32 %v5081, %v5218
      %v5347 = vadd.f32 %v5082, %v5219
      %v5348 = vadd.f32 %v5083, %v5220
      %v5349 = vadd.f32 %v5084, %v5221
      %v5350 = vadd.f32 %v5085, %v5222
      %v5351 = vadd.f32 %v5086, %v5223
      %v5352 = vadd.f32 %v5087, %v5224
      %v5353 = vadd.f32 %v5088, %v5225
      %v5354 = vadd.f32 %v5089, %v5226
      %v5355 = vadd.f32 %v5090, %v5227
      %v5356 = vadd.f32 %v5091, %v5228
      %v5357 = vadd.f32 %v5092, %v5229
      %v5358 = vadd.f32 %v5093, %v5230
      %v5359 = vadd.f32 %v5094, %v5231
      %v5360 = vadd.f32 %v5095, %v5232
      %v5361 = vadd.f32 %v5096, %v5233
      %v5362 = vadd.f32 %v5097, %v5234
      %v5363 = vadd.f32 %v5098, %v5235
      %v5364 = vadd.f32 %v5099, %v5236
      %v5365 = vadd.f32 %v5100, %v5237
      %v5366 = vadd.f32 %v5101, %v5238
      %v5367 = vadd.f32 %v5102, %v5239
      %v5368 = vadd.f32 %v5103, %v5240
      %v5369 = vadd.f32 %v5104, %v5241
      %v5370 = vadd.f32 %v5105, %v5242
      %v5371 = vadd.f32 %v5106, %v5243
      %v5372 = vadd.f32 %v5107, %v5244
      %v5373 = vadd.f32 %v5108, %v5245
      %v5374 = vadd.f32 %v5109, %v5246
      %v5375 = vadd.f32 %v5110, %v5247
      %v5376 = vadd.f32 %v5111, %v5248
      %v5377 = vadd.f32 %v5112, %v5249
      %v5378 = vadd.f32 %v5113, %v5250
      %v5379 = vadd.f32 %v5114, %v5251
      %v5380 = vadd.f32 %v5115, %v5252
      %v5381 = vadd.f32 %v5116, %v5253
      %v5382 = vadd.f32 %v5117, %v5254
      %v5383 = vadd.f32 %v5118, %v5255
      %v5384 = vadd.f32 %v5119, %v5256
      %v5385 = vadd.f32 %v5120, %v5257
      %v5386 = vadd.f32 %v5121, %v5258
      %v5387 = vadd.f32 %v5122, %v5259
      %v5388 = vadd.f32 %v5123, %v5260
      %v5389 = vadd.f32 %v5124, %v5261
      %v5390 = vadd.f32 %v5125, %v5262
      %v5391 = vadd.f32 %v5126, %v5263
      %v5392 = vadd.f32 %v5127, %v5264
      %v5393 = vadd.f32 %v5128, %v5265
      %v5394 = vadd.f32 %v5129, %v5266
      %v5395 = vadd.f32 %v5130, %v5267
      %v5396 = vadd.f32 %v5131, %v5268
      %v5397 = vadd.f32 %v5132, %v5269
      %v5398 = vadd.f32 %v5133, %v5270
      %v5399 = vadd.f32 %v5134, %v5271
      %v5400 = vadd.f32 %v5135, %v5272
      %v5401 = vadd.f32 %v5136, %v5273
      %v5402 = vadd.f32 %v5137, %v5274
      %v5403 = vadd.f32 %v5138, %v5275
      %v5404 = vadd.f32 %v5139, %v5276
      %v5405 = vadd.f32 %v5140, %v5277
      %v5406 = vadd.f32 %v5141, %v5278
      %v5407 = vadd.f32 %v5142, %v5279
      %v5408 = vadd.f32 %v5143, %v5280
      %v5409 = vadd.f32 %v5144, %v5281
      %v5410 = vadd.f32 %v5145, %v5282
      %v5411 = vadd.f32 %v5146, %v5283
      %v5412 = vadd.f32 %v5147, %v5284
      %v5413 = vadd.f32 %v5148, %v5285
      %v5414 = vadd.f32 %v5149, %v5286
      %v5415 = vadd.f32 %v5150, %v5287
      %v5416 = vadd.f32 %v5151, %v5288
      %v5417 = vadd.f32 %v5152, %v5289
      %v5418 = vadd.f32 %v5153, %v5290
      %v5419 = vadd.f32 %v5154, %v5291
      %v5420 = vadd.f32 %v5155, %v5292
      %v5421 = vadd.f32 %v5156, %v5293
      %v5422 = vadd.f32 %v5157, %v5294
      %v5423 = vadd.f32 %v5158, %v5295
      %v5424 = vadd.f32 %v5159, %v5296
      %v5425 = vadd.f32 %v5160, %v5297
      %v5426 = vadd.f32 %v5161, %v5298
      %v5427 = vadd.f32 %v5162, %v5299
      %v5428 = vadd.f32 %v5163, %v5300
      %v5429 = vadd.f32 %v5164, %v5301
      %v5430 = vadd.f32 %v5165, %v5302
      %v5431 = vadd.f32 %v5166, %v5303
      %v5432 = vadd.f32 %v5167, %v5304
      %v5433 = vadd.f32 %v5168, %v5305
      %v5434 = vadd.f32 %v5169, %v5306
      %v5435 = vadd.f32 %v5170, %v5307
      %v5436 = vadd.f32 %v5171, %v5308
      %v5437 = vadd.f32 %v5172, %v5309
      %v5438 = vadd.f32 %v5173, %v5310
      %v5439 = vadd.f32 %v5174, %v5311
      %v5440 = vadd.f32 %v5175, %v5312
      %v5441 = vadd.f32 %v5176, %v5313
      %v5442 = vadd.f32 %v5177, %v5314
      %v5443 = vadd.f32 %v5178, %v5315
      %v5444 = vadd.f32 %v5179, %v5316
      %v5445 = vadd.f32 %v5180, %v5317
      %v5446 = vadd.f32 %v5181, %v5318
      %v5447 = vadd.f32 %v5182, %v5319
      %v5448 = vadd.f32 %v5183, %v5320
      %v5449 = vadd.f32 %v5184, %v5321
      %v5450 = vadd.f32 %v5185, %v5322
      %v5451 = vadd.f32 %v5186, %v5323
      %v5452 = vadd.f32 %v5187, %v5324
      %v5453 = vadd.f32 %v5188, %v5325
      %v5454 = vadd.f32 %v5189, %v5326
      %v5455 = vld [vmem:[#allocation2 + $0x112] sm:$0xff]
      %v5456 = vld [vmem:[#allocation2 + $0x11a] sm:$0xff]
      %v5457 = vld [vmem:[#allocation2 + $0x23a] sm:$0xff]
      %v5458 = vld [vmem:[#allocation2 + $0x242] sm:$0xff]
      %v5459 = vld [vmem:[#allocation2 + $0x362] sm:$0xff]
      %v5460 = vld [vmem:[#allocation2 + $0x36a] sm:$0xff]
      %v5461 = vld [vmem:[#allocation2 + $0x48a] sm:$0xff]
      %v5462 = vld [vmem:[#allocation2 + $0x492] sm:$0xff]
      %v5463 = vperm.slane %v2590, 0
      %v5464 = vmul.f32 %v3429, %v5463
      %v5465 = vmul.f32 %v3430, %v5463
      %v5466 = vmul.f32 %v3431, %v5463
      %v5467 = vmul.f32 %v3432, %v5463
      %v5468 = vmul.f32 %v3433, %v5463
      %v5469 = vmul.f32 %v3434, %v5463
      %v5470 = vmul.f32 %v3435, %v5463
      %v5471 = vmul.f32 %v3436, %v5463
      %v5472 = vmul.f32 %v3437, %v5463
      %v5473 = vmul.f32 %v3438, %v5463
      %v5474 = vmul.f32 %v3439, %v5463
      %v5475 = vmul.f32 %v3440, %v5463
      %v5476 = vmul.f32 %v3441, %v5463
      %v5477 = vmul.f32 %v3442, %v5463
      %v5478 = vmul.f32 %v3443, %v5463
      %v5479 = vmul.f32 %v3444, %v5463
      %v5480 = vmul.f32 %v3445, %v5463
      %v5481 = vmul.f32 %v3446, %v5463
      %v5482 = vmul.f32 %v3447, %v5463
      %v5483 = vmul.f32 %v3448, %v5463
      %v5484 = vmul.f32 %v3449, %v5463
      %v5485 = vmul.f32 %v3450, %v5463
      %v5486 = vmul.f32 %v3451, %v5463
      %v5487 = vmul.f32 %v3452, %v5463
      %v5488 = vmul.f32 %v3453, %v5463
      %v5489 = vmul.f32 %v3454, %v5463
      %v5490 = vmul.f32 %v3455, %v5463
      %v5491 = vmul.f32 %v3456, %v5463
      %v5492 = vmul.f32 %v4532, %v5463
      %v5493 = vmul.f32 %v4533, %v5463
      %v5494 = vmul.f32 %v5455, %v5463
      %v5495 = vmul.f32 %v5456, %v5463
      %v5496 = vmul.f32 %v3461, %v5463
      %v5497 = vmul.f32 %v3462, %v5463
      %v5498 = vmul.f32 %v3463, %v5463
      %v5499 = vmul.f32 %v3464, %v5463
      %v5500 = vmul.f32 %v3465, %v5463
      %v5501 = vmul.f32 %v3466, %v5463
      %v5502 = vmul.f32 %v3467, %v5463
      %v5503 = vmul.f32 %v3468, %v5463
      %v5504 = vmul.f32 %v3469, %v5463
      %v5505 = vmul.f32 %v3470, %v5463
      %v5506 = vmul.f32 %v3471, %v5463
      %v5507 = vmul.f32 %v3472, %v5463
      %v5508 = vmul.f32 %v3473, %v5463
      %v5509 = vmul.f32 %v3474, %v5463
      %v5510 = vmul.f32 %v3475, %v5463
      %v5511 = vmul.f32 %v3476, %v5463
      %v5512 = vmul.f32 %v3477, %v5463
      %v5513 = vmul.f32 %v3478, %v5463
      %v5514 = vmul.f32 %v3479, %v5463
      %v5515 = vmul.f32 %v3480, %v5463
      %v5516 = vmul.f32 %v3481, %v5463
      %v5517 = vmul.f32 %v3482, %v5463
      %v5518 = vmul.f32 %v3483, %v5463
      %v5519 = vmul.f32 %v3484, %v5463
      %v5520 = vmul.f32 %v3485, %v5463
      %v5521 = vmul.f32 %v3486, %v5463
      %v5522 = vmul.f32 %v3487, %v5463
      %v5523 = vmul.f32 %v3488, %v5463
      %v5524 = vmul.f32 %v4534, %v5463
      %v5525 = vmul.f32 %v4535, %v5463
      %v5526 = vmul.f32 %v5457, %v5463
      %v5527 = vmul.f32 %v5458, %v5463
      %v5528 = vmul.f32 %v3493, %v5463
      %v5529 = vmul.f32 %v3494, %v5463
      %v5530 = vmul.f32 %v3495, %v5463
      %v5531 = vmul.f32 %v3496, %v5463
      %v5532 = vmul.f32 %v3497, %v5463
      %v5533 = vmul.f32 %v3498, %v5463
      %v5534 = vmul.f32 %v3499, %v5463
      %v5535 = vmul.f32 %v3500, %v5463
      %v5536 = vmul.f32 %v3501, %v5463
      %v5537 = vmul.f32 %v3502, %v5463
      %v5538 = vmul.f32 %v3503, %v5463
      %v5539 = vmul.f32 %v3504, %v5463
      %v5540 = vmul.f32 %v3505, %v5463
      %v5541 = vmul.f32 %v3506, %v5463
      %v5542 = vmul.f32 %v3507, %v5463
      %v5543 = vmul.f32 %v3508, %v5463
      %v5544 = vmul.f32 %v3509, %v5463
      %v5545 = vmul.f32 %v3510, %v5463
      %v5546 = vmul.f32 %v3511, %v5463
      %v5547 = vmul.f32 %v3512, %v5463
      %v5548 = vmul.f32 %v3513, %v5463
      %v5549 = vmul.f32 %v3514, %v5463
      %v5550 = vmul.f32 %v3515, %v5463
      %v5551 = vmul.f32 %v3516, %v5463
      %v5552 = vmul.f32 %v3517, %v5463
      %v5553 = vmul.f32 %v3518, %v5463
      %v5554 = vmul.f32 %v3519, %v5463
      %v5555 = vmul.f32 %v3520, %v5463
      %v5556 = vmul.f32 %v4536, %v5463
      %v5557 = vmul.f32 %v4537, %v5463
      %v5558 = vmul.f32 %v5459, %v5463
      %v5559 = vmul.f32 %v5460, %v5463
      %v5560 = vmul.f32 %v3525, %v5463
      %v5561 = vmul.f32 %v3526, %v5463
      %v5562 = vmul.f32 %v3527, %v5463
      %v5563 = vmul.f32 %v3528, %v5463
      %v5564 = vmul.f32 %v3529, %v5463
      %v5565 = vmul.f32 %v3530, %v5463
      %v5566 = vmul.f32 %v3531, %v5463
      %v5567 = vmul.f32 %v3532, %v5463
      %v5568 = vmul.f32 %v3533, %v5463
      %v5569 = vmul.f32 %v3534, %v5463
      %v5570 = vmul.f32 %v3535, %v5463
      %v5571 = vmul.f32 %v3536, %v5463
      %v5572 = vmul.f32 %v3537, %v5463
      %v5573 = vmul.f32 %v3538, %v5463
      %v5574 = vmul.f32 %v3539, %v5463
      %v5575 = vmul.f32 %v3540, %v5463
      %v5576 = vmul.f32 %v3541, %v5463
      %v5577 = vmul.f32 %v3542, %v5463
      %v5578 = vmul.f32 %v3543, %v5463
      %v5579 = vmul.f32 %v3544, %v5463
      %v5580 = vmul.f32 %v3545, %v5463
      %v5581 = vmul.f32 %v3546, %v5463
      %v5582 = vmul.f32 %v3547, %v5463
      %v5583 = vmul.f32 %v3548, %v5463
      %v5584 = vmul.f32 %v3549, %v5463
      %v5585 = vmul.f32 %v3550, %v5463
      %v5586 = vmul.f32 %v3551, %v5463
      %v5587 = vmul.f32 %v3552, %v5463
      %v5588 = vmul.f32 %v4538, %v5463
      %v5589 = vmul.f32 %v4539, %v5463
      %v5590 = vmul.f32 %v5461, %v5463
      %v5591 = vmul.f32 %v5462, %v5463
      %v5592 = vsel %vm3714, %v5464, 0.0
      %v5593 = vsel %vm3715, %v5465, 0.0
      %v5594 = vsel %vm3716, %v5466, 0.0
      %v5595 = vsel %vm3717, %v5467, 0.0
      %v5596 = vsel %vm3718, %v5468, 0.0
      %v5597 = vsel %vm3719, %v5469, 0.0
      %v5598 = vsel %vm3720, %v5470, 0.0
      %v5599 = vsel %vm3721, %v5471, 0.0
      %v5600 = vsel %vm3722, %v5472, 0.0
      %v5601 = vsel %vm3723, %v5473, 0.0
      %v5602 = vsel %vm3724, %v5474, 0.0
      %v5603 = vsel %vm3725, %v5475, 0.0
      %v5604 = vsel %vm3726, %v5476, 0.0
      %v5605 = vsel %vm3727, %v5477, 0.0
      %v5606 = vsel %vm3728, %v5478, 0.0
      %v5607 = vsel %vm3729, %v5479, 0.0
      %v5608 = vsel %vm3730, %v5480, 0.0
      %v5609 = vsel %vm3731, %v5481, 0.0
      %v5610 = vsel %vm3732, %v5482, 0.0
      %v5611 = vsel %vm3733, %v5483, 0.0
      %v5612 = vsel %vm3734, %v5484, 0.0
      %v5613 = vsel %vm3735, %v5485, 0.0
      %v5614 = vsel %vm3736, %v5486, 0.0
      %v5615 = vsel %vm3737, %v5487, 0.0
      %v5616 = vsel %vm3738, %v5488, 0.0
      %v5617 = vsel %vm3739, %v5489, 0.0
      %v5618 = vsel %vm3740, %v5490, 0.0
      %v5619 = vsel %vm3741, %v5491, 0.0
      %v5620 = vsel %vm3742, %v5492, 0.0
      %v5621 = vsel %vm3743, %v5493, 0.0
      %v5622 = vsel %vm3744, %v5494, 0.0
      %v5623 = vsel %vm3745, %v5495, 0.0
      %v5624 = vsel %vm3714, %v5496, 0.0
      %v5625 = vsel %vm3715, %v5497, 0.0
      %v5626 = vsel %vm3716, %v5498, 0.0
      %v5627 = vsel %vm3717, %v5499, 0.0
      %v5628 = vsel %vm3718, %v5500, 0.0
      %v5629 = vsel %vm3719, %v5501, 0.0
      %v5630 = vsel %vm3720, %v5502, 0.0
      %v5631 = vsel %vm3721, %v5503, 0.0
      %v5632 = vsel %vm3722, %v5504, 0.0
      %v5633 = vsel %vm3723, %v5505, 0.0
      %v5634 = vsel %vm3724, %v5506, 0.0
      %v5635 = vsel %vm3725, %v5507, 0.0
      %v5636 = vsel %vm3726, %v5508, 0.0
      %v5637 = vsel %vm3727, %v5509, 0.0
      %v5638 = vsel %vm3728, %v5510, 0.0
      %v5639 = vsel %vm3729, %v5511, 0.0
      %v5640 = vsel %vm3730, %v5512, 0.0
      %v5641 = vsel %vm3731, %v5513, 0.0
      %v5642 = vsel %vm3732, %v5514, 0.0
      %v5643 = vsel %vm3733, %v5515, 0.0
      %v5644 = vsel %vm3734, %v5516, 0.0
      %v5645 = vsel %vm3735, %v5517, 0.0
      %v5646 = vsel %vm3736, %v5518, 0.0
      %v5647 = vsel %vm3737, %v5519, 0.0
      %v5648 = vsel %vm3738, %v5520, 0.0
      %v5649 = vsel %vm3739, %v5521, 0.0
      %v5650 = vsel %vm3740, %v5522, 0.0
      %v5651 = vsel %vm3741, %v5523, 0.0
      %v5652 = vsel %vm3742, %v5524, 0.0
      %v5653 = vsel %vm3743, %v5525, 0.0
      %v5654 = vsel %vm3744, %v5526, 0.0
      %v5655 = vsel %vm3745, %v5527, 0.0
      %v5656 = vsel %vm3714, %v5528, 0.0
      %v5657 = vsel %vm3715, %v5529, 0.0
      %v5658 = vsel %vm3716, %v5530, 0.0
      %v5659 = vsel %vm3717, %v5531, 0.0
      %v5660 = vsel %vm3718, %v5532, 0.0
      %v5661 = vsel %vm3719, %v5533, 0.0
      %v5662 = vsel %vm3720, %v5534, 0.0
      %v5663 = vsel %vm3721, %v5535, 0.0
      %v5664 = vsel %vm3722, %v5536, 0.0
      %v5665 = vsel %vm3723, %v5537, 0.0
      %v5666 = vsel %vm3724, %v5538, 0.0
      %v5667 = vsel %vm3725, %v5539, 0.0
      %v5668 = vsel %vm3726, %v5540, 0.0
      %v5669 = vsel %vm3727, %v5541, 0.0
      %v5670 = vsel %vm3728, %v5542, 0.0
      %v5671 = vsel %vm3729, %v5543, 0.0
      %v5672 = vsel %vm3730, %v5544, 0.0
      %v5673 = vsel %vm3731, %v5545, 0.0
      %v5674 = vsel %vm3732, %v5546, 0.0
      %v5675 = vsel %vm3733, %v5547, 0.0
      %v5676 = vsel %vm3734, %v5548, 0.0
      %v5677 = vsel %vm3735, %v5549, 0.0
      %v5678 = vsel %vm3736, %v5550, 0.0
      %v5679 = vsel %vm3737, %v5551, 0.0
      %v5680 = vsel %vm3738, %v5552, 0.0
      %v5681 = vsel %vm3739, %v5553, 0.0
      %v5682 = vsel %vm3740, %v5554, 0.0
      %v5683 = vsel %vm3741, %v5555, 0.0
      %v5684 = vsel %vm3742, %v5556, 0.0
      %v5685 = vsel %vm3743, %v5557, 0.0
      %v5686 = vsel %vm3744, %v5558, 0.0
      %v5687 = vsel %vm3745, %v5559, 0.0
      %v5688 = vsel %vm3714, %v5560, 0.0
      %v5689 = vsel %vm3715, %v5561, 0.0
      %v5690 = vsel %vm3716, %v5562, 0.0
      %v5691 = vsel %vm3717, %v5563, 0.0
      %v5692 = vsel %vm3718, %v5564, 0.0
      %v5693 = vsel %vm3719, %v5565, 0.0
      %v5694 = vsel %vm3720, %v5566, 0.0
      %v5695 = vsel %vm3721, %v5567, 0.0
      %v5696 = vsel %vm3722, %v5568, 0.0
      %v5697 = vsel %vm3723, %v5569, 0.0
      %v5698 = vsel %vm3724, %v5570, 0.0
      %v5699 = vsel %vm3725, %v5571, 0.0
      %v5700 = vsel %vm3726, %v5572, 0.0
      %v5701 = vsel %vm3727, %v5573, 0.0
      %v5702 = vsel %vm3728, %v5574, 0.0
      %v5703 = vsel %vm3729, %v5575, 0.0
      %v5704 = vsel %vm3730, %v5576, 0.0
      %v5705 = vsel %vm3731, %v5577, 0.0
      %v5706 = vsel %vm3732, %v5578, 0.0
      %v5707 = vsel %vm3733, %v5579, 0.0
      %v5708 = vsel %vm3734, %v5580, 0.0
      %v5709 = vsel %vm3735, %v5581, 0.0
      %v5710 = vsel %vm3736, %v5582, 0.0
      %v5711 = vsel %vm3737, %v5583, 0.0
      %v5712 = vsel %vm3738, %v5584, 0.0
      %v5713 = vsel %vm3739, %v5585, 0.0
      %v5714 = vsel %vm3740, %v5586, 0.0
      %v5715 = vsel %vm3741, %v5587, 0.0
      %v5716 = vsel %vm3742, %v5588, 0.0
      %v5717 = vsel %vm3743, %v5589, 0.0
      %v5718 = vsel %vm3744, %v5590, 0.0
      %v5719 = vsel %vm3745, %v5591, 0.0
      %v5720 = vadd.f32 %v5327, %v5592
      %v5721 = vadd.f32 %v5328, %v5593
      %v5722 = vadd.f32 %v5329, %v5594
      %v5723 = vadd.f32 %v5330, %v5595
      %v5724 = vadd.f32 %v5331, %v5596
      %v5725 = vadd.f32 %v5332, %v5597
      %v5726 = vadd.f32 %v5333, %v5598
      %v5727 = vadd.f32 %v5334, %v5599
      %v5728 = vadd.f32 %v5335, %v5600
      %v5729 = vadd.f32 %v5336, %v5601
      %v5730 = vadd.f32 %v5337, %v5602
      %v5731 = vadd.f32 %v5338, %v5603
      %v5732 = vadd.f32 %v5339, %v5604
      %v5733 = vadd.f32 %v5340, %v5605
      %v5734 = vadd.f32 %v5341, %v5606
      %v5735 = vadd.f32 %v5342, %v5607
      %v5736 = vadd.f32 %v5343, %v5608
      %v5737 = vadd.f32 %v5344, %v5609
      %v5738 = vadd.f32 %v5345, %v5610
      %v5739 = vadd.f32 %v5346, %v5611
      %v5740 = vadd.f32 %v5347, %v5612
      %v5741 = vadd.f32 %v5348, %v5613
      %v5742 = vadd.f32 %v5349, %v5614
      %v5743 = vadd.f32 %v5350, %v5615
      %v5744 = vadd.f32 %v5351, %v5616
      %v5745 = vadd.f32 %v5352, %v5617
      %v5746 = vadd.f32 %v5353, %v5618
      %v5747 = vadd.f32 %v5354, %v5619
      %v5748 = vadd.f32 %v5355, %v5620
      %v5749 = vadd.f32 %v5356, %v5621
      %v5750 = vadd.f32 %v5357, %v5622
      %v5751 = vadd.f32 %v5358, %v5623
      %v5752 = vadd.f32 %v5359, %v5624
      %v5753 = vadd.f32 %v5360, %v5625
      %v5754 = vadd.f32 %v5361, %v5626
      %v5755 = vadd.f32 %v5362, %v5627
      %v5756 = vadd.f32 %v5363, %v5628
      %v5757 = vadd.f32 %v5364, %v5629
      %v5758 = vadd.f32 %v5365, %v5630
      %v5759 = vadd.f32 %v5366, %v5631
      %v5760 = vadd.f32 %v5367, %v5632
      %v5761 = vadd.f32 %v5368, %v5633
      %v5762 = vadd.f32 %v5369, %v5634
      %v5763 = vadd.f32 %v5370, %v5635
      %v5764 = vadd.f32 %v5371, %v5636
      %v5765 = vadd.f32 %v5372, %v5637
      %v5766 = vadd.f32 %v5373, %v5638
      %v5767 = vadd.f32 %v5374, %v5639
      %v5768 = vadd.f32 %v5375, %v5640
      %v5769 = vadd.f32 %v5376, %v5641
      %v5770 = vadd.f32 %v5377, %v5642
      %v5771 = vadd.f32 %v5378, %v5643
      %v5772 = vadd.f32 %v5379, %v5644
      %v5773 = vadd.f32 %v5380, %v5645
      %v5774 = vadd.f32 %v5381, %v5646
      %v5775 = vadd.f32 %v5382, %v5647
      %v5776 = vadd.f32 %v5383, %v5648
      %v5777 = vadd.f32 %v5384, %v5649
      %v5778 = vadd.f32 %v5385, %v5650
      %v5779 = vadd.f32 %v5386, %v5651
      %v5780 = vadd.f32 %v5387, %v5652
      %v5781 = vadd.f32 %v5388, %v5653
      %v5782 = vadd.f32 %v5389, %v5654
      %v5783 = vadd.f32 %v5390, %v5655
      %v5784 = vadd.f32 %v5391, %v5656
      %v5785 = vadd.f32 %v5392, %v5657
      %v5786 = vadd.f32 %v5393, %v5658
      %v5787 = vadd.f32 %v5394, %v5659
      %v5788 = vadd.f32 %v5395, %v5660
      %v5789 = vadd.f32 %v5396, %v5661
      %v5790 = vadd.f32 %v5397, %v5662
      %v5791 = vadd.f32 %v5398, %v5663
      %v5792 = vadd.f32 %v5399, %v5664
      %v5793 = vadd.f32 %v5400, %v5665
      %v5794 = vadd.f32 %v5401, %v5666
      %v5795 = vadd.f32 %v5402, %v5667
      %v5796 = vadd.f32 %v5403, %v5668
      %v5797 = vadd.f32 %v5404, %v5669
      %v5798 = vadd.f32 %v5405, %v5670
      %v5799 = vadd.f32 %v5406, %v5671
      %v5800 = vadd.f32 %v5407, %v5672
      %v5801 = vadd.f32 %v5408, %v5673
      %v5802 = vadd.f32 %v5409, %v5674
      %v5803 = vadd.f32 %v5410, %v5675
      %v5804 = vadd.f32 %v5411, %v5676
      %v5805 = vadd.f32 %v5412, %v5677
      %v5806 = vadd.f32 %v5413, %v5678
      %v5807 = vadd.f32 %v5414, %v5679
      %v5808 = vadd.f32 %v5415, %v5680
      %v5809 = vadd.f32 %v5416, %v5681
      %v5810 = vadd.f32 %v5417, %v5682
      %v5811 = vadd.f32 %v5418, %v5683
      %v5812 = vadd.f32 %v5419, %v5684
      %v5813 = vadd.f32 %v5420, %v5685
      %v5814 = vadd.f32 %v5421, %v5686
      %v5815 = vadd.f32 %v5422, %v5687
      %v5816 = vadd.f32 %v5423, %v5688
      %v5817 = vadd.f32 %v5424, %v5689
      %v5818 = vadd.f32 %v5425, %v5690
      %v5819 = vadd.f32 %v5426, %v5691
      %v5820 = vadd.f32 %v5427, %v5692
      %v5821 = vadd.f32 %v5428, %v5693
      %v5822 = vadd.f32 %v5429, %v5694
      %v5823 = vadd.f32 %v5430, %v5695
      %v5824 = vadd.f32 %v5431, %v5696
      %v5825 = vadd.f32 %v5432, %v5697
      %v5826 = vadd.f32 %v5433, %v5698
      %v5827 = vadd.f32 %v5434, %v5699
      %v5828 = vadd.f32 %v5435, %v5700
      %v5829 = vadd.f32 %v5436, %v5701
      %v5830 = vadd.f32 %v5437, %v5702
      %v5831 = vadd.f32 %v5438, %v5703
      %v5832 = vadd.f32 %v5439, %v5704
      %v5833 = vadd.f32 %v5440, %v5705
      %v5834 = vadd.f32 %v5441, %v5706
      %v5835 = vadd.f32 %v5442, %v5707
      %v5836 = vadd.f32 %v5443, %v5708
      %v5837 = vadd.f32 %v5444, %v5709
      %v5838 = vadd.f32 %v5445, %v5710
      %v5839 = vadd.f32 %v5446, %v5711
      %v5840 = vadd.f32 %v5447, %v5712
      %v5841 = vadd.f32 %v5448, %v5713
      %v5842 = vadd.f32 %v5449, %v5714
      %v5843 = vadd.f32 %v5450, %v5715
      %v5844 = vadd.f32 %v5451, %v5716
      %v5845 = vadd.f32 %v5452, %v5717
      %v5846 = vadd.f32 %v5453, %v5718
      %v5847 = vadd.f32 %v5454, %v5719
      %v5848 = vadd.f32 %v3874, %v4797
      %v5849 = vadd.f32 %v3875, %v4798
      %v5850 = vadd.f32 %v3876, %v4799
      %v5851 = vadd.f32 %v3877, %v4800
      %v5852 = vadd.f32 %v3878, %v4801
      %v5853 = vadd.f32 %v3879, %v4802
      %v5854 = vadd.f32 %v3880, %v4803
      %v5855 = vadd.f32 %v3881, %v4804
      %v5856 = vadd.f32 %v3882, %v4805
      %v5857 = vadd.f32 %v3883, %v4806
      %v5858 = vadd.f32 %v3884, %v4807
      %v5859 = vadd.f32 %v3885, %v4808
      %v5860 = vadd.f32 %v3886, %v4809
      %v5861 = vadd.f32 %v3887, %v4810
      %v5862 = vadd.f32 %v3888, %v4811
      %v5863 = vadd.f32 %v3889, %v4812
      %v5864 = vadd.f32 %v3890, %v4813
      %v5865 = vadd.f32 %v3891, %v4814
      %v5866 = vadd.f32 %v3892, %v4815
      %v5867 = vadd.f32 %v3893, %v4816
      %v5868 = vadd.f32 %v3894, %v4817
      %v5869 = vadd.f32 %v3895, %v4818
      %v5870 = vadd.f32 %v3896, %v4819
      %v5871 = vadd.f32 %v3897, %v4820
      %v5872 = vadd.f32 %v3898, %v4821
      %v5873 = vadd.f32 %v3899, %v4822
      %v5874 = vadd.f32 %v3900, %v4823
      %v5875 = vadd.f32 %v3901, %v4824
      %v5876 = vadd.f32 %v3902, %v4825
      %v5877 = vadd.f32 %v3903, %v4826
      %v5878 = vadd.f32 %v3904, %v4827
      %v5879 = vadd.f32 %v3905, %v4828
      %v5880 = vadd.f32 %v3906, %v4829
      %v5881 = vadd.f32 %v3907, %v4830
      %v5882 = vadd.f32 %v3908, %v4831
      %v5883 = vadd.f32 %v3909, %v4832
      %v5884 = vadd.f32 %v3910, %v4833
      %v5885 = vadd.f32 %v3911, %v4834
      %v5886 = vadd.f32 %v3912, %v4835
      %v5887 = vadd.f32 %v3913, %v4836
      %v5888 = vadd.f32 %v3914, %v4837
      %v5889 = vadd.f32 %v3915, %v4838
      %v5890 = vadd.f32 %v3916, %v4839
      %v5891 = vadd.f32 %v3917, %v4840
      %v5892 = vadd.f32 %v3918, %v4841
      %v5893 = vadd.f32 %v3919, %v4842
      %v5894 = vadd.f32 %v3920, %v4843
      %v5895 = vadd.f32 %v3921, %v4844
      %v5896 = vadd.f32 %v3922, %v4845
      %v5897 = vadd.f32 %v3923, %v4846
      %v5898 = vadd.f32 %v3924, %v4847
      %v5899 = vadd.f32 %v3925, %v4848
      %v5900 = vadd.f32 %v3926, %v4849
      %v5901 = vadd.f32 %v3927, %v4850
      %v5902 = vadd.f32 %v3928, %v4851
      %v5903 = vadd.f32 %v3929, %v4852
      %v5904 = vadd.f32 %v3930, %v4853
      %v5905 = vadd.f32 %v3931, %v4854
      %v5906 = vadd.f32 %v3932, %v4855
      %v5907 = vadd.f32 %v3933, %v4856
      %v5908 = vadd.f32 %v3934, %v4857
      %v5909 = vadd.f32 %v3935, %v4858
      %v5910 = vadd.f32 %v3936, %v4859
      %v5911 = vadd.f32 %v3937, %v4860
      %v5912 = vadd.f32 %v3938, %v4861
      %v5913 = vadd.f32 %v3939, %v4862
      %v5914 = vadd.f32 %v3940, %v4863
      %v5915 = vadd.f32 %v3941, %v4864
      %v5916 = vadd.f32 %v3942, %v4865
      %v5917 = vadd.f32 %v3943, %v4866
      %v5918 = vadd.f32 %v3944, %v4867
      %v5919 = vadd.f32 %v3945, %v4868
      %v5920 = vadd.f32 %v3946, %v4869
      %v5921 = vadd.f32 %v3947, %v4870
      %v5922 = vadd.f32 %v3948, %v4871
      %v5923 = vadd.f32 %v3949, %v4872
      %v5924 = vadd.f32 %v3950, %v4873
      %v5925 = vadd.f32 %v3951, %v4874
      %v5926 = vadd.f32 %v3952, %v4875
      %v5927 = vadd.f32 %v3953, %v4876
      %v5928 = vadd.f32 %v3954, %v4877
      %v5929 = vadd.f32 %v3955, %v4878
      %v5930 = vadd.f32 %v3956, %v4879
      %v5931 = vadd.f32 %v3957, %v4880
      %v5932 = vadd.f32 %v3958, %v4881
      %v5933 = vadd.f32 %v3959, %v4882
      %v5934 = vadd.f32 %v3960, %v4883
      %v5935 = vadd.f32 %v3961, %v4884
      %v5936 = vadd.f32 %v3962, %v4885
      %v5937 = vadd.f32 %v3963, %v4886
      %v5938 = vadd.f32 %v3964, %v4887
      %v5939 = vadd.f32 %v3965, %v4888
      %v5940 = vadd.f32 %v3966, %v4889
      %v5941 = vadd.f32 %v3967, %v4890
      %v5942 = vadd.f32 %v3968, %v4891
      %v5943 = vadd.f32 %v3969, %v4892
      %v5944 = vadd.f32 %v3970, %v4893
      %v5945 = vadd.f32 %v3971, %v4894
      %v5946 = vadd.f32 %v3972, %v4895
      %v5947 = vadd.f32 %v3973, %v4896
      %v5948 = vadd.f32 %v3974, %v4897
      %v5949 = vadd.f32 %v3975, %v4898
      %v5950 = vadd.f32 %v3976, %v4899
      %v5951 = vadd.f32 %v3977, %v4900
      %v5952 = vadd.f32 %v3978, %v4901
      %v5953 = vadd.f32 %v3979, %v4902
      %v5954 = vadd.f32 %v3980, %v4903
      %v5955 = vadd.f32 %v3981, %v4904
      %v5956 = vadd.f32 %v3982, %v4905
      %v5957 = vadd.f32 %v3983, %v4906
      %v5958 = vadd.f32 %v3984, %v4907
      %v5959 = vadd.f32 %v3985, %v4908
      %v5960 = vadd.f32 %v3986, %v4909
      %v5961 = vadd.f32 %v3987, %v4910
      %v5962 = vadd.f32 %v3988, %v4911
      %v5963 = vadd.f32 %v3989, %v4912
      %v5964 = vadd.f32 %v3990, %v4913
      %v5965 = vadd.f32 %v3991, %v4914
      %v5966 = vadd.f32 %v3992, %v4915
      %v5967 = vadd.f32 %v3993, %v4916
      %v5968 = vadd.f32 %v3994, %v4917
      %v5969 = vadd.f32 %v3995, %v4918
      %v5970 = vadd.f32 %v3996, %v4919
      %v5971 = vadd.f32 %v3997, %v4920
      %v5972 = vadd.f32 %v3998, %v4921
      %v5973 = vadd.f32 %v3999, %v4922
      %v5974 = vadd.f32 %v4000, %v4923
      %v5975 = vadd.f32 %v4001, %v4924
      %v5976 = vadd.f32 %v5848, %v5720
      %v5977 = vadd.f32 %v5849, %v5721
      %v5978 = vadd.f32 %v5850, %v5722
      %v5979 = vadd.f32 %v5851, %v5723
      %v5980 = vadd.f32 %v5852, %v5724
      %v5981 = vadd.f32 %v5853, %v5725
      %v5982 = vadd.f32 %v5854, %v5726
      %v5983 = vadd.f32 %v5855, %v5727
      %v5984 = vadd.f32 %v5856, %v5728
      %v5985 = vadd.f32 %v5857, %v5729
      %v5986 = vadd.f32 %v5858, %v5730
      %v5987 = vadd.f32 %v5859, %v5731
      %v5988 = vadd.f32 %v5860, %v5732
      %v5989 = vadd.f32 %v5861, %v5733
      %v5990 = vadd.f32 %v5862, %v5734
      %v5991 = vadd.f32 %v5863, %v5735
      %v5992 = vadd.f32 %v5864, %v5736
      %v5993 = vadd.f32 %v5865, %v5737
      %v5994 = vadd.f32 %v5866, %v5738
      %v5995 = vadd.f32 %v5867, %v5739
      %v5996 = vadd.f32 %v5868, %v5740
      %v5997 = vadd.f32 %v5869, %v5741
      %v5998 = vadd.f32 %v5870, %v5742
      %v5999 = vadd.f32 %v5871, %v5743
      %v6000 = vadd.f32 %v5872, %v5744
      %v6001 = vadd.f32 %v5873, %v5745
      %v6002 = vadd.f32 %v5874, %v5746
      %v6003 = vadd.f32 %v5875, %v5747
      %v6004 = vadd.f32 %v5876, %v5748
      %v6005 = vadd.f32 %v5877, %v5749
      %v6006 = vadd.f32 %v5878, %v5750
      %v6007 = vadd.f32 %v5879, %v5751
      %v6008 = vadd.f32 %v5880, %v5752
      %v6009 = vadd.f32 %v5881, %v5753
      %v6010 = vadd.f32 %v5882, %v5754
      %v6011 = vadd.f32 %v5883, %v5755
      %v6012 = vadd.f32 %v5884, %v5756
      %v6013 = vadd.f32 %v5885, %v5757
      %v6014 = vadd.f32 %v5886, %v5758
      %v6015 = vadd.f32 %v5887, %v5759
      %v6016 = vadd.f32 %v5888, %v5760
      %v6017 = vadd.f32 %v5889, %v5761
      %v6018 = vadd.f32 %v5890, %v5762
      %v6019 = vadd.f32 %v5891, %v5763
      %v6020 = vadd.f32 %v5892, %v5764
      %v6021 = vadd.f32 %v5893, %v5765
      %v6022 = vadd.f32 %v5894, %v5766
      %v6023 = vadd.f32 %v5895, %v5767
      %v6024 = vadd.f32 %v5896, %v5768
      %v6025 = vadd.f32 %v5897, %v5769
      %v6026 = vadd.f32 %v5898, %v5770
      %v6027 = vadd.f32 %v5899, %v5771
      %v6028 = vadd.f32 %v5900, %v5772
      %v6029 = vadd.f32 %v5901, %v5773
      %v6030 = vadd.f32 %v5902, %v5774
      %v6031 = vadd.f32 %v5903, %v5775
      %v6032 = vadd.f32 %v5904, %v5776
      %v6033 = vadd.f32 %v5905, %v5777
      %v6034 = vadd.f32 %v5906, %v5778
      %v6035 = vadd.f32 %v5907, %v5779
      %v6036 = vadd.f32 %v5908, %v5780
      %v6037 = vadd.f32 %v5909, %v5781
      %v6038 = vadd.f32 %v5910, %v5782
      %v6039 = vadd.f32 %v5911, %v5783
      %v6040 = vadd.f32 %v5912, %v5784
      %v6041 = vadd.f32 %v5913, %v5785
      %v6042 = vadd.f32 %v5914, %v5786
      %v6043 = vadd.f32 %v5915, %v5787
      %v6044 = vadd.f32 %v5916, %v5788
      %v6045 = vadd.f32 %v5917, %v5789
      %v6046 = vadd.f32 %v5918, %v5790
      %v6047 = vadd.f32 %v5919, %v5791
      %v6048 = vadd.f32 %v5920, %v5792
      %v6049 = vadd.f32 %v5921, %v5793
      %v6050 = vadd.f32 %v5922, %v5794
      %v6051 = vadd.f32 %v5923, %v5795
      %v6052 = vadd.f32 %v5924, %v5796
      %v6053 = vadd.f32 %v5925, %v5797
      %v6054 = vadd.f32 %v5926, %v5798
      %v6055 = vadd.f32 %v5927, %v5799
      %v6056 = vadd.f32 %v5928, %v5800
      %v6057 = vadd.f32 %v5929, %v5801
      %v6058 = vadd.f32 %v5930, %v5802
      %v6059 = vadd.f32 %v5931, %v5803
      %v6060 = vadd.f32 %v5932, %v5804
      %v6061 = vadd.f32 %v5933, %v5805
      %v6062 = vadd.f32 %v5934, %v5806
      %v6063 = vadd.f32 %v5935, %v5807
      %v6064 = vadd.f32 %v5936, %v5808
      %v6065 = vadd.f32 %v5937, %v5809
      %v6066 = vadd.f32 %v5938, %v5810
      %v6067 = vadd.f32 %v5939, %v5811
      %v6068 = vadd.f32 %v5940, %v5812
      %v6069 = vadd.f32 %v5941, %v5813
      %v6070 = vadd.f32 %v5942, %v5814
      %v6071 = vadd.f32 %v5943, %v5815
      %v6072 = vadd.f32 %v5944, %v5816
      %v6073 = vadd.f32 %v5945, %v5817
      %v6074 = vadd.f32 %v5946, %v5818
      %v6075 = vadd.f32 %v5947, %v5819
      %v6076 = vadd.f32 %v5948, %v5820
      %v6077 = vadd.f32 %v5949, %v5821
      %v6078 = vadd.f32 %v5950, %v5822
      %v6079 = vadd.f32 %v5951, %v5823
      %v6080 = vadd.f32 %v5952, %v5824
      %v6081 = vadd.f32 %v5953, %v5825
      %v6082 = vadd.f32 %v5954, %v5826
      %v6083 = vadd.f32 %v5955, %v5827
      %v6084 = vadd.f32 %v5956, %v5828
      %v6085 = vadd.f32 %v5957, %v5829
      %v6086 = vadd.f32 %v5958, %v5830
      %v6087 = vadd.f32 %v5959, %v5831
      %v6088 = vadd.f32 %v5960, %v5832
      %v6089 = vadd.f32 %v5961, %v5833
      %v6090 = vadd.f32 %v5962, %v5834
      %v6091 = vadd.f32 %v5963, %v5835
      %v6092 = vadd.f32 %v5964, %v5836
      %v6093 = vadd.f32 %v5965, %v5837
      %v6094 = vadd.f32 %v5966, %v5838
      %v6095 = vadd.f32 %v5967, %v5839
      %v6096 = vadd.f32 %v5968, %v5840
      %v6097 = vadd.f32 %v5969, %v5841
      %v6098 = vadd.f32 %v5970, %v5842
      %v6099 = vadd.f32 %v5971, %v5843
      %v6100 = vadd.f32 %v5972, %v5844
      %v6101 = vadd.f32 %v5973, %v5845
      %v6102 = vadd.f32 %v5974, %v5846
      %v6103 = vadd.f32 %v5975, %v5847
      %v6104 = vld [vmem:[%s4] sm:$0x1]
      %v6106 = vperm.slane %v6104, 0
      %v6108 = vadd.f32 %v5976, %v6106
      %v6109 = vadd.f32 %v5977, %v6106
      %v6110 = vadd.f32 %v5978, %v6106
      %v6111 = vadd.f32 %v5979, %v6106
      %v6112 = vadd.f32 %v5980, %v6106
      %v6113 = vadd.f32 %v5981, %v6106
      %v6114 = vadd.f32 %v5982, %v6106
      %v6115 = vadd.f32 %v5983, %v6106
      %v6116 = vadd.f32 %v5984, %v6106
      %v6117 = vadd.f32 %v5985, %v6106
      %v6118 = vadd.f32 %v5986, %v6106
      %v6119 = vadd.f32 %v5987, %v6106
      %v6120 = vadd.f32 %v5988, %v6106
      %v6121 = vadd.f32 %v5989, %v6106
      %v6122 = vadd.f32 %v5990, %v6106
      %v6123 = vadd.f32 %v5991, %v6106
      %v6124 = vadd.f32 %v5992, %v6106
      %v6125 = vadd.f32 %v5993, %v6106
      %v6126 = vadd.f32 %v5994, %v6106
      %v6127 = vadd.f32 %v5995, %v6106
      %v6128 = vadd.f32 %v5996, %v6106
      %v6129 = vadd.f32 %v5997, %v6106
      %v6130 = vadd.f32 %v5998, %v6106
      %v6131 = vadd.f32 %v5999, %v6106
      %v6132 = vadd.f32 %v6000, %v6106
      %v6133 = vadd.f32 %v6001, %v6106
      %v6134 = vadd.f32 %v6002, %v6106
      %v6135 = vadd.f32 %v6003, %v6106
      %v6136 = vadd.f32 %v6004, %v6106
      %v6137 = vadd.f32 %v6005, %v6106
      %v6138 = vadd.f32 %v6006, %v6106
      %v6139 = vadd.f32 %v6007, %v6106
      %v6140 = vadd.f32 %v6008, %v6106
      %v6141 = vadd.f32 %v6009, %v6106
      %v6142 = vadd.f32 %v6010, %v6106
      %v6143 = vadd.f32 %v6011, %v6106
      %v6144 = vadd.f32 %v6012, %v6106
      %v6145 = vadd.f32 %v6013, %v6106
      %v6146 = vadd.f32 %v6014, %v6106
      %v6147 = vadd.f32 %v6015, %v6106
      %v6148 = vadd.f32 %v6016, %v6106
      %v6149 = vadd.f32 %v6017, %v6106
      %v6150 = vadd.f32 %v6018, %v6106
      %v6151 = vadd.f32 %v6019, %v6106
      %v6152 = vadd.f32 %v6020, %v6106
      %v6153 = vadd.f32 %v6021, %v6106
      %v6154 = vadd.f32 %v6022, %v6106
      %v6155 = vadd.f32 %v6023, %v6106
      %v6156 = vadd.f32 %v6024, %v6106
      %v6157 = vadd.f32 %v6025, %v6106
      %v6158 = vadd.f32 %v6026, %v6106
      %v6159 = vadd.f32 %v6027, %v6106
      %v6160 = vadd.f32 %v6028, %v6106
      %v6161 = vadd.f32 %v6029, %v6106
      %v6162 = vadd.f32 %v6030, %v6106
      %v6163 = vadd.f32 %v6031, %v6106
      %v6164 = vadd.f32 %v6032, %v6106
      %v6165 = vadd.f32 %v6033, %v6106
      %v6166 = vadd.f32 %v6034, %v6106
      %v6167 = vadd.f32 %v6035, %v6106
      %v6168 = vadd.f32 %v6036, %v6106
      %v6169 = vadd.f32 %v6037, %v6106
      %v6170 = vadd.f32 %v6038, %v6106
      %v6171 = vadd.f32 %v6039, %v6106
      %v6172 = vadd.f32 %v6040, %v6106
      %v6173 = vadd.f32 %v6041, %v6106
      %v6174 = vadd.f32 %v6042, %v6106
      %v6175 = vadd.f32 %v6043, %v6106
      %v6176 = vadd.f32 %v6044, %v6106
      %v6177 = vadd.f32 %v6045, %v6106
      %v6178 = vadd.f32 %v6046, %v6106
      %v6179 = vadd.f32 %v6047, %v6106
      %v6180 = vadd.f32 %v6048, %v6106
      %v6181 = vadd.f32 %v6049, %v6106
      %v6182 = vadd.f32 %v6050, %v6106
      %v6183 = vadd.f32 %v6051, %v6106
      %v6184 = vadd.f32 %v6052, %v6106
      %v6185 = vadd.f32 %v6053, %v6106
      %v6186 = vadd.f32 %v6054, %v6106
      %v6187 = vadd.f32 %v6055, %v6106
      %v6188 = vadd.f32 %v6056, %v6106
      %v6189 = vadd.f32 %v6057, %v6106
      %v6190 = vadd.f32 %v6058, %v6106
      %v6191 = vadd.f32 %v6059, %v6106
      %v6192 = vadd.f32 %v6060, %v6106
      %v6193 = vadd.f32 %v6061, %v6106
      %v6194 = vadd.f32 %v6062, %v6106
      %v6195 = vadd.f32 %v6063, %v6106
      %v6196 = vadd.f32 %v6064, %v6106
      %v6197 = vadd.f32 %v6065, %v6106
      %v6198 = vadd.f32 %v6066, %v6106
      %v6199 = vadd.f32 %v6067, %v6106
      %v6200 = vadd.f32 %v6068, %v6106
      %v6201 = vadd.f32 %v6069, %v6106
      %v6202 = vadd.f32 %v6070, %v6106
      %v6203 = vadd.f32 %v6071, %v6106
      %v6204 = vadd.f32 %v6072, %v6106
      %v6205 = vadd.f32 %v6073, %v6106
      %v6206 = vadd.f32 %v6074, %v6106
      %v6207 = vadd.f32 %v6075, %v6106
      %v6208 = vadd.f32 %v6076, %v6106
      %v6209 = vadd.f32 %v6077, %v6106
      %v6210 = vadd.f32 %v6078, %v6106
      %v6211 = vadd.f32 %v6079, %v6106
      %v6212 = vadd.f32 %v6080, %v6106
      %v6213 = vadd.f32 %v6081, %v6106
      %v6214 = vadd.f32 %v6082, %v6106
      %v6215 = vadd.f32 %v6083, %v6106
      %v6216 = vadd.f32 %v6084, %v6106
      %v6217 = vadd.f32 %v6085, %v6106
      %v6218 = vadd.f32 %v6086, %v6106
      %v6219 = vadd.f32 %v6087, %v6106
      %v6220 = vadd.f32 %v6088, %v6106
      %v6221 = vadd.f32 %v6089, %v6106
      %v6222 = vadd.f32 %v6090, %v6106
      %v6223 = vadd.f32 %v6091, %v6106
      %v6224 = vadd.f32 %v6092, %v6106
      %v6225 = vadd.f32 %v6093, %v6106
      %v6226 = vadd.f32 %v6094, %v6106
      %v6227 = vadd.f32 %v6095, %v6106
      %v6228 = vadd.f32 %v6096, %v6106
      %v6229 = vadd.f32 %v6097, %v6106
      %v6230 = vadd.f32 %v6098, %v6106
      %v6231 = vadd.f32 %v6099, %v6106
      %v6232 = vadd.f32 %v6100, %v6106
      %v6233 = vadd.f32 %v6101, %v6106
      %v6234 = vadd.f32 %v6102, %v6106
      %v6235 = vadd.f32 %v6103, %v6106
      %v6236 = vadd.f32 %v6108, 3.0
      %v6237 = vadd.f32 %v6109, 3.0
      %v6238 = vadd.f32 %v6110, 3.0
      %v6239 = vadd.f32 %v6111, 3.0
      %v6240 = vadd.f32 %v6112, 3.0
      %v6241 = vadd.f32 %v6113, 3.0
      %v6242 = vadd.f32 %v6114, 3.0
      %v6243 = vadd.f32 %v6115, 3.0
      %v6244 = vadd.f32 %v6116, 3.0
      %v6245 = vadd.f32 %v6117, 3.0
      %v6246 = vadd.f32 %v6118, 3.0
      %v6247 = vadd.f32 %v6119, 3.0
      %v6248 = vadd.f32 %v6120, 3.0
      %v6249 = vadd.f32 %v6121, 3.0
      %v6250 = vadd.f32 %v6122, 3.0
      %v6251 = vadd.f32 %v6123, 3.0
      %v6252 = vadd.f32 %v6124, 3.0
      %v6253 = vadd.f32 %v6125, 3.0
      %v6254 = vadd.f32 %v6126, 3.0
      %v6255 = vadd.f32 %v6127, 3.0
      %v6256 = vadd.f32 %v6128, 3.0
      %v6257 = vadd.f32 %v6129, 3.0
      %v6258 = vadd.f32 %v6130, 3.0
      %v6259 = vadd.f32 %v6131, 3.0
      %v6260 = vadd.f32 %v6132, 3.0
      %v6261 = vadd.f32 %v6133, 3.0
      %v6262 = vadd.f32 %v6134, 3.0
      %v6263 = vadd.f32 %v6135, 3.0
      %v6264 = vadd.f32 %v6136, 3.0
      %v6265 = vadd.f32 %v6137, 3.0
      %v6266 = vadd.f32 %v6138, 3.0
      %v6267 = vadd.f32 %v6139, 3.0
      %v6268 = vadd.f32 %v6140, 3.0
      %v6269 = vadd.f32 %v6141, 3.0
      %v6270 = vadd.f32 %v6142, 3.0
      %v6271 = vadd.f32 %v6143, 3.0
      %v6272 = vadd.f32 %v6144, 3.0
      %v6273 = vadd.f32 %v6145, 3.0
      %v6274 = vadd.f32 %v6146, 3.0
      %v6275 = vadd.f32 %v6147, 3.0
      %v6276 = vadd.f32 %v6148, 3.0
      %v6277 = vadd.f32 %v6149, 3.0
      %v6278 = vadd.f32 %v6150, 3.0
      %v6279 = vadd.f32 %v6151, 3.0
      %v6280 = vadd.f32 %v6152, 3.0
      %v6281 = vadd.f32 %v6153, 3.0
      %v6282 = vadd.f32 %v6154, 3.0
      %v6283 = vadd.f32 %v6155, 3.0
      %v6284 = vadd.f32 %v6156, 3.0
      %v6285 = vadd.f32 %v6157, 3.0
      %v6286 = vadd.f32 %v6158, 3.0
      %v6287 = vadd.f32 %v6159, 3.0
      %v6288 = vadd.f32 %v6160, 3.0
      %v6289 = vadd.f32 %v6161, 3.0
      %v6290 = vadd.f32 %v6162, 3.0
      %v6291 = vadd.f32 %v6163, 3.0
      %v6292 = vadd.f32 %v6164, 3.0
      %v6293 = vadd.f32 %v6165, 3.0
      %v6294 = vadd.f32 %v6166, 3.0
      %v6295 = vadd.f32 %v6167, 3.0
      %v6296 = vadd.f32 %v6168, 3.0
      %v6297 = vadd.f32 %v6169, 3.0
      %v6298 = vadd.f32 %v6170, 3.0
      %v6299 = vadd.f32 %v6171, 3.0
      %v6300 = vadd.f32 %v6172, 3.0
      %v6301 = vadd.f32 %v6173, 3.0
      %v6302 = vadd.f32 %v6174, 3.0
      %v6303 = vadd.f32 %v6175, 3.0
      %v6304 = vadd.f32 %v6176, 3.0
      %v6305 = vadd.f32 %v6177, 3.0
      %v6306 = vadd.f32 %v6178, 3.0
      %v6307 = vadd.f32 %v6179, 3.0
      %v6308 = vadd.f32 %v6180, 3.0
      %v6309 = vadd.f32 %v6181, 3.0
      %v6310 = vadd.f32 %v6182, 3.0
      %v6311 = vadd.f32 %v6183, 3.0
      %v6312 = vadd.f32 %v6184, 3.0
      %v6313 = vadd.f32 %v6185, 3.0
      %v6314 = vadd.f32 %v6186, 3.0
      %v6315 = vadd.f32 %v6187, 3.0
      %v6316 = vadd.f32 %v6188, 3.0
      %v6317 = vadd.f32 %v6189, 3.0
      %v6318 = vadd.f32 %v6190, 3.0
      %v6319 = vadd.f32 %v6191, 3.0
      %v6320 = vadd.f32 %v6192, 3.0
      %v6321 = vadd.f32 %v6193, 3.0
      %v6322 = vadd.f32 %v6194, 3.0
      %v6323 = vadd.f32 %v6195, 3.0
      %v6324 = vadd.f32 %v6196, 3.0
      %v6325 = vadd.f32 %v6197, 3.0
      %v6326 = vadd.f32 %v6198, 3.0
      %v6327 = vadd.f32 %v6199, 3.0
      %v6328 = vadd.f32 %v6200, 3.0
      %v6329 = vadd.f32 %v6201, 3.0
      %v6330 = vadd.f32 %v6202, 3.0
      %v6331 = vadd.f32 %v6203, 3.0
      %v6332 = vadd.f32 %v6204, 3.0
      %v6333 = vadd.f32 %v6205, 3.0
      %v6334 = vadd.f32 %v6206, 3.0
      %v6335 = vadd.f32 %v6207, 3.0
      %v6336 = vadd.f32 %v6208, 3.0
      %v6337 = vadd.f32 %v6209, 3.0
      %v6338 = vadd.f32 %v6210, 3.0
      %v6339 = vadd.f32 %v6211, 3.0
      %v6340 = vadd.f32 %v6212, 3.0
      %v6341 = vadd.f32 %v6213, 3.0
      %v6342 = vadd.f32 %v6214, 3.0
      %v6343 = vadd.f32 %v6215, 3.0
      %v6344 = vadd.f32 %v6216, 3.0
      %v6345 = vadd.f32 %v6217, 3.0
      %v6346 = vadd.f32 %v6218, 3.0
      %v6347 = vadd.f32 %v6219, 3.0
      %v6348 = vadd.f32 %v6220, 3.0
      %v6349 = vadd.f32 %v6221, 3.0
      %v6350 = vadd.f32 %v6222, 3.0
      %v6351 = vadd.f32 %v6223, 3.0
      %v6352 = vadd.f32 %v6224, 3.0
      %v6353 = vadd.f32 %v6225, 3.0
      %v6354 = vadd.f32 %v6226, 3.0
      %v6355 = vadd.f32 %v6227, 3.0
      %v6356 = vadd.f32 %v6228, 3.0
      %v6357 = vadd.f32 %v6229, 3.0
      %v6358 = vadd.f32 %v6230, 3.0
      %v6359 = vadd.f32 %v6231, 3.0
      %v6360 = vadd.f32 %v6232, 3.0
      %v6361 = vadd.f32 %v6233, 3.0
      %v6362 = vadd.f32 %v6234, 3.0
      %v6363 = vadd.f32 %v6235, 3.0
      %v6364 = vmax.f32 %v6236, 0.0
      %v6365 = vmax.f32 %v6237, 0.0
      %v6366 = vmax.f32 %v6238, 0.0
      %v6367 = vmax.f32 %v6239, 0.0
      %v6368 = vmax.f32 %v6240, 0.0
      %v6369 = vmax.f32 %v6241, 0.0
      %v6370 = vmax.f32 %v6242, 0.0
      %v6371 = vmax.f32 %v6243, 0.0
      %v6372 = vmax.f32 %v6244, 0.0
      %v6373 = vmax.f32 %v6245, 0.0
      %v6374 = vmax.f32 %v6246, 0.0
      %v6375 = vmax.f32 %v6247, 0.0
      %v6376 = vmax.f32 %v6248, 0.0
      %v6377 = vmax.f32 %v6249, 0.0
      %v6378 = vmax.f32 %v6250, 0.0
      %v6379 = vmax.f32 %v6251, 0.0
      %v6380 = vmax.f32 %v6252, 0.0
      %v6381 = vmax.f32 %v6253, 0.0
      %v6382 = vmax.f32 %v6254, 0.0
      %v6383 = vmax.f32 %v6255, 0.0
      %v6384 = vmax.f32 %v6256, 0.0
      %v6385 = vmax.f32 %v6257, 0.0
      %v6386 = vmax.f32 %v6258, 0.0
      %v6387 = vmax.f32 %v6259, 0.0
      %v6388 = vmax.f32 %v6260, 0.0
      %v6389 = vmax.f32 %v6261, 0.0
      %v6390 = vmax.f32 %v6262, 0.0
      %v6391 = vmax.f32 %v6263, 0.0
      %v6392 = vmax.f32 %v6264, 0.0
      %v6393 = vmax.f32 %v6265, 0.0
      %v6394 = vmax.f32 %v6266, 0.0
      %v6395 = vmax.f32 %v6267, 0.0
      %v6396 = vmax.f32 %v6268, 0.0
      %v6397 = vmax.f32 %v6269, 0.0
      %v6398 = vmax.f32 %v6270, 0.0
      %v6399 = vmax.f32 %v6271, 0.0
      %v6400 = vmax.f32 %v6272, 0.0
      %v6401 = vmax.f32 %v6273, 0.0
      %v6402 = vmax.f32 %v6274, 0.0
      %v6403 = vmax.f32 %v6275, 0.0
      %v6404 = vmax.f32 %v6276, 0.0
      %v6405 = vmax.f32 %v6277, 0.0
      %v6406 = vmax.f32 %v6278, 0.0
      %v6407 = vmax.f32 %v6279, 0.0
      %v6408 = vmax.f32 %v6280, 0.0
      %v6409 = vmax.f32 %v6281, 0.0
      %v6410 = vmax.f32 %v6282, 0.0
      %v6411 = vmax.f32 %v6283, 0.0
      %v6412 = vmax.f32 %v6284, 0.0
      %v6413 = vmax.f32 %v6285, 0.0
      %v6414 = vmax.f32 %v6286, 0.0
      %v6415 = vmax.f32 %v6287, 0.0
      %v6416 = vmax.f32 %v6288, 0.0
      %v6417 = vmax.f32 %v6289, 0.0
      %v6418 = vmax.f32 %v6290, 0.0
      %v6419 = vmax.f32 %v6291, 0.0
      %v6420 = vmax.f32 %v6292, 0.0
      %v6421 = vmax.f32 %v6293, 0.0
      %v6422 = vmax.f32 %v6294, 0.0
      %v6423 = vmax.f32 %v6295, 0.0
      %v6424 = vmax.f32 %v6296, 0.0
      %v6425 = vmax.f32 %v6297, 0.0
      %v6426 = vmax.f32 %v6298, 0.0
      %v6427 = vmax.f32 %v6299, 0.0
      %v6428 = vmax.f32 %v6300, 0.0
      %v6429 = vmax.f32 %v6301, 0.0
      %v6430 = vmax.f32 %v6302, 0.0
      %v6431 = vmax.f32 %v6303, 0.0
      %v6432 = vmax.f32 %v6304, 0.0
      %v6433 = vmax.f32 %v6305, 0.0
      %v6434 = vmax.f32 %v6306, 0.0
      %v6435 = vmax.f32 %v6307, 0.0
      %v6436 = vmax.f32 %v6308, 0.0
      %v6437 = vmax.f32 %v6309, 0.0
      %v6438 = vmax.f32 %v6310, 0.0
      %v6439 = vmax.f32 %v6311, 0.0
      %v6440 = vmax.f32 %v6312, 0.0
      %v6441 = vmax.f32 %v6313, 0.0
      %v6442 = vmax.f32 %v6314, 0.0
      %v6443 = vmax.f32 %v6315, 0.0
      %v6444 = vmax.f32 %v6316, 0.0
      %v6445 = vmax.f32 %v6317, 0.0
      %v6446 = vmax.f32 %v6318, 0.0
      %v6447 = vmax.f32 %v6319, 0.0
      %v6448 = vmax.f32 %v6320, 0.0
      %v6449 = vmax.f32 %v6321, 0.0
      %v6450 = vmax.f32 %v6322, 0.0
      %v6451 = vmax.f32 %v6323, 0.0
      %v6452 = vmax.f32 %v6324, 0.0
      %v6453 = vmax.f32 %v6325, 0.0
      %v6454 = vmax.f32 %v6326, 0.0
      %v6455 = vmax.f32 %v6327, 0.0
      %v6456 = vmax.f32 %v6328, 0.0
      %v6457 = vmax.f32 %v6329, 0.0
      %v6458 = vmax.f32 %v6330, 0.0
      %v6459 = vmax.f32 %v6331, 0.0
      %v6460 = vmax.f32 %v6332, 0.0
      %v6461 = vmax.f32 %v6333, 0.0
      %v6462 = vmax.f32 %v6334, 0.0
      %v6463 = vmax.f32 %v6335, 0.0
      %v6464 = vmax.f32 %v6336, 0.0
      %v6465 = vmax.f32 %v6337, 0.0
      %v6466 = vmax.f32 %v6338, 0.0
      %v6467 = vmax.f32 %v6339, 0.0
      %v6468 = vmax.f32 %v6340, 0.0
      %v6469 = vmax.f32 %v6341, 0.0
      %v6470 = vmax.f32 %v6342, 0.0
      %v6471 = vmax.f32 %v6343, 0.0
      %v6472 = vmax.f32 %v6344, 0.0
      %v6473 = vmax.f32 %v6345, 0.0
      %v6474 = vmax.f32 %v6346, 0.0
      %v6475 = vmax.f32 %v6347, 0.0
      %v6476 = vmax.f32 %v6348, 0.0
      %v6477 = vmax.f32 %v6349, 0.0
      %v6478 = vmax.f32 %v6350, 0.0
      %v6479 = vmax.f32 %v6351, 0.0
      %v6480 = vmax.f32 %v6352, 0.0
      %v6481 = vmax.f32 %v6353, 0.0
      %v6482 = vmax.f32 %v6354, 0.0
      %v6483 = vmax.f32 %v6355, 0.0
      %v6484 = vmax.f32 %v6356, 0.0
      %v6485 = vmax.f32 %v6357, 0.0
      %v6486 = vmax.f32 %v6358, 0.0
      %v6487 = vmax.f32 %v6359, 0.0
      %v6488 = vmax.f32 %v6360, 0.0
      %v6489 = vmax.f32 %v6361, 0.0
      %v6490 = vmax.f32 %v6362, 0.0
      %v6491 = vmax.f32 %v6363, 0.0
      %v6492 = vmin.f32 %v6364, 6.0
      %v6493 = vmin.f32 %v6365, 6.0
      %v6494 = vmin.f32 %v6366, 6.0
      %v6495 = vmin.f32 %v6367, 6.0
      %v6496 = vmin.f32 %v6368, 6.0
      %v6497 = vmin.f32 %v6369, 6.0
      %v6498 = vmin.f32 %v6370, 6.0
      %v6499 = vmin.f32 %v6371, 6.0
      %v6500 = vmin.f32 %v6372, 6.0
      %v6501 = vmin.f32 %v6373, 6.0
      %v6502 = vmin.f32 %v6374, 6.0
      %v6503 = vmin.f32 %v6375, 6.0
      %v6504 = vmin.f32 %v6376, 6.0
      %v6505 = vmin.f32 %v6377, 6.0
      %v6506 = vmin.f32 %v6378, 6.0
      %v6507 = vmin.f32 %v6379, 6.0
      %v6508 = vmin.f32 %v6380, 6.0
      %v6509 = vmin.f32 %v6381, 6.0
      %v6510 = vmin.f32 %v6382, 6.0
      %v6511 = vmin.f32 %v6383, 6.0
      %v6512 = vmin.f32 %v6384, 6.0
      %v6513 = vmin.f32 %v6385, 6.0
      %v6514 = vmin.f32 %v6386, 6.0
      %v6515 = vmin.f32 %v6387, 6.0
      %v6516 = vmin.f32 %v6388, 6.0
      %v6517 = vmin.f32 %v6389, 6.0
      %v6518 = vmin.f32 %v6390, 6.0
      %v6519 = vmin.f32 %v6391, 6.0
      %v6520 = vmin.f32 %v6392, 6.0
      %v6521 = vmin.f32 %v6393, 6.0
      %v6522 = vmin.f32 %v6394, 6.0
      %v6523 = vmin.f32 %v6395, 6.0
      %v6524 = vmin.f32 %v6396, 6.0
      %v6525 = vmin.f32 %v6397, 6.0
      %v6526 = vmin.f32 %v6398, 6.0
      %v6527 = vmin.f32 %v6399, 6.0
      %v6528 = vmin.f32 %v6400, 6.0
      %v6529 = vmin.f32 %v6401, 6.0
      %v6530 = vmin.f32 %v6402, 6.0
      %v6531 = vmin.f32 %v6403, 6.0
      %v6532 = vmin.f32 %v6404, 6.0
      %v6533 = vmin.f32 %v6405, 6.0
      %v6534 = vmin.f32 %v6406, 6.0
      %v6535 = vmin.f32 %v6407, 6.0
      %v6536 = vmin.f32 %v6408, 6.0
      %v6537 = vmin.f32 %v6409, 6.0
      %v6538 = vmin.f32 %v6410, 6.0
      %v6539 = vmin.f32 %v6411, 6.0
      %v6540 = vmin.f32 %v6412, 6.0
      %v6541 = vmin.f32 %v6413, 6.0
      %v6542 = vmin.f32 %v6414, 6.0
      %v6543 = vmin.f32 %v6415, 6.0
      %v6544 = vmin.f32 %v6416, 6.0
      %v6545 = vmin.f32 %v6417, 6.0
      %v6546 = vmin.f32 %v6418, 6.0
      %v6547 = vmin.f32 %v6419, 6.0
      %v6548 = vmin.f32 %v6420, 6.0
      %v6549 = vmin.f32 %v6421, 6.0
      %v6550 = vmin.f32 %v6422, 6.0
      %v6551 = vmin.f32 %v6423, 6.0
      %v6552 = vmin.f32 %v6424, 6.0
      %v6553 = vmin.f32 %v6425, 6.0
      %v6554 = vmin.f32 %v6426, 6.0
      %v6555 = vmin.f32 %v6427, 6.0
      %v6556 = vmin.f32 %v6428, 6.0
      %v6557 = vmin.f32 %v6429, 6.0
      %v6558 = vmin.f32 %v6430, 6.0
      %v6559 = vmin.f32 %v6431, 6.0
      %v6560 = vmin.f32 %v6432, 6.0
      %v6561 = vmin.f32 %v6433, 6.0
      %v6562 = vmin.f32 %v6434, 6.0
      %v6563 = vmin.f32 %v6435, 6.0
      %v6564 = vmin.f32 %v6436, 6.0
      %v6565 = vmin.f32 %v6437, 6.0
      %v6566 = vmin.f32 %v6438, 6.0
      %v6567 = vmin.f32 %v6439, 6.0
      %v6568 = vmin.f32 %v6440, 6.0
      %v6569 = vmin.f32 %v6441, 6.0
      %v6570 = vmin.f32 %v6442, 6.0
      %v6571 = vmin.f32 %v6443, 6.0
      %v6572 = vmin.f32 %v6444, 6.0
      %v6573 = vmin.f32 %v6445, 6.0
      %v6574 = vmin.f32 %v6446, 6.0
      %v6575 = vmin.f32 %v6447, 6.0
      %v6576 = vmin.f32 %v6448, 6.0
      %v6577 = vmin.f32 %v6449, 6.0
      %v6578 = vmin.f32 %v6450, 6.0
      %v6579 = vmin.f32 %v6451, 6.0
      %v6580 = vmin.f32 %v6452, 6.0
      %v6581 = vmin.f32 %v6453, 6.0
      %v6582 = vmin.f32 %v6454, 6.0
      %v6583 = vmin.f32 %v6455, 6.0
      %v6584 = vmin.f32 %v6456, 6.0
      %v6585 = vmin.f32 %v6457, 6.0
      %v6586 = vmin.f32 %v6458, 6.0
      %v6587 = vmin.f32 %v6459, 6.0
      %v6588 = vmin.f32 %v6460, 6.0
      %v6589 = vmin.f32 %v6461, 6.0
      %v6590 = vmin.f32 %v6462, 6.0
      %v6591 = vmin.f32 %v6463, 6.0
      %v6592 = vmin.f32 %v6464, 6.0
      %v6593 = vmin.f32 %v6465, 6.0
      %v6594 = vmin.f32 %v6466, 6.0
      %v6595 = vmin.f32 %v6467, 6.0
      %v6596 = vmin.f32 %v6468, 6.0
      %v6597 = vmin.f32 %v6469, 6.0
      %v6598 = vmin.f32 %v6470, 6.0
      %v6599 = vmin.f32 %v6471, 6.0
      %v6600 = vmin.f32 %v6472, 6.0
      %v6601 = vmin.f32 %v6473, 6.0
      %v6602 = vmin.f32 %v6474, 6.0
      %v6603 = vmin.f32 %v6475, 6.0
      %v6604 = vmin.f32 %v6476, 6.0
      %v6605 = vmin.f32 %v6477, 6.0
      %v6606 = vmin.f32 %v6478, 6.0
      %v6607 = vmin.f32 %v6479, 6.0
      %v6608 = vmin.f32 %v6480, 6.0
      %v6609 = vmin.f32 %v6481, 6.0
      %v6610 = vmin.f32 %v6482, 6.0
      %v6611 = vmin.f32 %v6483, 6.0
      %v6612 = vmin.f32 %v6484, 6.0
      %v6613 = vmin.f32 %v6485, 6.0
      %v6614 = vmin.f32 %v6486, 6.0
      %v6615 = vmin.f32 %v6487, 6.0
      %v6616 = vmin.f32 %v6488, 6.0
      %v6617 = vmin.f32 %v6489, 6.0
      %v6618 = vmin.f32 %v6490, 6.0
      %v6619 = vmin.f32 %v6491, 6.0
      %v6620 = vmul.f32 %v6108, %v6492
      %v6621 = vmul.f32 %v6109, %v6493
      %v6622 = vmul.f32 %v6110, %v6494
      %v6623 = vmul.f32 %v6111, %v6495
      %v6624 = vmul.f32 %v6112, %v6496
      %v6625 = vmul.f32 %v6113, %v6497
      %v6626 = vmul.f32 %v6114, %v6498
      %v6627 = vmul.f32 %v6115, %v6499
      %v6628 = vmul.f32 %v6116, %v6500
      %v6629 = vmul.f32 %v6117, %v6501
      %v6630 = vmul.f32 %v6118, %v6502
      %v6631 = vmul.f32 %v6119, %v6503
      %v6632 = vmul.f32 %v6120, %v6504
      %v6633 = vmul.f32 %v6121, %v6505
      %v6634 = vmul.f32 %v6122, %v6506
      %v6635 = vmul.f32 %v6123, %v6507
      %v6636 = vmul.f32 %v6124, %v6508
      %v6637 = vmul.f32 %v6125, %v6509
      %v6638 = vmul.f32 %v6126, %v6510
      %v6639 = vmul.f32 %v6127, %v6511
      %v6640 = vmul.f32 %v6128, %v6512
      %v6641 = vmul.f32 %v6129, %v6513
      %v6642 = vmul.f32 %v6130, %v6514
      %v6643 = vmul.f32 %v6131, %v6515
      %v6644 = vmul.f32 %v6132, %v6516
      %v6645 = vmul.f32 %v6133, %v6517
      %v6646 = vmul.f32 %v6134, %v6518
      %v6647 = vmul.f32 %v6135, %v6519
      %v6648 = vmul.f32 %v6136, %v6520
      %v6649 = vmul.f32 %v6137, %v6521
      %v6650 = vmul.f32 %v6138, %v6522
      %v6651 = vmul.f32 %v6139, %v6523
      %v6652 = vmul.f32 %v6140, %v6524
      %v6653 = vmul.f32 %v6141, %v6525
      %v6654 = vmul.f32 %v6142, %v6526
      %v6655 = vmul.f32 %v6143, %v6527
      %v6656 = vmul.f32 %v6144, %v6528
      %v6657 = vmul.f32 %v6145, %v6529
      %v6658 = vmul.f32 %v6146, %v6530
      %v6659 = vmul.f32 %v6147, %v6531
      %v6660 = vmul.f32 %v6148, %v6532
      %v6661 = vmul.f32 %v6149, %v6533
      %v6662 = vmul.f32 %v6150, %v6534
      %v6663 = vmul.f32 %v6151, %v6535
      %v6664 = vmul.f32 %v6152, %v6536
      %v6665 = vmul.f32 %v6153, %v6537
      %v6666 = vmul.f32 %v6154, %v6538
      %v6667 = vmul.f32 %v6155, %v6539
      %v6668 = vmul.f32 %v6156, %v6540
      %v6669 = vmul.f32 %v6157, %v6541
      %v6670 = vmul.f32 %v6158, %v6542
      %v6671 = vmul.f32 %v6159, %v6543
      %v6672 = vmul.f32 %v6160, %v6544
      %v6673 = vmul.f32 %v6161, %v6545
      %v6674 = vmul.f32 %v6162, %v6546
      %v6675 = vmul.f32 %v6163, %v6547
      %v6676 = vmul.f32 %v6164, %v6548
      %v6677 = vmul.f32 %v6165, %v6549
      %v6678 = vmul.f32 %v6166, %v6550
      %v6679 = vmul.f32 %v6167, %v6551
      %v6680 = vmul.f32 %v6168, %v6552
      %v6681 = vmul.f32 %v6169, %v6553
      %v6682 = vmul.f32 %v6170, %v6554
      %v6683 = vmul.f32 %v6171, %v6555
      %v6684 = vmul.f32 %v6172, %v6556
      %v6685 = vmul.f32 %v6173, %v6557
      %v6686 = vmul.f32 %v6174, %v6558
      %v6687 = vmul.f32 %v6175, %v6559
      %v6688 = vmul.f32 %v6176, %v6560
      %v6689 = vmul.f32 %v6177, %v6561
      %v6690 = vmul.f32 %v6178, %v6562
      %v6691 = vmul.f32 %v6179, %v6563
      %v6692 = vmul.f32 %v6180, %v6564
      %v6693 = vmul.f32 %v6181, %v6565
      %v6694 = vmul.f32 %v6182, %v6566
      %v6695 = vmul.f32 %v6183, %v6567
      %v6696 = vmul.f32 %v6184, %v6568
      %v6697 = vmul.f32 %v6185, %v6569
      %v6698 = vmul.f32 %v6186, %v6570
      %v6699 = vmul.f32 %v6187, %v6571
      %v6700 = vmul.f32 %v6188, %v6572
      %v6701 = vmul.f32 %v6189, %v6573
      %v6702 = vmul.f32 %v6190, %v6574
      %v6703 = vmul.f32 %v6191, %v6575
      %v6704 = vmul.f32 %v6192, %v6576
      %v6705 = vmul.f32 %v6193, %v6577
      %v6706 = vmul.f32 %v6194, %v6578
      %v6707 = vmul.f32 %v6195, %v6579
      %v6708 = vmul.f32 %v6196, %v6580
      %v6709 = vmul.f32 %v6197, %v6581
      %v6710 = vmul.f32 %v6198, %v6582
      %v6711 = vmul.f32 %v6199, %v6583
      %v6712 = vmul.f32 %v6200, %v6584
      %v6713 = vmul.f32 %v6201, %v6585
      %v6714 = vmul.f32 %v6202, %v6586
      %v6715 = vmul.f32 %v6203, %v6587
      %v6716 = vmul.f32 %v6204, %v6588
      %v6717 = vmul.f32 %v6205, %v6589
      %v6718 = vmul.f32 %v6206, %v6590
      %v6719 = vmul.f32 %v6207, %v6591
      %v6720 = vmul.f32 %v6208, %v6592
      %v6721 = vmul.f32 %v6209, %v6593
      %v6722 = vmul.f32 %v6210, %v6594
      %v6723 = vmul.f32 %v6211, %v6595
      %v6724 = vmul.f32 %v6212, %v6596
      %v6725 = vmul.f32 %v6213, %v6597
      %v6726 = vmul.f32 %v6214, %v6598
      %v6727 = vmul.f32 %v6215, %v6599
      %v6728 = vmul.f32 %v6216, %v6600
      %v6729 = vmul.f32 %v6217, %v6601
      %v6730 = vmul.f32 %v6218, %v6602
      %v6731 = vmul.f32 %v6219, %v6603
      %v6732 = vmul.f32 %v6220, %v6604
      %v6733 = vmul.f32 %v6221, %v6605
      %v6734 = vmul.f32 %v6222, %v6606
      %v6735 = vmul.f32 %v6223, %v6607
      %v6736 = vmul.f32 %v6224, %v6608
      %v6737 = vmul.f32 %v6225, %v6609
      %v6738 = vmul.f32 %v6226, %v6610
      %v6739 = vmul.f32 %v6227, %v6611
      %v6740 = vmul.f32 %v6228, %v6612
      %v6741 = vmul.f32 %v6229, %v6613
      %v6742 = vmul.f32 %v6230, %v6614
      %v6743 = vmul.f32 %v6231, %v6615
      %v6744 = vmul.f32 %v6232, %v6616
      %v6745 = vmul.f32 %v6233, %v6617
      %v6746 = vmul.f32 %v6234, %v6618
      %v6747 = vmul.f32 %v6235, %v6619
      %v6748 = vmul.f32 %v6620, 0.16666667
      %v6749 = vmul.f32 %v6621, 0.16666667
      %v6750 = vmul.f32 %v6622, 0.16666667
      %v6751 = vmul.f32 %v6623, 0.16666667
      %v6752 = vmul.f32 %v6624, 0.16666667
      %v6753 = vmul.f32 %v6625, 0.16666667
      %v6754 = vmul.f32 %v6626, 0.16666667
      %v6755 = vmul.f32 %v6627, 0.16666667
      %v6756 = vmul.f32 %v6628, 0.16666667
      %v6757 = vmul.f32 %v6629, 0.16666667
      %v6758 = vmul.f32 %v6630, 0.16666667
      %v6759 = vmul.f32 %v6631, 0.16666667
      %v6760 = vmul.f32 %v6632, 0.16666667
      %v6761 = vmul.f32 %v6633, 0.16666667
      %v6762 = vmul.f32 %v6634, 0.16666667
      %v6763 = vmul.f32 %v6635, 0.16666667
      %v6764 = vmul.f32 %v6636, 0.16666667
      %v6765 = vmul.f32 %v6637, 0.16666667
      %v6766 = vmul.f32 %v6638, 0.16666667
      %v6767 = vmul.f32 %v6639, 0.16666667
      %v6768 = vmul.f32 %v6640, 0.16666667
      %v6769 = vmul.f32 %v6641, 0.16666667
      %v6770 = vmul.f32 %v6642, 0.16666667
      %v6771 = vmul.f32 %v6643, 0.16666667
      %v6772 = vmul.f32 %v6644, 0.16666667
      %v6773 = vmul.f32 %v6645, 0.16666667
      %v6774 = vmul.f32 %v6646, 0.16666667
      %v6775 = vmul.f32 %v6647, 0.16666667
      %v6776 = vmul.f32 %v6648, 0.16666667
      %v6777 = vmul.f32 %v6649, 0.16666667
      %v6778 = vmul.f32 %v6650, 0.16666667
      %v6779 = vmul.f32 %v6651, 0.16666667
      %v6780 = vmul.f32 %v6652, 0.16666667
      %v6781 = vmul.f32 %v6653, 0.16666667
      %v6782 = vmul.f32 %v6654, 0.16666667
      %v6783 = vmul.f32 %v6655, 0.16666667
      %v6784 = vmul.f32 %v6656, 0.16666667
      %v6785 = vmul.f32 %v6657, 0.16666667
      %v6786 = vmul.f32 %v6658, 0.16666667
      %v6787 = vmul.f32 %v6659, 0.16666667
      %v6788 = vmul.f32 %v6660, 0.16666667
      %v6789 = vmul.f32 %v6661, 0.16666667
      %v6790 = vmul.f32 %v6662, 0.16666667
      %v6791 = vmul.f32 %v6663, 0.16666667
      %v6792 = vmul.f32 %v6664, 0.16666667
      %v6793 = vmul.f32 %v6665, 0.16666667
      %v6794 = vmul.f32 %v6666, 0.16666667
      %v6795 = vmul.f32 %v6667, 0.16666667
      %v6796 = vmul.f32 %v6668, 0.16666667
      %v6797 = vmul.f32 %v6669, 0.16666667
      %v6798 = vmul.f32 %v6670, 0.16666667
      %v6799 = vmul.f32 %v6671, 0.16666667
      %v6800 = vmul.f32 %v6672, 0.16666667
      %v6801 = vmul.f32 %v6673, 0.16666667
      %v6802 = vmul.f32 %v6674, 0.16666667
      %v6803 = vmul.f32 %v6675, 0.16666667
      %v6804 = vmul.f32 %v6676, 0.16666667
      %v6805 = vmul.f32 %v6677, 0.16666667
      %v6806 = vmul.f32 %v6678, 0.16666667
      %v6807 = vmul.f32 %v6679, 0.16666667
      %v6808 = vmul.f32 %v6680, 0.16666667
      %v6809 = vmul.f32 %v6681, 0.16666667
      %v6810 = vmul.f32 %v6682, 0.16666667
      %v6811 = vmul.f32 %v6683, 0.16666667
      %v6812 = vmul.f32 %v6684, 0.16666667
      %v6813 = vmul.f32 %v6685, 0.16666667
      %v6814 = vmul.f32 %v6686, 0.16666667
      %v6815 = vmul.f32 %v6687, 0.16666667
      %v6816 = vmul.f32 %v6688, 0.16666667
      %v6817 = vmul.f32 %v6689, 0.16666667
      %v6818 = vmul.f32 %v6690, 0.16666667
      %v6819 = vmul.f32 %v6691, 0.16666667
      %v6820 = vmul.f32 %v6692, 0.16666667
      %v6821 = vmul.f32 %v6693, 0.16666667
      %v6822 = vmul.f32 %v6694, 0.16666667
      %v6823 = vmul.f32 %v6695, 0.16666667
      %v6824 = vmul.f32 %v6696, 0.16666667
      %v6825 = vmul.f32 %v6697, 0.16666667
      %v6826 = vmul.f32 %v6698, 0.16666667
      %v6827 = vmul.f32 %v6699, 0.16666667
      %v6828 = vmul.f32 %v6700, 0.16666667
      %v6829 = vmul.f32 %v6701, 0.16666667
      %v6830 = vmul.f32 %v6702, 0.16666667
      %v6831 = vmul.f32 %v6703, 0.16666667
      %v6832 = vmul.f32 %v6704, 0.16666667
      %v6833 = vmul.f32 %v6705, 0.16666667
      %v6834 = vmul.f32 %v6706, 0.16666667
      %v6835 = vmul.f32 %v6707, 0.16666667
      %v6836 = vmul.f32 %v6708, 0.16666667
      %v6837 = vmul.f32 %v6709, 0.16666667
      %v6838 = vmul.f32 %v6710, 0.16666667
      %v6839 = vmul.f32 %v6711, 0.16666667
      %v6840 = vmul.f32 %v6712, 0.16666667
      %v6841 = vmul.f32 %v6713, 0.16666667
      %v6842 = vmul.f32 %v6714, 0.16666667
      %v6843 = vmul.f32 %v6715, 0.16666667
      %v6844 = vmul.f32 %v6716, 0.16666667
      %v6845 = vmul.f32 %v6717, 0.16666667
      %v6846 = vmul.f32 %v6718, 0.16666667
      %v6847 = vmul.f32 %v6719, 0.16666667
      %v6848 = vmul.f32 %v6720, 0.16666667
      %v6849 = vmul.f32 %v6721, 0.16666667
      %v6850 = vmul.f32 %v6722, 0.16666667
      %v6851 = vmul.f32 %v6723, 0.16666667
      %v6852 = vmul.f32 %v6724, 0.16666667
      %v6853 = vmul.f32 %v6725, 0.16666667
      %v6854 = vmul.f32 %v6726, 0.16666667
      %v6855 = vmul.f32 %v6727, 0.16666667
      %v6856 = vmul.f32 %v6728, 0.16666667
      %v6857 = vmul.f32 %v6729, 0.16666667
      %v6858 = vmul.f32 %v6730, 0.16666667
      %v6859 = vmul.f32 %v6731, 0.16666667
      %v6860 = vmul.f32 %v6732, 0.16666667
      %v6861 = vmul.f32 %v6733, 0.16666667
      %v6862 = vmul.f32 %v6734, 0.16666667
      %v6863 = vmul.f32 %v6735, 0.16666667
      %v6864 = vmul.f32 %v6736, 0.16666667
      %v6865 = vmul.f32 %v6737, 0.16666667
      %v6866 = vmul.f32 %v6738, 0.16666667
      %v6867 = vmul.f32 %v6739, 0.16666667
      %v6868 = vmul.f32 %v6740, 0.16666667
      %v6869 = vmul.f32 %v6741, 0.16666667
      %v6870 = vmul.f32 %v6742, 0.16666667
      %v6871 = vmul.f32 %v6743, 0.16666667
      %v6872 = vmul.f32 %v6744, 0.16666667
      %v6873 = vmul.f32 %v6745, 0.16666667
      %v6874 = vmul.f32 %v6746, 0.16666667
      %v6875 = vmul.f32 %v6747, 0.16666667
      %v6876 = vsel %vm1762, %v6748, 0.0
      %v6877 = vsel %vm1762, %v6749, 0.0
      %v6878 = vadd.f32 %v6876, %v6877
      %v6879 = vsel %vm1762, %v6750, 0.0
      %v6880 = vadd.f32 %v6878, %v6879
      %v6881 = vsel %vm1762, %v6751, 0.0
      %v6882 = vadd.f32 %v6880, %v6881
      %v6883 = vsel %vm1762, %v6752, 0.0
      %v6884 = vadd.f32 %v6882, %v6883
      %v6885 = vsel %vm1762, %v6753, 0.0
      %v6886 = vadd.f32 %v6884, %v6885
      %v6887 = vsel %vm1762, %v6754, 0.0
      %v6888 = vadd.f32 %v6886, %v6887
      %v6889 = vsel %vm1762, %v6755, 0.0
      %v6890 = vadd.f32 %v6888, %v6889
      %v6891 = vsel %vm1762, %v6756, 0.0
      %v6892 = vadd.f32 %v6890, %v6891
      %v6893 = vsel %vm1762, %v6757, 0.0
      %v6894 = vadd.f32 %v6892, %v6893
      %v6895 = vsel %vm1762, %v6758, 0.0
      %v6896 = vadd.f32 %v6894, %v6895
      %v6897 = vsel %vm1762, %v6759, 0.0
      %v6898 = vadd.f32 %v6896, %v6897
      %v6899 = vsel %vm1762, %v6760, 0.0
      %v6900 = vadd.f32 %v6898, %v6899
      %v6901 = vsel %vm1762, %v6761, 0.0
      %v6902 = vadd.f32 %v6900, %v6901
      %v6903 = vsel %vm1762, %v6762, 0.0
      %v6904 = vadd.f32 %v6902, %v6903
      %v6905 = vsel %vm1762, %v6763, 0.0
      %v6906 = vadd.f32 %v6904, %v6905
      %v6907 = vsel %vm1762, %v6764, 0.0
      %v6908 = vadd.f32 %v6906, %v6907
      %v6909 = vsel %vm1762, %v6765, 0.0
      %v6910 = vadd.f32 %v6908, %v6909
      %v6911 = vsel %vm1762, %v6766, 0.0
      %v6912 = vadd.f32 %v6910, %v6911
      %v6913 = vsel %vm1762, %v6767, 0.0
      %v6914 = vadd.f32 %v6912, %v6913
      %v6915 = vsel %vm1762, %v6768, 0.0
      %v6916 = vadd.f32 %v6914, %v6915
      %v6917 = vsel %vm1762, %v6769, 0.0
      %v6918 = vadd.f32 %v6916, %v6917
      %v6919 = vsel %vm1762, %v6770, 0.0
      %v6920 = vadd.f32 %v6918, %v6919
      %v6921 = vsel %vm1762, %v6771, 0.0
      %v6922 = vadd.f32 %v6920, %v6921
      %v6923 = vsel %vm1762, %v6772, 0.0
      %v6924 = vadd.f32 %v6922, %v6923
      %v6925 = vsel %vm1762, %v6773, 0.0
      %v6926 = vadd.f32 %v6924, %v6925
      %v6927 = vsel %vm1762, %v6774, 0.0
      %v6928 = vadd.f32 %v6926, %v6927
      %v6929 = vsel %vm1762, %v6775, 0.0
      %v6930 = vadd.f32 %v6928, %v6929
      %v6931 = vsel %vm1762, %v6776, 0.0
      %v6932 = vadd.f32 %v6930, %v6931
      %v6933 = vsel %vm1762, %v6777, 0.0
      %v6934 = vadd.f32 %v6932, %v6933
      %v6935 = vsel %vm1762, %v6778, 0.0
      %v6936 = vadd.f32 %v6934, %v6935
      %v6937 = vsel %vm1762, %v6779, 0.0
      %v6938 = vadd.f32 %v6936, %v6937
      %v6939 = vrot.slane %v6938, 4
      %v6940 = vadd.f32 %v6938, %v6939
      %v6941 = vrot.slane %v6940, 2
      %v6942 = vadd.f32 %v6940, %v6941
      %v6943 = vrot.slane %v6942, 1
      %v6944 = vadd.f32 %v6942, %v6943
      %v6945 = vsel %vm1762, %v6780, 0.0
      %v6946 = vsel %vm1762, %v6781, 0.0
      %v6947 = vadd.f32 %v6945, %v6946
      %v6948 = vsel %vm1762, %v6782, 0.0
      %v6949 = vadd.f32 %v6947, %v6948
      %v6950 = vsel %vm1762, %v6783, 0.0
      %v6951 = vadd.f32 %v6949, %v6950
      %v6952 = vsel %vm1762, %v6784, 0.0
      %v6953 = vadd.f32 %v6951, %v6952
      %v6954 = vsel %vm1762, %v6785, 0.0
      %v6955 = vadd.f32 %v6953, %v6954
      %v6956 = vsel %vm1762, %v6786, 0.0
      %v6957 = vadd.f32 %v6955, %v6956
      %v6958 = vsel %vm1762, %v6787, 0.0
      %v6959 = vadd.f32 %v6957, %v6958
      %v6960 = vsel %vm1762, %v6788, 0.0
      %v6961 = vadd.f32 %v6959, %v6960
      %v6962 = vsel %vm1762, %v6789, 0.0
      %v6963 = vadd.f32 %v6961, %v6962
      %v6964 = vsel %vm1762, %v6790, 0.0
      %v6965 = vadd.f32 %v6963, %v6964
      %v6966 = vsel %vm1762, %v6791, 0.0
      %v6967 = vadd.f32 %v6965, %v6966
      %v6968 = vsel %vm1762, %v6792, 0.0
      %v6969 = vadd.f32 %v6967, %v6968
      %v6970 = vsel %vm1762, %v6793, 0.0
      %v6971 = vadd.f32 %v6969, %v6970
      %v6972 = vsel %vm1762, %v6794, 0.0
      %v6973 = vadd.f32 %v6971, %v6972
      %v6974 = vsel %vm1762, %v6795, 0.0
      %v6975 = vadd.f32 %v6973, %v6974
      %v6976 = vsel %vm1762, %v6796, 0.0
      %v6977 = vadd.f32 %v6975, %v6976
      %v6978 = vsel %vm1762, %v6797, 0.0
      %v6979 = vadd.f32 %v6977, %v6978
      %v6980 = vsel %vm1762, %v6798, 0.0
      %v6981 = vadd.f32 %v6979, %v6980
      %v6982 = vsel %vm1762, %v6799, 0.0
      %v6983 = vadd.f32 %v6981, %v6982
      %v6984 = vsel %vm1762, %v6800, 0.0
      %v6985 = vadd.f32 %v6983, %v6984
      %v6986 = vsel %vm1762, %v6801, 0.0
      %v6987 = vadd.f32 %v6985, %v6986
      %v6988 = vsel %vm1762, %v6802, 0.0
      %v6989 = vadd.f32 %v6987, %v6988
      %v6990 = vsel %vm1762, %v6803, 0.0
      %v6991 = vadd.f32 %v6989, %v6990
      %v6992 = vsel %vm1762, %v6804, 0.0
      %v6993 = vadd.f32 %v6991, %v6992
      %v6994 = vsel %vm1762, %v6805, 0.0
      %v6995 = vadd.f32 %v6993, %v6994
      %v6996 = vsel %vm1762, %v6806, 0.0
      %v6997 = vadd.f32 %v6995, %v6996
      %v6998 = vsel %vm1762, %v6807, 0.0
      %v6999 = vadd.f32 %v6997, %v6998
      %v7000 = vsel %vm1762, %v6808, 0.0
      %v7001 = vadd.f32 %v6999, %v7000
      %v7002 = vsel %vm1762, %v6809, 0.0
      %v7003 = vadd.f32 %v7001, %v7002
      %v7004 = vsel %vm1762, %v6810, 0.0
      %v7005 = vadd.f32 %v7003, %v7004
      %v7006 = vsel %vm1762, %v6811, 0.0
      %v7007 = vadd.f32 %v7005, %v7006
      %v7008 = vrot.slane %v7007, 4
      %v7009 = vadd.f32 %v7007, %v7008
      %v7010 = vrot.slane %v7009, 2
      %v7011 = vadd.f32 %v7009, %v7010
      %v7012 = vrot.slane %v7011, 1
      %v7013 = vadd.f32 %v7011, %v7012
      %v7014 = vsel %vm1762, %v6812, 0.0
      %v7015 = vsel %vm1762, %v6813, 0.0
      %v7016 = vadd.f32 %v7014, %v7015
      %v7017 = vsel %vm1762, %v6814, 0.0
      %v7018 = vadd.f32 %v7016, %v7017
      %v7019 = vsel %vm1762, %v6815, 0.0
      %v7020 = vadd.f32 %v7018, %v7019
      %v7021 = vsel %vm1762, %v6816, 0.0
      %v7022 = vadd.f32 %v7020, %v7021
      %v7023 = vsel %vm1762, %v6817, 0.0
      %v7024 = vadd.f32 %v7022, %v7023
      %v7025 = vsel %vm1762, %v6818, 0.0
      %v7026 = vadd.f32 %v7024, %v7025
      %v7027 = vsel %vm1762, %v6819, 0.0
      %v7028 = vadd.f32 %v7026, %v7027
      %v7029 = vsel %vm1762, %v6820, 0.0
      %v7030 = vadd.f32 %v7028, %v7029
      %v7031 = vsel %vm1762, %v6821, 0.0
      %v7032 = vadd.f32 %v7030, %v7031
      %v7033 = vsel %vm1762, %v6822, 0.0
      %v7034 = vadd.f32 %v7032, %v7033
      %v7035 = vsel %vm1762, %v6823, 0.0
      %v7036 = vadd.f32 %v7034, %v7035
      %v7037 = vsel %vm1762, %v6824, 0.0
      %v7038 = vadd.f32 %v7036, %v7037
      %v7039 = vsel %vm1762, %v6825, 0.0
      %v7040 = vadd.f32 %v7038, %v7039
      %v7041 = vsel %vm1762, %v6826, 0.0
      %v7042 = vadd.f32 %v7040, %v7041
      %v7043 = vsel %vm1762, %v6827, 0.0
      %v7044 = vadd.f32 %v7042, %v7043
      %v7045 = vsel %vm1762, %v6828, 0.0
      %v7046 = vadd.f32 %v7044, %v7045
      %v7047 = vsel %vm1762, %v6829, 0.0
      %v7048 = vadd.f32 %v7046, %v7047
      %v7049 = vsel %vm1762, %v6830, 0.0
      %v7050 = vadd.f32 %v7048, %v7049
      %v7051 = vsel %vm1762, %v6831, 0.0
      %v7052 = vadd.f32 %v7050, %v7051
      %v7053 = vsel %vm1762, %v6832, 0.0
      %v7054 = vadd.f32 %v7052, %v7053
      %v7055 = vsel %vm1762, %v6833, 0.0
      %v7056 = vadd.f32 %v7054, %v7055
      %v7057 = vsel %vm1762, %v6834, 0.0
      %v7058 = vadd.f32 %v7056, %v7057
      %v7059 = vsel %vm1762, %v6835, 0.0
      %v7060 = vadd.f32 %v7058, %v7059
      %v7061 = vsel %vm1762, %v6836, 0.0
      %v7062 = vadd.f32 %v7060, %v7061
      %v7063 = vsel %vm1762, %v6837, 0.0
      %v7064 = vadd.f32 %v7062, %v7063
      %v7065 = vsel %vm1762, %v6838, 0.0
      %v7066 = vadd.f32 %v7064, %v7065
      %v7067 = vsel %vm1762, %v6839, 0.0
      %v7068 = vadd.f32 %v7066, %v7067
      %v7069 = vsel %vm1762, %v6840, 0.0
      %v7070 = vadd.f32 %v7068, %v7069
      %v7071 = vsel %vm1762, %v6841, 0.0
      %v7072 = vadd.f32 %v7070, %v7071
      %v7073 = vsel %vm1762, %v6842, 0.0
      %v7074 = vadd.f32 %v7072, %v7073
      %v7075 = vsel %vm1762, %v6843, 0.0
      %v7076 = vadd.f32 %v7074, %v7075
      %v7077 = vrot.slane %v7076, 4
      %v7078 = vadd.f32 %v7076, %v7077
      %v7079 = vrot.slane %v7078, 2
      %v7080 = vadd.f32 %v7078, %v7079
      %v7081 = vrot.slane %v7080, 1
      %v7082 = vadd.f32 %v7080, %v7081
      %v7083 = vsel %vm1762, %v6844, 0.0
      %v7084 = vsel %vm1762, %v6845, 0.0
      %v7085 = vadd.f32 %v7083, %v7084
      %v7086 = vsel %vm1762, %v6846, 0.0
      %v7087 = vadd.f32 %v7085, %v7086
      %v7088 = vsel %vm1762, %v6847, 0.0
      %v7089 = vadd.f32 %v7087, %v7088
      %v7090 = vsel %vm1762, %v6848, 0.0
      %v7091 = vadd.f32 %v7089, %v7090
      %v7092 = vsel %vm1762, %v6849, 0.0
      %v7093 = vadd.f32 %v7091, %v7092
      %v7094 = vsel %vm1762, %v6850, 0.0
      %v7095 = vadd.f32 %v7093, %v7094
      %v7096 = vsel %vm1762, %v6851, 0.0
      %v7097 = vadd.f32 %v7095, %v7096
      %v7098 = vsel %vm1762, %v6852, 0.0
      %v7099 = vadd.f32 %v7097, %v7098
      %v7100 = vsel %vm1762, %v6853, 0.0
      %v7101 = vadd.f32 %v7099, %v7100
      %v7102 = vsel %vm1762, %v6854, 0.0
      %v7103 = vadd.f32 %v7101, %v7102
      %v7104 = vsel %vm1762, %v6855, 0.0
      %v7105 = vadd.f32 %v7103, %v7104
      %v7106 = vsel %vm1762, %v6856, 0.0
      %v7107 = vadd.f32 %v7105, %v7106
      %v7108 = vsel %vm1762, %v6857, 0.0
      %v7109 = vadd.f32 %v7107, %v7108
      %v7110 = vsel %vm1762, %v6858, 0.0
      %v7111 = vadd.f32 %v7109, %v7110
      %v7112 = vsel %vm1762, %v6859, 0.0
      %v7113 = vadd.f32 %v7111, %v7112
      %v7114 = vsel %vm1762, %v6860, 0.0
      %v7115 = vadd.f32 %v7113, %v7114
      %v7116 = vsel %vm1762, %v6861, 0.0
      %v7117 = vadd.f32 %v7115, %v7116
      %v7118 = vsel %vm1762, %v6862, 0.0
      %v7119 = vadd.f32 %v7117, %v7118
      %v7120 = vsel %vm1762, %v6863, 0.0
      %v7121 = vadd.f32 %v7119, %v7120
      %v7122 = vsel %vm1762, %v6864, 0.0
      %v7123 = vadd.f32 %v7121, %v7122
      %v7124 = vsel %vm1762, %v6865, 0.0
      %v7125 = vadd.f32 %v7123, %v7124
      %v7126 = vsel %vm1762, %v6866, 0.0
      %v7127 = vadd.f32 %v7125, %v7126
      %v7128 = vsel %vm1762, %v6867, 0.0
      %v7129 = vadd.f32 %v7127, %v7128
      %v7130 = vsel %vm1762, %v6868, 0.0
      %v7131 = vadd.f32 %v7129, %v7130
      %v7132 = vsel %vm1762, %v6869, 0.0
      %v7133 = vadd.f32 %v7131, %v7132
      %v7134 = vsel %vm1762, %v6870, 0.0
      %v7135 = vadd.f32 %v7133, %v7134
      %v7136 = vsel %vm1762, %v6871, 0.0
      %v7137 = vadd.f32 %v7135, %v7136
      %v7138 = vsel %vm1762, %v6872, 0.0
      %v7139 = vadd.f32 %v7137, %v7138
      %v7140 = vsel %vm1762, %v6873, 0.0
      %v7141 = vadd.f32 %v7139, %v7140
      %v7142 = vsel %vm1762, %v6874, 0.0
      %v7143 = vadd.f32 %v7141, %v7142
      %v7144 = vsel %vm1762, %v6875, 0.0
      %v7145 = vadd.f32 %v7143, %v7144
      %v7146 = vrot.slane %v7145, 4
      %v7147 = vadd.f32 %v7145, %v7146
      %v7148 = vrot.slane %v7147, 2
      %v7149 = vadd.f32 %v7147, %v7148
      %v7150 = vrot.slane %v7149, 1
      %v7151 = vadd.f32 %v7149, %v7150
      %v7152 = vmul.f32 %v6944, 0.00390625
      %v7153 = vmul.f32 %v7013, 0.00390625
      %v7154 = vmul.f32 %v7082, 0.00390625
      %v7155 = vmul.f32 %v7151, 0.00390625
      %v7156 = vld [vmem:[%s5] sm:$0xf]
      %v7157 = vld [vmem:[%s5 + $0x4] sm:$0xf]
      %v7158 = vld [vmem:[%s5 + $0x8] sm:$0xf]
      %v7159 = vld [vmem:[%s5 + $0xc] sm:$0xf]
      %v7160 = vpack.c.bf16 %v7152, %v7152
      %v7161 = vpack.c.bf16 %v7153, %v7153
      %v7162 = vpack.c.bf16 %v7154, %v7154
      %v7163 = vpack.c.bf16 %v7155, %v7155
      %v7164 = vld [vmem:[%s6] sm:$0x1]
      %v7166 = vperm.slane %v7164, 0
      %v7172 = vunpack.c.l.b16 %v7160
      %v7173 = vunpack.c.l.b16 %v7161
      %v7174 = vunpack.c.l.b16 %v7162
      %v7175 = vunpack.c.l.b16 %v7163
      %vm7176 = vcmask 1041409
      %v7177 = vsel %vm7176, %v7173, %v7172
      %vm7178 = vcmask 1042434
      %v7179 = vsel %vm7178, %v7174, %v7177
      %vm7180 = vcmask 1043459
      %v7181 = vsel %vm7180, %v7175, %v7179
      %v7182 = vpack.c.b16 %v7181, %v7181
      %v7187 = vunpack.c.l.b16 %v7156
      %v7188 = vunpack.c.l.b16 %v7157
      %v7189 = vunpack.c.l.b16 %v7158
      %v7190 = vunpack.c.l.b16 %v7159
      %v7191 = vpack.c.b16 %v7188, %v7187
      %v7192 = vpack.c.b16 %v7190, %v7189
      %v7196 = vsel %vm1762, %v7182, 0
      %7198 = vmatpush.bf16.msra.mxu0 0
      %7199 = vmatpush.bf16.msra.mxu0 0
      %7200 = vmatpush.bf16.msra.mxu0 0
      %7201 = vmatpush.bf16.msra.mxu0 0
      %7202 = vmatpush.bf16.msra.mxu0 0
      %7203 = vmatpush.bf16.msra.mxu0 0
      %7204 = vmatpush.bf16.msra.mxu0 %v7192
      %7205 = vmatpush.bf16.msra.mxu0 %v7191
      %7206 = vmatmul.bf16.gmra.mxu0 %v7196
      %v7207 = vpop.f32.mrf.mxu0
      %v7208 = vadd.f32 %v7166, %v7207
      %v7209 = vpop.f32.mrf.mxu0
      %7210 = vdwg.mxu0
      %v7211 = vmax.f32 %v7208, 0.0
      %v7212 = vld [vmem:[%s7] sm:$0xf]
      %v7213 = vpack.c.bf16 %v7211, %v7211
      %v7214 = vld [vmem:[%s8] sm:$0x1]
      %v7216 = vperm.slane %v7214, 0
      %vm7218 = vcmask 64512
      %v7220 = vsel %vm7218, %v7213, 0
      %vm7222 = vcmask 1043456
      %v7224 = vsel %vm7222, %v7212, 0
      %7226 = vmatpush.bf16.msra.mxu0 0
      %7227 = vmatpush.bf16.msra.mxu0 0
      %7228 = vmatpush.bf16.msra.mxu0 0
      %7229 = vmatpush.bf16.msra.mxu0 0
      %7230 = vmatpush.bf16.msra.mxu0 0
      %7231 = vmatpush.bf16.msra.mxu0 0
      %7232 = vmatpush.bf16.msra.mxu0 0
      %7233 = vmatpush.bf16.msra.mxu0 %v7224
      %7234 = vmatmul.bf16.gmra.mxu0 %v7220
      %v7235 = vpop.f32.mrf.mxu0
      %v7236 = vadd.f32 %v7216, %v7235
      %v7237 = vpop.f32.mrf.mxu0
      %7238 = vdwg.mxu0
      %v7239 = vadd.f32 %v7236, 3.0
      %v7240 = vmax.f32 %v7239, 0.0
      %v7241 = vmin.f32 %v7240, 6.0
      %v7242 = vmul.f32 %v7241, 0.16666667
      %v7244 = vrot.slane %v7242, 1
      %v7245 = vrot.slane %v7242, 2
      %v7246 = vrot.slane %v7242, 3
      %v7247 = vperm.slane %v7242, 0
      %v7248 = vperm.slane %v7244, 0
      %v7249 = vperm.slane %v7245, 0
      %v7250 = vperm.slane %v7246, 0
      %v7255 = vmul.f32 %v6748, %v7247
      %v7256 = vmul.f32 %v6749, %v7247
      %v7257 = vmul.f32 %v6750, %v7247
      %v7258 = vmul.f32 %v6751, %v7247
      %v7259 = vmul.f32 %v6752, %v7247
      %v7260 = vmul.f32 %v6753, %v7247
      %v7261 = vmul.f32 %v6754, %v7247
      %v7262 = vmul.f32 %v6755, %v7247
      %v7263 = vmul.f32 %v6756, %v7247
      %v7264 = vmul.f32 %v6757, %v7247
      %v7265 = vmul.f32 %v6758, %v7247
      %v7266 = vmul.f32 %v6759, %v7247
      %v7267 = vmul.f32 %v6760, %v7247
      %v7268 = vmul.f32 %v6761, %v7247
      %v7269 = vmul.f32 %v6762, %v7247
      %v7270 = vmul.f32 %v6763, %v7247
      %v7271 = vmul.f32 %v6764, %v7247
      %v7272 = vmul.f32 %v6765, %v7247
      %v7273 = vmul.f32 %v6766, %v7247
      %v7274 = vmul.f32 %v6767, %v7247
      %v7275 = vmul.f32 %v6768, %v7247
      %v7276 = vmul.f32 %v6769, %v7247
      %v7277 = vmul.f32 %v6770, %v7247
      %v7278 = vmul.f32 %v6771, %v7247
      %v7279 = vmul.f32 %v6772, %v7247
      %v7280 = vmul.f32 %v6773, %v7247
      %v7281 = vmul.f32 %v6774, %v7247
      %v7282 = vmul.f32 %v6775, %v7247
      %v7283 = vmul.f32 %v6776, %v7247
      %v7284 = vmul.f32 %v6777, %v7247
      %v7285 = vmul.f32 %v6778, %v7247
      %v7286 = vmul.f32 %v6779, %v7247
      %v7287 = vmul.f32 %v6780, %v7248
      %v7288 = vmul.f32 %v6781, %v7248
      %v7289 = vmul.f32 %v6782, %v7248
      %v7290 = vmul.f32 %v6783, %v7248
      %v7291 = vmul.f32 %v6784, %v7248
      %v7292 = vmul.f32 %v6785, %v7248
      %v7293 = vmul.f32 %v6786, %v7248
      %v7294 = vmul.f32 %v6787, %v7248
      %v7295 = vmul.f32 %v6788, %v7248
      %v7296 = vmul.f32 %v6789, %v7248
      %v7297 = vmul.f32 %v6790, %v7248
      %v7298 = vmul.f32 %v6791, %v7248
      %v7299 = vmul.f32 %v6792, %v7248
      %v7300 = vmul.f32 %v6793, %v7248
      %v7301 = vmul.f32 %v6794, %v7248
      %v7302 = vmul.f32 %v6795, %v7248
      %v7303 = vmul.f32 %v6796, %v7248
      %v7304 = vmul.f32 %v6797, %v7248
      %v7305 = vmul.f32 %v6798, %v7248
      %v7306 = vmul.f32 %v6799, %v7248
      %v7307 = vmul.f32 %v6800, %v7248
      %v7308 = vmul.f32 %v6801, %v7248
      %v7309 = vmul.f32 %v6802, %v7248
      %v7310 = vmul.f32 %v6803, %v7248
      %v7311 = vmul.f32 %v6804, %v7248
      %v7312 = vmul.f32 %v6805, %v7248
      %v7313 = vmul.f32 %v6806, %v7248
      %v7314 = vmul.f32 %v6807, %v7248
      %v7315 = vmul.f32 %v6808, %v7248
      %v7316 = vmul.f32 %v6809, %v7248
      %v7317 = vmul.f32 %v6810, %v7248
      %v7318 = vmul.f32 %v6811, %v7248
      %v7319 = vmul.f32 %v6812, %v7249
      %v7320 = vmul.f32 %v6813, %v7249
      %v7321 = vmul.f32 %v6814, %v7249
      %v7322 = vmul.f32 %v6815, %v7249
      %v7323 = vmul.f32 %v6816, %v7249
      %v7324 = vmul.f32 %v6817, %v7249
      %v7325 = vmul.f32 %v6818, %v7249
      %v7326 = vmul.f32 %v6819, %v7249
      %v7327 = vmul.f32 %v6820, %v7249
      %v7328 = vmul.f32 %v6821, %v7249
      %v7329 = vmul.f32 %v6822, %v7249
      %v7330 = vmul.f32 %v6823, %v7249
      %v7331 = vmul.f32 %v6824, %v7249
      %v7332 = vmul.f32 %v6825, %v7249
      %v7333 = vmul.f32 %v6826, %v7249
      %v7334 = vmul.f32 %v6827, %v7249
      %v7335 = vmul.f32 %v6828, %v7249
      %v7336 = vmul.f32 %v6829, %v7249
      %v7337 = vmul.f32 %v6830, %v7249
      %v7338 = vmul.f32 %v6831, %v7249
      %v7339 = vmul.f32 %v6832, %v7249
      %v7340 = vmul.f32 %v6833, %v7249
      %v7341 = vmul.f32 %v6834, %v7249
      %v7342 = vmul.f32 %v6835, %v7249
      %v7343 = vmul.f32 %v6836, %v7249
      %v7344 = vmul.f32 %v6837, %v7249
      %v7345 = vmul.f32 %v6838, %v7249
      %v7346 = vmul.f32 %v6839, %v7249
      %v7347 = vmul.f32 %v6840, %v7249
      %v7348 = vmul.f32 %v6841, %v7249
      %v7349 = vmul.f32 %v6842, %v7249
      %v7350 = vmul.f32 %v6843, %v7249
      %v7351 = vmul.f32 %v6844, %v7250
      %v7352 = vmul.f32 %v6845, %v7250
      %v7353 = vmul.f32 %v6846, %v7250
      %v7354 = vmul.f32 %v6847, %v7250
      %v7355 = vmul.f32 %v6848, %v7250
      %v7356 = vmul.f32 %v6849, %v7250
      %v7357 = vmul.f32 %v6850, %v7250
      %v7358 = vmul.f32 %v6851, %v7250
      %v7359 = vmul.f32 %v6852, %v7250
      %v7360 = vmul.f32 %v6853, %v7250
      %v7361 = vmul.f32 %v6854, %v7250
      %v7362 = vmul.f32 %v6855, %v7250
      %v7363 = vmul.f32 %v6856, %v7250
      %v7364 = vmul.f32 %v6857, %v7250
      %v7365 = vmul.f32 %v6858, %v7250
      %v7366 = vmul.f32 %v6859, %v7250
      %v7367 = vmul.f32 %v6860, %v7250
      %v7368 = vmul.f32 %v6861, %v7250
      %v7369 = vmul.f32 %v6862, %v7250
      %v7370 = vmul.f32 %v6863, %v7250
      %v7371 = vmul.f32 %v6864, %v7250
      %v7372 = vmul.f32 %v6865, %v7250
      %v7373 = vmul.f32 %v6866, %v7250
      %v7374 = vmul.f32 %v6867, %v7250
      %v7375 = vmul.f32 %v6868, %v7250
      %v7376 = vmul.f32 %v6869, %v7250
      %v7377 = vmul.f32 %v6870, %v7250
      %v7378 = vmul.f32 %v6871, %v7250
      %v7379 = vmul.f32 %v6872, %v7250
      %v7380 = vmul.f32 %v6873, %v7250
      %v7381 = vmul.f32 %v6874, %v7250
      %v7382 = vmul.f32 %v6875, %v7250
      %v7383 = vld [vmem:[%s9] sm:$0xf]
      %v7384 = vld [vmem:[%s9 + $0x4] sm:$0xf]
      %v7385 = vld [vmem:[%s9 + $0x8] sm:$0xf]
      %v7386 = vld [vmem:[%s9 + $0xc] sm:$0xf]
      %v7387 = vpack.c.bf16 %v7256, %v7255
      %v7388 = vpack.c.bf16 %v7258, %v7257
      %v7389 = vpack.c.bf16 %v7260, %v7259
      %v7390 = vpack.c.bf16 %v7262, %v7261
      %v7391 = vpack.c.bf16 %v7264, %v7263
      %v7392 = vpack.c.bf16 %v7266, %v7265
      %v7393 = vpack.c.bf16 %v7268, %v7267
      %v7394 = vpack.c.bf16 %v7270, %v7269
      %v7395 = vpack.c.bf16 %v7272, %v7271
      %v7396 = vpack.c.bf16 %v7274, %v7273
      %v7397 = vpack.c.bf16 %v7276, %v7275
      %v7398 = vpack.c.bf16 %v7278, %v7277
      %v7399 = vpack.c.bf16 %v7280, %v7279
      %v7400 = vpack.c.bf16 %v7282, %v7281
      %v7401 = vpack.c.bf16 %v7284, %v7283
      %v7402 = vpack.c.bf16 %v7286, %v7285
      %v7403 = vpack.c.bf16 %v7288, %v7287
      %v7404 = vpack.c.bf16 %v7290, %v7289
      %v7405 = vpack.c.bf16 %v7292, %v7291
      %v7406 = vpack.c.bf16 %v7294, %v7293
      %v7407 = vpack.c.bf16 %v7296, %v7295
      %v7408 = vpack.c.bf16 %v7298, %v7297
      %v7409 = vpack.c.bf16 %v7300, %v7299
      %v7410 = vpack.c.bf16 %v7302, %v7301
      %v7411 = vpack.c.bf16 %v7304, %v7303
      %v7412 = vpack.c.bf16 %v7306, %v7305
      %v7413 = vpack.c.bf16 %v7308, %v7307
      %v7414 = vpack.c.bf16 %v7310, %v7309
      %v7415 = vpack.c.bf16 %v7312, %v7311
      %v7416 = vpack.c.bf16 %v7314, %v7313
      %v7417 = vpack.c.bf16 %v7316, %v7315
      %v7418 = vpack.c.bf16 %v7318, %v7317
      %v7419 = vpack.c.bf16 %v7320, %v7319
      %v7420 = vpack.c.bf16 %v7322, %v7321
      %v7421 = vpack.c.bf16 %v7324, %v7323
      %v7422 = vpack.c.bf16 %v7326, %v7325
      %v7423 = vpack.c.bf16 %v7328, %v7327
      %v7424 = vpack.c.bf16 %v7330, %v7329
      %v7425 = vpack.c.bf16 %v7332, %v7331
      %v7426 = vpack.c.bf16 %v7334, %v7333
      %v7427 = vpack.c.bf16 %v7336, %v7335
      %v7428 = vpack.c.bf16 %v7338, %v7337
      %v7429 = vpack.c.bf16 %v7340, %v7339
      %v7430 = vpack.c.bf16 %v7342, %v7341
      %v7431 = vpack.c.bf16 %v7344, %v7343
      %v7432 = vpack.c.bf16 %v7346, %v7345
      %v7433 = vpack.c.bf16 %v7348, %v7347
      %v7434 = vpack.c.bf16 %v7350, %v7349
      %v7435 = vpack.c.bf16 %v7352, %v7351
      %v7436 = vpack.c.bf16 %v7354, %v7353
      %v7437 = vpack.c.bf16 %v7356, %v7355
      %v7438 = vpack.c.bf16 %v7358, %v7357
      %v7439 = vpack.c.bf16 %v7360, %v7359
      %v7440 = vpack.c.bf16 %v7362, %v7361
      %v7441 = vpack.c.bf16 %v7364, %v7363
      %v7442 = vpack.c.bf16 %v7366, %v7365
      %v7443 = vpack.c.bf16 %v7368, %v7367
      %v7444 = vpack.c.bf16 %v7370, %v7369
      %v7445 = vpack.c.bf16 %v7372, %v7371
      %v7446 = vpack.c.bf16 %v7374, %v7373
      %v7447 = vpack.c.bf16 %v7376, %v7375
      %v7448 = vpack.c.bf16 %v7378, %v7377
      %v7449 = vpack.c.bf16 %v7380, %v7379
      %v7450 = vpack.c.bf16 %v7382, %v7381
      %v7451 = vld [vmem:[%s10] sm:$0x1]
      %v7453 = vperm.slane %v7451, 0
      %v7459 = vunpack.c.l.b16 %v7383
      %v7460 = vunpack.c.l.b16 %v7384
      %v7461 = vunpack.c.l.b16 %v7385
      %v7462 = vunpack.c.l.b16 %v7386
      %v7463 = vpack.c.b16 %v7460, %v7459
      %v7464 = vpack.c.b16 %v7462, %v7461
      %v7468 = vsel %vm1762, %v7387, 0
      %v7471 = vsel %vm1762, %v7388, 0
      %v7474 = vsel %vm1762, %v7389, 0
      %v7477 = vsel %vm1762, %v7390, 0
      %v7480 = vsel %vm1762, %v7391, 0
      %v7483 = vsel %vm1762, %v7392, 0
      %v7486 = vsel %vm1762, %v7393, 0
      %v7489 = vsel %vm1762, %v7394, 0
      %v7492 = vsel %vm1762, %v7395, 0
      %v7495 = vsel %vm1762, %v7396, 0
      %v7498 = vsel %vm1762, %v7397, 0
      %v7501 = vsel %vm1762, %v7398, 0
      %v7504 = vsel %vm1762, %v7399, 0
      %v7507 = vsel %vm1762, %v7400, 0
      %v7510 = vsel %vm1762, %v7401, 0
      %v7513 = vsel %vm1762, %v7402, 0
      %v7516 = vsel %vm1762, %v7403, 0
      %v7519 = vsel %vm1762, %v7404, 0
      %v7522 = vsel %vm1762, %v7405, 0
      %v7525 = vsel %vm1762, %v7406, 0
      %v7528 = vsel %vm1762, %v7407, 0
      %v7531 = vsel %vm1762, %v7408, 0
      %v7534 = vsel %vm1762, %v7409, 0
      %v7537 = vsel %vm1762, %v7410, 0
      %v7540 = vsel %vm1762, %v7411, 0
      %v7543 = vsel %vm1762, %v7412, 0
      %v7546 = vsel %vm1762, %v7413, 0
      %v7549 = vsel %vm1762, %v7414, 0
      %v7552 = vsel %vm1762, %v7415, 0
      %v7555 = vsel %vm1762, %v7416, 0
      %v7558 = vsel %vm1762, %v7417, 0
      %v7561 = vsel %vm1762, %v7418, 0
      %v7564 = vsel %vm1762, %v7419, 0
      %v7567 = vsel %vm1762, %v7420, 0
      %v7570 = vsel %vm1762, %v7421, 0
      %v7573 = vsel %vm1762, %v7422, 0
      %v7576 = vsel %vm1762, %v7423, 0
      %v7579 = vsel %vm1762, %v7424, 0
      %v7582 = vsel %vm1762, %v7425, 0
      %v7585 = vsel %vm1762, %v7426, 0
      %v7588 = vsel %vm1762, %v7427, 0
      %v7591 = vsel %vm1762, %v7428, 0
      %v7594 = vsel %vm1762, %v7429, 0
      %v7597 = vsel %vm1762, %v7430, 0
      %v7600 = vsel %vm1762, %v7431, 0
      %v7603 = vsel %vm1762, %v7432, 0
      %v7606 = vsel %vm1762, %v7433, 0
      %v7609 = vsel %vm1762, %v7434, 0
      %v7612 = vsel %vm1762, %v7435, 0
      %v7615 = vsel %vm1762, %v7436, 0
      %v7618 = vsel %vm1762, %v7437, 0
      %v7621 = vsel %vm1762, %v7438, 0
      %v7624 = vsel %vm1762, %v7439, 0
      %v7627 = vsel %vm1762, %v7440, 0
      %v7630 = vsel %vm1762, %v7441, 0
      %v7633 = vsel %vm1762, %v7442, 0
      %v7636 = vsel %vm1762, %v7443, 0
      %v7639 = vsel %vm1762, %v7444, 0
      %v7642 = vsel %vm1762, %v7445, 0
      %v7645 = vsel %vm1762, %v7446, 0
      %v7648 = vsel %vm1762, %v7447, 0
      %v7651 = vsel %vm1762, %v7448, 0
      %v7654 = vsel %vm1762, %v7449, 0
      %v7657 = vsel %vm1762, %v7450, 0
      %7659 = vmatpush.bf16.msra.mxu0 0
      %7660 = vmatpush.bf16.msra.mxu0 0
      %7661 = vmatpush.bf16.msra.mxu0 0
      %7662 = vmatpush.bf16.msra.mxu0 0
      %7663 = vmatpush.bf16.msra.mxu0 0
      %7664 = vmatpush.bf16.msra.mxu0 0
      %7665 = vmatpush.bf16.msra.mxu0 %v7464
      %7666 = vmatpush.bf16.msra.mxu0 %v7463
      %7667 = vmatmul.bf16.gmra.mxu0 %v7468
      %v7668 = vpop.f32.mrf.mxu0
      %v7669 = vadd.f32 %v7453, %v7668
      %v7670 = vpop.f32.mrf.mxu0
      %v7671 = vadd.f32 %v7453, %v7670
      %7672 = vmatmul.bf16.gmra.mxu0 %v7471
      %v7673 = vpop.f32.mrf.mxu0
      %v7674 = vadd.f32 %v7453, %v7673
      %v7675 = vpop.f32.mrf.mxu0
      %v7676 = vadd.f32 %v7453, %v7675
      %7677 = vmatmul.bf16.gmra.mxu0 %v7474
      %v7678 = vpop.f32.mrf.mxu0
      %v7679 = vadd.f32 %v7453, %v7678
      %v7680 = vpop.f32.mrf.mxu0
      %v7681 = vadd.f32 %v7453, %v7680
      %7682 = vmatmul.bf16.gmra.mxu0 %v7477
      %v7683 = vpop.f32.mrf.mxu0
      %v7684 = vadd.f32 %v7453, %v7683
      %v7685 = vpop.f32.mrf.mxu0
      %v7686 = vadd.f32 %v7453, %v7685
      %7687 = vmatmul.bf16.gmra.mxu0 %v7480
      %v7688 = vpop.f32.mrf.mxu0
      %v7689 = vadd.f32 %v7453, %v7688
      %v7690 = vpop.f32.mrf.mxu0
      %v7691 = vadd.f32 %v7453, %v7690
      %7692 = vmatmul.bf16.gmra.mxu0 %v7483
      %v7693 = vpop.f32.mrf.mxu0
      %v7694 = vadd.f32 %v7453, %v7693
      %v7695 = vpop.f32.mrf.mxu0
      %v7696 = vadd.f32 %v7453, %v7695
      %7697 = vmatmul.bf16.gmra.mxu0 %v7486
      %v7698 = vpop.f32.mrf.mxu0
      %v7699 = vadd.f32 %v7453, %v7698
      %v7700 = vpop.f32.mrf.mxu0
      %v7701 = vadd.f32 %v7453, %v7700
      %7702 = vmatmul.bf16.gmra.mxu0 %v7489
      %v7703 = vpop.f32.mrf.mxu0
      %v7704 = vadd.f32 %v7453, %v7703
      %v7705 = vpop.f32.mrf.mxu0
      %v7706 = vadd.f32 %v7453, %v7705
      %7707 = vmatmul.bf16.gmra.mxu0 %v7492
      %v7708 = vpop.f32.mrf.mxu0
      %v7709 = vadd.f32 %v7453, %v7708
      %v7710 = vpop.f32.mrf.mxu0
      %v7711 = vadd.f32 %v7453, %v7710
      %7712 = vmatmul.bf16.gmra.mxu0 %v7495
      %v7713 = vpop.f32.mrf.mxu0
      %v7714 = vadd.f32 %v7453, %v7713
      %v7715 = vpop.f32.mrf.mxu0
      %v7716 = vadd.f32 %v7453, %v7715
      %7717 = vmatmul.bf16.gmra.mxu0 %v7498
      %v7718 = vpop.f32.mrf.mxu0
      %v7719 = vadd.f32 %v7453, %v7718
      %v7720 = vpop.f32.mrf.mxu0
      %v7721 = vadd.f32 %v7453, %v7720
      %7722 = vmatmul.bf16.gmra.mxu0 %v7501
      %v7723 = vpop.f32.mrf.mxu0
      %v7724 = vadd.f32 %v7453, %v7723
      %v7725 = vpop.f32.mrf.mxu0
      %v7726 = vadd.f32 %v7453, %v7725
      %7727 = vmatmul.bf16.gmra.mxu0 %v7504
      %v7728 = vpop.f32.mrf.mxu0
      %v7729 = vadd.f32 %v7453, %v7728
      %v7730 = vpop.f32.mrf.mxu0
      %v7731 = vadd.f32 %v7453, %v7730
      %7732 = vmatmul.bf16.gmra.mxu0 %v7507
      %v7733 = vpop.f32.mrf.mxu0
      %v7734 = vadd.f32 %v7453, %v7733
      %v7735 = vpop.f32.mrf.mxu0
      %v7736 = vadd.f32 %v7453, %v7735
      %7737 = vmatmul.bf16.gmra.mxu0 %v7510
      %v7738 = vpop.f32.mrf.mxu0
      %v7739 = vadd.f32 %v7453, %v7738
      %v7740 = vpop.f32.mrf.mxu0
      %v7741 = vadd.f32 %v7453, %v7740
      %7742 = vmatmul.bf16.gmra.mxu0 %v7513
      %v7743 = vpop.f32.mrf.mxu0
      %v7744 = vadd.f32 %v7453, %v7743
      %v7745 = vpop.f32.mrf.mxu0
      %v7746 = vadd.f32 %v7453, %v7745
      %7747 = vmatmul.bf16.gmra.mxu0 %v7516
      %v7748 = vpop.f32.mrf.mxu0
      %v7749 = vadd.f32 %v7453, %v7748
      %v7750 = vpop.f32.mrf.mxu0
      %v7751 = vadd.f32 %v7453, %v7750
      %7752 = vmatmul.bf16.gmra.mxu0 %v7519
      %v7753 = vpop.f32.mrf.mxu0
      %v7754 = vadd.f32 %v7453, %v7753
      %v7755 = vpop.f32.mrf.mxu0
      %v7756 = vadd.f32 %v7453, %v7755
      %7757 = vmatmul.bf16.gmra.mxu0 %v7522
      %v7758 = vpop.f32.mrf.mxu0
      %v7759 = vadd.f32 %v7453, %v7758
      %v7760 = vpop.f32.mrf.mxu0
      %v7761 = vadd.f32 %v7453, %v7760
      %7762 = vmatmul.bf16.gmra.mxu0 %v7525
      %v7763 = vpop.f32.mrf.mxu0
      %v7764 = vadd.f32 %v7453, %v7763
      %v7765 = vpop.f32.mrf.mxu0
      %v7766 = vadd.f32 %v7453, %v7765
      %7767 = vmatmul.bf16.gmra.mxu0 %v7528
      %v7768 = vpop.f32.mrf.mxu0
      %v7769 = vadd.f32 %v7453, %v7768
      %v7770 = vpop.f32.mrf.mxu0
      %v7771 = vadd.f32 %v7453, %v7770
      %7772 = vmatmul.bf16.gmra.mxu0 %v7531
      %v7773 = vpop.f32.mrf.mxu0
      %v7774 = vadd.f32 %v7453, %v7773
      %v7775 = vpop.f32.mrf.mxu0
      %v7776 = vadd.f32 %v7453, %v7775
      %7777 = vmatmul.bf16.gmra.mxu0 %v7534
      %v7778 = vpop.f32.mrf.mxu0
      %v7779 = vadd.f32 %v7453, %v7778
      %v7780 = vpop.f32.mrf.mxu0
      %v7781 = vadd.f32 %v7453, %v7780
      %7782 = vmatmul.bf16.gmra.mxu0 %v7537
      %v7783 = vpop.f32.mrf.mxu0
      %v7784 = vadd.f32 %v7453, %v7783
      %v7785 = vpop.f32.mrf.mxu0
      %v7786 = vadd.f32 %v7453, %v7785
      %7787 = vmatmul.bf16.gmra.mxu0 %v7540
      %v7788 = vpop.f32.mrf.mxu0
      %v7789 = vadd.f32 %v7453, %v7788
      %v7790 = vpop.f32.mrf.mxu0
      %v7791 = vadd.f32 %v7453, %v7790
      %7792 = vmatmul.bf16.gmra.mxu0 %v7543
      %v7793 = vpop.f32.mrf.mxu0
      %v7794 = vadd.f32 %v7453, %v7793
      %v7795 = vpop.f32.mrf.mxu0
      %v7796 = vadd.f32 %v7453, %v7795
      %7797 = vmatmul.bf16.gmra.mxu0 %v7546
      %v7798 = vpop.f32.mrf.mxu0
      %v7799 = vadd.f32 %v7453, %v7798
      %v7800 = vpop.f32.mrf.mxu0
      %v7801 = vadd.f32 %v7453, %v7800
      %7802 = vmatmul.bf16.gmra.mxu0 %v7549
      %v7803 = vpop.f32.mrf.mxu0
      %v7804 = vadd.f32 %v7453, %v7803
      %v7805 = vpop.f32.mrf.mxu0
      %v7806 = vadd.f32 %v7453, %v7805
      %7807 = vmatmul.bf16.gmra.mxu0 %v7552
      %v7808 = vpop.f32.mrf.mxu0
      %v7809 = vadd.f32 %v7453, %v7808
      %v7810 = vpop.f32.mrf.mxu0
      %v7811 = vadd.f32 %v7453, %v7810
      %7812 = vmatmul.bf16.gmra.mxu0 %v7555
      %v7813 = vpop.f32.mrf.mxu0
      %v7814 = vadd.f32 %v7453, %v7813
      %v7815 = vpop.f32.mrf.mxu0
      %v7816 = vadd.f32 %v7453, %v7815
      %7817 = vmatmul.bf16.gmra.mxu0 %v7558
      %v7818 = vpop.f32.mrf.mxu0
      %v7819 = vadd.f32 %v7453, %v7818
      %v7820 = vpop.f32.mrf.mxu0
      %v7821 = vadd.f32 %v7453, %v7820
      %7822 = vmatmul.bf16.gmra.mxu0 %v7561
      %v7823 = vpop.f32.mrf.mxu0
      %v7824 = vadd.f32 %v7453, %v7823
      %v7825 = vpop.f32.mrf.mxu0
      %v7826 = vadd.f32 %v7453, %v7825
      %7827 = vmatmul.bf16.gmra.mxu0 %v7564
      %v7828 = vpop.f32.mrf.mxu0
      %v7829 = vadd.f32 %v7453, %v7828
      %v7830 = vpop.f32.mrf.mxu0
      %v7831 = vadd.f32 %v7453, %v7830
      %7832 = vmatmul.bf16.gmra.mxu0 %v7567
      %v7833 = vpop.f32.mrf.mxu0
      %v7834 = vadd.f32 %v7453, %v7833
      %v7835 = vpop.f32.mrf.mxu0
      %v7836 = vadd.f32 %v7453, %v7835
      %7837 = vmatmul.bf16.gmra.mxu0 %v7570
      %v7838 = vpop.f32.mrf.mxu0
      %v7839 = vadd.f32 %v7453, %v7838
      %v7840 = vpop.f32.mrf.mxu0
      %v7841 = vadd.f32 %v7453, %v7840
      %7842 = vmatmul.bf16.gmra.mxu0 %v7573
      %v7843 = vpop.f32.mrf.mxu0
      %v7844 = vadd.f32 %v7453, %v7843
      %v7845 = vpop.f32.mrf.mxu0
      %v7846 = vadd.f32 %v7453, %v7845
      %7847 = vmatmul.bf16.gmra.mxu0 %v7576
      %v7848 = vpop.f32.mrf.mxu0
      %v7849 = vadd.f32 %v7453, %v7848
      %v7850 = vpop.f32.mrf.mxu0
      %v7851 = vadd.f32 %v7453, %v7850
      %7852 = vmatmul.bf16.gmra.mxu0 %v7579
      %v7853 = vpop.f32.mrf.mxu0
      %v7854 = vadd.f32 %v7453, %v7853
      %v7855 = vpop.f32.mrf.mxu0
      %v7856 = vadd.f32 %v7453, %v7855
      %7857 = vmatmul.bf16.gmra.mxu0 %v7582
      %v7858 = vpop.f32.mrf.mxu0
      %v7859 = vadd.f32 %v7453, %v7858
      %v7860 = vpop.f32.mrf.mxu0
      %v7861 = vadd.f32 %v7453, %v7860
      %7862 = vmatmul.bf16.gmra.mxu0 %v7585
      %v7863 = vpop.f32.mrf.mxu0
      %v7864 = vadd.f32 %v7453, %v7863
      %v7865 = vpop.f32.mrf.mxu0
      %v7866 = vadd.f32 %v7453, %v7865
      %7867 = vmatmul.bf16.gmra.mxu0 %v7588
      %v7868 = vpop.f32.mrf.mxu0
      %v7869 = vadd.f32 %v7453, %v7868
      %v7870 = vpop.f32.mrf.mxu0
      %v7871 = vadd.f32 %v7453, %v7870
      %7872 = vmatmul.bf16.gmra.mxu0 %v7591
      %v7873 = vpop.f32.mrf.mxu0
      %v7874 = vadd.f32 %v7453, %v7873
      %v7875 = vpop.f32.mrf.mxu0
      %v7876 = vadd.f32 %v7453, %v7875
      %7877 = vmatmul.bf16.gmra.mxu0 %v7594
      %v7878 = vpop.f32.mrf.mxu0
      %v7879 = vadd.f32 %v7453, %v7878
      %v7880 = vpop.f32.mrf.mxu0
      %v7881 = vadd.f32 %v7453, %v7880
      %7882 = vmatmul.bf16.gmra.mxu0 %v7597
      %v7883 = vpop.f32.mrf.mxu0
      %v7884 = vadd.f32 %v7453, %v7883
      %v7885 = vpop.f32.mrf.mxu0
      %v7886 = vadd.f32 %v7453, %v7885
      %7887 = vmatmul.bf16.gmra.mxu0 %v7600
      %v7888 = vpop.f32.mrf.mxu0
      %v7889 = vadd.f32 %v7453, %v7888
      %v7890 = vpop.f32.mrf.mxu0
      %v7891 = vadd.f32 %v7453, %v7890
      %7892 = vmatmul.bf16.gmra.mxu0 %v7603
      %v7893 = vpop.f32.mrf.mxu0
      %v7894 = vadd.f32 %v7453, %v7893
      %v7895 = vpop.f32.mrf.mxu0
      %v7896 = vadd.f32 %v7453, %v7895
      %7897 = vmatmul.bf16.gmra.mxu0 %v7606
      %v7898 = vpop.f32.mrf.mxu0
      %v7899 = vadd.f32 %v7453, %v7898
      %v7900 = vpop.f32.mrf.mxu0
      %v7901 = vadd.f32 %v7453, %v7900
      %7902 = vmatmul.bf16.gmra.mxu0 %v7609
      %v7903 = vpop.f32.mrf.mxu0
      %v7904 = vadd.f32 %v7453, %v7903
      %v7905 = vpop.f32.mrf.mxu0
      %v7906 = vadd.f32 %v7453, %v7905
      %7907 = vmatmul.bf16.gmra.mxu0 %v7612
      %v7908 = vpop.f32.mrf.mxu0
      %v7909 = vadd.f32 %v7453, %v7908
      %v7910 = vpop.f32.mrf.mxu0
      %v7911 = vadd.f32 %v7453, %v7910
      %7912 = vmatmul.bf16.gmra.mxu0 %v7615
      %v7913 = vpop.f32.mrf.mxu0
      %v7914 = vadd.f32 %v7453, %v7913
      %v7915 = vpop.f32.mrf.mxu0
      %v7916 = vadd.f32 %v7453, %v7915
      %7917 = vmatmul.bf16.gmra.mxu0 %v7618
      %v7918 = vpop.f32.mrf.mxu0
      %v7919 = vadd.f32 %v7453, %v7918
      %v7920 = vpop.f32.mrf.mxu0
      %v7921 = vadd.f32 %v7453, %v7920
      %7922 = vmatmul.bf16.gmra.mxu0 %v7621
      %v7923 = vpop.f32.mrf.mxu0
      %v7924 = vadd.f32 %v7453, %v7923
      %v7925 = vpop.f32.mrf.mxu0
      %v7926 = vadd.f32 %v7453, %v7925
      %7927 = vmatmul.bf16.gmra.mxu0 %v7624
      %v7928 = vpop.f32.mrf.mxu0
      %v7929 = vadd.f32 %v7453, %v7928
      %v7930 = vpop.f32.mrf.mxu0
      %v7931 = vadd.f32 %v7453, %v7930
      %7932 = vmatmul.bf16.gmra.mxu0 %v7627
      %v7933 = vpop.f32.mrf.mxu0
      %v7934 = vadd.f32 %v7453, %v7933
      %v7935 = vpop.f32.mrf.mxu0
      %v7936 = vadd.f32 %v7453, %v7935
      %7937 = vmatmul.bf16.gmra.mxu0 %v7630
      %v7938 = vpop.f32.mrf.mxu0
      %v7939 = vadd.f32 %v7453, %v7938
      %v7940 = vpop.f32.mrf.mxu0
      %v7941 = vadd.f32 %v7453, %v7940
      %7942 = vmatmul.bf16.gmra.mxu0 %v7633
      %v7943 = vpop.f32.mrf.mxu0
      %v7944 = vadd.f32 %v7453, %v7943
      %v7945 = vpop.f32.mrf.mxu0
      %v7946 = vadd.f32 %v7453, %v7945
      %7947 = vmatmul.bf16.gmra.mxu0 %v7636
      %v7948 = vpop.f32.mrf.mxu0
      %v7949 = vadd.f32 %v7453, %v7948
      %v7950 = vpop.f32.mrf.mxu0
      %v7951 = vadd.f32 %v7453, %v7950
      %7952 = vmatmul.bf16.gmra.mxu0 %v7639
      %v7953 = vpop.f32.mrf.mxu0
      %v7954 = vadd.f32 %v7453, %v7953
      %v7955 = vpop.f32.mrf.mxu0
      %v7956 = vadd.f32 %v7453, %v7955
      %7957 = vmatmul.bf16.gmra.mxu0 %v7642
      %v7958 = vpop.f32.mrf.mxu0
      %v7959 = vadd.f32 %v7453, %v7958
      %v7960 = vpop.f32.mrf.mxu0
      %v7961 = vadd.f32 %v7453, %v7960
      %7962 = vmatmul.bf16.gmra.mxu0 %v7645
      %v7963 = vpop.f32.mrf.mxu0
      %v7964 = vadd.f32 %v7453, %v7963
      %v7965 = vpop.f32.mrf.mxu0
      %v7966 = vadd.f32 %v7453, %v7965
      %7967 = vmatmul.bf16.gmra.mxu0 %v7648
      %v7968 = vpop.f32.mrf.mxu0
      %v7969 = vadd.f32 %v7453, %v7968
      %v7970 = vpop.f32.mrf.mxu0
      %v7971 = vadd.f32 %v7453, %v7970
      %7972 = vmatmul.bf16.gmra.mxu0 %v7651
      %v7973 = vpop.f32.mrf.mxu0
      %v7974 = vadd.f32 %v7453, %v7973
      %v7975 = vpop.f32.mrf.mxu0
      %v7976 = vadd.f32 %v7453, %v7975
      %7977 = vmatmul.bf16.gmra.mxu0 %v7654
      %v7978 = vpop.f32.mrf.mxu0
      %v7979 = vadd.f32 %v7453, %v7978
      %v7980 = vpop.f32.mrf.mxu0
      %v7981 = vadd.f32 %v7453, %v7980
      %7982 = vmatmul.bf16.gmra.mxu0 %v7657
      %v7983 = vpop.f32.mrf.mxu0
      %v7984 = vadd.f32 %v7453, %v7983
      %v7985 = vpop.f32.mrf.mxu0
      %v7986 = vadd.f32 %v7453, %v7985
      %7987 = vdwg.mxu0
      %v7988 = vadd.f32 %v7669, %v396
      %v7989 = vadd.f32 %v7671, %v397
      %v7990 = vadd.f32 %v7674, %v398
      %v7991 = vadd.f32 %v7676, %v399
      %v7992 = vadd.f32 %v7679, %v400
      %v7993 = vadd.f32 %v7681, %v401
      %v7994 = vadd.f32 %v7684, %v402
      %v7995 = vadd.f32 %v7686, %v403
      %v7996 = vadd.f32 %v7689, %v404
      %v7997 = vadd.f32 %v7691, %v405
      %v7998 = vadd.f32 %v7694, %v406
      %v7999 = vadd.f32 %v7696, %v407
      %v8000 = vadd.f32 %v7699, %v408
      %v8001 = vadd.f32 %v7701, %v409
      %v8002 = vadd.f32 %v7704, %v410
      %v8003 = vadd.f32 %v7706, %v411
      %v8004 = vadd.f32 %v7709, %v412
      %v8005 = vadd.f32 %v7711, %v413
      %v8006 = vadd.f32 %v7714, %v414
      %v8007 = vadd.f32 %v7716, %v415
      %v8008 = vadd.f32 %v7719, %v416
      %v8009 = vadd.f32 %v7721, %v417
      %v8010 = vadd.f32 %v7724, %v418
      %v8011 = vadd.f32 %v7726, %v419
      %v8012 = vadd.f32 %v7729, %v420
      %v8013 = vadd.f32 %v7731, %v421
      %v8014 = vadd.f32 %v7734, %v422
      %v8015 = vadd.f32 %v7736, %v423
      %v8016 = vadd.f32 %v7739, %v424
      %v8017 = vadd.f32 %v7741, %v425
      %v8018 = vadd.f32 %v7744, %v426
      %v8019 = vadd.f32 %v7746, %v427
      %v8020 = vadd.f32 %v7749, %v428
      %v8021 = vadd.f32 %v7751, %v429
      %v8022 = vadd.f32 %v7754, %v430
      %v8023 = vadd.f32 %v7756, %v431
      %v8024 = vadd.f32 %v7759, %v432
      %v8025 = vadd.f32 %v7761, %v433
      %v8026 = vadd.f32 %v7764, %v434
      %v8027 = vadd.f32 %v7766, %v435
      %v8028 = vadd.f32 %v7769, %v436
      %v8029 = vadd.f32 %v7771, %v437
      %v8030 = vadd.f32 %v7774, %v438
      %v8031 = vadd.f32 %v7776, %v439
      %v8032 = vadd.f32 %v7779, %v440
      %v8033 = vadd.f32 %v7781, %v441
      %v8034 = vadd.f32 %v7784, %v442
      %v8035 = vadd.f32 %v7786, %v443
      %v8036 = vadd.f32 %v7789, %v444
      %v8037 = vadd.f32 %v7791, %v445
      %v8038 = vadd.f32 %v7794, %v446
      %v8039 = vadd.f32 %v7796, %v447
      %v8040 = vadd.f32 %v7799, %v448
      %v8041 = vadd.f32 %v7801, %v449
      %v8042 = vadd.f32 %v7804, %v450
      %v8043 = vadd.f32 %v7806, %v451
      %v8044 = vadd.f32 %v7809, %v452
      %v8045 = vadd.f32 %v7811, %v453
      %v8046 = vadd.f32 %v7814, %v454
      %v8047 = vadd.f32 %v7816, %v455
      %v8048 = vadd.f32 %v7819, %v456
      %v8049 = vadd.f32 %v7821, %v457
      %v8050 = vadd.f32 %v7824, %v458
      %v8051 = vadd.f32 %v7826, %v459
      %v8052 = vadd.f32 %v7829, %v460
      %v8053 = vadd.f32 %v7831, %v461
      %v8054 = vadd.f32 %v7834, %v462
      %v8055 = vadd.f32 %v7836, %v463
      %v8056 = vadd.f32 %v7839, %v464
      %v8057 = vadd.f32 %v7841, %v465
      %v8058 = vadd.f32 %v7844, %v466
      %v8059 = vadd.f32 %v7846, %v467
      %v8060 = vadd.f32 %v7849, %v468
      %v8061 = vadd.f32 %v7851, %v469
      %v8062 = vadd.f32 %v7854, %v470
      %v8063 = vadd.f32 %v7856, %v471
      %v8064 = vadd.f32 %v7859, %v472
      %v8065 = vadd.f32 %v7861, %v473
      %v8066 = vadd.f32 %v7864, %v474
      %v8067 = vadd.f32 %v7866, %v475
      %v8068 = vadd.f32 %v7869, %v476
      %v8069 = vadd.f32 %v7871, %v477
      %v8070 = vadd.f32 %v7874, %v478
      %v8071 = vadd.f32 %v7876, %v479
      %v8072 = vadd.f32 %v7879, %v480
      %v8073 = vadd.f32 %v7881, %v481
      %v8074 = vadd.f32 %v7884, %v482
      %v8075 = vadd.f32 %v7886, %v483
      %v8076 = vadd.f32 %v7889, %v484
      %v8077 = vadd.f32 %v7891, %v485
      %v8078 = vadd.f32 %v7894, %v486
      %v8079 = vadd.f32 %v7896, %v487
      %v8080 = vadd.f32 %v7899, %v488
      %v8081 = vadd.f32 %v7901, %v489
      %v8082 = vadd.f32 %v7904, %v490
      %v8083 = vadd.f32 %v7906, %v491
      %v8084 = vadd.f32 %v7909, %v492
      %v8085 = vadd.f32 %v7911, %v493
      %v8086 = vadd.f32 %v7914, %v494
      %v8087 = vadd.f32 %v7916, %v495
      %v8088 = vadd.f32 %v7919, %v496
      %v8089 = vadd.f32 %v7921, %v497
      %v8090 = vadd.f32 %v7924, %v498
      %v8091 = vadd.f32 %v7926, %v499
      %v8092 = vadd.f32 %v7929, %v500
      %v8093 = vadd.f32 %v7931, %v501
      %v8094 = vadd.f32 %v7934, %v502
      %v8095 = vadd.f32 %v7936, %v503
      %v8096 = vadd.f32 %v7939, %v504
      %v8097 = vadd.f32 %v7941, %v505
      %v8098 = vadd.f32 %v7944, %v506
      %v8099 = vadd.f32 %v7946, %v507
      %v8100 = vadd.f32 %v7949, %v508
      %v8101 = vadd.f32 %v7951, %v509
      %v8102 = vadd.f32 %v7954, %v510
      %v8103 = vadd.f32 %v7956, %v511
      %v8104 = vadd.f32 %v7959, %v512
      %v8105 = vadd.f32 %v7961, %v513
      %v8106 = vadd.f32 %v7964, %v514
      %v8107 = vadd.f32 %v7966, %v515
      %v8108 = vadd.f32 %v7969, %v516
      %v8109 = vadd.f32 %v7971, %v517
      %v8110 = vadd.f32 %v7974, %v518
      %v8111 = vadd.f32 %v7976, %v519
      %v8112 = vadd.f32 %v7979, %v520
      %v8113 = vadd.f32 %v7981, %v521
      %v8114 = vadd.f32 %v7984, %v522
      %v8115 = vadd.f32 %v7986, %v523
      %8116 = vst.msk [vmem:[%s393] sm:$0xff] %vm600, %v7988
      %8117 = vst.msk [vmem:[%s393 + $0x8] sm:$0xff] %vm600, %v7989
      %8118 = vst.msk [vmem:[%s393 + $0x10] sm:$0xff] %vm600, %v7990
      %8119 = vst.msk [vmem:[%s393 + $0x18] sm:$0xff] %vm600, %v7991
      %8120 = vst.msk [vmem:[%s393 + $0x20] sm:$0xff] %vm600, %v7992
      %8121 = vst.msk [vmem:[%s393 + $0x28] sm:$0xff] %vm600, %v7993
      %8122 = vst.msk [vmem:[%s393 + $0x30] sm:$0xff] %vm600, %v7994
      %8123 = vst.msk [vmem:[%s393 + $0x38] sm:$0xff] %vm600, %v7995
      %8124 = vst.msk [vmem:[%s393 + $0x40] sm:$0xff] %vm600, %v7996
      %8125 = vst.msk [vmem:[%s393 + $0x48] sm:$0xff] %vm600, %v7997
      %8126 = vst.msk [vmem:[%s393 + $0x50] sm:$0xff] %vm600, %v7998
      %8127 = vst.msk [vmem:[%s393 + $0x58] sm:$0xff] %vm600, %v7999
      %8128 = vst.msk [vmem:[%s393 + $0x60] sm:$0xff] %vm600, %v8000
      %8129 = vst.msk [vmem:[%s393 + $0x68] sm:$0xff] %vm600, %v8001
      %8130 = vst.msk [vmem:[%s393 + $0x70] sm:$0xff] %vm600, %v8002
      %8131 = vst.msk [vmem:[%s393 + $0x78] sm:$0xff] %vm600, %v8003
      %8132 = vst.msk [vmem:[%s393 + $0x80] sm:$0xff] %vm600, %v8004
      %8133 = vst.msk [vmem:[%s393 + $0x88] sm:$0xff] %vm600, %v8005
      %8134 = vst.msk [vmem:[%s393 + $0x90] sm:$0xff] %vm600, %v8006
      %8135 = vst.msk [vmem:[%s393 + $0x98] sm:$0xff] %vm600, %v8007
      %8136 = vst.msk [vmem:[%s393 + $0xa0] sm:$0xff] %vm600, %v8008
      %8137 = vst.msk [vmem:[%s393 + $0xa8] sm:$0xff] %vm600, %v8009
      %8138 = vst.msk [vmem:[%s393 + $0xb0] sm:$0xff] %vm600, %v8010
      %8139 = vst.msk [vmem:[%s393 + $0xb8] sm:$0xff] %vm600, %v8011
      %8140 = vst.msk [vmem:[%s393 + $0xc0] sm:$0xff] %vm600, %v8012
      %8141 = vst.msk [vmem:[%s393 + $0xc8] sm:$0xff] %vm600, %v8013
      %8142 = vst.msk [vmem:[%s393 + $0xd0] sm:$0xff] %vm600, %v8014
      %8143 = vst.msk [vmem:[%s393 + $0xd8] sm:$0xff] %vm600, %v8015
      %8144 = vst.msk [vmem:[%s393 + $0xe0] sm:$0xff] %vm600, %v8016
      %8145 = vst.msk [vmem:[%s393 + $0xe8] sm:$0xff] %vm600, %v8017
      %8146 = vst.msk [vmem:[%s393 + $0xf0] sm:$0xff] %vm600, %v8018
      %8147 = vst.msk [vmem:[%s393 + $0xf8] sm:$0xff] %vm600, %v8019
      %8148 = vst.msk [vmem:[%s393 + $0x100] sm:$0xff] %vm600, %v8020
      %8149 = vst.msk [vmem:[%s393 + $0x108] sm:$0xff] %vm600, %v8021
      %8150 = vst.msk [vmem:[%s393 + $0x110] sm:$0xff] %vm600, %v8022
      %8151 = vst.msk [vmem:[%s393 + $0x118] sm:$0xff] %vm600, %v8023
      %8152 = vst.msk [vmem:[%s393 + $0x120] sm:$0xff] %vm600, %v8024
      %8153 = vst.msk [vmem:[%s393 + $0x128] sm:$0xff] %vm600, %v8025
      %8154 = vst.msk [vmem:[%s393 + $0x130] sm:$0xff] %vm600, %v8026
      %8155 = vst.msk [vmem:[%s393 + $0x138] sm:$0xff] %vm600, %v8027
      %8156 = vst.msk [vmem:[%s393 + $0x140] sm:$0xff] %vm600, %v8028
      %8157 = vst.msk [vmem:[%s393 + $0x148] sm:$0xff] %vm600, %v8029
      %8158 = vst.msk [vmem:[%s393 + $0x150] sm:$0xff] %vm600, %v8030
      %8159 = vst.msk [vmem:[%s393 + $0x158] sm:$0xff] %vm600, %v8031
      %8160 = vst.msk [vmem:[%s393 + $0x160] sm:$0xff] %vm600, %v8032
      %8161 = vst.msk [vmem:[%s393 + $0x168] sm:$0xff] %vm600, %v8033
      %8162 = vst.msk [vmem:[%s393 + $0x170] sm:$0xff] %vm600, %v8034
      %8163 = vst.msk [vmem:[%s393 + $0x178] sm:$0xff] %vm600, %v8035
      %8164 = vst.msk [vmem:[%s393 + $0x180] sm:$0xff] %vm600, %v8036
      %8165 = vst.msk [vmem:[%s393 + $0x188] sm:$0xff] %vm600, %v8037
      %8166 = vst.msk [vmem:[%s393 + $0x190] sm:$0xff] %vm600, %v8038
      %8167 = vst.msk [vmem:[%s393 + $0x198] sm:$0xff] %vm600, %v8039
      %8168 = vst.msk [vmem:[%s393 + $0x1a0] sm:$0xff] %vm600, %v8040
      %8169 = vst.msk [vmem:[%s393 + $0x1a8] sm:$0xff] %vm600, %v8041
      %8170 = vst.msk [vmem:[%s393 + $0x1b0] sm:$0xff] %vm600, %v8042
      %8171 = vst.msk [vmem:[%s393 + $0x1b8] sm:$0xff] %vm600, %v8043
      %8172 = vst.msk [vmem:[%s393 + $0x1c0] sm:$0xff] %vm600, %v8044
      %8173 = vst.msk [vmem:[%s393 + $0x1c8] sm:$0xff] %vm600, %v8045
      %8174 = vst.msk [vmem:[%s393 + $0x1d0] sm:$0xff] %vm600, %v8046
      %8175 = vst.msk [vmem:[%s393 + $0x1d8] sm:$0xff] %vm600, %v8047
      %8176 = vst.msk [vmem:[%s393 + $0x1e0] sm:$0xff] %vm600, %v8048
      %8177 = vst.msk [vmem:[%s393 + $0x1e8] sm:$0xff] %vm600, %v8049
      %8178 = vst.msk [vmem:[%s393 + $0x1f0] sm:$0xff] %vm600, %v8050
      %8179 = vst.msk [vmem:[%s393 + $0x1f8] sm:$0xff] %vm600, %v8051
      %8180 = vst.msk [vmem:[%s393 + $0x200] sm:$0xff] %vm600, %v8052
      %8181 = vst.msk [vmem:[%s393 + $0x208] sm:$0xff] %vm600, %v8053
      %8182 = vst.msk [vmem:[%s393 + $0x210] sm:$0xff] %vm600, %v8054
      %8183 = vst.msk [vmem:[%s393 + $0x218] sm:$0xff] %vm600, %v8055
      %8184 = vst.msk [vmem:[%s393 + $0x220] sm:$0xff] %vm600, %v8056
      %8185 = vst.msk [vmem:[%s393 + $0x228] sm:$0xff] %vm600, %v8057
      %8186 = vst.msk [vmem:[%s393 + $0x230] sm:$0xff] %vm600, %v8058
      %8187 = vst.msk [vmem:[%s393 + $0x238] sm:$0xff] %vm600, %v8059
      %8188 = vst.msk [vmem:[%s393 + $0x240] sm:$0xff] %vm600, %v8060
      %8189 = vst.msk [vmem:[%s393 + $0x248] sm:$0xff] %vm600, %v8061
      %8190 = vst.msk [vmem:[%s393 + $0x250] sm:$0xff] %vm600, %v8062
      %8191 = vst.msk [vmem:[%s393 + $0x258] sm:$0xff] %vm600, %v8063
      %8192 = vst.msk [vmem:[%s393 + $0x260] sm:$0xff] %vm600, %v8064
      %8193 = vst.msk [vmem:[%s393 + $0x268] sm:$0xff] %vm600, %v8065
      %8194 = vst.msk [vmem:[%s393 + $0x270] sm:$0xff] %vm600, %v8066
      %8195 = vst.msk [vmem:[%s393 + $0x278] sm:$0xff] %vm600, %v8067
      %8196 = vst.msk [vmem:[%s393 + $0x280] sm:$0xff] %vm600, %v8068
      %8197 = vst.msk [vmem:[%s393 + $0x288] sm:$0xff] %vm600, %v8069
      %8198 = vst.msk [vmem:[%s393 + $0x290] sm:$0xff] %vm600, %v8070
      %8199 = vst.msk [vmem:[%s393 + $0x298] sm:$0xff] %vm600, %v8071
      %8200 = vst.msk [vmem:[%s393 + $0x2a0] sm:$0xff] %vm600, %v8072
      %8201 = vst.msk [vmem:[%s393 + $0x2a8] sm:$0xff] %vm600, %v8073
      %8202 = vst.msk [vmem:[%s393 + $0x2b0] sm:$0xff] %vm600, %v8074
      %8203 = vst.msk [vmem:[%s393 + $0x2b8] sm:$0xff] %vm600, %v8075
      %8204 = vst.msk [vmem:[%s393 + $0x2c0] sm:$0xff] %vm600, %v8076
      %8205 = vst.msk [vmem:[%s393 + $0x2c8] sm:$0xff] %vm600, %v8077
      %8206 = vst.msk [vmem:[%s393 + $0x2d0] sm:$0xff] %vm600, %v8078
      %8207 = vst.msk [vmem:[%s393 + $0x2d8] sm:$0xff] %vm600, %v8079
      %8208 = vst.msk [vmem:[%s393 + $0x2e0] sm:$0xff] %vm600, %v8080
      %8209 = vst.msk [vmem:[%s393 + $0x2e8] sm:$0xff] %vm600, %v8081
      %8210 = vst.msk [vmem:[%s393 + $0x2f0] sm:$0xff] %vm600, %v8082
      %8211 = vst.msk [vmem:[%s393 + $0x2f8] sm:$0xff] %vm600, %v8083
      %8212 = vst.msk [vmem:[%s393 + $0x300] sm:$0xff] %vm600, %v8084
      %8213 = vst.msk [vmem:[%s393 + $0x308] sm:$0xff] %vm600, %v8085
      %8214 = vst.msk [vmem:[%s393 + $0x310] sm:$0xff] %vm600, %v8086
      %8215 = vst.msk [vmem:[%s393 + $0x318] sm:$0xff] %vm600, %v8087
      %8216 = vst.msk [vmem:[%s393 + $0x320] sm:$0xff] %vm600, %v8088
      %8217 = vst.msk [vmem:[%s393 + $0x328] sm:$0xff] %vm600, %v8089
      %8218 = vst.msk [vmem:[%s393 + $0x330] sm:$0xff] %vm600, %v8090
      %8219 = vst.msk [vmem:[%s393 + $0x338] sm:$0xff] %vm600, %v8091
      %8220 = vst.msk [vmem:[%s393 + $0x340] sm:$0xff] %vm600, %v8092
      %8221 = vst.msk [vmem:[%s393 + $0x348] sm:$0xff] %vm600, %v8093
      %8222 = vst.msk [vmem:[%s393 + $0x350] sm:$0xff] %vm600, %v8094
      %8223 = vst.msk [vmem:[%s393 + $0x358] sm:$0xff] %vm600, %v8095
      %8224 = vst.msk [vmem:[%s393 + $0x360] sm:$0xff] %vm600, %v8096
      %8225 = vst.msk [vmem:[%s393 + $0x368] sm:$0xff] %vm600, %v8097
      %8226 = vst.msk [vmem:[%s393 + $0x370] sm:$0xff] %vm600, %v8098
      %8227 = vst.msk [vmem:[%s393 + $0x378] sm:$0xff] %vm600, %v8099
      %8228 = vst.msk [vmem:[%s393 + $0x380] sm:$0xff] %vm600, %v8100
      %8229 = vst.msk [vmem:[%s393 + $0x388] sm:$0xff] %vm600, %v8101
      %8230 = vst.msk [vmem:[%s393 + $0x390] sm:$0xff] %vm600, %v8102
      %8231 = vst.msk [vmem:[%s393 + $0x398] sm:$0xff] %vm600, %v8103
      %8232 = vst.msk [vmem:[%s393 + $0x3a0] sm:$0xff] %vm600, %v8104
      %8233 = vst.msk [vmem:[%s393 + $0x3a8] sm:$0xff] %vm600, %v8105
      %8234 = vst.msk [vmem:[%s393 + $0x3b0] sm:$0xff] %vm600, %v8106
      %8235 = vst.msk [vmem:[%s393 + $0x3b8] sm:$0xff] %vm600, %v8107
      %8236 = vst.msk [vmem:[%s393 + $0x3c0] sm:$0xff] %vm600, %v8108
      %8237 = vst.msk [vmem:[%s393 + $0x3c8] sm:$0xff] %vm600, %v8109
      %8238 = vst.msk [vmem:[%s393 + $0x3d0] sm:$0xff] %vm600, %v8110
      %8239 = vst.msk [vmem:[%s393 + $0x3d8] sm:$0xff] %vm600, %v8111
      %8240 = vst.msk [vmem:[%s393 + $0x3e0] sm:$0xff] %vm600, %v8112
      %8241 = vst.msk [vmem:[%s393 + $0x3e8] sm:$0xff] %vm600, %v8113
      %8242 = vst.msk [vmem:[%s393 + $0x3f0] sm:$0xff] %vm600, %v8114
      %8243 = vst.msk [vmem:[%s393 + $0x3f8] sm:$0xff] %vm600, %v8115
      %s8244 = smul.u32 4, %s22
      %p8245 = scmp.lt.s32.totalorder %s8244, 7
      %s8246 = scalar_select %p8245, %s8244, 7
      %s8247 = smul.addr %s8246, 32
      %s8248 = smul.addr %s8247, 8
      %s8249 = scalar_lea.vmem %s11, %s8248
      // Predicated region
      $region65: #{tpu_custom_call.1} parent=63 // pred_check
        %p8250 = pneg %p276
      $region66: #{tpu_custom_call.1} parent=63 // pred_check_branch
        %8252 = sbr.rel (%p8250) target = $region68
      $region67: #{tpu_custom_call.1} parent=63 // pred_region
        %s8253 = smul.u32 4, %s22
      $region68: #{tpu_custom_call.1} parent=63 // pred_fallthru
        _
    $region64: #{tpu_custom_call.1} parent=5 // pred_fallthru
      _
    %p8254 = scmp.le.s32.totalorder 2, %s17
    // Predicated region
    $region69: #{tpu_custom_call.1} parent=5 // pred_check
      %p8255 = pneg %p8254
    $region70: #{tpu_custom_call.1} parent=5 // pred_check_branch
      %8257 = sbr.rel (%p8255) target = $region72
    $region71: #{tpu_custom_call.1} parent=5 // pred_region
      %s8258 = ssub.s32 %s17, 2
      // Predicated region
      $region73: #{tpu_custom_call.1} parent=71 // pred_check
        %p8259 = pneg %p282
      $region74: #{tpu_custom_call.1} parent=71 // pred_check_branch
        %8261 = sbr.rel (%p8259) target = $region76
      $region75: #{tpu_custom_call.1} parent=71 // pred_region
        %s8262 = smul.u32 4, %s23
        %p8263 = scmp.lt.s32.totalorder %s8262, 7
        %s8264 = scalar_select %p8263, %s8262, 7
        %s8265 = smul.addr %s8264, 32
        %s8266 = smul.addr %s8265, 8
        %s8267 = scalar_lea.vmem %s11, %s8266
      $region76: #{tpu_custom_call.1} parent=71 // pred_fallthru
        _
    $region72: #{tpu_custom_call.1} parent=5 // pred_fallthru
      _
  $region6: #{tpu_custom_call.1} parent=0 // loop_footer
    %s21 = sadd.s32 1, %s17
  $region7: #{tpu_custom_call.1} parent=0 // loop_footer_branch
    %16 = sbr.rel target = $region3
  $region8: #{tpu_custom_call.1} parent=0 // loop_exit
    _

</llo_original>
